<compile_context>
chip_gen: v7x
topology: tpu7x:2x2x1
jax: 0.10.0
libtpu: 0.0.40
codegen_flags: <defaults>
</compile_context>

<pallas_src>
import functools

import jax
import jax.numpy as jnp
from jax.experimental import pallas as pl
from jax.experimental.pallas import tpu as pltpu


def _vq_kernel(x_ref, waug_ref, w_ref, sse_ref, es_ref, *, n_valid):
    """One tile of flattened inputs against the full codebook.

    x_ref   : (TN, D)     flattened input tile (native dtype)
    waug_ref: (D+1, K)    augmented codebook [2*w ; -||w||^2] (x dtype)
    w_ref   : (D, K)      f32 codebook (exact quantize / SSE path)
    sse_ref : (1, 1)      running sum of ||quantize - x||^2        (resident acc)
    es_ref  : (D+1, K)    rows 0..D-1: flatten.T @ onehot,
                          row D      : onehot column sums          (resident acc)
    """
    c = pl.program_id(0)          # core-split axis ("parallel")
    i = pl.program_id(1)          # reduction axis over tiles ("arbitrary")

    @pl.when(i == 0)
    def _():
        sse_ref[...] = jnp.zeros_like(sse_ref)
        es_ref[...] = jnp.zeros_like(es_ref)

    x = x_ref[...]                                   # (TN, D) native dtype
    tn, d = x.shape
    xf = x.astype(jnp.float32)

    # Augmented input: the ones column folds the -||w_k||^2 bias into the
    # score matmul AND the onehot column-sum into the embed_sum matmul.  The
    # MXU contraction/output dims are badly under-filled at D=16, so the extra
    # row/column is free.
    ones = jnp.ones((tn, 1), dtype=x.dtype)
    x_aug = jnp.concatenate([x, ones], axis=1)       # (TN, D+1)

    # score[r, k] = 2 x_r . w_k - ||w_k||^2 ; argmax_k == nearest codebook
    # entry (the per-row ||x||^2 term is constant across k).  Runs in the
    # input's native dtype -> bf16 MXU on v6e/v7x when x is bf16.
    score = jnp.dot(x_aug, waug_ref[...],
                    preferred_element_type=jnp.float32)      # (TN, K)  MXU

    # Row-validity mask for the zero-padded tail (keeps stats unbiased).
    row_start = (c * pl.num_programs(1) + i) * tn
    row_idx = row_start + jax.lax.broadcasted_iota(jnp.int32, (tn, 1), 0)
    valid = row_idx < n_valid                        # (TN, 1)

    m = jnp.max(score, axis=1, keepdims=True)        # (TN, 1)  single XLU reduce
    # TODO(synk): exact score ties would double-count a row here (strict
    # first-index tie-breaking dropped per perf review; measure-zero for
    # continuous inputs).
    onehot = jnp.where(valid, (score == m).astype(jnp.float32), 0.0)  # (TN, K)

    # Exact SSE: quantize = onehot @ w.T in f32 (K-contraction MXU matmul),
    # then sum((quantize - x)^2).  Padded rows have onehot == 0 and x == 0, so
    # they contribute exactly zero.
    quant = jax.lax.dot_general(
        onehot, w_ref[...],
        dimension_numbers=(((1,), (1,)), ((), ())),
        preferred_element_type=jnp.float32)                  # (TN, D)  MXU
    diff = quant - xf
    sse_ref[...] = sse_ref[...] + jnp.sum(diff * diff)

    # [flatten ; 1].T @ onehot, contracting the row axis of both operands
    # directly (no in-kernel transpose).  Row D of the result is the onehot
    # column sum.
    es_tile = jax.lax.dot_general(
        x_aug.astype(jnp.float32), onehot,
        dimension_numbers=(((0,), (0,)), ((), ())),
        preferred_element_type=jnp.float32)                  # (D+1, K)  MXU
    es_ref[...] = es_ref[...] + es_tile


@functools.partial(jax.jit, static_argnames=("tile_n", "num_cores"))
def vq_reductions(flat, w, *, tile_n=2048, num_cores=1):
    """Run the Pallas kernel over flattened inputs.

    flat : (N, D), w : (D, K).
    Returns (sse, onehot_sum (K,), embed_sum (D, K)).
    num_cores=1 on single-TensorCore chips (v5e/v6e); set 2 on v7x to engage
    the second TensorCore via the leading 'parallel' grid axis.
    """
    N, D = flat.shape
    K = w.shape[1]

    # Augmented codebook hoisted out of the kernel (grid-invariant work):
    # w_aug = [2*w ; -||w||^2], cast to the input dtype so the score matmul
    # stays on the fast (bf16) MXU path when the input is bf16.
    w_f32 = w.astype(jnp.float32)
    w2 = jnp.sum(w_f32 * w_f32, axis=0, keepdims=True)            # (1, K)
    waug = jnp.concatenate([2.0 * w_f32, -w2], axis=0).astype(flat.dtype)

    # Pad N up to a (num_cores * tile_n) multiple; padded rows are masked out
    # inside the kernel, so the reductions stay exact for arbitrary N.
    chunk = tile_n * num_cores
    n_pad = pl.cdiv(N, chunk) * chunk
    if n_pad != N:
        flat = jnp.pad(flat, ((0, n_pad - N), (0, 0)))
    tiles_per_core = n_pad // chunk

    kernel = functools.partial(_vq_kernel, n_valid=N)

    out_shapes = (
        jax.ShapeDtypeStruct((num_cores, 1, 1), jnp.float32),
        jax.ShapeDtypeStruct((num_cores, D + 1, K), jnp.float32),
    )
    sse, es = pl.pallas_call(
        kernel,
        out_shape=out_shapes,
        grid_spec=pltpu.PrefetchScalarGridSpec(
            num_scalar_prefetch=0,
            grid=(num_cores, tiles_per_core),
            in_specs=[
                pl.BlockSpec((tile_n, D),
                             lambda c, i: (c * tiles_per_core + i, 0)),
                # Grid-invariant codebook inputs: single-buffered (they never
                # change block index; halves their VMEM footprint).
                pl.BlockSpec((D + 1, K), lambda c, i: (0, 0),
                             pipeline_mode=pl.Buffered(1)),
                pl.BlockSpec((D, K), lambda c, i: (0, 0),
                             pipeline_mode=pl.Buffered(1)),
            ],
            out_specs=[
                pl.BlockSpec((None, 1, 1), lambda c, i: (c, 0, 0)),
                pl.BlockSpec((None, D + 1, K), lambda c, i: (c, 0, 0)),
            ],
        ),
        compiler_params=pltpu.CompilerParams(
            dimension_semantics=("parallel", "arbitrary"),
            vmem_limit_bytes=48 * 1024 * 1024),
    )(flat, waug, w_f32)

    es = jnp.sum(es, axis=0)                 # (D+1, K)
    return jnp.sum(sse), es[D], es[:D]


def vq_ema_forward(x, state, *, commitment_cost, decay=0.99, eps=1e-5,
                   training=True):
    """Forward pass of VectorQuantizerEMA.

    x     : (..., D) channels-last input
    state : dict with '_w' (D, K), 'embed_cluster_size' (K,), 'embed_avg' (D, K)
    Returns ((loss, perplexity), new_state).  EMA buffer mutation is returned
    functionally as new_state (no in-place PyTorch buffers in JAX).
    """
    D = x.shape[-1]
    w = state["_w"]
    K = w.shape[1]
    flat = x.reshape(-1, D)      # no dtype cast: avoids an extra HBM pass
    N = flat.shape[0]

    sse, onehot_sum, embed_sum = vq_reductions(flat, w)

    e_latent_loss = sse / (N * D)    # mean over all elements of (quantize - x)^2
    loss = commitment_cost * e_latent_loss

    avg_probs = onehot_sum / N
    perplexity = jnp.exp(-jnp.sum(avg_probs * jnp.log(avg_probs + 1e-10)))

    new_state = state
    if training:
        cluster_size = decay * state["embed_cluster_size"] \
            + (1.0 - decay) * onehot_sum
        embed_avg = decay * state["embed_avg"] + (1.0 - decay) * embed_sum
        n = jnp.sum(cluster_size)
        cs = (cluster_size + eps) / (n + K * eps) * n
        w_new = embed_avg / cs[None, :]
        new_state = {
            "_w": w_new,
            "embed_cluster_size": cluster_size,
            "embed_avg": embed_avg,
        }

    return (loss, perplexity), new_state


if __name__ == "__main__":
    dim = 16          # embedding dimension (trailing axis of input)
    n_embed = 128     # codebook size
    commitment_cost = 0.25
    decay = 0.99
    eps = 1e-5

    key = jax.random.PRNGKey(0)
    k_w, k_x = jax.random.split(key)

    # Deterministic parameter init (matches shapes in __init__):
    #   _w ~ randn(dim, n_embed); embed_cluster_size = 0; embed_avg = _w.clone()
    w0 = jax.random.normal(k_w, (dim, n_embed), dtype=jnp.float32)
    state = {
        "_w": w0,
        "embed_cluster_size": jnp.zeros((n_embed,), jnp.float32),
        "embed_avg": w0,
    }

    # Small channels-last input: (B, H, W, D) = (2, 16, 16, 16) -> N = 512 rows
    # (exercises the pad/mask path since 512 < tile_n).
    x = jax.random.normal(k_x, (2, 16, 16, dim), dtype=jnp.float32)

    (loss, perplexity), new_state = vq_ema_forward(
        x, state, commitment_cost=commitment_cost, decay=decay, eps=eps,
        training=True)

    jax.block_until_ready((loss, perplexity, new_state["_w"]))

    # Lightweight sanity check against a pure-JAX reference of the PyTorch path.
    flat = x.reshape(-1, dim)
    dist = (jnp.sum(flat ** 2, 1, keepdims=True) - 2 * flat @ w0
            + jnp.sum(w0 ** 2, 0, keepdims=True))
    ind = jnp.argmax(-dist, axis=1)
    onehot = jax.nn.one_hot(ind, n_embed, dtype=jnp.float32)
    quant = w0.T[ind]
    ref_loss = commitment_cost * jnp.mean((quant - flat) ** 2)
    ref_avg = jnp.mean(onehot, 0)
    ref_perp = jnp.exp(-jnp.sum(ref_avg * jnp.log(ref_avg + 1e-10)))
    ref_cluster = decay * state["embed_cluster_size"] \
        + (1.0 - decay) * jnp.sum(onehot, 0)
    ref_embed_avg = decay * state["embed_avg"] + (1.0 - decay) * (flat.T @ onehot)

    assert jnp.allclose(loss, ref_loss, rtol=1e-4, atol=1e-4), (loss, ref_loss)
    assert jnp.allclose(perplexity, ref_perp, rtol=1e-4, atol=1e-4), \
        (perplexity, ref_perp)
    assert jnp.allclose(new_state["embed_cluster_size"], ref_cluster,
                        rtol=1e-4, atol=1e-4)
    assert jnp.allclose(new_state["embed_avg"], ref_embed_avg,
                        rtol=1e-4, atol=1e-4)

    print("KERNEL_OK")
</pallas_src>

<mosaic_0001>
module attributes {stable_mosaic.version = 11 : i64} {
  func.func @_vq_kernel(%arg0: i32, %arg1: i32, %arg2: memref<2048x16xf32, #tpu.memory_space<vmem>>, %arg3: memref<17x128xf32, #tpu.memory_space<vmem>>, %arg4: memref<16x128xf32, #tpu.memory_space<vmem>>, %arg5: memref<1x1x1xf32, #tpu.memory_space<vmem>>, %arg6: memref<1x17x128xf32, #tpu.memory_space<vmem>>) attributes {dimension_semantics = [#tpu.dimension_semantics<parallel>, #tpu.dimension_semantics<arbitrary>], iteration_bounds = array<i64: 1, 1>, scalar_prefetch = 0 : i64, scratch_operands = 0 : i64, tpu.core_type = #tpu.core_type<tc>, window_params = [{transform_indices = @transform_0, window_bounds = array<i64: 2048, 16>}, {pipeline_mode = #tpu.pipeline_mode<synchronous>, transform_indices = @transform_1, window_bounds = array<i64: 17, 128>}, {pipeline_mode = #tpu.pipeline_mode<synchronous>, transform_indices = @transform_2, window_bounds = array<i64: 16, 128>}, {transform_indices = @transform_3, window_bounds = array<i64: 1, 1, 1>}, {transform_indices = @transform_4, window_bounds = array<i64: 1, 17, 128>}]} {
    %c0_i32 = arith.constant 0 : i32
    %0 = arith.cmpi eq, %arg1, %c0_i32 : i32
    %1 = arith.extui %0 : i1 to i32
    %c0_i32_0 = arith.constant 0 : i32
    %2 = arith.cmpi ne, %1, %c0_i32_0 : i32
    scf.if %2 {
      %cst_24 = arith.constant 0.000000e+00 : f32
      %48 = vector.broadcast %cst_24 : f32 to vector<1x1xf32>
      %c0_25 = arith.constant 0 : index
      %c0_26 = arith.constant 0 : index
      %c0_27 = arith.constant 0 : index
      %49 = vector.load %arg5[%c0_25, %c0_26, %c0_27] : memref<1x1x1xf32, #tpu.memory_space<vmem>>, vector<1x1x1xf32>
      %50 = vector.shape_cast %49 : vector<1x1x1xf32> to vector<1x1xf32>
      %51 = vector.shape_cast %48 : vector<1x1xf32> to vector<1x1x1xf32>
      tpu.vector_store %arg5[%c0_25, %c0_26, %c0_27], %51 {strides = array<i32>} : memref<1x1x1xf32, #tpu.memory_space<vmem>>, vector<1x1x1xf32>,
      %cst_28 = arith.constant 0.000000e+00 : f32
      %52 = vector.broadcast %cst_28 : f32 to vector<17x128xf32>
      %c0_29 = arith.constant 0 : index
      %c0_30 = arith.constant 0 : index
      %c0_31 = arith.constant 0 : index
      %53 = vector.load %arg6[%c0_29, %c0_30, %c0_31] : memref<1x17x128xf32, #tpu.memory_space<vmem>>, vector<1x17x128xf32>
      %54 = vector.shape_cast %53 : vector<1x17x128xf32> to vector<17x128xf32>
      %55 = vector.shape_cast %52 : vector<17x128xf32> to vector<1x17x128xf32>
      tpu.vector_store %arg6[%c0_29, %c0_30, %c0_31], %55 {strides = array<i32>} : memref<1x17x128xf32, #tpu.memory_space<vmem>>, vector<1x17x128xf32>,
    } else {
    }
    %c0 = arith.constant 0 : index
    %c0_1 = arith.constant 0 : index
    %3 = vector.load %arg2[%c0, %c0_1] : memref<2048x16xf32, #tpu.memory_space<vmem>>, vector<2048x16xf32>
    %cst = arith.constant 1.000000e+00 : f32
    %4 = vector.broadcast %cst : f32 to vector<2048x1xf32>
    %5 = tpu.concatenate %3, %4 in 1 : vector<2048x16xf32>, vector<2048x1xf32> -> vector<2048x17xf32>
    %c0_2 = arith.constant 0 : index
    %c0_3 = arith.constant 0 : index
    %6 = vector.load %arg3[%c0_2, %c0_3] : memref<17x128xf32, #tpu.memory_space<vmem>>, vector<17x128xf32>
    %cst_4 = arith.constant dense<0.000000e+00> : vector<2048x128xf32>
    %7 = tpu.matmul %5, %6, %cst_4 {dimension_numbers = #tpu.dot_dimension_numbers<[1], [0], [0], [1], [0, 0, 1, 1], [], []>} : vector<2048x17xf32>, vector<17x128xf32>, vector<2048x128xf32> -> vector<2048x128xf32>
    %c1_i32 = arith.constant 1 : i32
    %8 = arith.muli %arg0, %c1_i32 : i32
    %9 = arith.addi %8, %arg1 : i32
    %c2048_i32 = arith.constant 2048 : i32
    %10 = arith.muli %9, %c2048_i32 : i32
    %11 = tpu.iota {dimensions = array<i32: 0>} : vector<2048x1xi32>
    %12 = vector.broadcast %10 : i32 to vector<2048x1xi32>
    %13 = arith.addi %12, %11 : vector<2048x1xi32>
    %c512_i32 = arith.constant 512 : i32
    %14 = vector.broadcast %c512_i32 : i32 to vector<2048x1xi32>
    %15 = arith.cmpi slt, %13, %14 : vector<2048x1xi32>
    %cst_5 = arith.constant dense<0xFF800000> : vector<2048xf32>
    %16 = vector.multi_reduction <maximumf>, %7, %cst_5 [1] : vector<2048x128xf32> to vector<2048xf32>
    %17 = vector.shape_cast %16 : vector<2048xf32> to vector<2048x1xf32>
    %18 = vector.broadcast %17 : vector<2048x1xf32> to vector<2048x128xf32>
    %19 = arith.cmpf oeq, %7, %18 : vector<2048x128xf32>
    %20 = arith.extui %19 : vector<2048x128xi1> to vector<2048x128xi32>
    %21 = arith.sitofp %20 : vector<2048x128xi32> to vector<2048x128xf32>
    %cst_6 = arith.constant 0.000000e+00 : f32
    %22 = vector.shape_cast %15 : vector<2048x1xi1> to vector<2048x1xi1>
    %23 = vector.broadcast %22 : vector<2048x1xi1> to vector<2048x128xi1>
    %24 = vector.broadcast %cst_6 : f32 to vector<2048x128xf32>
    %25 = arith.select %23, %21, %24 : vector<2048x128xi1>, vector<2048x128xf32>
    %c0_7 = arith.constant 0 : index
    %c0_8 = arith.constant 0 : index
    %26 = vector.load %arg4[%c0_7, %c0_8] : memref<16x128xf32, #tpu.memory_space<vmem>>, vector<16x128xf32>
    %cst_9 = arith.constant dense<0.000000e+00> : vector<2048x16xf32>
    %27 = tpu.matmul %25, %26, %cst_9 {dimension_numbers = #tpu.dot_dimension_numbers<[1], [1], [0], [0], [0, 0, 1, 0], [], []>} : vector<2048x128xf32>, vector<16x128xf32>, vector<2048x16xf32> -> vector<2048x16xf32>
    %28 = arith.subf %27, %3 : vector<2048x16xf32>
    %c0_10 = arith.constant 0 : index
    %c0_11 = arith.constant 0 : index
    %c0_12 = arith.constant 0 : index
    %29 = vector.load %arg5[%c0_10, %c0_11, %c0_12] : memref<1x1x1xf32, #tpu.memory_space<vmem>>, vector<1x1x1xf32>
    %30 = vector.shape_cast %29 : vector<1x1x1xf32> to vector<1x1xf32>
    %31 = arith.mulf %28, %28 : vector<2048x16xf32>
    %32 = vector.shape_cast %31 : vector<2048x16xf32> to vector<1x2048x16xf32>
    %cst_13 = arith.constant dense<0.000000e+00> : vector<1xf32>
    %33 = vector.multi_reduction <add>, %32, %cst_13 [1, 2] : vector<1x2048x16xf32> to vector<1xf32>
    %34 = vector.shape_cast %33 : vector<1xf32> to vector<1x1x1xf32>
    %35 = vector.extract %34[0, 0, 0] : f32 from vector<1x1x1xf32>
    %36 = vector.broadcast %35 : f32 to vector<1x1xf32>
    %37 = arith.addf %30, %36 : vector<1x1xf32>
    %c0_14 = arith.constant 0 : index
    %c0_15 = arith.constant 0 : index
    %c0_16 = arith.constant 0 : index
    %38 = vector.load %arg5[%c0_14, %c0_15, %c0_16] : memref<1x1x1xf32, #tpu.memory_space<vmem>>, vector<1x1x1xf32>
    %39 = vector.shape_cast %38 : vector<1x1x1xf32> to vector<1x1xf32>
    %40 = vector.shape_cast %37 : vector<1x1xf32> to vector<1x1x1xf32>
    tpu.vector_store %arg5[%c0_14, %c0_15, %c0_16], %40 {strides = array<i32>} : memref<1x1x1xf32, #tpu.memory_space<vmem>>, vector<1x1x1xf32>,
    %cst_17 = arith.constant dense<0.000000e+00> : vector<17x128xf32>
    %41 = tpu.matmul %5, %25, %cst_17 {dimension_numbers = #tpu.dot_dimension_numbers<[0], [0], [1], [1], [0, 1, 1, 1], [], []>} : vector<2048x17xf32>, vector<2048x128xf32>, vector<17x128xf32> -> vector<17x128xf32>
    %c0_18 = arith.constant 0 : index
    %c0_19 = arith.constant 0 : index
    %c0_20 = arith.constant 0 : index
    %42 = vector.load %arg6[%c0_18, %c0_19, %c0_20] : memref<1x17x128xf32, #tpu.memory_space<vmem>>, vector<1x17x128xf32>
    %43 = vector.shape_cast %42 : vector<1x17x128xf32> to vector<17x128xf32>
    %44 = arith.addf %43, %41 : vector<17x128xf32>
    %c0_21 = arith.constant 0 : index
    %c0_22 = arith.constant 0 : index
    %c0_23 = arith.constant 0 : index
    %45 = vector.load %arg6[%c0_21, %c0_22, %c0_23] : memref<1x17x128xf32, #tpu.memory_space<vmem>>, vector<1x17x128xf32>
    %46 = vector.shape_cast %45 : vector<1x17x128xf32> to vector<17x128xf32>
    %47 = vector.shape_cast %44 : vector<17x128xf32> to vector<1x17x128xf32>
    tpu.vector_store %arg6[%c0_21, %c0_22, %c0_23], %47 {strides = array<i32>} : memref<1x17x128xf32, #tpu.memory_space<vmem>>, vector<1x17x128xf32>,
    return
  }
  func.func @transform_0(%arg0: i32, %arg1: i32) -> (i32, i32) {
    %c1_i32 = arith.constant 1 : i32
    %0 = arith.muli %arg0, %c1_i32 : i32
    %1 = arith.addi %0, %arg1 : i32
    %c0_i32 = arith.constant 0 : i32
    %c0_i32_0 = arith.constant 0 : i32
    return %1, %c0_i32 : i32, i32
  }
  func.func @transform_1(%arg0: i32, %arg1: i32) -> (i32, i32) {
    %c0_i32 = arith.constant 0 : i32
    %c0_i32_0 = arith.constant 0 : i32
    %c0_i32_1 = arith.constant 0 : i32
    return %c0_i32, %c0_i32_0 : i32, i32
  }
  func.func @transform_2(%arg0: i32, %arg1: i32) -> (i32, i32) {
    %c0_i32 = arith.constant 0 : i32
    %c0_i32_0 = arith.constant 0 : i32
    %c0_i32_1 = arith.constant 0 : i32
    return %c0_i32, %c0_i32_0 : i32, i32
  }
  func.func @transform_3(%arg0: i32, %arg1: i32) -> (i32, i32, i32) {
    %c0_i32 = arith.constant 0 : i32
    %c0_i32_0 = arith.constant 0 : i32
    %c0_i32_1 = arith.constant 0 : i32
    return %arg0, %c0_i32, %c0_i32_0 : i32, i32, i32
  }
  func.func @transform_4(%arg0: i32, %arg1: i32) -> (i32, i32, i32) {
    %c0_i32 = arith.constant 0 : i32
    %c0_i32_0 = arith.constant 0 : i32
    %c0_i32_1 = arith.constant 0 : i32
    return %arg0, %c0_i32, %c0_i32_0 : i32, i32, i32
  }
}

</mosaic_0001>

<llo_original>
// kernel: vq_reductions.1
$region0: #{vq_reductions.1}
  #allocation0 [shape = 'u32[]', space=smem, size = 0x4, offset = 0x4, fixed_abs, tag = 'smem constant byte address 0x4 - core index']
  #allocation1 [shape = 'u32[144,128]{1,0:T(1,128)}', space=vmem, size = 0x12000, scoped, tag = 'internal scratch']
  %s0 = inlined_call_operand.vmem [shape: f32[2048,16], index: 0, kind: input, shape index: {}]
  %s1 = inlined_call_operand.vmem [shape: f32[17,128], index: 1, kind: input, shape index: {}]
  %s2 = inlined_call_operand.vmem [shape: f32[16,128], index: 2, kind: input, shape index: {}]
  %s3 = inlined_call_operand.hbm [shape: f32[1,1,1], index: 3, kind: output, shape index: {0}]
  %s4 = inlined_call_operand.vmem [shape: f32[1,17,128], index: 4, kind: output, shape index: {1}]
  %5 = xla_tuple %s3, %s4
  %s6 = sld [smem:[#allocation0]]
  $region34: #{vq_reductions.1} parent=0
    _
  %s8 = ssub.s32 1, %s6
  %s9 = scalar_select 0, %s8, %s6
  $region1: #{vq_reductions.1} parent=0
    #allocation2 [shape = 'u8[512]{0}', space=vmem, size = 0x400, scoped, tag = 'output window, operand 0, single buffered']
    #allocation3 [shape = 's32[1]{0}', space=sflag, size = 0x4, scoped, tag = 'scoped memory for vq_reductions.1']
    %10 = vsyncpa [#allocation3], 0
    // Predicated region
    $region2: #{vq_reductions.1} parent=1 // pred_check
      _
    $region3: #{vq_reductions.1} parent=1 // pred_check_branch
      %12 = sbr.rel (0) target = $region5
    $region4: #{vq_reductions.1} parent=1 // pred_region
      %s13 = sadd.s32 0, 0
      %s14 = smul.u32 256, %s13
      %p15 = scmp.lt.s32.totalorder %s14, 255
      %s16 = scalar_select %p15, %s14, 255
      %s17 = smul.addr %s16, 8
      %s18 = scalar_lea.vmem %s0, %s17
      %s19 = sadd.s32 0, 0
      %s20 = smul.u32 256, %s19
    $region5: #{vq_reductions.1} parent=1 // pred_fallthru
      _
    // Predicated region
    $region6: #{vq_reductions.1} parent=1 // pred_check
      _
    $region7: #{vq_reductions.1} parent=1 // pred_check_branch
      %22 = sbr.rel (0) target = $region9
    $region8: #{vq_reductions.1} parent=1 // pred_region
      _
    $region9: #{vq_reductions.1} parent=1 // pred_fallthru
      _
    // Predicated region
    $region10: #{vq_reductions.1} parent=1 // pred_check
      _
    $region11: #{vq_reductions.1} parent=1 // pred_check_branch
      %24 = sbr.rel (0) target = $region13
    $region12: #{vq_reductions.1} parent=1 // pred_region
      _
    $region13: #{vq_reductions.1} parent=1 // pred_fallthru
      _
    %s25 = sadd.s32 0, 0
    %s26 = smul.u32 256, %s25
    %p27 = scmp.lt.s32.totalorder %s26, 255
    %s28 = scalar_select %p27, %s26, 255
    %s29 = smul.addr %s28, 8
    %s30 = scalar_lea.vmem %s0, %s29
    %s31 = sadd.s32 0, 0
    %s32 = smul.u32 256, %s31
    %p33 = scmp.lt.s32.totalorder %s32, 255
    %s34 = scalar_select %p33, %s32, 255
    %s35 = smul.addr %s34, 8
    %s36 = scalar_lea.vmem %s0, %s35
    %s37 = sadd.s32 0, 0
    %s38 = smul.u32 256, %s37
    %p39 = scmp.eq.s32.totalorder 0, 0
    // Predicated region
    $region14: #{vq_reductions.1} parent=1 // pred_check
      %p40 = pneg %p39
    $region15: #{vq_reductions.1} parent=1 // pred_check_branch
      %42 = sbr.rel (%p40) target = $region17
    $region16: #{vq_reductions.1} parent=1 // pred_region
      %vm43 = vcmask 0
      %44 = vst.msk [vmem:[#allocation2] sm:$0x1] %vm43, 0.0
      %45 = vst [vmem:[%s4] sm:$0xff] 0.0
      %46 = vst [vmem:[%s4 + $0x8] sm:$0xff] 0.0
      %47 = vst [vmem:[%s4 + $0x10] sm:$0x1] 0.0
    $region17: #{vq_reductions.1} parent=1 // pred_fallthru
      _
    %v48 = vld [vmem:[%s36] sm:$0xff]
    %v49 = vld [vmem:[%s36 + $0x8] sm:$0xff]
    %v50 = vld [vmem:[%s36 + $0x10] sm:$0xff]
    %v51 = vld [vmem:[%s36 + $0x18] sm:$0xff]
    %v52 = vld [vmem:[%s36 + $0x20] sm:$0xff]
    %v53 = vld [vmem:[%s36 + $0x28] sm:$0xff]
    %v54 = vld [vmem:[%s36 + $0x30] sm:$0xff]
    %v55 = vld [vmem:[%s36 + $0x38] sm:$0xff]
    %v56 = vld [vmem:[%s36 + $0x40] sm:$0xff]
    %v57 = vld [vmem:[%s36 + $0x48] sm:$0xff]
    %v58 = vld [vmem:[%s36 + $0x50] sm:$0xff]
    %v59 = vld [vmem:[%s36 + $0x58] sm:$0xff]
    %v60 = vld [vmem:[%s36 + $0x60] sm:$0xff]
    %v61 = vld [vmem:[%s36 + $0x68] sm:$0xff]
    %v62 = vld [vmem:[%s36 + $0x70] sm:$0xff]
    %v63 = vld [vmem:[%s36 + $0x78] sm:$0xff]
    %v64 = vld [vmem:[%s36 + $0x80] sm:$0xff]
    %v65 = vld [vmem:[%s36 + $0x88] sm:$0xff]
    %v66 = vld [vmem:[%s36 + $0x90] sm:$0xff]
    %v67 = vld [vmem:[%s36 + $0x98] sm:$0xff]
    %v68 = vld [vmem:[%s36 + $0xa0] sm:$0xff]
    %v69 = vld [vmem:[%s36 + $0xa8] sm:$0xff]
    %v70 = vld [vmem:[%s36 + $0xb0] sm:$0xff]
    %v71 = vld [vmem:[%s36 + $0xb8] sm:$0xff]
    %v72 = vld [vmem:[%s36 + $0xc0] sm:$0xff]
    %v73 = vld [vmem:[%s36 + $0xc8] sm:$0xff]
    %v74 = vld [vmem:[%s36 + $0xd0] sm:$0xff]
    %v75 = vld [vmem:[%s36 + $0xd8] sm:$0xff]
    %v76 = vld [vmem:[%s36 + $0xe0] sm:$0xff]
    %v77 = vld [vmem:[%s36 + $0xe8] sm:$0xff]
    %v78 = vld [vmem:[%s36 + $0xf0] sm:$0xff]
    %v79 = vld [vmem:[%s36 + $0xf8] sm:$0xff]
    %v80 = vld [vmem:[%s36 + $0x100] sm:$0xff]
    %v81 = vld [vmem:[%s36 + $0x108] sm:$0xff]
    %v82 = vld [vmem:[%s36 + $0x110] sm:$0xff]
    %v83 = vld [vmem:[%s36 + $0x118] sm:$0xff]
    %v84 = vld [vmem:[%s36 + $0x120] sm:$0xff]
    %v85 = vld [vmem:[%s36 + $0x128] sm:$0xff]
    %v86 = vld [vmem:[%s36 + $0x130] sm:$0xff]
    %v87 = vld [vmem:[%s36 + $0x138] sm:$0xff]
    %v88 = vld [vmem:[%s36 + $0x140] sm:$0xff]
    %v89 = vld [vmem:[%s36 + $0x148] sm:$0xff]
    %v90 = vld [vmem:[%s36 + $0x150] sm:$0xff]
    %v91 = vld [vmem:[%s36 + $0x158] sm:$0xff]
    %v92 = vld [vmem:[%s36 + $0x160] sm:$0xff]
    %v93 = vld [vmem:[%s36 + $0x168] sm:$0xff]
    %v94 = vld [vmem:[%s36 + $0x170] sm:$0xff]
    %v95 = vld [vmem:[%s36 + $0x178] sm:$0xff]
    %v96 = vld [vmem:[%s36 + $0x180] sm:$0xff]
    %v97 = vld [vmem:[%s36 + $0x188] sm:$0xff]
    %v98 = vld [vmem:[%s36 + $0x190] sm:$0xff]
    %v99 = vld [vmem:[%s36 + $0x198] sm:$0xff]
    %v100 = vld [vmem:[%s36 + $0x1a0] sm:$0xff]
    %v101 = vld [vmem:[%s36 + $0x1a8] sm:$0xff]
    %v102 = vld [vmem:[%s36 + $0x1b0] sm:$0xff]
    %v103 = vld [vmem:[%s36 + $0x1b8] sm:$0xff]
    %v104 = vld [vmem:[%s36 + $0x1c0] sm:$0xff]
    %v105 = vld [vmem:[%s36 + $0x1c8] sm:$0xff]
    %v106 = vld [vmem:[%s36 + $0x1d0] sm:$0xff]
    %v107 = vld [vmem:[%s36 + $0x1d8] sm:$0xff]
    %v108 = vld [vmem:[%s36 + $0x1e0] sm:$0xff]
    %v109 = vld [vmem:[%s36 + $0x1e8] sm:$0xff]
    %v110 = vld [vmem:[%s36 + $0x1f0] sm:$0xff]
    %v111 = vld [vmem:[%s36 + $0x1f8] sm:$0xff]
    %v112 = vld [vmem:[%s36 + $0x200] sm:$0xff]
    %v113 = vld [vmem:[%s36 + $0x208] sm:$0xff]
    %v114 = vld [vmem:[%s36 + $0x210] sm:$0xff]
    %v115 = vld [vmem:[%s36 + $0x218] sm:$0xff]
    %v116 = vld [vmem:[%s36 + $0x220] sm:$0xff]
    %v117 = vld [vmem:[%s36 + $0x228] sm:$0xff]
    %v118 = vld [vmem:[%s36 + $0x230] sm:$0xff]
    %v119 = vld [vmem:[%s36 + $0x238] sm:$0xff]
    %v120 = vld [vmem:[%s36 + $0x240] sm:$0xff]
    %v121 = vld [vmem:[%s36 + $0x248] sm:$0xff]
    %v122 = vld [vmem:[%s36 + $0x250] sm:$0xff]
    %v123 = vld [vmem:[%s36 + $0x258] sm:$0xff]
    %v124 = vld [vmem:[%s36 + $0x260] sm:$0xff]
    %v125 = vld [vmem:[%s36 + $0x268] sm:$0xff]
    %v126 = vld [vmem:[%s36 + $0x270] sm:$0xff]
    %v127 = vld [vmem:[%s36 + $0x278] sm:$0xff]
    %v128 = vld [vmem:[%s36 + $0x280] sm:$0xff]
    %v129 = vld [vmem:[%s36 + $0x288] sm:$0xff]
    %v130 = vld [vmem:[%s36 + $0x290] sm:$0xff]
    %v131 = vld [vmem:[%s36 + $0x298] sm:$0xff]
    %v132 = vld [vmem:[%s36 + $0x2a0] sm:$0xff]
    %v133 = vld [vmem:[%s36 + $0x2a8] sm:$0xff]
    %v134 = vld [vmem:[%s36 + $0x2b0] sm:$0xff]
    %v135 = vld [vmem:[%s36 + $0x2b8] sm:$0xff]
    %v136 = vld [vmem:[%s36 + $0x2c0] sm:$0xff]
    %v137 = vld [vmem:[%s36 + $0x2c8] sm:$0xff]
    %v138 = vld [vmem:[%s36 + $0x2d0] sm:$0xff]
    %v139 = vld [vmem:[%s36 + $0x2d8] sm:$0xff]
    %v140 = vld [vmem:[%s36 + $0x2e0] sm:$0xff]
    %v141 = vld [vmem:[%s36 + $0x2e8] sm:$0xff]
    %v142 = vld [vmem:[%s36 + $0x2f0] sm:$0xff]
    %v143 = vld [vmem:[%s36 + $0x2f8] sm:$0xff]
    %v144 = vld [vmem:[%s36 + $0x300] sm:$0xff]
    %v145 = vld [vmem:[%s36 + $0x308] sm:$0xff]
    %v146 = vld [vmem:[%s36 + $0x310] sm:$0xff]
    %v147 = vld [vmem:[%s36 + $0x318] sm:$0xff]
    %v148 = vld [vmem:[%s36 + $0x320] sm:$0xff]
    %v149 = vld [vmem:[%s36 + $0x328] sm:$0xff]
    %v150 = vld [vmem:[%s36 + $0x330] sm:$0xff]
    %v151 = vld [vmem:[%s36 + $0x338] sm:$0xff]
    %v152 = vld [vmem:[%s36 + $0x340] sm:$0xff]
    %v153 = vld [vmem:[%s36 + $0x348] sm:$0xff]
    %v154 = vld [vmem:[%s36 + $0x350] sm:$0xff]
    %v155 = vld [vmem:[%s36 + $0x358] sm:$0xff]
    %v156 = vld [vmem:[%s36 + $0x360] sm:$0xff]
    %v157 = vld [vmem:[%s36 + $0x368] sm:$0xff]
    %v158 = vld [vmem:[%s36 + $0x370] sm:$0xff]
    %v159 = vld [vmem:[%s36 + $0x378] sm:$0xff]
    %v160 = vld [vmem:[%s36 + $0x380] sm:$0xff]
    %v161 = vld [vmem:[%s36 + $0x388] sm:$0xff]
    %v162 = vld [vmem:[%s36 + $0x390] sm:$0xff]
    %v163 = vld [vmem:[%s36 + $0x398] sm:$0xff]
    %v164 = vld [vmem:[%s36 + $0x3a0] sm:$0xff]
    %v165 = vld [vmem:[%s36 + $0x3a8] sm:$0xff]
    %v166 = vld [vmem:[%s36 + $0x3b0] sm:$0xff]
    %v167 = vld [vmem:[%s36 + $0x3b8] sm:$0xff]
    %v168 = vld [vmem:[%s36 + $0x3c0] sm:$0xff]
    %v169 = vld [vmem:[%s36 + $0x3c8] sm:$0xff]
    %v170 = vld [vmem:[%s36 + $0x3d0] sm:$0xff]
    %v171 = vld [vmem:[%s36 + $0x3d8] sm:$0xff]
    %v172 = vld [vmem:[%s36 + $0x3e0] sm:$0xff]
    %v173 = vld [vmem:[%s36 + $0x3e8] sm:$0xff]
    %v174 = vld [vmem:[%s36 + $0x3f0] sm:$0xff]
    %v175 = vld [vmem:[%s36 + $0x3f8] sm:$0xff]
    %v176 = vld [vmem:[%s36 + $0x400] sm:$0xff]
    %v177 = vld [vmem:[%s36 + $0x408] sm:$0xff]
    %v178 = vld [vmem:[%s36 + $0x410] sm:$0xff]
    %v179 = vld [vmem:[%s36 + $0x418] sm:$0xff]
    %v180 = vld [vmem:[%s36 + $0x420] sm:$0xff]
    %v181 = vld [vmem:[%s36 + $0x428] sm:$0xff]
    %v182 = vld [vmem:[%s36 + $0x430] sm:$0xff]
    %v183 = vld [vmem:[%s36 + $0x438] sm:$0xff]
    %v184 = vld [vmem:[%s36 + $0x440] sm:$0xff]
    %v185 = vld [vmem:[%s36 + $0x448] sm:$0xff]
    %v186 = vld [vmem:[%s36 + $0x450] sm:$0xff]
    %v187 = vld [vmem:[%s36 + $0x458] sm:$0xff]
    %v188 = vld [vmem:[%s36 + $0x460] sm:$0xff]
    %v189 = vld [vmem:[%s36 + $0x468] sm:$0xff]
    %v190 = vld [vmem:[%s36 + $0x470] sm:$0xff]
    %v191 = vld [vmem:[%s36 + $0x478] sm:$0xff]
    %v192 = vld [vmem:[%s36 + $0x480] sm:$0xff]
    %v193 = vld [vmem:[%s36 + $0x488] sm:$0xff]
    %v194 = vld [vmem:[%s36 + $0x490] sm:$0xff]
    %v195 = vld [vmem:[%s36 + $0x498] sm:$0xff]
    %v196 = vld [vmem:[%s36 + $0x4a0] sm:$0xff]
    %v197 = vld [vmem:[%s36 + $0x4a8] sm:$0xff]
    %v198 = vld [vmem:[%s36 + $0x4b0] sm:$0xff]
    %v199 = vld [vmem:[%s36 + $0x4b8] sm:$0xff]
    %v200 = vld [vmem:[%s36 + $0x4c0] sm:$0xff]
    %v201 = vld [vmem:[%s36 + $0x4c8] sm:$0xff]
    %v202 = vld [vmem:[%s36 + $0x4d0] sm:$0xff]
    %v203 = vld [vmem:[%s36 + $0x4d8] sm:$0xff]
    %v204 = vld [vmem:[%s36 + $0x4e0] sm:$0xff]
    %v205 = vld [vmem:[%s36 + $0x4e8] sm:$0xff]
    %v206 = vld [vmem:[%s36 + $0x4f0] sm:$0xff]
    %v207 = vld [vmem:[%s36 + $0x4f8] sm:$0xff]
    %v208 = vld [vmem:[%s36 + $0x500] sm:$0xff]
    %v209 = vld [vmem:[%s36 + $0x508] sm:$0xff]
    %v210 = vld [vmem:[%s36 + $0x510] sm:$0xff]
    %v211 = vld [vmem:[%s36 + $0x518] sm:$0xff]
    %v212 = vld [vmem:[%s36 + $0x520] sm:$0xff]
    %v213 = vld [vmem:[%s36 + $0x528] sm:$0xff]
    %v214 = vld [vmem:[%s36 + $0x530] sm:$0xff]
    %v215 = vld [vmem:[%s36 + $0x538] sm:$0xff]
    %v216 = vld [vmem:[%s36 + $0x540] sm:$0xff]
    %v217 = vld [vmem:[%s36 + $0x548] sm:$0xff]
    %v218 = vld [vmem:[%s36 + $0x550] sm:$0xff]
    %v219 = vld [vmem:[%s36 + $0x558] sm:$0xff]
    %v220 = vld [vmem:[%s36 + $0x560] sm:$0xff]
    %v221 = vld [vmem:[%s36 + $0x568] sm:$0xff]
    %v222 = vld [vmem:[%s36 + $0x570] sm:$0xff]
    %v223 = vld [vmem:[%s36 + $0x578] sm:$0xff]
    %v224 = vld [vmem:[%s36 + $0x580] sm:$0xff]
    %v225 = vld [vmem:[%s36 + $0x588] sm:$0xff]
    %v226 = vld [vmem:[%s36 + $0x590] sm:$0xff]
    %v227 = vld [vmem:[%s36 + $0x598] sm:$0xff]
    %v228 = vld [vmem:[%s36 + $0x5a0] sm:$0xff]
    %v229 = vld [vmem:[%s36 + $0x5a8] sm:$0xff]
    %v230 = vld [vmem:[%s36 + $0x5b0] sm:$0xff]
    %v231 = vld [vmem:[%s36 + $0x5b8] sm:$0xff]
    %v232 = vld [vmem:[%s36 + $0x5c0] sm:$0xff]
    %v233 = vld [vmem:[%s36 + $0x5c8] sm:$0xff]
    %v234 = vld [vmem:[%s36 + $0x5d0] sm:$0xff]
    %v235 = vld [vmem:[%s36 + $0x5d8] sm:$0xff]
    %v236 = vld [vmem:[%s36 + $0x5e0] sm:$0xff]
    %v237 = vld [vmem:[%s36 + $0x5e8] sm:$0xff]
    %v238 = vld [vmem:[%s36 + $0x5f0] sm:$0xff]
    %v239 = vld [vmem:[%s36 + $0x5f8] sm:$0xff]
    %v240 = vld [vmem:[%s36 + $0x600] sm:$0xff]
    %v241 = vld [vmem:[%s36 + $0x608] sm:$0xff]
    %v242 = vld [vmem:[%s36 + $0x610] sm:$0xff]
    %v243 = vld [vmem:[%s36 + $0x618] sm:$0xff]
    %v244 = vld [vmem:[%s36 + $0x620] sm:$0xff]
    %v245 = vld [vmem:[%s36 + $0x628] sm:$0xff]
    %v246 = vld [vmem:[%s36 + $0x630] sm:$0xff]
    %v247 = vld [vmem:[%s36 + $0x638] sm:$0xff]
    %v248 = vld [vmem:[%s36 + $0x640] sm:$0xff]
    %v249 = vld [vmem:[%s36 + $0x648] sm:$0xff]
    %v250 = vld [vmem:[%s36 + $0x650] sm:$0xff]
    %v251 = vld [vmem:[%s36 + $0x658] sm:$0xff]
    %v252 = vld [vmem:[%s36 + $0x660] sm:$0xff]
    %v253 = vld [vmem:[%s36 + $0x668] sm:$0xff]
    %v254 = vld [vmem:[%s36 + $0x670] sm:$0xff]
    %v255 = vld [vmem:[%s36 + $0x678] sm:$0xff]
    %v256 = vld [vmem:[%s36 + $0x680] sm:$0xff]
    %v257 = vld [vmem:[%s36 + $0x688] sm:$0xff]
    %v258 = vld [vmem:[%s36 + $0x690] sm:$0xff]
    %v259 = vld [vmem:[%s36 + $0x698] sm:$0xff]
    %v260 = vld [vmem:[%s36 + $0x6a0] sm:$0xff]
    %v261 = vld [vmem:[%s36 + $0x6a8] sm:$0xff]
    %v262 = vld [vmem:[%s36 + $0x6b0] sm:$0xff]
    %v263 = vld [vmem:[%s36 + $0x6b8] sm:$0xff]
    %v264 = vld [vmem:[%s36 + $0x6c0] sm:$0xff]
    %v265 = vld [vmem:[%s36 + $0x6c8] sm:$0xff]
    %v266 = vld [vmem:[%s36 + $0x6d0] sm:$0xff]
    %v267 = vld [vmem:[%s36 + $0x6d8] sm:$0xff]
    %v268 = vld [vmem:[%s36 + $0x6e0] sm:$0xff]
    %v269 = vld [vmem:[%s36 + $0x6e8] sm:$0xff]
    %v270 = vld [vmem:[%s36 + $0x6f0] sm:$0xff]
    %v271 = vld [vmem:[%s36 + $0x6f8] sm:$0xff]
    %v272 = vld [vmem:[%s36 + $0x700] sm:$0xff]
    %v273 = vld [vmem:[%s36 + $0x708] sm:$0xff]
    %v274 = vld [vmem:[%s36 + $0x710] sm:$0xff]
    %v275 = vld [vmem:[%s36 + $0x718] sm:$0xff]
    %v276 = vld [vmem:[%s36 + $0x720] sm:$0xff]
    %v277 = vld [vmem:[%s36 + $0x728] sm:$0xff]
    %v278 = vld [vmem:[%s36 + $0x730] sm:$0xff]
    %v279 = vld [vmem:[%s36 + $0x738] sm:$0xff]
    %v280 = vld [vmem:[%s36 + $0x740] sm:$0xff]
    %v281 = vld [vmem:[%s36 + $0x748] sm:$0xff]
    %v282 = vld [vmem:[%s36 + $0x750] sm:$0xff]
    %v283 = vld [vmem:[%s36 + $0x758] sm:$0xff]
    %v284 = vld [vmem:[%s36 + $0x760] sm:$0xff]
    %v285 = vld [vmem:[%s36 + $0x768] sm:$0xff]
    %v286 = vld [vmem:[%s36 + $0x770] sm:$0xff]
    %v287 = vld [vmem:[%s36 + $0x778] sm:$0xff]
    %v288 = vld [vmem:[%s36 + $0x780] sm:$0xff]
    %v289 = vld [vmem:[%s36 + $0x788] sm:$0xff]
    %v290 = vld [vmem:[%s36 + $0x790] sm:$0xff]
    %v291 = vld [vmem:[%s36 + $0x798] sm:$0xff]
    %v292 = vld [vmem:[%s36 + $0x7a0] sm:$0xff]
    %v293 = vld [vmem:[%s36 + $0x7a8] sm:$0xff]
    %v294 = vld [vmem:[%s36 + $0x7b0] sm:$0xff]
    %v295 = vld [vmem:[%s36 + $0x7b8] sm:$0xff]
    %v296 = vld [vmem:[%s36 + $0x7c0] sm:$0xff]
    %v297 = vld [vmem:[%s36 + $0x7c8] sm:$0xff]
    %v298 = vld [vmem:[%s36 + $0x7d0] sm:$0xff]
    %v299 = vld [vmem:[%s36 + $0x7d8] sm:$0xff]
    %v300 = vld [vmem:[%s36 + $0x7e0] sm:$0xff]
    %v301 = vld [vmem:[%s36 + $0x7e8] sm:$0xff]
    %v302 = vld [vmem:[%s36 + $0x7f0] sm:$0xff]
    %v303 = vld [vmem:[%s36 + $0x7f8] sm:$0xff]
    %vm304 = vcmask 130048
    %v305 = vsel %vm304, %v48, 1.0
    %v306 = vsel %vm304, %v49, 1.0
    %v307 = vsel %vm304, %v50, 1.0
    %v308 = vsel %vm304, %v51, 1.0
    %v309 = vsel %vm304, %v52, 1.0
    %v310 = vsel %vm304, %v53, 1.0
    %v311 = vsel %vm304, %v54, 1.0
    %v312 = vsel %vm304, %v55, 1.0
    %v313 = vsel %vm304, %v56, 1.0
    %v314 = vsel %vm304, %v57, 1.0
    %v315 = vsel %vm304, %v58, 1.0
    %v316 = vsel %vm304, %v59, 1.0
    %v317 = vsel %vm304, %v60, 1.0
    %v318 = vsel %vm304, %v61, 1.0
    %v319 = vsel %vm304, %v62, 1.0
    %v320 = vsel %vm304, %v63, 1.0
    %v321 = vsel %vm304, %v64, 1.0
    %v322 = vsel %vm304, %v65, 1.0
    %v323 = vsel %vm304, %v66, 1.0
    %v324 = vsel %vm304, %v67, 1.0
    %v325 = vsel %vm304, %v68, 1.0
    %v326 = vsel %vm304, %v69, 1.0
    %v327 = vsel %vm304, %v70, 1.0
    %v328 = vsel %vm304, %v71, 1.0
    %v329 = vsel %vm304, %v72, 1.0
    %v330 = vsel %vm304, %v73, 1.0
    %v331 = vsel %vm304, %v74, 1.0
    %v332 = vsel %vm304, %v75, 1.0
    %v333 = vsel %vm304, %v76, 1.0
    %v334 = vsel %vm304, %v77, 1.0
    %v335 = vsel %vm304, %v78, 1.0
    %v336 = vsel %vm304, %v79, 1.0
    %v337 = vsel %vm304, %v80, 1.0
    %v338 = vsel %vm304, %v81, 1.0
    %v339 = vsel %vm304, %v82, 1.0
    %v340 = vsel %vm304, %v83, 1.0
    %v341 = vsel %vm304, %v84, 1.0
    %v342 = vsel %vm304, %v85, 1.0
    %v343 = vsel %vm304, %v86, 1.0
    %v344 = vsel %vm304, %v87, 1.0
    %v345 = vsel %vm304, %v88, 1.0
    %v346 = vsel %vm304, %v89, 1.0
    %v347 = vsel %vm304, %v90, 1.0
    %v348 = vsel %vm304, %v91, 1.0
    %v349 = vsel %vm304, %v92, 1.0
    %v350 = vsel %vm304, %v93, 1.0
    %v351 = vsel %vm304, %v94, 1.0
    %v352 = vsel %vm304, %v95, 1.0
    %v353 = vsel %vm304, %v96, 1.0
    %v354 = vsel %vm304, %v97, 1.0
    %v355 = vsel %vm304, %v98, 1.0
    %v356 = vsel %vm304, %v99, 1.0
    %v357 = vsel %vm304, %v100, 1.0
    %v358 = vsel %vm304, %v101, 1.0
    %v359 = vsel %vm304, %v102, 1.0
    %v360 = vsel %vm304, %v103, 1.0
    %v361 = vsel %vm304, %v104, 1.0
    %v362 = vsel %vm304, %v105, 1.0
    %v363 = vsel %vm304, %v106, 1.0
    %v364 = vsel %vm304, %v107, 1.0
    %v365 = vsel %vm304, %v108, 1.0
    %v366 = vsel %vm304, %v109, 1.0
    %v367 = vsel %vm304, %v110, 1.0
    %v368 = vsel %vm304, %v111, 1.0
    %v369 = vsel %vm304, %v112, 1.0
    %v370 = vsel %vm304, %v113, 1.0
    %v371 = vsel %vm304, %v114, 1.0
    %v372 = vsel %vm304, %v115, 1.0
    %v373 = vsel %vm304, %v116, 1.0
    %v374 = vsel %vm304, %v117, 1.0
    %v375 = vsel %vm304, %v118, 1.0
    %v376 = vsel %vm304, %v119, 1.0
    %v377 = vsel %vm304, %v120, 1.0
    %v378 = vsel %vm304, %v121, 1.0
    %v379 = vsel %vm304, %v122, 1.0
    %v380 = vsel %vm304, %v123, 1.0
    %v381 = vsel %vm304, %v124, 1.0
    %v382 = vsel %vm304, %v125, 1.0
    %v383 = vsel %vm304, %v126, 1.0
    %v384 = vsel %vm304, %v127, 1.0
    %v385 = vsel %vm304, %v128, 1.0
    %v386 = vsel %vm304, %v129, 1.0
    %v387 = vsel %vm304, %v130, 1.0
    %v388 = vsel %vm304, %v131, 1.0
    %v389 = vsel %vm304, %v132, 1.0
    %v390 = vsel %vm304, %v133, 1.0
    %v391 = vsel %vm304, %v134, 1.0
    %v392 = vsel %vm304, %v135, 1.0
    %v393 = vsel %vm304, %v136, 1.0
    %v394 = vsel %vm304, %v137, 1.0
    %v395 = vsel %vm304, %v138, 1.0
    %v396 = vsel %vm304, %v139, 1.0
    %v397 = vsel %vm304, %v140, 1.0
    %v398 = vsel %vm304, %v141, 1.0
    %v399 = vsel %vm304, %v142, 1.0
    %v400 = vsel %vm304, %v143, 1.0
    %v401 = vsel %vm304, %v144, 1.0
    %v402 = vsel %vm304, %v145, 1.0
    %v403 = vsel %vm304, %v146, 1.0
    %v404 = vsel %vm304, %v147, 1.0
    %v405 = vsel %vm304, %v148, 1.0
    %v406 = vsel %vm304, %v149, 1.0
    %v407 = vsel %vm304, %v150, 1.0
    %v408 = vsel %vm304, %v151, 1.0
    %v409 = vsel %vm304, %v152, 1.0
    %v410 = vsel %vm304, %v153, 1.0
    %v411 = vsel %vm304, %v154, 1.0
    %v412 = vsel %vm304, %v155, 1.0
    %v413 = vsel %vm304, %v156, 1.0
    %v414 = vsel %vm304, %v157, 1.0
    %v415 = vsel %vm304, %v158, 1.0
    %v416 = vsel %vm304, %v159, 1.0
    %v417 = vsel %vm304, %v160, 1.0
    %v418 = vsel %vm304, %v161, 1.0
    %v419 = vsel %vm304, %v162, 1.0
    %v420 = vsel %vm304, %v163, 1.0
    %v421 = vsel %vm304, %v164, 1.0
    %v422 = vsel %vm304, %v165, 1.0
    %v423 = vsel %vm304, %v166, 1.0
    %v424 = vsel %vm304, %v167, 1.0
    %v425 = vsel %vm304, %v168, 1.0
    %v426 = vsel %vm304, %v169, 1.0
    %v427 = vsel %vm304, %v170, 1.0
    %v428 = vsel %vm304, %v171, 1.0
    %v429 = vsel %vm304, %v172, 1.0
    %v430 = vsel %vm304, %v173, 1.0
    %v431 = vsel %vm304, %v174, 1.0
    %v432 = vsel %vm304, %v175, 1.0
    %v433 = vsel %vm304, %v176, 1.0
    %v434 = vsel %vm304, %v177, 1.0
    %v435 = vsel %vm304, %v178, 1.0
    %v436 = vsel %vm304, %v179, 1.0
    %v437 = vsel %vm304, %v180, 1.0
    %v438 = vsel %vm304, %v181, 1.0
    %v439 = vsel %vm304, %v182, 1.0
    %v440 = vsel %vm304, %v183, 1.0
    %v441 = vsel %vm304, %v184, 1.0
    %v442 = vsel %vm304, %v185, 1.0
    %v443 = vsel %vm304, %v186, 1.0
    %v444 = vsel %vm304, %v187, 1.0
    %v445 = vsel %vm304, %v188, 1.0
    %v446 = vsel %vm304, %v189, 1.0
    %v447 = vsel %vm304, %v190, 1.0
    %v448 = vsel %vm304, %v191, 1.0
    %v449 = vsel %vm304, %v192, 1.0
    %v450 = vsel %vm304, %v193, 1.0
    %v451 = vsel %vm304, %v194, 1.0
    %v452 = vsel %vm304, %v195, 1.0
    %v453 = vsel %vm304, %v196, 1.0
    %v454 = vsel %vm304, %v197, 1.0
    %v455 = vsel %vm304, %v198, 1.0
    %v456 = vsel %vm304, %v199, 1.0
    %v457 = vsel %vm304, %v200, 1.0
    %v458 = vsel %vm304, %v201, 1.0
    %v459 = vsel %vm304, %v202, 1.0
    %v460 = vsel %vm304, %v203, 1.0
    %v461 = vsel %vm304, %v204, 1.0
    %v462 = vsel %vm304, %v205, 1.0
    %v463 = vsel %vm304, %v206, 1.0
    %v464 = vsel %vm304, %v207, 1.0
    %v465 = vsel %vm304, %v208, 1.0
    %v466 = vsel %vm304, %v209, 1.0
    %v467 = vsel %vm304, %v210, 1.0
    %v468 = vsel %vm304, %v211, 1.0
    %v469 = vsel %vm304, %v212, 1.0
    %v470 = vsel %vm304, %v213, 1.0
    %v471 = vsel %vm304, %v214, 1.0
    %v472 = vsel %vm304, %v215, 1.0
    %v473 = vsel %vm304, %v216, 1.0
    %v474 = vsel %vm304, %v217, 1.0
    %v475 = vsel %vm304, %v218, 1.0
    %v476 = vsel %vm304, %v219, 1.0
    %v477 = vsel %vm304, %v220, 1.0
    %v478 = vsel %vm304, %v221, 1.0
    %v479 = vsel %vm304, %v222, 1.0
    %v480 = vsel %vm304, %v223, 1.0
    %v481 = vsel %vm304, %v224, 1.0
    %v482 = vsel %vm304, %v225, 1.0
    %v483 = vsel %vm304, %v226, 1.0
    %v484 = vsel %vm304, %v227, 1.0
    %v485 = vsel %vm304, %v228, 1.0
    %v486 = vsel %vm304, %v229, 1.0
    %v487 = vsel %vm304, %v230, 1.0
    %v488 = vsel %vm304, %v231, 1.0
    %v489 = vsel %vm304, %v232, 1.0
    %v490 = vsel %vm304, %v233, 1.0
    %v491 = vsel %vm304, %v234, 1.0
    %v492 = vsel %vm304, %v235, 1.0
    %v493 = vsel %vm304, %v236, 1.0
    %v494 = vsel %vm304, %v237, 1.0
    %v495 = vsel %vm304, %v238, 1.0
    %v496 = vsel %vm304, %v239, 1.0
    %v497 = vsel %vm304, %v240, 1.0
    %v498 = vsel %vm304, %v241, 1.0
    %v499 = vsel %vm304, %v242, 1.0
    %v500 = vsel %vm304, %v243, 1.0
    %v501 = vsel %vm304, %v244, 1.0
    %v502 = vsel %vm304, %v245, 1.0
    %v503 = vsel %vm304, %v246, 1.0
    %v504 = vsel %vm304, %v247, 1.0
    %v505 = vsel %vm304, %v248, 1.0
    %v506 = vsel %vm304, %v249, 1.0
    %v507 = vsel %vm304, %v250, 1.0
    %v508 = vsel %vm304, %v251, 1.0
    %v509 = vsel %vm304, %v252, 1.0
    %v510 = vsel %vm304, %v253, 1.0
    %v511 = vsel %vm304, %v254, 1.0
    %v512 = vsel %vm304, %v255, 1.0
    %v513 = vsel %vm304, %v256, 1.0
    %v514 = vsel %vm304, %v257, 1.0
    %v515 = vsel %vm304, %v258, 1.0
    %v516 = vsel %vm304, %v259, 1.0
    %v517 = vsel %vm304, %v260, 1.0
    %v518 = vsel %vm304, %v261, 1.0
    %v519 = vsel %vm304, %v262, 1.0
    %v520 = vsel %vm304, %v263, 1.0
    %v521 = vsel %vm304, %v264, 1.0
    %v522 = vsel %vm304, %v265, 1.0
    %v523 = vsel %vm304, %v266, 1.0
    %v524 = vsel %vm304, %v267, 1.0
    %v525 = vsel %vm304, %v268, 1.0
    %v526 = vsel %vm304, %v269, 1.0
    %v527 = vsel %vm304, %v270, 1.0
    %v528 = vsel %vm304, %v271, 1.0
    %v529 = vsel %vm304, %v272, 1.0
    %v530 = vsel %vm304, %v273, 1.0
    %v531 = vsel %vm304, %v274, 1.0
    %v532 = vsel %vm304, %v275, 1.0
    %v533 = vsel %vm304, %v276, 1.0
    %v534 = vsel %vm304, %v277, 1.0
    %v535 = vsel %vm304, %v278, 1.0
    %v536 = vsel %vm304, %v279, 1.0
    %v537 = vsel %vm304, %v280, 1.0
    %v538 = vsel %vm304, %v281, 1.0
    %v539 = vsel %vm304, %v282, 1.0
    %v540 = vsel %vm304, %v283, 1.0
    %v541 = vsel %vm304, %v284, 1.0
    %v542 = vsel %vm304, %v285, 1.0
    %v543 = vsel %vm304, %v286, 1.0
    %v544 = vsel %vm304, %v287, 1.0
    %v545 = vsel %vm304, %v288, 1.0
    %v546 = vsel %vm304, %v289, 1.0
    %v547 = vsel %vm304, %v290, 1.0
    %v548 = vsel %vm304, %v291, 1.0
    %v549 = vsel %vm304, %v292, 1.0
    %v550 = vsel %vm304, %v293, 1.0
    %v551 = vsel %vm304, %v294, 1.0
    %v552 = vsel %vm304, %v295, 1.0
    %v553 = vsel %vm304, %v296, 1.0
    %v554 = vsel %vm304, %v297, 1.0
    %v555 = vsel %vm304, %v298, 1.0
    %v556 = vsel %vm304, %v299, 1.0
    %v557 = vsel %vm304, %v300, 1.0
    %v558 = vsel %vm304, %v301, 1.0
    %v559 = vsel %vm304, %v302, 1.0
    %v560 = vsel %vm304, %v303, 1.0
    %v561 = vld [vmem:[%s1] sm:$0xff]
    %v562 = vld [vmem:[%s1 + $0x8] sm:$0xff]
    %v563 = vld [vmem:[%s1 + $0x10] sm:$0x1]
    %vm564 = vcmask 138240
    %v566 = vsel %vm564, %v305, 0
    %v569 = vsel %vm564, %v306, 0
    %v572 = vsel %vm564, %v307, 0
    %v575 = vsel %vm564, %v308, 0
    %v578 = vsel %vm564, %v309, 0
    %v581 = vsel %vm564, %v310, 0
    %v584 = vsel %vm564, %v311, 0
    %v587 = vsel %vm564, %v312, 0
    %v590 = vsel %vm564, %v313, 0
    %v593 = vsel %vm564, %v314, 0
    %v596 = vsel %vm564, %v315, 0
    %v599 = vsel %vm564, %v316, 0
    %v602 = vsel %vm564, %v317, 0
    %v605 = vsel %vm564, %v318, 0
    %v608 = vsel %vm564, %v319, 0
    %v611 = vsel %vm564, %v320, 0
    %v614 = vsel %vm564, %v321, 0
    %v617 = vsel %vm564, %v322, 0
    %v620 = vsel %vm564, %v323, 0
    %v623 = vsel %vm564, %v324, 0
    %v626 = vsel %vm564, %v325, 0
    %v629 = vsel %vm564, %v326, 0
    %v632 = vsel %vm564, %v327, 0
    %v635 = vsel %vm564, %v328, 0
    %v638 = vsel %vm564, %v329, 0
    %v641 = vsel %vm564, %v330, 0
    %v644 = vsel %vm564, %v331, 0
    %v647 = vsel %vm564, %v332, 0
    %v650 = vsel %vm564, %v333, 0
    %v653 = vsel %vm564, %v334, 0
    %v656 = vsel %vm564, %v335, 0
    %v659 = vsel %vm564, %v336, 0
    %v662 = vsel %vm564, %v337, 0
    %v665 = vsel %vm564, %v338, 0
    %v668 = vsel %vm564, %v339, 0
    %v671 = vsel %vm564, %v340, 0
    %v674 = vsel %vm564, %v341, 0
    %v677 = vsel %vm564, %v342, 0
    %v680 = vsel %vm564, %v343, 0
    %v683 = vsel %vm564, %v344, 0
    %v686 = vsel %vm564, %v345, 0
    %v689 = vsel %vm564, %v346, 0
    %v692 = vsel %vm564, %v347, 0
    %v695 = vsel %vm564, %v348, 0
    %v698 = vsel %vm564, %v349, 0
    %v701 = vsel %vm564, %v350, 0
    %v704 = vsel %vm564, %v351, 0
    %v707 = vsel %vm564, %v352, 0
    %v710 = vsel %vm564, %v353, 0
    %v713 = vsel %vm564, %v354, 0
    %v716 = vsel %vm564, %v355, 0
    %v719 = vsel %vm564, %v356, 0
    %v722 = vsel %vm564, %v357, 0
    %v725 = vsel %vm564, %v358, 0
    %v728 = vsel %vm564, %v359, 0
    %v731 = vsel %vm564, %v360, 0
    %v734 = vsel %vm564, %v361, 0
    %v737 = vsel %vm564, %v362, 0
    %v740 = vsel %vm564, %v363, 0
    %v743 = vsel %vm564, %v364, 0
    %v746 = vsel %vm564, %v365, 0
    %v749 = vsel %vm564, %v366, 0
    %v752 = vsel %vm564, %v367, 0
    %v755 = vsel %vm564, %v368, 0
    %v758 = vsel %vm564, %v369, 0
    %v761 = vsel %vm564, %v370, 0
    %v764 = vsel %vm564, %v371, 0
    %v767 = vsel %vm564, %v372, 0
    %v770 = vsel %vm564, %v373, 0
    %v773 = vsel %vm564, %v374, 0
    %v776 = vsel %vm564, %v375, 0
    %v779 = vsel %vm564, %v376, 0
    %v782 = vsel %vm564, %v377, 0
    %v785 = vsel %vm564, %v378, 0
    %v788 = vsel %vm564, %v379, 0
    %v791 = vsel %vm564, %v380, 0
    %v794 = vsel %vm564, %v381, 0
    %v797 = vsel %vm564, %v382, 0
    %v800 = vsel %vm564, %v383, 0
    %v803 = vsel %vm564, %v384, 0
    %v806 = vsel %vm564, %v385, 0
    %v809 = vsel %vm564, %v386, 0
    %v812 = vsel %vm564, %v387, 0
    %v815 = vsel %vm564, %v388, 0
    %v818 = vsel %vm564, %v389, 0
    %v821 = vsel %vm564, %v390, 0
    %v824 = vsel %vm564, %v391, 0
    %v827 = vsel %vm564, %v392, 0
    %v830 = vsel %vm564, %v393, 0
    %v833 = vsel %vm564, %v394, 0
    %v836 = vsel %vm564, %v395, 0
    %v839 = vsel %vm564, %v396, 0
    %v842 = vsel %vm564, %v397, 0
    %v845 = vsel %vm564, %v398, 0
    %v848 = vsel %vm564, %v399, 0
    %v851 = vsel %vm564, %v400, 0
    %v854 = vsel %vm564, %v401, 0
    %v857 = vsel %vm564, %v402, 0
    %v860 = vsel %vm564, %v403, 0
    %v863 = vsel %vm564, %v404, 0
    %v866 = vsel %vm564, %v405, 0
    %v869 = vsel %vm564, %v406, 0
    %v872 = vsel %vm564, %v407, 0
    %v875 = vsel %vm564, %v408, 0
    %v878 = vsel %vm564, %v409, 0
    %v881 = vsel %vm564, %v410, 0
    %v884 = vsel %vm564, %v411, 0
    %v887 = vsel %vm564, %v412, 0
    %v890 = vsel %vm564, %v413, 0
    %v893 = vsel %vm564, %v414, 0
    %v896 = vsel %vm564, %v415, 0
    %v899 = vsel %vm564, %v416, 0
    %v902 = vsel %vm564, %v417, 0
    %v905 = vsel %vm564, %v418, 0
    %v908 = vsel %vm564, %v419, 0
    %v911 = vsel %vm564, %v420, 0
    %v914 = vsel %vm564, %v421, 0
    %v917 = vsel %vm564, %v422, 0
    %v920 = vsel %vm564, %v423, 0
    %v923 = vsel %vm564, %v424, 0
    %v926 = vsel %vm564, %v425, 0
    %v929 = vsel %vm564, %v426, 0
    %v932 = vsel %vm564, %v427, 0
    %v935 = vsel %vm564, %v428, 0
    %v938 = vsel %vm564, %v429, 0
    %v941 = vsel %vm564, %v430, 0
    %v944 = vsel %vm564, %v431, 0
    %v947 = vsel %vm564, %v432, 0
    %v950 = vsel %vm564, %v433, 0
    %v953 = vsel %vm564, %v434, 0
    %v956 = vsel %vm564, %v435, 0
    %v959 = vsel %vm564, %v436, 0
    %v962 = vsel %vm564, %v437, 0
    %v965 = vsel %vm564, %v438, 0
    %v968 = vsel %vm564, %v439, 0
    %v971 = vsel %vm564, %v440, 0
    %v974 = vsel %vm564, %v441, 0
    %v977 = vsel %vm564, %v442, 0
    %v980 = vsel %vm564, %v443, 0
    %v983 = vsel %vm564, %v444, 0
    %v986 = vsel %vm564, %v445, 0
    %v989 = vsel %vm564, %v446, 0
    %v992 = vsel %vm564, %v447, 0
    %v995 = vsel %vm564, %v448, 0
    %v998 = vsel %vm564, %v449, 0
    %v1001 = vsel %vm564, %v450, 0
    %v1004 = vsel %vm564, %v451, 0
    %v1007 = vsel %vm564, %v452, 0
    %v1010 = vsel %vm564, %v453, 0
    %v1013 = vsel %vm564, %v454, 0
    %v1016 = vsel %vm564, %v455, 0
    %v1019 = vsel %vm564, %v456, 0
    %v1022 = vsel %vm564, %v457, 0
    %v1025 = vsel %vm564, %v458, 0
    %v1028 = vsel %vm564, %v459, 0
    %v1031 = vsel %vm564, %v460, 0
    %v1034 = vsel %vm564, %v461, 0
    %v1037 = vsel %vm564, %v462, 0
    %v1040 = vsel %vm564, %v463, 0
    %v1043 = vsel %vm564, %v464, 0
    %v1046 = vsel %vm564, %v465, 0
    %v1049 = vsel %vm564, %v466, 0
    %v1052 = vsel %vm564, %v467, 0
    %v1055 = vsel %vm564, %v468, 0
    %v1058 = vsel %vm564, %v469, 0
    %v1061 = vsel %vm564, %v470, 0
    %v1064 = vsel %vm564, %v471, 0
    %v1067 = vsel %vm564, %v472, 0
    %v1070 = vsel %vm564, %v473, 0
    %v1073 = vsel %vm564, %v474, 0
    %v1076 = vsel %vm564, %v475, 0
    %v1079 = vsel %vm564, %v476, 0
    %v1082 = vsel %vm564, %v477, 0
    %v1085 = vsel %vm564, %v478, 0
    %v1088 = vsel %vm564, %v479, 0
    %v1091 = vsel %vm564, %v480, 0
    %v1094 = vsel %vm564, %v481, 0
    %v1097 = vsel %vm564, %v482, 0
    %v1100 = vsel %vm564, %v483, 0
    %v1103 = vsel %vm564, %v484, 0
    %v1106 = vsel %vm564, %v485, 0
    %v1109 = vsel %vm564, %v486, 0
    %v1112 = vsel %vm564, %v487, 0
    %v1115 = vsel %vm564, %v488, 0
    %v1118 = vsel %vm564, %v489, 0
    %v1121 = vsel %vm564, %v490, 0
    %v1124 = vsel %vm564, %v491, 0
    %v1127 = vsel %vm564, %v492, 0
    %v1130 = vsel %vm564, %v493, 0
    %v1133 = vsel %vm564, %v494, 0
    %v1136 = vsel %vm564, %v495, 0
    %v1139 = vsel %vm564, %v496, 0
    %v1142 = vsel %vm564, %v497, 0
    %v1145 = vsel %vm564, %v498, 0
    %v1148 = vsel %vm564, %v499, 0
    %v1151 = vsel %vm564, %v500, 0
    %v1154 = vsel %vm564, %v501, 0
    %v1157 = vsel %vm564, %v502, 0
    %v1160 = vsel %vm564, %v503, 0
    %v1163 = vsel %vm564, %v504, 0
    %v1166 = vsel %vm564, %v505, 0
    %v1169 = vsel %vm564, %v506, 0
    %v1172 = vsel %vm564, %v507, 0
    %v1175 = vsel %vm564, %v508, 0
    %v1178 = vsel %vm564, %v509, 0
    %v1181 = vsel %vm564, %v510, 0
    %v1184 = vsel %vm564, %v511, 0
    %v1187 = vsel %vm564, %v512, 0
    %v1190 = vsel %vm564, %v513, 0
    %v1193 = vsel %vm564, %v514, 0
    %v1196 = vsel %vm564, %v515, 0
    %v1199 = vsel %vm564, %v516, 0
    %v1202 = vsel %vm564, %v517, 0
    %v1205 = vsel %vm564, %v518, 0
    %v1208 = vsel %vm564, %v519, 0
    %v1211 = vsel %vm564, %v520, 0
    %v1214 = vsel %vm564, %v521, 0
    %v1217 = vsel %vm564, %v522, 0
    %v1220 = vsel %vm564, %v523, 0
    %v1223 = vsel %vm564, %v524, 0
    %v1226 = vsel %vm564, %v525, 0
    %v1229 = vsel %vm564, %v526, 0
    %v1232 = vsel %vm564, %v527, 0
    %v1235 = vsel %vm564, %v528, 0
    %v1238 = vsel %vm564, %v529, 0
    %v1241 = vsel %vm564, %v530, 0
    %v1244 = vsel %vm564, %v531, 0
    %v1247 = vsel %vm564, %v532, 0
    %v1250 = vsel %vm564, %v533, 0
    %v1253 = vsel %vm564, %v534, 0
    %v1256 = vsel %vm564, %v535, 0
    %v1259 = vsel %vm564, %v536, 0
    %v1262 = vsel %vm564, %v537, 0
    %v1265 = vsel %vm564, %v538, 0
    %v1268 = vsel %vm564, %v539, 0
    %v1271 = vsel %vm564, %v540, 0
    %v1274 = vsel %vm564, %v541, 0
    %v1277 = vsel %vm564, %v542, 0
    %v1280 = vsel %vm564, %v543, 0
    %v1283 = vsel %vm564, %v544, 0
    %v1286 = vsel %vm564, %v545, 0
    %v1289 = vsel %vm564, %v546, 0
    %v1292 = vsel %vm564, %v547, 0
    %v1295 = vsel %vm564, %v548, 0
    %v1298 = vsel %vm564, %v549, 0
    %v1301 = vsel %vm564, %v550, 0
    %v1304 = vsel %vm564, %v551, 0
    %v1307 = vsel %vm564, %v552, 0
    %v1310 = vsel %vm564, %v553, 0
    %v1313 = vsel %vm564, %v554, 0
    %v1316 = vsel %vm564, %v555, 0
    %v1319 = vsel %vm564, %v556, 0
    %v1322 = vsel %vm564, %v557, 0
    %v1325 = vsel %vm564, %v558, 0
    %v1328 = vsel %vm564, %v559, 0
    %v1331 = vsel %vm564, %v560, 0
    %vm1333 = vcmask 1040384
    %v1335 = vsel %vm1333, %v563, 0
    %1337 = vmatprep.subr.mxu0 0.0
    %1338 = vmatpush1.msra.mxu0 %v561
    %1339 = vmatprep.subr.mxu0 0.0
    %1340 = vmatpush1.msra.mxu0 %v562
    %1341 = vmatprep.subr.mxu0 0.0
    %1342 = vmatpush1.msra.mxu0 %v1335
    %1343 = vmatprep.subr.mxu0 0.0
    %1344 = vmatpush1.msra.mxu0 0.0
    %1345 = vmatprep.subr.mxu0 0.0
    %1346 = vmatpush1.msra.mxu0 0.0
    %1347 = vmatprep.subr.mxu0 0.0
    %1348 = vmatpush1.msra.mxu0 0.0
    %1349 = vmatprep.subr.mxu0 0.0
    %1350 = vmatpush1.msra.mxu0 0.0
    %1351 = vmatprep.subr.mxu0 0.0
    %1352 = vmatpush1.msra.mxu0 0.0
    %1353 = vmatprep.subr.mxu0 0.0
    %1354 = vmatpush1.msra.mxu0 0.0
    %1355 = vmatprep.subr.mxu0 0.0
    %1356 = vmatpush1.msra.mxu0 0.0
    %1357 = vmatprep.subr.mxu0 0.0
    %1358 = vmatpush1.msra.mxu0 0.0
    %1359 = vmatprep.subr.mxu0 0.0
    %1360 = vmatpush1.msra.mxu0 0.0
    %1361 = vmatprep.subr.mxu0 0.0
    %1362 = vmatpush1.msra.mxu0 0.0
    %1363 = vmatprep.subr.mxu0 0.0
    %1364 = vmatpush1.msra.mxu0 0.0
    %1365 = vmatprep.subr.mxu0 0.0
    %1366 = vmatpush1.msra.mxu0 0.0
    %1367 = vmatprep.subr.mxu0 0.0
    %1368 = vmatpush1.msra.mxu0 0.0
    %1369 = vmatprep.subr.mxu0 0.0
    %1370 = vmatpush1.msra.mxu0 0.0
    %1371 = vmatprep.subr.mxu0 0.0
    %1372 = vmatpush1.msra.mxu0 0.0
    %1373 = vmatprep.subr.mxu0 0.0
    %1374 = vmatpush1.msra.mxu0 0.0
    %1375 = vmatprep.subr.mxu0 0.0
    %1376 = vmatpush1.msra.mxu0 0.0
    %1377 = vmatprep.subr.mxu0 0.0
    %1378 = vmatpush1.msra.mxu0 0.0
    %1379 = vmatprep.subr.mxu0 0.0
    %1380 = vmatpush1.msra.mxu0 0.0
    %1381 = vmatprep.subr.mxu0 0.0
    %1382 = vmatpush1.msra.mxu0 0.0
    %1383 = vmatprep.subr.mxu0 0.0
    %1384 = vmatpush1.msra.mxu0 0.0
    %1385 = vmatprep.subr.mxu0 0.0
    %1386 = vmatpush1.msra.mxu0 0.0
    %1387 = vmatprep.subr.mxu0 0.0
    %1388 = vmatpush1.msra.mxu0 0.0
    %1389 = vmatprep.subr.mxu0 0.0
    %1390 = vmatpush1.msra.mxu0 0.0
    %1391 = vmatprep.subr.mxu0 0.0
    %1392 = vmatpush1.msra.mxu0 0.0
    %1393 = vmatprep.subr.mxu0 0.0
    %1394 = vmatpush1.msra.mxu0 0.0
    %1395 = vmatprep.subr.mxu0 0.0
    %1396 = vmatpush1.msra.mxu0 0.0
    %1397 = vmatprep.subr.mxu0 0.0
    %1398 = vmatpush1.msra.mxu0 0.0
    %1399 = vmatprep.subr.mxu0 0.0
    %1400 = vmatpush1.msra.mxu0 0.0
    %1401 = vmatprep.mubr.f32.mxu0 0.0
    %1402 = vmatmul.mubr.f32.gmra.mrb[0].mxu0 %v566
    %v1403 = vpop.f32.mrb[0].mxu0
    %v1404 = vadd.f32 0.0, %v1403
    %v1405 = vpop.f32.mrb[0].mxu0
    %1406 = vmatprep.mubr.f32.mxu0 0.0
    %1407 = vmatmul.mubr.f32.gmra.mrb[0].mxu0 %v569
    %v1408 = vpop.f32.mrb[0].mxu0
    %v1409 = vadd.f32 0.0, %v1408
    %v1410 = vpop.f32.mrb[0].mxu0
    %1411 = vmatprep.mubr.f32.mxu0 0.0
    %1412 = vmatmul.mubr.f32.gmra.mrb[0].mxu0 %v572
    %v1413 = vpop.f32.mrb[0].mxu0
    %v1414 = vadd.f32 0.0, %v1413
    %v1415 = vpop.f32.mrb[0].mxu0
    %1416 = vmatprep.mubr.f32.mxu0 0.0
    %1417 = vmatmul.mubr.f32.gmra.mrb[0].mxu0 %v575
    %v1418 = vpop.f32.mrb[0].mxu0
    %v1419 = vadd.f32 0.0, %v1418
    %v1420 = vpop.f32.mrb[0].mxu0
    %1421 = vmatprep.mubr.f32.mxu0 0.0
    %1422 = vmatmul.mubr.f32.gmra.mrb[0].mxu0 %v578
    %v1423 = vpop.f32.mrb[0].mxu0
    %v1424 = vadd.f32 0.0, %v1423
    %v1425 = vpop.f32.mrb[0].mxu0
    %1426 = vmatprep.mubr.f32.mxu0 0.0
    %1427 = vmatmul.mubr.f32.gmra.mrb[0].mxu0 %v581
    %v1428 = vpop.f32.mrb[0].mxu0
    %v1429 = vadd.f32 0.0, %v1428
    %v1430 = vpop.f32.mrb[0].mxu0
    %1431 = vmatprep.mubr.f32.mxu0 0.0
    %1432 = vmatmul.mubr.f32.gmra.mrb[0].mxu0 %v584
    %v1433 = vpop.f32.mrb[0].mxu0
    %v1434 = vadd.f32 0.0, %v1433
    %v1435 = vpop.f32.mrb[0].mxu0
    %1436 = vmatprep.mubr.f32.mxu0 0.0
    %1437 = vmatmul.mubr.f32.gmra.mrb[0].mxu0 %v587
    %v1438 = vpop.f32.mrb[0].mxu0
    %v1439 = vadd.f32 0.0, %v1438
    %v1440 = vpop.f32.mrb[0].mxu0
    %1441 = vmatprep.mubr.f32.mxu0 0.0
    %1442 = vmatmul.mubr.f32.gmra.mrb[0].mxu0 %v590
    %v1443 = vpop.f32.mrb[0].mxu0
    %v1444 = vadd.f32 0.0, %v1443
    %v1445 = vpop.f32.mrb[0].mxu0
    %1446 = vmatprep.mubr.f32.mxu0 0.0
    %1447 = vmatmul.mubr.f32.gmra.mrb[0].mxu0 %v593
    %v1448 = vpop.f32.mrb[0].mxu0
    %v1449 = vadd.f32 0.0, %v1448
    %v1450 = vpop.f32.mrb[0].mxu0
    %1451 = vmatprep.mubr.f32.mxu0 0.0
    %1452 = vmatmul.mubr.f32.gmra.mrb[0].mxu0 %v596
    %v1453 = vpop.f32.mrb[0].mxu0
    %v1454 = vadd.f32 0.0, %v1453
    %v1455 = vpop.f32.mrb[0].mxu0
    %1456 = vmatprep.mubr.f32.mxu0 0.0
    %1457 = vmatmul.mubr.f32.gmra.mrb[0].mxu0 %v599
    %v1458 = vpop.f32.mrb[0].mxu0
    %v1459 = vadd.f32 0.0, %v1458
    %v1460 = vpop.f32.mrb[0].mxu0
    %1461 = vmatprep.mubr.f32.mxu0 0.0
    %1462 = vmatmul.mubr.f32.gmra.mrb[0].mxu0 %v602
    %v1463 = vpop.f32.mrb[0].mxu0
    %v1464 = vadd.f32 0.0, %v1463
    %v1465 = vpop.f32.mrb[0].mxu0
    %1466 = vmatprep.mubr.f32.mxu0 0.0
    %1467 = vmatmul.mubr.f32.gmra.mrb[0].mxu0 %v605
    %v1468 = vpop.f32.mrb[0].mxu0
    %v1469 = vadd.f32 0.0, %v1468
    %v1470 = vpop.f32.mrb[0].mxu0
    %1471 = vmatprep.mubr.f32.mxu0 0.0
    %1472 = vmatmul.mubr.f32.gmra.mrb[0].mxu0 %v608
    %v1473 = vpop.f32.mrb[0].mxu0
    %v1474 = vadd.f32 0.0, %v1473
    %v1475 = vpop.f32.mrb[0].mxu0
    %1476 = vmatprep.mubr.f32.mxu0 0.0
    %1477 = vmatmul.mubr.f32.gmra.mrb[0].mxu0 %v611
    %v1478 = vpop.f32.mrb[0].mxu0
    %v1479 = vadd.f32 0.0, %v1478
    %v1480 = vpop.f32.mrb[0].mxu0
    %1481 = vmatprep.mubr.f32.mxu0 0.0
    %1482 = vmatmul.mubr.f32.gmra.mrb[0].mxu0 %v614
    %v1483 = vpop.f32.mrb[0].mxu0
    %v1484 = vadd.f32 0.0, %v1483
    %v1485 = vpop.f32.mrb[0].mxu0
    %1486 = vmatprep.mubr.f32.mxu0 0.0
    %1487 = vmatmul.mubr.f32.gmra.mrb[0].mxu0 %v617
    %v1488 = vpop.f32.mrb[0].mxu0
    %v1489 = vadd.f32 0.0, %v1488
    %v1490 = vpop.f32.mrb[0].mxu0
    %1491 = vmatprep.mubr.f32.mxu0 0.0
    %1492 = vmatmul.mubr.f32.gmra.mrb[0].mxu0 %v620
    %v1493 = vpop.f32.mrb[0].mxu0
    %v1494 = vadd.f32 0.0, %v1493
    %v1495 = vpop.f32.mrb[0].mxu0
    %1496 = vmatprep.mubr.f32.mxu0 0.0
    %1497 = vmatmul.mubr.f32.gmra.mrb[0].mxu0 %v623
    %v1498 = vpop.f32.mrb[0].mxu0
    %v1499 = vadd.f32 0.0, %v1498
    %v1500 = vpop.f32.mrb[0].mxu0
    %1501 = vmatprep.mubr.f32.mxu0 0.0
    %1502 = vmatmul.mubr.f32.gmra.mrb[0].mxu0 %v626
    %v1503 = vpop.f32.mrb[0].mxu0
    %v1504 = vadd.f32 0.0, %v1503
    %v1505 = vpop.f32.mrb[0].mxu0
    %1506 = vmatprep.mubr.f32.mxu0 0.0
    %1507 = vmatmul.mubr.f32.gmra.mrb[0].mxu0 %v629
    %v1508 = vpop.f32.mrb[0].mxu0
    %v1509 = vadd.f32 0.0, %v1508
    %v1510 = vpop.f32.mrb[0].mxu0
    %1511 = vmatprep.mubr.f32.mxu0 0.0
    %1512 = vmatmul.mubr.f32.gmra.mrb[0].mxu0 %v632
    %v1513 = vpop.f32.mrb[0].mxu0
    %v1514 = vadd.f32 0.0, %v1513
    %v1515 = vpop.f32.mrb[0].mxu0
    %1516 = vmatprep.mubr.f32.mxu0 0.0
    %1517 = vmatmul.mubr.f32.gmra.mrb[0].mxu0 %v635
    %v1518 = vpop.f32.mrb[0].mxu0
    %v1519 = vadd.f32 0.0, %v1518
    %v1520 = vpop.f32.mrb[0].mxu0
    %1521 = vmatprep.mubr.f32.mxu0 0.0
    %1522 = vmatmul.mubr.f32.gmra.mrb[0].mxu0 %v638
    %v1523 = vpop.f32.mrb[0].mxu0
    %v1524 = vadd.f32 0.0, %v1523
    %v1525 = vpop.f32.mrb[0].mxu0
    %1526 = vmatprep.mubr.f32.mxu0 0.0
    %1527 = vmatmul.mubr.f32.gmra.mrb[0].mxu0 %v641
    %v1528 = vpop.f32.mrb[0].mxu0
    %v1529 = vadd.f32 0.0, %v1528
    %v1530 = vpop.f32.mrb[0].mxu0
    %1531 = vmatprep.mubr.f32.mxu0 0.0
    %1532 = vmatmul.mubr.f32.gmra.mrb[0].mxu0 %v644
    %v1533 = vpop.f32.mrb[0].mxu0
    %v1534 = vadd.f32 0.0, %v1533
    %v1535 = vpop.f32.mrb[0].mxu0
    %1536 = vmatprep.mubr.f32.mxu0 0.0
    %1537 = vmatmul.mubr.f32.gmra.mrb[0].mxu0 %v647
    %v1538 = vpop.f32.mrb[0].mxu0
    %v1539 = vadd.f32 0.0, %v1538
    %v1540 = vpop.f32.mrb[0].mxu0
    %1541 = vmatprep.mubr.f32.mxu0 0.0
    %1542 = vmatmul.mubr.f32.gmra.mrb[0].mxu0 %v650
    %v1543 = vpop.f32.mrb[0].mxu0
    %v1544 = vadd.f32 0.0, %v1543
    %v1545 = vpop.f32.mrb[0].mxu0
    %1546 = vmatprep.mubr.f32.mxu0 0.0
    %1547 = vmatmul.mubr.f32.gmra.mrb[0].mxu0 %v653
    %v1548 = vpop.f32.mrb[0].mxu0
    %v1549 = vadd.f32 0.0, %v1548
    %v1550 = vpop.f32.mrb[0].mxu0
    %1551 = vmatprep.mubr.f32.mxu0 0.0
    %1552 = vmatmul.mubr.f32.gmra.mrb[0].mxu0 %v656
    %v1553 = vpop.f32.mrb[0].mxu0
    %v1554 = vadd.f32 0.0, %v1553
    %v1555 = vpop.f32.mrb[0].mxu0
    %1556 = vmatprep.mubr.f32.mxu0 0.0
    %1557 = vmatmul.mubr.f32.gmra.mrb[0].mxu0 %v659
    %v1558 = vpop.f32.mrb[0].mxu0
    %v1559 = vadd.f32 0.0, %v1558
    %v1560 = vpop.f32.mrb[0].mxu0
    %1561 = vmatprep.mubr.f32.mxu0 0.0
    %1562 = vmatmul.mubr.f32.gmra.mrb[0].mxu0 %v662
    %v1563 = vpop.f32.mrb[0].mxu0
    %v1564 = vadd.f32 0.0, %v1563
    %v1565 = vpop.f32.mrb[0].mxu0
    %1566 = vmatprep.mubr.f32.mxu0 0.0
    %1567 = vmatmul.mubr.f32.gmra.mrb[0].mxu0 %v665
    %v1568 = vpop.f32.mrb[0].mxu0
    %v1569 = vadd.f32 0.0, %v1568
    %v1570 = vpop.f32.mrb[0].mxu0
    %1571 = vmatprep.mubr.f32.mxu0 0.0
    %1572 = vmatmul.mubr.f32.gmra.mrb[0].mxu0 %v668
    %v1573 = vpop.f32.mrb[0].mxu0
    %v1574 = vadd.f32 0.0, %v1573
    %v1575 = vpop.f32.mrb[0].mxu0
    %1576 = vmatprep.mubr.f32.mxu0 0.0
    %1577 = vmatmul.mubr.f32.gmra.mrb[0].mxu0 %v671
    %v1578 = vpop.f32.mrb[0].mxu0
    %v1579 = vadd.f32 0.0, %v1578
    %v1580 = vpop.f32.mrb[0].mxu0
    %1581 = vmatprep.mubr.f32.mxu0 0.0
    %1582 = vmatmul.mubr.f32.gmra.mrb[0].mxu0 %v674
    %v1583 = vpop.f32.mrb[0].mxu0
    %v1584 = vadd.f32 0.0, %v1583
    %v1585 = vpop.f32.mrb[0].mxu0
    %1586 = vmatprep.mubr.f32.mxu0 0.0
    %1587 = vmatmul.mubr.f32.gmra.mrb[0].mxu0 %v677
    %v1588 = vpop.f32.mrb[0].mxu0
    %v1589 = vadd.f32 0.0, %v1588
    %v1590 = vpop.f32.mrb[0].mxu0
    %1591 = vmatprep.mubr.f32.mxu0 0.0
    %1592 = vmatmul.mubr.f32.gmra.mrb[0].mxu0 %v680
    %v1593 = vpop.f32.mrb[0].mxu0
    %v1594 = vadd.f32 0.0, %v1593
    %v1595 = vpop.f32.mrb[0].mxu0
    %1596 = vmatprep.mubr.f32.mxu0 0.0
    %1597 = vmatmul.mubr.f32.gmra.mrb[0].mxu0 %v683
    %v1598 = vpop.f32.mrb[0].mxu0
    %v1599 = vadd.f32 0.0, %v1598
    %v1600 = vpop.f32.mrb[0].mxu0
    %1601 = vmatprep.mubr.f32.mxu0 0.0
    %1602 = vmatmul.mubr.f32.gmra.mrb[0].mxu0 %v686
    %v1603 = vpop.f32.mrb[0].mxu0
    %v1604 = vadd.f32 0.0, %v1603
    %v1605 = vpop.f32.mrb[0].mxu0
    %1606 = vmatprep.mubr.f32.mxu0 0.0
    %1607 = vmatmul.mubr.f32.gmra.mrb[0].mxu0 %v689
    %v1608 = vpop.f32.mrb[0].mxu0
    %v1609 = vadd.f32 0.0, %v1608
    %v1610 = vpop.f32.mrb[0].mxu0
    %1611 = vmatprep.mubr.f32.mxu0 0.0
    %1612 = vmatmul.mubr.f32.gmra.mrb[0].mxu0 %v692
    %v1613 = vpop.f32.mrb[0].mxu0
    %v1614 = vadd.f32 0.0, %v1613
    %v1615 = vpop.f32.mrb[0].mxu0
    %1616 = vmatprep.mubr.f32.mxu0 0.0
    %1617 = vmatmul.mubr.f32.gmra.mrb[0].mxu0 %v695
    %v1618 = vpop.f32.mrb[0].mxu0
    %v1619 = vadd.f32 0.0, %v1618
    %v1620 = vpop.f32.mrb[0].mxu0
    %1621 = vmatprep.mubr.f32.mxu0 0.0
    %1622 = vmatmul.mubr.f32.gmra.mrb[0].mxu0 %v698
    %v1623 = vpop.f32.mrb[0].mxu0
    %v1624 = vadd.f32 0.0, %v1623
    %v1625 = vpop.f32.mrb[0].mxu0
    %1626 = vmatprep.mubr.f32.mxu0 0.0
    %1627 = vmatmul.mubr.f32.gmra.mrb[0].mxu0 %v701
    %v1628 = vpop.f32.mrb[0].mxu0
    %v1629 = vadd.f32 0.0, %v1628
    %v1630 = vpop.f32.mrb[0].mxu0
    %1631 = vmatprep.mubr.f32.mxu0 0.0
    %1632 = vmatmul.mubr.f32.gmra.mrb[0].mxu0 %v704
    %v1633 = vpop.f32.mrb[0].mxu0
    %v1634 = vadd.f32 0.0, %v1633
    %v1635 = vpop.f32.mrb[0].mxu0
    %1636 = vmatprep.mubr.f32.mxu0 0.0
    %1637 = vmatmul.mubr.f32.gmra.mrb[0].mxu0 %v707
    %v1638 = vpop.f32.mrb[0].mxu0
    %v1639 = vadd.f32 0.0, %v1638
    %v1640 = vpop.f32.mrb[0].mxu0
    %1641 = vmatprep.mubr.f32.mxu0 0.0
    %1642 = vmatmul.mubr.f32.gmra.mrb[0].mxu0 %v710
    %v1643 = vpop.f32.mrb[0].mxu0
    %v1644 = vadd.f32 0.0, %v1643
    %v1645 = vpop.f32.mrb[0].mxu0
    %1646 = vmatprep.mubr.f32.mxu0 0.0
    %1647 = vmatmul.mubr.f32.gmra.mrb[0].mxu0 %v713
    %v1648 = vpop.f32.mrb[0].mxu0
    %v1649 = vadd.f32 0.0, %v1648
    %v1650 = vpop.f32.mrb[0].mxu0
    %1651 = vmatprep.mubr.f32.mxu0 0.0
    %1652 = vmatmul.mubr.f32.gmra.mrb[0].mxu0 %v716
    %v1653 = vpop.f32.mrb[0].mxu0
    %v1654 = vadd.f32 0.0, %v1653
    %v1655 = vpop.f32.mrb[0].mxu0
    %1656 = vmatprep.mubr.f32.mxu0 0.0
    %1657 = vmatmul.mubr.f32.gmra.mrb[0].mxu0 %v719
    %v1658 = vpop.f32.mrb[0].mxu0
    %v1659 = vadd.f32 0.0, %v1658
    %v1660 = vpop.f32.mrb[0].mxu0
    %1661 = vmatprep.mubr.f32.mxu0 0.0
    %1662 = vmatmul.mubr.f32.gmra.mrb[0].mxu0 %v722
    %v1663 = vpop.f32.mrb[0].mxu0
    %v1664 = vadd.f32 0.0, %v1663
    %v1665 = vpop.f32.mrb[0].mxu0
    %1666 = vmatprep.mubr.f32.mxu0 0.0
    %1667 = vmatmul.mubr.f32.gmra.mrb[0].mxu0 %v725
    %v1668 = vpop.f32.mrb[0].mxu0
    %v1669 = vadd.f32 0.0, %v1668
    %v1670 = vpop.f32.mrb[0].mxu0
    %1671 = vmatprep.mubr.f32.mxu0 0.0
    %1672 = vmatmul.mubr.f32.gmra.mrb[0].mxu0 %v728
    %v1673 = vpop.f32.mrb[0].mxu0
    %v1674 = vadd.f32 0.0, %v1673
    %v1675 = vpop.f32.mrb[0].mxu0
    %1676 = vmatprep.mubr.f32.mxu0 0.0
    %1677 = vmatmul.mubr.f32.gmra.mrb[0].mxu0 %v731
    %v1678 = vpop.f32.mrb[0].mxu0
    %v1679 = vadd.f32 0.0, %v1678
    %v1680 = vpop.f32.mrb[0].mxu0
    %1681 = vmatprep.mubr.f32.mxu0 0.0
    %1682 = vmatmul.mubr.f32.gmra.mrb[0].mxu0 %v734
    %v1683 = vpop.f32.mrb[0].mxu0
    %v1684 = vadd.f32 0.0, %v1683
    %v1685 = vpop.f32.mrb[0].mxu0
    %1686 = vmatprep.mubr.f32.mxu0 0.0
    %1687 = vmatmul.mubr.f32.gmra.mrb[0].mxu0 %v737
    %v1688 = vpop.f32.mrb[0].mxu0
    %v1689 = vadd.f32 0.0, %v1688
    %v1690 = vpop.f32.mrb[0].mxu0
    %1691 = vmatprep.mubr.f32.mxu0 0.0
    %1692 = vmatmul.mubr.f32.gmra.mrb[0].mxu0 %v740
    %v1693 = vpop.f32.mrb[0].mxu0
    %v1694 = vadd.f32 0.0, %v1693
    %v1695 = vpop.f32.mrb[0].mxu0
    %1696 = vmatprep.mubr.f32.mxu0 0.0
    %1697 = vmatmul.mubr.f32.gmra.mrb[0].mxu0 %v743
    %v1698 = vpop.f32.mrb[0].mxu0
    %v1699 = vadd.f32 0.0, %v1698
    %v1700 = vpop.f32.mrb[0].mxu0
    %1701 = vmatprep.mubr.f32.mxu0 0.0
    %1702 = vmatmul.mubr.f32.gmra.mrb[0].mxu0 %v746
    %v1703 = vpop.f32.mrb[0].mxu0
    %v1704 = vadd.f32 0.0, %v1703
    %v1705 = vpop.f32.mrb[0].mxu0
    %1706 = vmatprep.mubr.f32.mxu0 0.0
    %1707 = vmatmul.mubr.f32.gmra.mrb[0].mxu0 %v749
    %v1708 = vpop.f32.mrb[0].mxu0
    %v1709 = vadd.f32 0.0, %v1708
    %v1710 = vpop.f32.mrb[0].mxu0
    %1711 = vmatprep.mubr.f32.mxu0 0.0
    %1712 = vmatmul.mubr.f32.gmra.mrb[0].mxu0 %v752
    %v1713 = vpop.f32.mrb[0].mxu0
    %v1714 = vadd.f32 0.0, %v1713
    %v1715 = vpop.f32.mrb[0].mxu0
    %1716 = vmatprep.mubr.f32.mxu0 0.0
    %1717 = vmatmul.mubr.f32.gmra.mrb[0].mxu0 %v755
    %v1718 = vpop.f32.mrb[0].mxu0
    %v1719 = vadd.f32 0.0, %v1718
    %v1720 = vpop.f32.mrb[0].mxu0
    %1721 = vmatprep.mubr.f32.mxu0 0.0
    %1722 = vmatmul.mubr.f32.gmra.mrb[0].mxu0 %v758
    %v1723 = vpop.f32.mrb[0].mxu0
    %v1724 = vadd.f32 0.0, %v1723
    %v1725 = vpop.f32.mrb[0].mxu0
    %1726 = vmatprep.mubr.f32.mxu0 0.0
    %1727 = vmatmul.mubr.f32.gmra.mrb[0].mxu0 %v761
    %v1728 = vpop.f32.mrb[0].mxu0
    %v1729 = vadd.f32 0.0, %v1728
    %v1730 = vpop.f32.mrb[0].mxu0
    %1731 = vmatprep.mubr.f32.mxu0 0.0
    %1732 = vmatmul.mubr.f32.gmra.mrb[0].mxu0 %v764
    %v1733 = vpop.f32.mrb[0].mxu0
    %v1734 = vadd.f32 0.0, %v1733
    %v1735 = vpop.f32.mrb[0].mxu0
    %1736 = vmatprep.mubr.f32.mxu0 0.0
    %1737 = vmatmul.mubr.f32.gmra.mrb[0].mxu0 %v767
    %v1738 = vpop.f32.mrb[0].mxu0
    %v1739 = vadd.f32 0.0, %v1738
    %v1740 = vpop.f32.mrb[0].mxu0
    %1741 = vmatprep.mubr.f32.mxu0 0.0
    %1742 = vmatmul.mubr.f32.gmra.mrb[0].mxu0 %v770
    %v1743 = vpop.f32.mrb[0].mxu0
    %v1744 = vadd.f32 0.0, %v1743
    %v1745 = vpop.f32.mrb[0].mxu0
    %1746 = vmatprep.mubr.f32.mxu0 0.0
    %1747 = vmatmul.mubr.f32.gmra.mrb[0].mxu0 %v773
    %v1748 = vpop.f32.mrb[0].mxu0
    %v1749 = vadd.f32 0.0, %v1748
    %v1750 = vpop.f32.mrb[0].mxu0
    %1751 = vmatprep.mubr.f32.mxu0 0.0
    %1752 = vmatmul.mubr.f32.gmra.mrb[0].mxu0 %v776
    %v1753 = vpop.f32.mrb[0].mxu0
    %v1754 = vadd.f32 0.0, %v1753
    %v1755 = vpop.f32.mrb[0].mxu0
    %1756 = vmatprep.mubr.f32.mxu0 0.0
    %1757 = vmatmul.mubr.f32.gmra.mrb[0].mxu0 %v779
    %v1758 = vpop.f32.mrb[0].mxu0
    %v1759 = vadd.f32 0.0, %v1758
    %v1760 = vpop.f32.mrb[0].mxu0
    %1761 = vmatprep.mubr.f32.mxu0 0.0
    %1762 = vmatmul.mubr.f32.gmra.mrb[0].mxu0 %v782
    %v1763 = vpop.f32.mrb[0].mxu0
    %v1764 = vadd.f32 0.0, %v1763
    %v1765 = vpop.f32.mrb[0].mxu0
    %1766 = vmatprep.mubr.f32.mxu0 0.0
    %1767 = vmatmul.mubr.f32.gmra.mrb[0].mxu0 %v785
    %v1768 = vpop.f32.mrb[0].mxu0
    %v1769 = vadd.f32 0.0, %v1768
    %v1770 = vpop.f32.mrb[0].mxu0
    %1771 = vmatprep.mubr.f32.mxu0 0.0
    %1772 = vmatmul.mubr.f32.gmra.mrb[0].mxu0 %v788
    %v1773 = vpop.f32.mrb[0].mxu0
    %v1774 = vadd.f32 0.0, %v1773
    %v1775 = vpop.f32.mrb[0].mxu0
    %1776 = vmatprep.mubr.f32.mxu0 0.0
    %1777 = vmatmul.mubr.f32.gmra.mrb[0].mxu0 %v791
    %v1778 = vpop.f32.mrb[0].mxu0
    %v1779 = vadd.f32 0.0, %v1778
    %v1780 = vpop.f32.mrb[0].mxu0
    %1781 = vmatprep.mubr.f32.mxu0 0.0
    %1782 = vmatmul.mubr.f32.gmra.mrb[0].mxu0 %v794
    %v1783 = vpop.f32.mrb[0].mxu0
    %v1784 = vadd.f32 0.0, %v1783
    %v1785 = vpop.f32.mrb[0].mxu0
    %1786 = vmatprep.mubr.f32.mxu0 0.0
    %1787 = vmatmul.mubr.f32.gmra.mrb[0].mxu0 %v797
    %v1788 = vpop.f32.mrb[0].mxu0
    %v1789 = vadd.f32 0.0, %v1788
    %v1790 = vpop.f32.mrb[0].mxu0
    %1791 = vmatprep.mubr.f32.mxu0 0.0
    %1792 = vmatmul.mubr.f32.gmra.mrb[0].mxu0 %v800
    %v1793 = vpop.f32.mrb[0].mxu0
    %v1794 = vadd.f32 0.0, %v1793
    %v1795 = vpop.f32.mrb[0].mxu0
    %1796 = vmatprep.mubr.f32.mxu0 0.0
    %1797 = vmatmul.mubr.f32.gmra.mrb[0].mxu0 %v803
    %v1798 = vpop.f32.mrb[0].mxu0
    %v1799 = vadd.f32 0.0, %v1798
    %v1800 = vpop.f32.mrb[0].mxu0
    %1801 = vmatprep.mubr.f32.mxu0 0.0
    %1802 = vmatmul.mubr.f32.gmra.mrb[0].mxu0 %v806
    %v1803 = vpop.f32.mrb[0].mxu0
    %v1804 = vadd.f32 0.0, %v1803
    %v1805 = vpop.f32.mrb[0].mxu0
    %1806 = vmatprep.mubr.f32.mxu0 0.0
    %1807 = vmatmul.mubr.f32.gmra.mrb[0].mxu0 %v809
    %v1808 = vpop.f32.mrb[0].mxu0
    %v1809 = vadd.f32 0.0, %v1808
    %v1810 = vpop.f32.mrb[0].mxu0
    %1811 = vmatprep.mubr.f32.mxu0 0.0
    %1812 = vmatmul.mubr.f32.gmra.mrb[0].mxu0 %v812
    %v1813 = vpop.f32.mrb[0].mxu0
    %v1814 = vadd.f32 0.0, %v1813
    %v1815 = vpop.f32.mrb[0].mxu0
    %1816 = vmatprep.mubr.f32.mxu0 0.0
    %1817 = vmatmul.mubr.f32.gmra.mrb[0].mxu0 %v815
    %v1818 = vpop.f32.mrb[0].mxu0
    %v1819 = vadd.f32 0.0, %v1818
    %v1820 = vpop.f32.mrb[0].mxu0
    %1821 = vmatprep.mubr.f32.mxu0 0.0
    %1822 = vmatmul.mubr.f32.gmra.mrb[0].mxu0 %v818
    %v1823 = vpop.f32.mrb[0].mxu0
    %v1824 = vadd.f32 0.0, %v1823
    %v1825 = vpop.f32.mrb[0].mxu0
    %1826 = vmatprep.mubr.f32.mxu0 0.0
    %1827 = vmatmul.mubr.f32.gmra.mrb[0].mxu0 %v821
    %v1828 = vpop.f32.mrb[0].mxu0
    %v1829 = vadd.f32 0.0, %v1828
    %v1830 = vpop.f32.mrb[0].mxu0
    %1831 = vmatprep.mubr.f32.mxu0 0.0
    %1832 = vmatmul.mubr.f32.gmra.mrb[0].mxu0 %v824
    %v1833 = vpop.f32.mrb[0].mxu0
    %v1834 = vadd.f32 0.0, %v1833
    %v1835 = vpop.f32.mrb[0].mxu0
    %1836 = vmatprep.mubr.f32.mxu0 0.0
    %1837 = vmatmul.mubr.f32.gmra.mrb[0].mxu0 %v827
    %v1838 = vpop.f32.mrb[0].mxu0
    %v1839 = vadd.f32 0.0, %v1838
    %v1840 = vpop.f32.mrb[0].mxu0
    %1841 = vmatprep.mubr.f32.mxu0 0.0
    %1842 = vmatmul.mubr.f32.gmra.mrb[0].mxu0 %v830
    %v1843 = vpop.f32.mrb[0].mxu0
    %v1844 = vadd.f32 0.0, %v1843
    %v1845 = vpop.f32.mrb[0].mxu0
    %1846 = vmatprep.mubr.f32.mxu0 0.0
    %1847 = vmatmul.mubr.f32.gmra.mrb[0].mxu0 %v833
    %v1848 = vpop.f32.mrb[0].mxu0
    %v1849 = vadd.f32 0.0, %v1848
    %v1850 = vpop.f32.mrb[0].mxu0
    %1851 = vmatprep.mubr.f32.mxu0 0.0
    %1852 = vmatmul.mubr.f32.gmra.mrb[0].mxu0 %v836
    %v1853 = vpop.f32.mrb[0].mxu0
    %v1854 = vadd.f32 0.0, %v1853
    %v1855 = vpop.f32.mrb[0].mxu0
    %1856 = vmatprep.mubr.f32.mxu0 0.0
    %1857 = vmatmul.mubr.f32.gmra.mrb[0].mxu0 %v839
    %v1858 = vpop.f32.mrb[0].mxu0
    %v1859 = vadd.f32 0.0, %v1858
    %v1860 = vpop.f32.mrb[0].mxu0
    %1861 = vmatprep.mubr.f32.mxu0 0.0
    %1862 = vmatmul.mubr.f32.gmra.mrb[0].mxu0 %v842
    %v1863 = vpop.f32.mrb[0].mxu0
    %v1864 = vadd.f32 0.0, %v1863
    %v1865 = vpop.f32.mrb[0].mxu0
    %1866 = vmatprep.mubr.f32.mxu0 0.0
    %1867 = vmatmul.mubr.f32.gmra.mrb[0].mxu0 %v845
    %v1868 = vpop.f32.mrb[0].mxu0
    %v1869 = vadd.f32 0.0, %v1868
    %v1870 = vpop.f32.mrb[0].mxu0
    %1871 = vmatprep.mubr.f32.mxu0 0.0
    %1872 = vmatmul.mubr.f32.gmra.mrb[0].mxu0 %v848
    %v1873 = vpop.f32.mrb[0].mxu0
    %v1874 = vadd.f32 0.0, %v1873
    %v1875 = vpop.f32.mrb[0].mxu0
    %1876 = vmatprep.mubr.f32.mxu0 0.0
    %1877 = vmatmul.mubr.f32.gmra.mrb[0].mxu0 %v851
    %v1878 = vpop.f32.mrb[0].mxu0
    %v1879 = vadd.f32 0.0, %v1878
    %v1880 = vpop.f32.mrb[0].mxu0
    %1881 = vmatprep.mubr.f32.mxu0 0.0
    %1882 = vmatmul.mubr.f32.gmra.mrb[0].mxu0 %v854
    %v1883 = vpop.f32.mrb[0].mxu0
    %v1884 = vadd.f32 0.0, %v1883
    %v1885 = vpop.f32.mrb[0].mxu0
    %1886 = vmatprep.mubr.f32.mxu0 0.0
    %1887 = vmatmul.mubr.f32.gmra.mrb[0].mxu0 %v857
    %v1888 = vpop.f32.mrb[0].mxu0
    %v1889 = vadd.f32 0.0, %v1888
    %v1890 = vpop.f32.mrb[0].mxu0
    %1891 = vmatprep.mubr.f32.mxu0 0.0
    %1892 = vmatmul.mubr.f32.gmra.mrb[0].mxu0 %v860
    %v1893 = vpop.f32.mrb[0].mxu0
    %v1894 = vadd.f32 0.0, %v1893
    %v1895 = vpop.f32.mrb[0].mxu0
    %1896 = vmatprep.mubr.f32.mxu0 0.0
    %1897 = vmatmul.mubr.f32.gmra.mrb[0].mxu0 %v863
    %v1898 = vpop.f32.mrb[0].mxu0
    %v1899 = vadd.f32 0.0, %v1898
    %v1900 = vpop.f32.mrb[0].mxu0
    %1901 = vmatprep.mubr.f32.mxu0 0.0
    %1902 = vmatmul.mubr.f32.gmra.mrb[0].mxu0 %v866
    %v1903 = vpop.f32.mrb[0].mxu0
    %v1904 = vadd.f32 0.0, %v1903
    %v1905 = vpop.f32.mrb[0].mxu0
    %1906 = vmatprep.mubr.f32.mxu0 0.0
    %1907 = vmatmul.mubr.f32.gmra.mrb[0].mxu0 %v869
    %v1908 = vpop.f32.mrb[0].mxu0
    %v1909 = vadd.f32 0.0, %v1908
    %v1910 = vpop.f32.mrb[0].mxu0
    %1911 = vmatprep.mubr.f32.mxu0 0.0
    %1912 = vmatmul.mubr.f32.gmra.mrb[0].mxu0 %v872
    %v1913 = vpop.f32.mrb[0].mxu0
    %v1914 = vadd.f32 0.0, %v1913
    %v1915 = vpop.f32.mrb[0].mxu0
    %1916 = vmatprep.mubr.f32.mxu0 0.0
    %1917 = vmatmul.mubr.f32.gmra.mrb[0].mxu0 %v875
    %v1918 = vpop.f32.mrb[0].mxu0
    %v1919 = vadd.f32 0.0, %v1918
    %v1920 = vpop.f32.mrb[0].mxu0
    %1921 = vmatprep.mubr.f32.mxu0 0.0
    %1922 = vmatmul.mubr.f32.gmra.mrb[0].mxu0 %v878
    %v1923 = vpop.f32.mrb[0].mxu0
    %v1924 = vadd.f32 0.0, %v1923
    %v1925 = vpop.f32.mrb[0].mxu0
    %1926 = vmatprep.mubr.f32.mxu0 0.0
    %1927 = vmatmul.mubr.f32.gmra.mrb[0].mxu0 %v881
    %v1928 = vpop.f32.mrb[0].mxu0
    %v1929 = vadd.f32 0.0, %v1928
    %v1930 = vpop.f32.mrb[0].mxu0
    %1931 = vmatprep.mubr.f32.mxu0 0.0
    %1932 = vmatmul.mubr.f32.gmra.mrb[0].mxu0 %v884
    %v1933 = vpop.f32.mrb[0].mxu0
    %v1934 = vadd.f32 0.0, %v1933
    %v1935 = vpop.f32.mrb[0].mxu0
    %1936 = vmatprep.mubr.f32.mxu0 0.0
    %1937 = vmatmul.mubr.f32.gmra.mrb[0].mxu0 %v887
    %v1938 = vpop.f32.mrb[0].mxu0
    %v1939 = vadd.f32 0.0, %v1938
    %v1940 = vpop.f32.mrb[0].mxu0
    %1941 = vmatprep.mubr.f32.mxu0 0.0
    %1942 = vmatmul.mubr.f32.gmra.mrb[0].mxu0 %v890
    %v1943 = vpop.f32.mrb[0].mxu0
    %v1944 = vadd.f32 0.0, %v1943
    %v1945 = vpop.f32.mrb[0].mxu0
    %1946 = vmatprep.mubr.f32.mxu0 0.0
    %1947 = vmatmul.mubr.f32.gmra.mrb[0].mxu0 %v893
    %v1948 = vpop.f32.mrb[0].mxu0
    %v1949 = vadd.f32 0.0, %v1948
    %v1950 = vpop.f32.mrb[0].mxu0
    %1951 = vmatprep.mubr.f32.mxu0 0.0
    %1952 = vmatmul.mubr.f32.gmra.mrb[0].mxu0 %v896
    %v1953 = vpop.f32.mrb[0].mxu0
    %v1954 = vadd.f32 0.0, %v1953
    %v1955 = vpop.f32.mrb[0].mxu0
    %1956 = vmatprep.mubr.f32.mxu0 0.0
    %1957 = vmatmul.mubr.f32.gmra.mrb[0].mxu0 %v899
    %v1958 = vpop.f32.mrb[0].mxu0
    %v1959 = vadd.f32 0.0, %v1958
    %v1960 = vpop.f32.mrb[0].mxu0
    %1961 = vmatprep.mubr.f32.mxu0 0.0
    %1962 = vmatmul.mubr.f32.gmra.mrb[0].mxu0 %v902
    %v1963 = vpop.f32.mrb[0].mxu0
    %v1964 = vadd.f32 0.0, %v1963
    %v1965 = vpop.f32.mrb[0].mxu0
    %1966 = vmatprep.mubr.f32.mxu0 0.0
    %1967 = vmatmul.mubr.f32.gmra.mrb[0].mxu0 %v905
    %v1968 = vpop.f32.mrb[0].mxu0
    %v1969 = vadd.f32 0.0, %v1968
    %v1970 = vpop.f32.mrb[0].mxu0
    %1971 = vmatprep.mubr.f32.mxu0 0.0
    %1972 = vmatmul.mubr.f32.gmra.mrb[0].mxu0 %v908
    %v1973 = vpop.f32.mrb[0].mxu0
    %v1974 = vadd.f32 0.0, %v1973
    %v1975 = vpop.f32.mrb[0].mxu0
    %1976 = vmatprep.mubr.f32.mxu0 0.0
    %1977 = vmatmul.mubr.f32.gmra.mrb[0].mxu0 %v911
    %v1978 = vpop.f32.mrb[0].mxu0
    %v1979 = vadd.f32 0.0, %v1978
    %v1980 = vpop.f32.mrb[0].mxu0
    %1981 = vmatprep.mubr.f32.mxu0 0.0
    %1982 = vmatmul.mubr.f32.gmra.mrb[0].mxu0 %v914
    %v1983 = vpop.f32.mrb[0].mxu0
    %v1984 = vadd.f32 0.0, %v1983
    %v1985 = vpop.f32.mrb[0].mxu0
    %1986 = vmatprep.mubr.f32.mxu0 0.0
    %1987 = vmatmul.mubr.f32.gmra.mrb[0].mxu0 %v917
    %v1988 = vpop.f32.mrb[0].mxu0
    %v1989 = vadd.f32 0.0, %v1988
    %v1990 = vpop.f32.mrb[0].mxu0
    %1991 = vmatprep.mubr.f32.mxu0 0.0
    %1992 = vmatmul.mubr.f32.gmra.mrb[0].mxu0 %v920
    %v1993 = vpop.f32.mrb[0].mxu0
    %v1994 = vadd.f32 0.0, %v1993
    %v1995 = vpop.f32.mrb[0].mxu0
    %1996 = vmatprep.mubr.f32.mxu0 0.0
    %1997 = vmatmul.mubr.f32.gmra.mrb[0].mxu0 %v923
    %v1998 = vpop.f32.mrb[0].mxu0
    %v1999 = vadd.f32 0.0, %v1998
    %v2000 = vpop.f32.mrb[0].mxu0
    %2001 = vmatprep.mubr.f32.mxu0 0.0
    %2002 = vmatmul.mubr.f32.gmra.mrb[0].mxu0 %v926
    %v2003 = vpop.f32.mrb[0].mxu0
    %v2004 = vadd.f32 0.0, %v2003
    %v2005 = vpop.f32.mrb[0].mxu0
    %2006 = vmatprep.mubr.f32.mxu0 0.0
    %2007 = vmatmul.mubr.f32.gmra.mrb[0].mxu0 %v929
    %v2008 = vpop.f32.mrb[0].mxu0
    %v2009 = vadd.f32 0.0, %v2008
    %v2010 = vpop.f32.mrb[0].mxu0
    %2011 = vmatprep.mubr.f32.mxu0 0.0
    %2012 = vmatmul.mubr.f32.gmra.mrb[0].mxu0 %v932
    %v2013 = vpop.f32.mrb[0].mxu0
    %v2014 = vadd.f32 0.0, %v2013
    %v2015 = vpop.f32.mrb[0].mxu0
    %2016 = vmatprep.mubr.f32.mxu0 0.0
    %2017 = vmatmul.mubr.f32.gmra.mrb[0].mxu0 %v935
    %v2018 = vpop.f32.mrb[0].mxu0
    %v2019 = vadd.f32 0.0, %v2018
    %v2020 = vpop.f32.mrb[0].mxu0
    %2021 = vmatprep.mubr.f32.mxu0 0.0
    %2022 = vmatmul.mubr.f32.gmra.mrb[0].mxu0 %v938
    %v2023 = vpop.f32.mrb[0].mxu0
    %v2024 = vadd.f32 0.0, %v2023
    %v2025 = vpop.f32.mrb[0].mxu0
    %2026 = vmatprep.mubr.f32.mxu0 0.0
    %2027 = vmatmul.mubr.f32.gmra.mrb[0].mxu0 %v941
    %v2028 = vpop.f32.mrb[0].mxu0
    %v2029 = vadd.f32 0.0, %v2028
    %v2030 = vpop.f32.mrb[0].mxu0
    %2031 = vmatprep.mubr.f32.mxu0 0.0
    %2032 = vmatmul.mubr.f32.gmra.mrb[0].mxu0 %v944
    %v2033 = vpop.f32.mrb[0].mxu0
    %v2034 = vadd.f32 0.0, %v2033
    %v2035 = vpop.f32.mrb[0].mxu0
    %2036 = vmatprep.mubr.f32.mxu0 0.0
    %2037 = vmatmul.mubr.f32.gmra.mrb[0].mxu0 %v947
    %v2038 = vpop.f32.mrb[0].mxu0
    %v2039 = vadd.f32 0.0, %v2038
    %v2040 = vpop.f32.mrb[0].mxu0
    %2041 = vmatprep.mubr.f32.mxu0 0.0
    %2042 = vmatmul.mubr.f32.gmra.mrb[0].mxu0 %v950
    %v2043 = vpop.f32.mrb[0].mxu0
    %v2044 = vadd.f32 0.0, %v2043
    %v2045 = vpop.f32.mrb[0].mxu0
    %2046 = vmatprep.mubr.f32.mxu0 0.0
    %2047 = vmatmul.mubr.f32.gmra.mrb[0].mxu0 %v953
    %v2048 = vpop.f32.mrb[0].mxu0
    %v2049 = vadd.f32 0.0, %v2048
    %v2050 = vpop.f32.mrb[0].mxu0
    %2051 = vmatprep.mubr.f32.mxu0 0.0
    %2052 = vmatmul.mubr.f32.gmra.mrb[0].mxu0 %v956
    %v2053 = vpop.f32.mrb[0].mxu0
    %v2054 = vadd.f32 0.0, %v2053
    %v2055 = vpop.f32.mrb[0].mxu0
    %2056 = vmatprep.mubr.f32.mxu0 0.0
    %2057 = vmatmul.mubr.f32.gmra.mrb[0].mxu0 %v959
    %v2058 = vpop.f32.mrb[0].mxu0
    %v2059 = vadd.f32 0.0, %v2058
    %v2060 = vpop.f32.mrb[0].mxu0
    %2061 = vmatprep.mubr.f32.mxu0 0.0
    %2062 = vmatmul.mubr.f32.gmra.mrb[0].mxu0 %v962
    %v2063 = vpop.f32.mrb[0].mxu0
    %v2064 = vadd.f32 0.0, %v2063
    %v2065 = vpop.f32.mrb[0].mxu0
    %2066 = vmatprep.mubr.f32.mxu0 0.0
    %2067 = vmatmul.mubr.f32.gmra.mrb[0].mxu0 %v965
    %v2068 = vpop.f32.mrb[0].mxu0
    %v2069 = vadd.f32 0.0, %v2068
    %v2070 = vpop.f32.mrb[0].mxu0
    %2071 = vmatprep.mubr.f32.mxu0 0.0
    %2072 = vmatmul.mubr.f32.gmra.mrb[0].mxu0 %v968
    %v2073 = vpop.f32.mrb[0].mxu0
    %v2074 = vadd.f32 0.0, %v2073
    %v2075 = vpop.f32.mrb[0].mxu0
    %2076 = vmatprep.mubr.f32.mxu0 0.0
    %2077 = vmatmul.mubr.f32.gmra.mrb[0].mxu0 %v971
    %v2078 = vpop.f32.mrb[0].mxu0
    %v2079 = vadd.f32 0.0, %v2078
    %v2080 = vpop.f32.mrb[0].mxu0
    %2081 = vmatprep.mubr.f32.mxu0 0.0
    %2082 = vmatmul.mubr.f32.gmra.mrb[0].mxu0 %v974
    %v2083 = vpop.f32.mrb[0].mxu0
    %v2084 = vadd.f32 0.0, %v2083
    %v2085 = vpop.f32.mrb[0].mxu0
    %2086 = vmatprep.mubr.f32.mxu0 0.0
    %2087 = vmatmul.mubr.f32.gmra.mrb[0].mxu0 %v977
    %v2088 = vpop.f32.mrb[0].mxu0
    %v2089 = vadd.f32 0.0, %v2088
    %v2090 = vpop.f32.mrb[0].mxu0
    %2091 = vmatprep.mubr.f32.mxu0 0.0
    %2092 = vmatmul.mubr.f32.gmra.mrb[0].mxu0 %v980
    %v2093 = vpop.f32.mrb[0].mxu0
    %v2094 = vadd.f32 0.0, %v2093
    %v2095 = vpop.f32.mrb[0].mxu0
    %2096 = vmatprep.mubr.f32.mxu0 0.0
    %2097 = vmatmul.mubr.f32.gmra.mrb[0].mxu0 %v983
    %v2098 = vpop.f32.mrb[0].mxu0
    %v2099 = vadd.f32 0.0, %v2098
    %v2100 = vpop.f32.mrb[0].mxu0
    %2101 = vmatprep.mubr.f32.mxu0 0.0
    %2102 = vmatmul.mubr.f32.gmra.mrb[0].mxu0 %v986
    %v2103 = vpop.f32.mrb[0].mxu0
    %v2104 = vadd.f32 0.0, %v2103
    %v2105 = vpop.f32.mrb[0].mxu0
    %2106 = vmatprep.mubr.f32.mxu0 0.0
    %2107 = vmatmul.mubr.f32.gmra.mrb[0].mxu0 %v989
    %v2108 = vpop.f32.mrb[0].mxu0
    %v2109 = vadd.f32 0.0, %v2108
    %v2110 = vpop.f32.mrb[0].mxu0
    %2111 = vmatprep.mubr.f32.mxu0 0.0
    %2112 = vmatmul.mubr.f32.gmra.mrb[0].mxu0 %v992
    %v2113 = vpop.f32.mrb[0].mxu0
    %v2114 = vadd.f32 0.0, %v2113
    %v2115 = vpop.f32.mrb[0].mxu0
    %2116 = vmatprep.mubr.f32.mxu0 0.0
    %2117 = vmatmul.mubr.f32.gmra.mrb[0].mxu0 %v995
    %v2118 = vpop.f32.mrb[0].mxu0
    %v2119 = vadd.f32 0.0, %v2118
    %v2120 = vpop.f32.mrb[0].mxu0
    %2121 = vmatprep.mubr.f32.mxu0 0.0
    %2122 = vmatmul.mubr.f32.gmra.mrb[0].mxu0 %v998
    %v2123 = vpop.f32.mrb[0].mxu0
    %v2124 = vadd.f32 0.0, %v2123
    %v2125 = vpop.f32.mrb[0].mxu0
    %2126 = vmatprep.mubr.f32.mxu0 0.0
    %2127 = vmatmul.mubr.f32.gmra.mrb[0].mxu0 %v1001
    %v2128 = vpop.f32.mrb[0].mxu0
    %v2129 = vadd.f32 0.0, %v2128
    %v2130 = vpop.f32.mrb[0].mxu0
    %2131 = vmatprep.mubr.f32.mxu0 0.0
    %2132 = vmatmul.mubr.f32.gmra.mrb[0].mxu0 %v1004
    %v2133 = vpop.f32.mrb[0].mxu0
    %v2134 = vadd.f32 0.0, %v2133
    %v2135 = vpop.f32.mrb[0].mxu0
    %2136 = vmatprep.mubr.f32.mxu0 0.0
    %2137 = vmatmul.mubr.f32.gmra.mrb[0].mxu0 %v1007
    %v2138 = vpop.f32.mrb[0].mxu0
    %v2139 = vadd.f32 0.0, %v2138
    %v2140 = vpop.f32.mrb[0].mxu0
    %2141 = vmatprep.mubr.f32.mxu0 0.0
    %2142 = vmatmul.mubr.f32.gmra.mrb[0].mxu0 %v1010
    %v2143 = vpop.f32.mrb[0].mxu0
    %v2144 = vadd.f32 0.0, %v2143
    %v2145 = vpop.f32.mrb[0].mxu0
    %2146 = vmatprep.mubr.f32.mxu0 0.0
    %2147 = vmatmul.mubr.f32.gmra.mrb[0].mxu0 %v1013
    %v2148 = vpop.f32.mrb[0].mxu0
    %v2149 = vadd.f32 0.0, %v2148
    %v2150 = vpop.f32.mrb[0].mxu0
    %2151 = vmatprep.mubr.f32.mxu0 0.0
    %2152 = vmatmul.mubr.f32.gmra.mrb[0].mxu0 %v1016
    %v2153 = vpop.f32.mrb[0].mxu0
    %v2154 = vadd.f32 0.0, %v2153
    %v2155 = vpop.f32.mrb[0].mxu0
    %2156 = vmatprep.mubr.f32.mxu0 0.0
    %2157 = vmatmul.mubr.f32.gmra.mrb[0].mxu0 %v1019
    %v2158 = vpop.f32.mrb[0].mxu0
    %v2159 = vadd.f32 0.0, %v2158
    %v2160 = vpop.f32.mrb[0].mxu0
    %2161 = vmatprep.mubr.f32.mxu0 0.0
    %2162 = vmatmul.mubr.f32.gmra.mrb[0].mxu0 %v1022
    %v2163 = vpop.f32.mrb[0].mxu0
    %v2164 = vadd.f32 0.0, %v2163
    %v2165 = vpop.f32.mrb[0].mxu0
    %2166 = vmatprep.mubr.f32.mxu0 0.0
    %2167 = vmatmul.mubr.f32.gmra.mrb[0].mxu0 %v1025
    %v2168 = vpop.f32.mrb[0].mxu0
    %v2169 = vadd.f32 0.0, %v2168
    %v2170 = vpop.f32.mrb[0].mxu0
    %2171 = vmatprep.mubr.f32.mxu0 0.0
    %2172 = vmatmul.mubr.f32.gmra.mrb[0].mxu0 %v1028
    %v2173 = vpop.f32.mrb[0].mxu0
    %v2174 = vadd.f32 0.0, %v2173
    %v2175 = vpop.f32.mrb[0].mxu0
    %2176 = vmatprep.mubr.f32.mxu0 0.0
    %2177 = vmatmul.mubr.f32.gmra.mrb[0].mxu0 %v1031
    %v2178 = vpop.f32.mrb[0].mxu0
    %v2179 = vadd.f32 0.0, %v2178
    %v2180 = vpop.f32.mrb[0].mxu0
    %2181 = vmatprep.mubr.f32.mxu0 0.0
    %2182 = vmatmul.mubr.f32.gmra.mrb[0].mxu0 %v1034
    %v2183 = vpop.f32.mrb[0].mxu0
    %v2184 = vadd.f32 0.0, %v2183
    %v2185 = vpop.f32.mrb[0].mxu0
    %2186 = vmatprep.mubr.f32.mxu0 0.0
    %2187 = vmatmul.mubr.f32.gmra.mrb[0].mxu0 %v1037
    %v2188 = vpop.f32.mrb[0].mxu0
    %v2189 = vadd.f32 0.0, %v2188
    %v2190 = vpop.f32.mrb[0].mxu0
    %2191 = vmatprep.mubr.f32.mxu0 0.0
    %2192 = vmatmul.mubr.f32.gmra.mrb[0].mxu0 %v1040
    %v2193 = vpop.f32.mrb[0].mxu0
    %v2194 = vadd.f32 0.0, %v2193
    %v2195 = vpop.f32.mrb[0].mxu0
    %2196 = vmatprep.mubr.f32.mxu0 0.0
    %2197 = vmatmul.mubr.f32.gmra.mrb[0].mxu0 %v1043
    %v2198 = vpop.f32.mrb[0].mxu0
    %v2199 = vadd.f32 0.0, %v2198
    %v2200 = vpop.f32.mrb[0].mxu0
    %2201 = vmatprep.mubr.f32.mxu0 0.0
    %2202 = vmatmul.mubr.f32.gmra.mrb[0].mxu0 %v1046
    %v2203 = vpop.f32.mrb[0].mxu0
    %v2204 = vadd.f32 0.0, %v2203
    %v2205 = vpop.f32.mrb[0].mxu0
    %2206 = vmatprep.mubr.f32.mxu0 0.0
    %2207 = vmatmul.mubr.f32.gmra.mrb[0].mxu0 %v1049
    %v2208 = vpop.f32.mrb[0].mxu0
    %v2209 = vadd.f32 0.0, %v2208
    %v2210 = vpop.f32.mrb[0].mxu0
    %2211 = vmatprep.mubr.f32.mxu0 0.0
    %2212 = vmatmul.mubr.f32.gmra.mrb[0].mxu0 %v1052
    %v2213 = vpop.f32.mrb[0].mxu0
    %v2214 = vadd.f32 0.0, %v2213
    %v2215 = vpop.f32.mrb[0].mxu0
    %2216 = vmatprep.mubr.f32.mxu0 0.0
    %2217 = vmatmul.mubr.f32.gmra.mrb[0].mxu0 %v1055
    %v2218 = vpop.f32.mrb[0].mxu0
    %v2219 = vadd.f32 0.0, %v2218
    %v2220 = vpop.f32.mrb[0].mxu0
    %2221 = vmatprep.mubr.f32.mxu0 0.0
    %2222 = vmatmul.mubr.f32.gmra.mrb[0].mxu0 %v1058
    %v2223 = vpop.f32.mrb[0].mxu0
    %v2224 = vadd.f32 0.0, %v2223
    %v2225 = vpop.f32.mrb[0].mxu0
    %2226 = vmatprep.mubr.f32.mxu0 0.0
    %2227 = vmatmul.mubr.f32.gmra.mrb[0].mxu0 %v1061
    %v2228 = vpop.f32.mrb[0].mxu0
    %v2229 = vadd.f32 0.0, %v2228
    %v2230 = vpop.f32.mrb[0].mxu0
    %2231 = vmatprep.mubr.f32.mxu0 0.0
    %2232 = vmatmul.mubr.f32.gmra.mrb[0].mxu0 %v1064
    %v2233 = vpop.f32.mrb[0].mxu0
    %v2234 = vadd.f32 0.0, %v2233
    %v2235 = vpop.f32.mrb[0].mxu0
    %2236 = vmatprep.mubr.f32.mxu0 0.0
    %2237 = vmatmul.mubr.f32.gmra.mrb[0].mxu0 %v1067
    %v2238 = vpop.f32.mrb[0].mxu0
    %v2239 = vadd.f32 0.0, %v2238
    %v2240 = vpop.f32.mrb[0].mxu0
    %2241 = vmatprep.mubr.f32.mxu0 0.0
    %2242 = vmatmul.mubr.f32.gmra.mrb[0].mxu0 %v1070
    %v2243 = vpop.f32.mrb[0].mxu0
    %v2244 = vadd.f32 0.0, %v2243
    %v2245 = vpop.f32.mrb[0].mxu0
    %2246 = vmatprep.mubr.f32.mxu0 0.0
    %2247 = vmatmul.mubr.f32.gmra.mrb[0].mxu0 %v1073
    %v2248 = vpop.f32.mrb[0].mxu0
    %v2249 = vadd.f32 0.0, %v2248
    %v2250 = vpop.f32.mrb[0].mxu0
    %2251 = vmatprep.mubr.f32.mxu0 0.0
    %2252 = vmatmul.mubr.f32.gmra.mrb[0].mxu0 %v1076
    %v2253 = vpop.f32.mrb[0].mxu0
    %v2254 = vadd.f32 0.0, %v2253
    %v2255 = vpop.f32.mrb[0].mxu0
    %2256 = vmatprep.mubr.f32.mxu0 0.0
    %2257 = vmatmul.mubr.f32.gmra.mrb[0].mxu0 %v1079
    %v2258 = vpop.f32.mrb[0].mxu0
    %v2259 = vadd.f32 0.0, %v2258
    %v2260 = vpop.f32.mrb[0].mxu0
    %2261 = vmatprep.mubr.f32.mxu0 0.0
    %2262 = vmatmul.mubr.f32.gmra.mrb[0].mxu0 %v1082
    %v2263 = vpop.f32.mrb[0].mxu0
    %v2264 = vadd.f32 0.0, %v2263
    %v2265 = vpop.f32.mrb[0].mxu0
    %2266 = vmatprep.mubr.f32.mxu0 0.0
    %2267 = vmatmul.mubr.f32.gmra.mrb[0].mxu0 %v1085
    %v2268 = vpop.f32.mrb[0].mxu0
    %v2269 = vadd.f32 0.0, %v2268
    %v2270 = vpop.f32.mrb[0].mxu0
    %2271 = vmatprep.mubr.f32.mxu0 0.0
    %2272 = vmatmul.mubr.f32.gmra.mrb[0].mxu0 %v1088
    %v2273 = vpop.f32.mrb[0].mxu0
    %v2274 = vadd.f32 0.0, %v2273
    %v2275 = vpop.f32.mrb[0].mxu0
    %2276 = vmatprep.mubr.f32.mxu0 0.0
    %2277 = vmatmul.mubr.f32.gmra.mrb[0].mxu0 %v1091
    %v2278 = vpop.f32.mrb[0].mxu0
    %v2279 = vadd.f32 0.0, %v2278
    %v2280 = vpop.f32.mrb[0].mxu0
    %2281 = vmatprep.mubr.f32.mxu0 0.0
    %2282 = vmatmul.mubr.f32.gmra.mrb[0].mxu0 %v1094
    %v2283 = vpop.f32.mrb[0].mxu0
    %v2284 = vadd.f32 0.0, %v2283
    %v2285 = vpop.f32.mrb[0].mxu0
    %2286 = vmatprep.mubr.f32.mxu0 0.0
    %2287 = vmatmul.mubr.f32.gmra.mrb[0].mxu0 %v1097
    %v2288 = vpop.f32.mrb[0].mxu0
    %v2289 = vadd.f32 0.0, %v2288
    %v2290 = vpop.f32.mrb[0].mxu0
    %2291 = vmatprep.mubr.f32.mxu0 0.0
    %2292 = vmatmul.mubr.f32.gmra.mrb[0].mxu0 %v1100
    %v2293 = vpop.f32.mrb[0].mxu0
    %v2294 = vadd.f32 0.0, %v2293
    %v2295 = vpop.f32.mrb[0].mxu0
    %2296 = vmatprep.mubr.f32.mxu0 0.0
    %2297 = vmatmul.mubr.f32.gmra.mrb[0].mxu0 %v1103
    %v2298 = vpop.f32.mrb[0].mxu0
    %v2299 = vadd.f32 0.0, %v2298
    %v2300 = vpop.f32.mrb[0].mxu0
    %2301 = vmatprep.mubr.f32.mxu0 0.0
    %2302 = vmatmul.mubr.f32.gmra.mrb[0].mxu0 %v1106
    %v2303 = vpop.f32.mrb[0].mxu0
    %v2304 = vadd.f32 0.0, %v2303
    %v2305 = vpop.f32.mrb[0].mxu0
    %2306 = vmatprep.mubr.f32.mxu0 0.0
    %2307 = vmatmul.mubr.f32.gmra.mrb[0].mxu0 %v1109
    %v2308 = vpop.f32.mrb[0].mxu0
    %v2309 = vadd.f32 0.0, %v2308
    %v2310 = vpop.f32.mrb[0].mxu0
    %2311 = vmatprep.mubr.f32.mxu0 0.0
    %2312 = vmatmul.mubr.f32.gmra.mrb[0].mxu0 %v1112
    %v2313 = vpop.f32.mrb[0].mxu0
    %v2314 = vadd.f32 0.0, %v2313
    %v2315 = vpop.f32.mrb[0].mxu0
    %2316 = vmatprep.mubr.f32.mxu0 0.0
    %2317 = vmatmul.mubr.f32.gmra.mrb[0].mxu0 %v1115
    %v2318 = vpop.f32.mrb[0].mxu0
    %v2319 = vadd.f32 0.0, %v2318
    %v2320 = vpop.f32.mrb[0].mxu0
    %2321 = vmatprep.mubr.f32.mxu0 0.0
    %2322 = vmatmul.mubr.f32.gmra.mrb[0].mxu0 %v1118
    %v2323 = vpop.f32.mrb[0].mxu0
    %v2324 = vadd.f32 0.0, %v2323
    %v2325 = vpop.f32.mrb[0].mxu0
    %2326 = vmatprep.mubr.f32.mxu0 0.0
    %2327 = vmatmul.mubr.f32.gmra.mrb[0].mxu0 %v1121
    %v2328 = vpop.f32.mrb[0].mxu0
    %v2329 = vadd.f32 0.0, %v2328
    %v2330 = vpop.f32.mrb[0].mxu0
    %2331 = vmatprep.mubr.f32.mxu0 0.0
    %2332 = vmatmul.mubr.f32.gmra.mrb[0].mxu0 %v1124
    %v2333 = vpop.f32.mrb[0].mxu0
    %v2334 = vadd.f32 0.0, %v2333
    %v2335 = vpop.f32.mrb[0].mxu0
    %2336 = vmatprep.mubr.f32.mxu0 0.0
    %2337 = vmatmul.mubr.f32.gmra.mrb[0].mxu0 %v1127
    %v2338 = vpop.f32.mrb[0].mxu0
    %v2339 = vadd.f32 0.0, %v2338
    %v2340 = vpop.f32.mrb[0].mxu0
    %2341 = vmatprep.mubr.f32.mxu0 0.0
    %2342 = vmatmul.mubr.f32.gmra.mrb[0].mxu0 %v1130
    %v2343 = vpop.f32.mrb[0].mxu0
    %v2344 = vadd.f32 0.0, %v2343
    %v2345 = vpop.f32.mrb[0].mxu0
    %2346 = vmatprep.mubr.f32.mxu0 0.0
    %2347 = vmatmul.mubr.f32.gmra.mrb[0].mxu0 %v1133
    %v2348 = vpop.f32.mrb[0].mxu0
    %v2349 = vadd.f32 0.0, %v2348
    %v2350 = vpop.f32.mrb[0].mxu0
    %2351 = vmatprep.mubr.f32.mxu0 0.0
    %2352 = vmatmul.mubr.f32.gmra.mrb[0].mxu0 %v1136
    %v2353 = vpop.f32.mrb[0].mxu0
    %v2354 = vadd.f32 0.0, %v2353
    %v2355 = vpop.f32.mrb[0].mxu0
    %2356 = vmatprep.mubr.f32.mxu0 0.0
    %2357 = vmatmul.mubr.f32.gmra.mrb[0].mxu0 %v1139
    %v2358 = vpop.f32.mrb[0].mxu0
    %v2359 = vadd.f32 0.0, %v2358
    %v2360 = vpop.f32.mrb[0].mxu0
    %2361 = vmatprep.mubr.f32.mxu0 0.0
    %2362 = vmatmul.mubr.f32.gmra.mrb[0].mxu0 %v1142
    %v2363 = vpop.f32.mrb[0].mxu0
    %v2364 = vadd.f32 0.0, %v2363
    %v2365 = vpop.f32.mrb[0].mxu0
    %2366 = vmatprep.mubr.f32.mxu0 0.0
    %2367 = vmatmul.mubr.f32.gmra.mrb[0].mxu0 %v1145
    %v2368 = vpop.f32.mrb[0].mxu0
    %v2369 = vadd.f32 0.0, %v2368
    %v2370 = vpop.f32.mrb[0].mxu0
    %2371 = vmatprep.mubr.f32.mxu0 0.0
    %2372 = vmatmul.mubr.f32.gmra.mrb[0].mxu0 %v1148
    %v2373 = vpop.f32.mrb[0].mxu0
    %v2374 = vadd.f32 0.0, %v2373
    %v2375 = vpop.f32.mrb[0].mxu0
    %2376 = vmatprep.mubr.f32.mxu0 0.0
    %2377 = vmatmul.mubr.f32.gmra.mrb[0].mxu0 %v1151
    %v2378 = vpop.f32.mrb[0].mxu0
    %v2379 = vadd.f32 0.0, %v2378
    %v2380 = vpop.f32.mrb[0].mxu0
    %2381 = vmatprep.mubr.f32.mxu0 0.0
    %2382 = vmatmul.mubr.f32.gmra.mrb[0].mxu0 %v1154
    %v2383 = vpop.f32.mrb[0].mxu0
    %v2384 = vadd.f32 0.0, %v2383
    %v2385 = vpop.f32.mrb[0].mxu0
    %2386 = vmatprep.mubr.f32.mxu0 0.0
    %2387 = vmatmul.mubr.f32.gmra.mrb[0].mxu0 %v1157
    %v2388 = vpop.f32.mrb[0].mxu0
    %v2389 = vadd.f32 0.0, %v2388
    %v2390 = vpop.f32.mrb[0].mxu0
    %2391 = vmatprep.mubr.f32.mxu0 0.0
    %2392 = vmatmul.mubr.f32.gmra.mrb[0].mxu0 %v1160
    %v2393 = vpop.f32.mrb[0].mxu0
    %v2394 = vadd.f32 0.0, %v2393
    %v2395 = vpop.f32.mrb[0].mxu0
    %2396 = vmatprep.mubr.f32.mxu0 0.0
    %2397 = vmatmul.mubr.f32.gmra.mrb[0].mxu0 %v1163
    %v2398 = vpop.f32.mrb[0].mxu0
    %v2399 = vadd.f32 0.0, %v2398
    %v2400 = vpop.f32.mrb[0].mxu0
    %2401 = vmatprep.mubr.f32.mxu0 0.0
    %2402 = vmatmul.mubr.f32.gmra.mrb[0].mxu0 %v1166
    %v2403 = vpop.f32.mrb[0].mxu0
    %v2404 = vadd.f32 0.0, %v2403
    %v2405 = vpop.f32.mrb[0].mxu0
    %2406 = vmatprep.mubr.f32.mxu0 0.0
    %2407 = vmatmul.mubr.f32.gmra.mrb[0].mxu0 %v1169
    %v2408 = vpop.f32.mrb[0].mxu0
    %v2409 = vadd.f32 0.0, %v2408
    %v2410 = vpop.f32.mrb[0].mxu0
    %2411 = vmatprep.mubr.f32.mxu0 0.0
    %2412 = vmatmul.mubr.f32.gmra.mrb[0].mxu0 %v1172
    %v2413 = vpop.f32.mrb[0].mxu0
    %v2414 = vadd.f32 0.0, %v2413
    %v2415 = vpop.f32.mrb[0].mxu0
    %2416 = vmatprep.mubr.f32.mxu0 0.0
    %2417 = vmatmul.mubr.f32.gmra.mrb[0].mxu0 %v1175
    %v2418 = vpop.f32.mrb[0].mxu0
    %v2419 = vadd.f32 0.0, %v2418
    %v2420 = vpop.f32.mrb[0].mxu0
    %2421 = vmatprep.mubr.f32.mxu0 0.0
    %2422 = vmatmul.mubr.f32.gmra.mrb[0].mxu0 %v1178
    %v2423 = vpop.f32.mrb[0].mxu0
    %v2424 = vadd.f32 0.0, %v2423
    %v2425 = vpop.f32.mrb[0].mxu0
    %2426 = vmatprep.mubr.f32.mxu0 0.0
    %2427 = vmatmul.mubr.f32.gmra.mrb[0].mxu0 %v1181
    %v2428 = vpop.f32.mrb[0].mxu0
    %v2429 = vadd.f32 0.0, %v2428
    %v2430 = vpop.f32.mrb[0].mxu0
    %2431 = vmatprep.mubr.f32.mxu0 0.0
    %2432 = vmatmul.mubr.f32.gmra.mrb[0].mxu0 %v1184
    %v2433 = vpop.f32.mrb[0].mxu0
    %v2434 = vadd.f32 0.0, %v2433
    %v2435 = vpop.f32.mrb[0].mxu0
    %2436 = vmatprep.mubr.f32.mxu0 0.0
    %2437 = vmatmul.mubr.f32.gmra.mrb[0].mxu0 %v1187
    %v2438 = vpop.f32.mrb[0].mxu0
    %v2439 = vadd.f32 0.0, %v2438
    %v2440 = vpop.f32.mrb[0].mxu0
    %2441 = vmatprep.mubr.f32.mxu0 0.0
    %2442 = vmatmul.mubr.f32.gmra.mrb[0].mxu0 %v1190
    %v2443 = vpop.f32.mrb[0].mxu0
    %v2444 = vadd.f32 0.0, %v2443
    %v2445 = vpop.f32.mrb[0].mxu0
    %2446 = vmatprep.mubr.f32.mxu0 0.0
    %2447 = vmatmul.mubr.f32.gmra.mrb[0].mxu0 %v1193
    %v2448 = vpop.f32.mrb[0].mxu0
    %v2449 = vadd.f32 0.0, %v2448
    %v2450 = vpop.f32.mrb[0].mxu0
    %2451 = vmatprep.mubr.f32.mxu0 0.0
    %2452 = vmatmul.mubr.f32.gmra.mrb[0].mxu0 %v1196
    %v2453 = vpop.f32.mrb[0].mxu0
    %v2454 = vadd.f32 0.0, %v2453
    %v2455 = vpop.f32.mrb[0].mxu0
    %2456 = vmatprep.mubr.f32.mxu0 0.0
    %2457 = vmatmul.mubr.f32.gmra.mrb[0].mxu0 %v1199
    %v2458 = vpop.f32.mrb[0].mxu0
    %v2459 = vadd.f32 0.0, %v2458
    %v2460 = vpop.f32.mrb[0].mxu0
    %2461 = vmatprep.mubr.f32.mxu0 0.0
    %2462 = vmatmul.mubr.f32.gmra.mrb[0].mxu0 %v1202
    %v2463 = vpop.f32.mrb[0].mxu0
    %v2464 = vadd.f32 0.0, %v2463
    %v2465 = vpop.f32.mrb[0].mxu0
    %2466 = vmatprep.mubr.f32.mxu0 0.0
    %2467 = vmatmul.mubr.f32.gmra.mrb[0].mxu0 %v1205
    %v2468 = vpop.f32.mrb[0].mxu0
    %v2469 = vadd.f32 0.0, %v2468
    %v2470 = vpop.f32.mrb[0].mxu0
    %2471 = vmatprep.mubr.f32.mxu0 0.0
    %2472 = vmatmul.mubr.f32.gmra.mrb[0].mxu0 %v1208
    %v2473 = vpop.f32.mrb[0].mxu0
    %v2474 = vadd.f32 0.0, %v2473
    %v2475 = vpop.f32.mrb[0].mxu0
    %2476 = vmatprep.mubr.f32.mxu0 0.0
    %2477 = vmatmul.mubr.f32.gmra.mrb[0].mxu0 %v1211
    %v2478 = vpop.f32.mrb[0].mxu0
    %v2479 = vadd.f32 0.0, %v2478
    %v2480 = vpop.f32.mrb[0].mxu0
    %2481 = vmatprep.mubr.f32.mxu0 0.0
    %2482 = vmatmul.mubr.f32.gmra.mrb[0].mxu0 %v1214
    %v2483 = vpop.f32.mrb[0].mxu0
    %v2484 = vadd.f32 0.0, %v2483
    %v2485 = vpop.f32.mrb[0].mxu0
    %2486 = vmatprep.mubr.f32.mxu0 0.0
    %2487 = vmatmul.mubr.f32.gmra.mrb[0].mxu0 %v1217
    %v2488 = vpop.f32.mrb[0].mxu0
    %v2489 = vadd.f32 0.0, %v2488
    %v2490 = vpop.f32.mrb[0].mxu0
    %2491 = vmatprep.mubr.f32.mxu0 0.0
    %2492 = vmatmul.mubr.f32.gmra.mrb[0].mxu0 %v1220
    %v2493 = vpop.f32.mrb[0].mxu0
    %v2494 = vadd.f32 0.0, %v2493
    %v2495 = vpop.f32.mrb[0].mxu0
    %2496 = vmatprep.mubr.f32.mxu0 0.0
    %2497 = vmatmul.mubr.f32.gmra.mrb[0].mxu0 %v1223
    %v2498 = vpop.f32.mrb[0].mxu0
    %v2499 = vadd.f32 0.0, %v2498
    %v2500 = vpop.f32.mrb[0].mxu0
    %2501 = vmatprep.mubr.f32.mxu0 0.0
    %2502 = vmatmul.mubr.f32.gmra.mrb[0].mxu0 %v1226
    %v2503 = vpop.f32.mrb[0].mxu0
    %v2504 = vadd.f32 0.0, %v2503
    %v2505 = vpop.f32.mrb[0].mxu0
    %2506 = vmatprep.mubr.f32.mxu0 0.0
    %2507 = vmatmul.mubr.f32.gmra.mrb[0].mxu0 %v1229
    %v2508 = vpop.f32.mrb[0].mxu0
    %v2509 = vadd.f32 0.0, %v2508
    %v2510 = vpop.f32.mrb[0].mxu0
    %2511 = vmatprep.mubr.f32.mxu0 0.0
    %2512 = vmatmul.mubr.f32.gmra.mrb[0].mxu0 %v1232
    %v2513 = vpop.f32.mrb[0].mxu0
    %v2514 = vadd.f32 0.0, %v2513
    %v2515 = vpop.f32.mrb[0].mxu0
    %2516 = vmatprep.mubr.f32.mxu0 0.0
    %2517 = vmatmul.mubr.f32.gmra.mrb[0].mxu0 %v1235
    %v2518 = vpop.f32.mrb[0].mxu0
    %v2519 = vadd.f32 0.0, %v2518
    %v2520 = vpop.f32.mrb[0].mxu0
    %2521 = vmatprep.mubr.f32.mxu0 0.0
    %2522 = vmatmul.mubr.f32.gmra.mrb[0].mxu0 %v1238
    %v2523 = vpop.f32.mrb[0].mxu0
    %v2524 = vadd.f32 0.0, %v2523
    %v2525 = vpop.f32.mrb[0].mxu0
    %2526 = vmatprep.mubr.f32.mxu0 0.0
    %2527 = vmatmul.mubr.f32.gmra.mrb[0].mxu0 %v1241
    %v2528 = vpop.f32.mrb[0].mxu0
    %v2529 = vadd.f32 0.0, %v2528
    %v2530 = vpop.f32.mrb[0].mxu0
    %2531 = vmatprep.mubr.f32.mxu0 0.0
    %2532 = vmatmul.mubr.f32.gmra.mrb[0].mxu0 %v1244
    %v2533 = vpop.f32.mrb[0].mxu0
    %v2534 = vadd.f32 0.0, %v2533
    %v2535 = vpop.f32.mrb[0].mxu0
    %2536 = vmatprep.mubr.f32.mxu0 0.0
    %2537 = vmatmul.mubr.f32.gmra.mrb[0].mxu0 %v1247
    %v2538 = vpop.f32.mrb[0].mxu0
    %v2539 = vadd.f32 0.0, %v2538
    %v2540 = vpop.f32.mrb[0].mxu0
    %2541 = vmatprep.mubr.f32.mxu0 0.0
    %2542 = vmatmul.mubr.f32.gmra.mrb[0].mxu0 %v1250
    %v2543 = vpop.f32.mrb[0].mxu0
    %v2544 = vadd.f32 0.0, %v2543
    %v2545 = vpop.f32.mrb[0].mxu0
    %2546 = vmatprep.mubr.f32.mxu0 0.0
    %2547 = vmatmul.mubr.f32.gmra.mrb[0].mxu0 %v1253
    %v2548 = vpop.f32.mrb[0].mxu0
    %v2549 = vadd.f32 0.0, %v2548
    %v2550 = vpop.f32.mrb[0].mxu0
    %2551 = vmatprep.mubr.f32.mxu0 0.0
    %2552 = vmatmul.mubr.f32.gmra.mrb[0].mxu0 %v1256
    %v2553 = vpop.f32.mrb[0].mxu0
    %v2554 = vadd.f32 0.0, %v2553
    %v2555 = vpop.f32.mrb[0].mxu0
    %2556 = vmatprep.mubr.f32.mxu0 0.0
    %2557 = vmatmul.mubr.f32.gmra.mrb[0].mxu0 %v1259
    %v2558 = vpop.f32.mrb[0].mxu0
    %v2559 = vadd.f32 0.0, %v2558
    %v2560 = vpop.f32.mrb[0].mxu0
    %2561 = vmatprep.mubr.f32.mxu0 0.0
    %2562 = vmatmul.mubr.f32.gmra.mrb[0].mxu0 %v1262
    %v2563 = vpop.f32.mrb[0].mxu0
    %v2564 = vadd.f32 0.0, %v2563
    %v2565 = vpop.f32.mrb[0].mxu0
    %2566 = vmatprep.mubr.f32.mxu0 0.0
    %2567 = vmatmul.mubr.f32.gmra.mrb[0].mxu0 %v1265
    %v2568 = vpop.f32.mrb[0].mxu0
    %v2569 = vadd.f32 0.0, %v2568
    %v2570 = vpop.f32.mrb[0].mxu0
    %2571 = vmatprep.mubr.f32.mxu0 0.0
    %2572 = vmatmul.mubr.f32.gmra.mrb[0].mxu0 %v1268
    %v2573 = vpop.f32.mrb[0].mxu0
    %v2574 = vadd.f32 0.0, %v2573
    %v2575 = vpop.f32.mrb[0].mxu0
    %2576 = vmatprep.mubr.f32.mxu0 0.0
    %2577 = vmatmul.mubr.f32.gmra.mrb[0].mxu0 %v1271
    %v2578 = vpop.f32.mrb[0].mxu0
    %v2579 = vadd.f32 0.0, %v2578
    %v2580 = vpop.f32.mrb[0].mxu0
    %2581 = vmatprep.mubr.f32.mxu0 0.0
    %2582 = vmatmul.mubr.f32.gmra.mrb[0].mxu0 %v1274
    %v2583 = vpop.f32.mrb[0].mxu0
    %v2584 = vadd.f32 0.0, %v2583
    %v2585 = vpop.f32.mrb[0].mxu0
    %2586 = vmatprep.mubr.f32.mxu0 0.0
    %2587 = vmatmul.mubr.f32.gmra.mrb[0].mxu0 %v1277
    %v2588 = vpop.f32.mrb[0].mxu0
    %v2589 = vadd.f32 0.0, %v2588
    %v2590 = vpop.f32.mrb[0].mxu0
    %2591 = vmatprep.mubr.f32.mxu0 0.0
    %2592 = vmatmul.mubr.f32.gmra.mrb[0].mxu0 %v1280
    %v2593 = vpop.f32.mrb[0].mxu0
    %v2594 = vadd.f32 0.0, %v2593
    %v2595 = vpop.f32.mrb[0].mxu0
    %2596 = vmatprep.mubr.f32.mxu0 0.0
    %2597 = vmatmul.mubr.f32.gmra.mrb[0].mxu0 %v1283
    %v2598 = vpop.f32.mrb[0].mxu0
    %v2599 = vadd.f32 0.0, %v2598
    %v2600 = vpop.f32.mrb[0].mxu0
    %2601 = vmatprep.mubr.f32.mxu0 0.0
    %2602 = vmatmul.mubr.f32.gmra.mrb[0].mxu0 %v1286
    %v2603 = vpop.f32.mrb[0].mxu0
    %v2604 = vadd.f32 0.0, %v2603
    %v2605 = vpop.f32.mrb[0].mxu0
    %2606 = vmatprep.mubr.f32.mxu0 0.0
    %2607 = vmatmul.mubr.f32.gmra.mrb[0].mxu0 %v1289
    %v2608 = vpop.f32.mrb[0].mxu0
    %v2609 = vadd.f32 0.0, %v2608
    %v2610 = vpop.f32.mrb[0].mxu0
    %2611 = vmatprep.mubr.f32.mxu0 0.0
    %2612 = vmatmul.mubr.f32.gmra.mrb[0].mxu0 %v1292
    %v2613 = vpop.f32.mrb[0].mxu0
    %v2614 = vadd.f32 0.0, %v2613
    %v2615 = vpop.f32.mrb[0].mxu0
    %2616 = vmatprep.mubr.f32.mxu0 0.0
    %2617 = vmatmul.mubr.f32.gmra.mrb[0].mxu0 %v1295
    %v2618 = vpop.f32.mrb[0].mxu0
    %v2619 = vadd.f32 0.0, %v2618
    %v2620 = vpop.f32.mrb[0].mxu0
    %2621 = vmatprep.mubr.f32.mxu0 0.0
    %2622 = vmatmul.mubr.f32.gmra.mrb[0].mxu0 %v1298
    %v2623 = vpop.f32.mrb[0].mxu0
    %v2624 = vadd.f32 0.0, %v2623
    %v2625 = vpop.f32.mrb[0].mxu0
    %2626 = vmatprep.mubr.f32.mxu0 0.0
    %2627 = vmatmul.mubr.f32.gmra.mrb[0].mxu0 %v1301
    %v2628 = vpop.f32.mrb[0].mxu0
    %v2629 = vadd.f32 0.0, %v2628
    %v2630 = vpop.f32.mrb[0].mxu0
    %2631 = vmatprep.mubr.f32.mxu0 0.0
    %2632 = vmatmul.mubr.f32.gmra.mrb[0].mxu0 %v1304
    %v2633 = vpop.f32.mrb[0].mxu0
    %v2634 = vadd.f32 0.0, %v2633
    %v2635 = vpop.f32.mrb[0].mxu0
    %2636 = vmatprep.mubr.f32.mxu0 0.0
    %2637 = vmatmul.mubr.f32.gmra.mrb[0].mxu0 %v1307
    %v2638 = vpop.f32.mrb[0].mxu0
    %v2639 = vadd.f32 0.0, %v2638
    %v2640 = vpop.f32.mrb[0].mxu0
    %2641 = vmatprep.mubr.f32.mxu0 0.0
    %2642 = vmatmul.mubr.f32.gmra.mrb[0].mxu0 %v1310
    %v2643 = vpop.f32.mrb[0].mxu0
    %v2644 = vadd.f32 0.0, %v2643
    %v2645 = vpop.f32.mrb[0].mxu0
    %2646 = vmatprep.mubr.f32.mxu0 0.0
    %2647 = vmatmul.mubr.f32.gmra.mrb[0].mxu0 %v1313
    %v2648 = vpop.f32.mrb[0].mxu0
    %v2649 = vadd.f32 0.0, %v2648
    %v2650 = vpop.f32.mrb[0].mxu0
    %2651 = vmatprep.mubr.f32.mxu0 0.0
    %2652 = vmatmul.mubr.f32.gmra.mrb[0].mxu0 %v1316
    %v2653 = vpop.f32.mrb[0].mxu0
    %v2654 = vadd.f32 0.0, %v2653
    %v2655 = vpop.f32.mrb[0].mxu0
    %2656 = vmatprep.mubr.f32.mxu0 0.0
    %2657 = vmatmul.mubr.f32.gmra.mrb[0].mxu0 %v1319
    %v2658 = vpop.f32.mrb[0].mxu0
    %v2659 = vadd.f32 0.0, %v2658
    %v2660 = vpop.f32.mrb[0].mxu0
    %2661 = vmatprep.mubr.f32.mxu0 0.0
    %2662 = vmatmul.mubr.f32.gmra.mrb[0].mxu0 %v1322
    %v2663 = vpop.f32.mrb[0].mxu0
    %v2664 = vadd.f32 0.0, %v2663
    %v2665 = vpop.f32.mrb[0].mxu0
    %2666 = vmatprep.mubr.f32.mxu0 0.0
    %2667 = vmatmul.mubr.f32.gmra.mrb[0].mxu0 %v1325
    %v2668 = vpop.f32.mrb[0].mxu0
    %v2669 = vadd.f32 0.0, %v2668
    %v2670 = vpop.f32.mrb[0].mxu0
    %2671 = vmatprep.mubr.f32.mxu0 0.0
    %2672 = vmatmul.mubr.f32.gmra.mrb[0].mxu0 %v1328
    %v2673 = vpop.f32.mrb[0].mxu0
    %v2674 = vadd.f32 0.0, %v2673
    %v2675 = vpop.f32.mrb[0].mxu0
    %2676 = vmatprep.mubr.f32.mxu0 0.0
    %2677 = vmatmul.mubr.f32.gmra.mrb[0].mxu0 %v1331
    %v2678 = vpop.f32.mrb[0].mxu0
    %v2679 = vadd.f32 0.0, %v2678
    %v2680 = vpop.f32.mrb[0].mxu0
    %2681 = vdwg.mxu0
    %s2682 = sadd.s32 0, 0
    %s2683 = smul.u32 %s2682, 2048
    %v2684 = vlaneseq
    %v2685 = vshrl.u32 %v2684, 7
    %v2686 = vadd.s32 %v2685, 8
    %v2687 = vadd.s32 %v2685, 16
    %v2688 = vadd.s32 %v2685, 24
    %v2689 = vadd.s32 %v2685, 32
    %v2690 = vadd.s32 %v2685, 40
    %v2691 = vadd.s32 %v2685, 48
    %v2692 = vadd.s32 %v2685, 56
    %v2693 = vadd.s32 %v2685, 64
    %v2694 = vadd.s32 %v2685, 72
    %v2695 = vadd.s32 %v2685, 80
    %v2696 = vadd.s32 %v2685, 88
    %v2697 = vadd.s32 %v2685, 96
    %v2698 = vadd.s32 %v2685, 104
    %v2699 = vadd.s32 %v2685, 112
    %v2700 = vadd.s32 %v2685, 120
    %v2701 = vadd.s32 %v2685, 128
    %v2702 = vadd.s32 %v2685, 136
    %v2703 = vadd.s32 %v2685, 144
    %v2704 = vadd.s32 %v2685, 152
    %v2705 = vadd.s32 %v2685, 160
    %v2706 = vadd.s32 %v2685, 168
    %v2707 = vadd.s32 %v2685, 176
    %v2708 = vadd.s32 %v2685, 184
    %v2709 = vadd.s32 %v2685, 192
    %v2710 = vadd.s32 %v2685, 200
    %v2711 = vadd.s32 %v2685, 208
    %v2712 = vadd.s32 %v2685, 216
    %v2713 = vadd.s32 %v2685, 224
    %v2714 = vadd.s32 %v2685, 232
    %v2715 = vadd.s32 %v2685, 240
    %v2716 = vadd.s32 %v2685, 248
    %v2717 = vadd.s32 %v2685, 256
    %v2718 = vadd.s32 %v2685, 264
    %v2719 = vadd.s32 %v2685, 272
    %v2720 = vadd.s32 %v2685, 280
    %v2721 = vadd.s32 %v2685, 288
    %v2722 = vadd.s32 %v2685, 296
    %v2723 = vadd.s32 %v2685, 304
    %v2724 = vadd.s32 %v2685, 312
    %v2725 = vadd.s32 %v2685, 320
    %v2726 = vadd.s32 %v2685, 328
    %v2727 = vadd.s32 %v2685, 336
    %v2728 = vadd.s32 %v2685, 344
    %v2729 = vadd.s32 %v2685, 352
    %v2730 = vadd.s32 %v2685, 360
    %v2731 = vadd.s32 %v2685, 368
    %v2732 = vadd.s32 %v2685, 376
    %v2733 = vadd.s32 %v2685, 384
    %v2734 = vadd.s32 %v2685, 392
    %v2735 = vadd.s32 %v2685, 400
    %v2736 = vadd.s32 %v2685, 408
    %v2737 = vadd.s32 %v2685, 416
    %v2738 = vadd.s32 %v2685, 424
    %v2739 = vadd.s32 %v2685, 432
    %v2740 = vadd.s32 %v2685, 440
    %v2741 = vadd.s32 %v2685, 448
    %v2742 = vadd.s32 %v2685, 456
    %v2743 = vadd.s32 %v2685, 464
    %v2744 = vadd.s32 %v2685, 472
    %v2745 = vadd.s32 %v2685, 480
    %v2746 = vadd.s32 %v2685, 488
    %v2747 = vadd.s32 %v2685, 496
    %v2748 = vadd.s32 %v2685, 504
    %v2749 = vadd.s32 %v2685, 512
    %v2750 = vadd.s32 %v2685, 520
    %v2751 = vadd.s32 %v2685, 528
    %v2752 = vadd.s32 %v2685, 536
    %v2753 = vadd.s32 %v2685, 544
    %v2754 = vadd.s32 %v2685, 552
    %v2755 = vadd.s32 %v2685, 560
    %v2756 = vadd.s32 %v2685, 568
    %v2757 = vadd.s32 %v2685, 576
    %v2758 = vadd.s32 %v2685, 584
    %v2759 = vadd.s32 %v2685, 592
    %v2760 = vadd.s32 %v2685, 600
    %v2761 = vadd.s32 %v2685, 608
    %v2762 = vadd.s32 %v2685, 616
    %v2763 = vadd.s32 %v2685, 624
    %v2764 = vadd.s32 %v2685, 632
    %v2765 = vadd.s32 %v2685, 640
    %v2766 = vadd.s32 %v2685, 648
    %v2767 = vadd.s32 %v2685, 656
    %v2768 = vadd.s32 %v2685, 664
    %v2769 = vadd.s32 %v2685, 672
    %v2770 = vadd.s32 %v2685, 680
    %v2771 = vadd.s32 %v2685, 688
    %v2772 = vadd.s32 %v2685, 696
    %v2773 = vadd.s32 %v2685, 704
    %v2774 = vadd.s32 %v2685, 712
    %v2775 = vadd.s32 %v2685, 720
    %v2776 = vadd.s32 %v2685, 728
    %v2777 = vadd.s32 %v2685, 736
    %v2778 = vadd.s32 %v2685, 744
    %v2779 = vadd.s32 %v2685, 752
    %v2780 = vadd.s32 %v2685, 760
    %v2781 = vadd.s32 %v2685, 768
    %v2782 = vadd.s32 %v2685, 776
    %v2783 = vadd.s32 %v2685, 784
    %v2784 = vadd.s32 %v2685, 792
    %v2785 = vadd.s32 %v2685, 800
    %v2786 = vadd.s32 %v2685, 808
    %v2787 = vadd.s32 %v2685, 816
    %v2788 = vadd.s32 %v2685, 824
    %v2789 = vadd.s32 %v2685, 832
    %v2790 = vadd.s32 %v2685, 840
    %v2791 = vadd.s32 %v2685, 848
    %v2792 = vadd.s32 %v2685, 856
    %v2793 = vadd.s32 %v2685, 864
    %v2794 = vadd.s32 %v2685, 872
    %v2795 = vadd.s32 %v2685, 880
    %v2796 = vadd.s32 %v2685, 888
    %v2797 = vadd.s32 %v2685, 896
    %v2798 = vadd.s32 %v2685, 904
    %v2799 = vadd.s32 %v2685, 912
    %v2800 = vadd.s32 %v2685, 920
    %v2801 = vadd.s32 %v2685, 928
    %v2802 = vadd.s32 %v2685, 936
    %v2803 = vadd.s32 %v2685, 944
    %v2804 = vadd.s32 %v2685, 952
    %v2805 = vadd.s32 %v2685, 960
    %v2806 = vadd.s32 %v2685, 968
    %v2807 = vadd.s32 %v2685, 976
    %v2808 = vadd.s32 %v2685, 984
    %v2809 = vadd.s32 %v2685, 992
    %v2810 = vadd.s32 %v2685, 1000
    %v2811 = vadd.s32 %v2685, 1008
    %v2812 = vadd.s32 %v2685, 1016
    %v2813 = vadd.s32 %v2685, 1024
    %v2814 = vadd.s32 %v2685, 1032
    %v2815 = vadd.s32 %v2685, 1040
    %v2816 = vadd.s32 %v2685, 1048
    %v2817 = vadd.s32 %v2685, 1056
    %v2818 = vadd.s32 %v2685, 1064
    %v2819 = vadd.s32 %v2685, 1072
    %v2820 = vadd.s32 %v2685, 1080
    %v2821 = vadd.s32 %v2685, 1088
    %v2822 = vadd.s32 %v2685, 1096
    %v2823 = vadd.s32 %v2685, 1104
    %v2824 = vadd.s32 %v2685, 1112
    %v2825 = vadd.s32 %v2685, 1120
    %v2826 = vadd.s32 %v2685, 1128
    %v2827 = vadd.s32 %v2685, 1136
    %v2828 = vadd.s32 %v2685, 1144
    %v2829 = vadd.s32 %v2685, 1152
    %v2830 = vadd.s32 %v2685, 1160
    %v2831 = vadd.s32 %v2685, 1168
    %v2832 = vadd.s32 %v2685, 1176
    %v2833 = vadd.s32 %v2685, 1184
    %v2834 = vadd.s32 %v2685, 1192
    %v2835 = vadd.s32 %v2685, 1200
    %v2836 = vadd.s32 %v2685, 1208
    %v2837 = vadd.s32 %v2685, 1216
    %v2838 = vadd.s32 %v2685, 1224
    %v2839 = vadd.s32 %v2685, 1232
    %v2840 = vadd.s32 %v2685, 1240
    %v2841 = vadd.s32 %v2685, 1248
    %v2842 = vadd.s32 %v2685, 1256
    %v2843 = vadd.s32 %v2685, 1264
    %v2844 = vadd.s32 %v2685, 1272
    %v2845 = vadd.s32 %v2685, 1280
    %v2846 = vadd.s32 %v2685, 1288
    %v2847 = vadd.s32 %v2685, 1296
    %v2848 = vadd.s32 %v2685, 1304
    %v2849 = vadd.s32 %v2685, 1312
    %v2850 = vadd.s32 %v2685, 1320
    %v2851 = vadd.s32 %v2685, 1328
    %v2852 = vadd.s32 %v2685, 1336
    %v2853 = vadd.s32 %v2685, 1344
    %v2854 = vadd.s32 %v2685, 1352
    %v2855 = vadd.s32 %v2685, 1360
    %v2856 = vadd.s32 %v2685, 1368
    %v2857 = vadd.s32 %v2685, 1376
    %v2858 = vadd.s32 %v2685, 1384
    %v2859 = vadd.s32 %v2685, 1392
    %v2860 = vadd.s32 %v2685, 1400
    %v2861 = vadd.s32 %v2685, 1408
    %v2862 = vadd.s32 %v2685, 1416
    %v2863 = vadd.s32 %v2685, 1424
    %v2864 = vadd.s32 %v2685, 1432
    %v2865 = vadd.s32 %v2685, 1440
    %v2866 = vadd.s32 %v2685, 1448
    %v2867 = vadd.s32 %v2685, 1456
    %v2868 = vadd.s32 %v2685, 1464
    %v2869 = vadd.s32 %v2685, 1472
    %v2870 = vadd.s32 %v2685, 1480
    %v2871 = vadd.s32 %v2685, 1488
    %v2872 = vadd.s32 %v2685, 1496
    %v2873 = vadd.s32 %v2685, 1504
    %v2874 = vadd.s32 %v2685, 1512
    %v2875 = vadd.s32 %v2685, 1520
    %v2876 = vadd.s32 %v2685, 1528
    %v2877 = vadd.s32 %v2685, 1536
    %v2878 = vadd.s32 %v2685, 1544
    %v2879 = vadd.s32 %v2685, 1552
    %v2880 = vadd.s32 %v2685, 1560
    %v2881 = vadd.s32 %v2685, 1568
    %v2882 = vadd.s32 %v2685, 1576
    %v2883 = vadd.s32 %v2685, 1584
    %v2884 = vadd.s32 %v2685, 1592
    %v2885 = vadd.s32 %v2685, 1600
    %v2886 = vadd.s32 %v2685, 1608
    %v2887 = vadd.s32 %v2685, 1616
    %v2888 = vadd.s32 %v2685, 1624
    %v2889 = vadd.s32 %v2685, 1632
    %v2890 = vadd.s32 %v2685, 1640
    %v2891 = vadd.s32 %v2685, 1648
    %v2892 = vadd.s32 %v2685, 1656
    %v2893 = vadd.s32 %v2685, 1664
    %v2894 = vadd.s32 %v2685, 1672
    %v2895 = vadd.s32 %v2685, 1680
    %v2896 = vadd.s32 %v2685, 1688
    %v2897 = vadd.s32 %v2685, 1696
    %v2898 = vadd.s32 %v2685, 1704
    %v2899 = vadd.s32 %v2685, 1712
    %v2900 = vadd.s32 %v2685, 1720
    %v2901 = vadd.s32 %v2685, 1728
    %v2902 = vadd.s32 %v2685, 1736
    %v2903 = vadd.s32 %v2685, 1744
    %v2904 = vadd.s32 %v2685, 1752
    %v2905 = vadd.s32 %v2685, 1760
    %v2906 = vadd.s32 %v2685, 1768
    %v2907 = vadd.s32 %v2685, 1776
    %v2908 = vadd.s32 %v2685, 1784
    %v2909 = vadd.s32 %v2685, 1792
    %v2910 = vadd.s32 %v2685, 1800
    %v2911 = vadd.s32 %v2685, 1808
    %v2912 = vadd.s32 %v2685, 1816
    %v2913 = vadd.s32 %v2685, 1824
    %v2914 = vadd.s32 %v2685, 1832
    %v2915 = vadd.s32 %v2685, 1840
    %v2916 = vadd.s32 %v2685, 1848
    %v2917 = vadd.s32 %v2685, 1856
    %v2918 = vadd.s32 %v2685, 1864
    %v2919 = vadd.s32 %v2685, 1872
    %v2920 = vadd.s32 %v2685, 1880
    %v2921 = vadd.s32 %v2685, 1888
    %v2922 = vadd.s32 %v2685, 1896
    %v2923 = vadd.s32 %v2685, 1904
    %v2924 = vadd.s32 %v2685, 1912
    %v2925 = vadd.s32 %v2685, 1920
    %v2926 = vadd.s32 %v2685, 1928
    %v2927 = vadd.s32 %v2685, 1936
    %v2928 = vadd.s32 %v2685, 1944
    %v2929 = vadd.s32 %v2685, 1952
    %v2930 = vadd.s32 %v2685, 1960
    %v2931 = vadd.s32 %v2685, 1968
    %v2932 = vadd.s32 %v2685, 1976
    %v2933 = vadd.s32 %v2685, 1984
    %v2934 = vadd.s32 %v2685, 1992
    %v2935 = vadd.s32 %v2685, 2000
    %v2936 = vadd.s32 %v2685, 2008
    %v2937 = vadd.s32 %v2685, 2016
    %v2938 = vadd.s32 %v2685, 2024
    %v2939 = vadd.s32 %v2685, 2032
    %v2940 = vadd.s32 %v2685, 2040
    %v2941 = vstv %s2683
    %v2942 = vadd.s32 %v2941, %v2685
    %v2943 = vadd.s32 %v2941, %v2686
    %v2944 = vadd.s32 %v2941, %v2687
    %v2945 = vadd.s32 %v2941, %v2688
    %v2946 = vadd.s32 %v2941, %v2689
    %v2947 = vadd.s32 %v2941, %v2690
    %v2948 = vadd.s32 %v2941, %v2691
    %v2949 = vadd.s32 %v2941, %v2692
    %v2950 = vadd.s32 %v2941, %v2693
    %v2951 = vadd.s32 %v2941, %v2694
    %v2952 = vadd.s32 %v2941, %v2695
    %v2953 = vadd.s32 %v2941, %v2696
    %v2954 = vadd.s32 %v2941, %v2697
    %v2955 = vadd.s32 %v2941, %v2698
    %v2956 = vadd.s32 %v2941, %v2699
    %v2957 = vadd.s32 %v2941, %v2700
    %v2958 = vadd.s32 %v2941, %v2701
    %v2959 = vadd.s32 %v2941, %v2702
    %v2960 = vadd.s32 %v2941, %v2703
    %v2961 = vadd.s32 %v2941, %v2704
    %v2962 = vadd.s32 %v2941, %v2705
    %v2963 = vadd.s32 %v2941, %v2706
    %v2964 = vadd.s32 %v2941, %v2707
    %v2965 = vadd.s32 %v2941, %v2708
    %v2966 = vadd.s32 %v2941, %v2709
    %v2967 = vadd.s32 %v2941, %v2710
    %v2968 = vadd.s32 %v2941, %v2711
    %v2969 = vadd.s32 %v2941, %v2712
    %v2970 = vadd.s32 %v2941, %v2713
    %v2971 = vadd.s32 %v2941, %v2714
    %v2972 = vadd.s32 %v2941, %v2715
    %v2973 = vadd.s32 %v2941, %v2716
    %v2974 = vadd.s32 %v2941, %v2717
    %v2975 = vadd.s32 %v2941, %v2718
    %v2976 = vadd.s32 %v2941, %v2719
    %v2977 = vadd.s32 %v2941, %v2720
    %v2978 = vadd.s32 %v2941, %v2721
    %v2979 = vadd.s32 %v2941, %v2722
    %v2980 = vadd.s32 %v2941, %v2723
    %v2981 = vadd.s32 %v2941, %v2724
    %v2982 = vadd.s32 %v2941, %v2725
    %v2983 = vadd.s32 %v2941, %v2726
    %v2984 = vadd.s32 %v2941, %v2727
    %v2985 = vadd.s32 %v2941, %v2728
    %v2986 = vadd.s32 %v2941, %v2729
    %v2987 = vadd.s32 %v2941, %v2730
    %v2988 = vadd.s32 %v2941, %v2731
    %v2989 = vadd.s32 %v2941, %v2732
    %v2990 = vadd.s32 %v2941, %v2733
    %v2991 = vadd.s32 %v2941, %v2734
    %v2992 = vadd.s32 %v2941, %v2735
    %v2993 = vadd.s32 %v2941, %v2736
    %v2994 = vadd.s32 %v2941, %v2737
    %v2995 = vadd.s32 %v2941, %v2738
    %v2996 = vadd.s32 %v2941, %v2739
    %v2997 = vadd.s32 %v2941, %v2740
    %v2998 = vadd.s32 %v2941, %v2741
    %v2999 = vadd.s32 %v2941, %v2742
    %v3000 = vadd.s32 %v2941, %v2743
    %v3001 = vadd.s32 %v2941, %v2744
    %v3002 = vadd.s32 %v2941, %v2745
    %v3003 = vadd.s32 %v2941, %v2746
    %v3004 = vadd.s32 %v2941, %v2747
    %v3005 = vadd.s32 %v2941, %v2748
    %v3006 = vadd.s32 %v2941, %v2749
    %v3007 = vadd.s32 %v2941, %v2750
    %v3008 = vadd.s32 %v2941, %v2751
    %v3009 = vadd.s32 %v2941, %v2752
    %v3010 = vadd.s32 %v2941, %v2753
    %v3011 = vadd.s32 %v2941, %v2754
    %v3012 = vadd.s32 %v2941, %v2755
    %v3013 = vadd.s32 %v2941, %v2756
    %v3014 = vadd.s32 %v2941, %v2757
    %v3015 = vadd.s32 %v2941, %v2758
    %v3016 = vadd.s32 %v2941, %v2759
    %v3017 = vadd.s32 %v2941, %v2760
    %v3018 = vadd.s32 %v2941, %v2761
    %v3019 = vadd.s32 %v2941, %v2762
    %v3020 = vadd.s32 %v2941, %v2763
    %v3021 = vadd.s32 %v2941, %v2764
    %v3022 = vadd.s32 %v2941, %v2765
    %v3023 = vadd.s32 %v2941, %v2766
    %v3024 = vadd.s32 %v2941, %v2767
    %v3025 = vadd.s32 %v2941, %v2768
    %v3026 = vadd.s32 %v2941, %v2769
    %v3027 = vadd.s32 %v2941, %v2770
    %v3028 = vadd.s32 %v2941, %v2771
    %v3029 = vadd.s32 %v2941, %v2772
    %v3030 = vadd.s32 %v2941, %v2773
    %v3031 = vadd.s32 %v2941, %v2774
    %v3032 = vadd.s32 %v2941, %v2775
    %v3033 = vadd.s32 %v2941, %v2776
    %v3034 = vadd.s32 %v2941, %v2777
    %v3035 = vadd.s32 %v2941, %v2778
    %v3036 = vadd.s32 %v2941, %v2779
    %v3037 = vadd.s32 %v2941, %v2780
    %v3038 = vadd.s32 %v2941, %v2781
    %v3039 = vadd.s32 %v2941, %v2782
    %v3040 = vadd.s32 %v2941, %v2783
    %v3041 = vadd.s32 %v2941, %v2784
    %v3042 = vadd.s32 %v2941, %v2785
    %v3043 = vadd.s32 %v2941, %v2786
    %v3044 = vadd.s32 %v2941, %v2787
    %v3045 = vadd.s32 %v2941, %v2788
    %v3046 = vadd.s32 %v2941, %v2789
    %v3047 = vadd.s32 %v2941, %v2790
    %v3048 = vadd.s32 %v2941, %v2791
    %v3049 = vadd.s32 %v2941, %v2792
    %v3050 = vadd.s32 %v2941, %v2793
    %v3051 = vadd.s32 %v2941, %v2794
    %v3052 = vadd.s32 %v2941, %v2795
    %v3053 = vadd.s32 %v2941, %v2796
    %v3054 = vadd.s32 %v2941, %v2797
    %v3055 = vadd.s32 %v2941, %v2798
    %v3056 = vadd.s32 %v2941, %v2799
    %v3057 = vadd.s32 %v2941, %v2800
    %v3058 = vadd.s32 %v2941, %v2801
    %v3059 = vadd.s32 %v2941, %v2802
    %v3060 = vadd.s32 %v2941, %v2803
    %v3061 = vadd.s32 %v2941, %v2804
    %v3062 = vadd.s32 %v2941, %v2805
    %v3063 = vadd.s32 %v2941, %v2806
    %v3064 = vadd.s32 %v2941, %v2807
    %v3065 = vadd.s32 %v2941, %v2808
    %v3066 = vadd.s32 %v2941, %v2809
    %v3067 = vadd.s32 %v2941, %v2810
    %v3068 = vadd.s32 %v2941, %v2811
    %v3069 = vadd.s32 %v2941, %v2812
    %v3070 = vadd.s32 %v2941, %v2813
    %v3071 = vadd.s32 %v2941, %v2814
    %v3072 = vadd.s32 %v2941, %v2815
    %v3073 = vadd.s32 %v2941, %v2816
    %v3074 = vadd.s32 %v2941, %v2817
    %v3075 = vadd.s32 %v2941, %v2818
    %v3076 = vadd.s32 %v2941, %v2819
    %v3077 = vadd.s32 %v2941, %v2820
    %v3078 = vadd.s32 %v2941, %v2821
    %v3079 = vadd.s32 %v2941, %v2822
    %v3080 = vadd.s32 %v2941, %v2823
    %v3081 = vadd.s32 %v2941, %v2824
    %v3082 = vadd.s32 %v2941, %v2825
    %v3083 = vadd.s32 %v2941, %v2826
    %v3084 = vadd.s32 %v2941, %v2827
    %v3085 = vadd.s32 %v2941, %v2828
    %v3086 = vadd.s32 %v2941, %v2829
    %v3087 = vadd.s32 %v2941, %v2830
    %v3088 = vadd.s32 %v2941, %v2831
    %v3089 = vadd.s32 %v2941, %v2832
    %v3090 = vadd.s32 %v2941, %v2833
    %v3091 = vadd.s32 %v2941, %v2834
    %v3092 = vadd.s32 %v2941, %v2835
    %v3093 = vadd.s32 %v2941, %v2836
    %v3094 = vadd.s32 %v2941, %v2837
    %v3095 = vadd.s32 %v2941, %v2838
    %v3096 = vadd.s32 %v2941, %v2839
    %v3097 = vadd.s32 %v2941, %v2840
    %v3098 = vadd.s32 %v2941, %v2841
    %v3099 = vadd.s32 %v2941, %v2842
    %v3100 = vadd.s32 %v2941, %v2843
    %v3101 = vadd.s32 %v2941, %v2844
    %v3102 = vadd.s32 %v2941, %v2845
    %v3103 = vadd.s32 %v2941, %v2846
    %v3104 = vadd.s32 %v2941, %v2847
    %v3105 = vadd.s32 %v2941, %v2848
    %v3106 = vadd.s32 %v2941, %v2849
    %v3107 = vadd.s32 %v2941, %v2850
    %v3108 = vadd.s32 %v2941, %v2851
    %v3109 = vadd.s32 %v2941, %v2852
    %v3110 = vadd.s32 %v2941, %v2853
    %v3111 = vadd.s32 %v2941, %v2854
    %v3112 = vadd.s32 %v2941, %v2855
    %v3113 = vadd.s32 %v2941, %v2856
    %v3114 = vadd.s32 %v2941, %v2857
    %v3115 = vadd.s32 %v2941, %v2858
    %v3116 = vadd.s32 %v2941, %v2859
    %v3117 = vadd.s32 %v2941, %v2860
    %v3118 = vadd.s32 %v2941, %v2861
    %v3119 = vadd.s32 %v2941, %v2862
    %v3120 = vadd.s32 %v2941, %v2863
    %v3121 = vadd.s32 %v2941, %v2864
    %v3122 = vadd.s32 %v2941, %v2865
    %v3123 = vadd.s32 %v2941, %v2866
    %v3124 = vadd.s32 %v2941, %v2867
    %v3125 = vadd.s32 %v2941, %v2868
    %v3126 = vadd.s32 %v2941, %v2869
    %v3127 = vadd.s32 %v2941, %v2870
    %v3128 = vadd.s32 %v2941, %v2871
    %v3129 = vadd.s32 %v2941, %v2872
    %v3130 = vadd.s32 %v2941, %v2873
    %v3131 = vadd.s32 %v2941, %v2874
    %v3132 = vadd.s32 %v2941, %v2875
    %v3133 = vadd.s32 %v2941, %v2876
    %v3134 = vadd.s32 %v2941, %v2877
    %v3135 = vadd.s32 %v2941, %v2878
    %v3136 = vadd.s32 %v2941, %v2879
    %v3137 = vadd.s32 %v2941, %v2880
    %v3138 = vadd.s32 %v2941, %v2881
    %v3139 = vadd.s32 %v2941, %v2882
    %v3140 = vadd.s32 %v2941, %v2883
    %v3141 = vadd.s32 %v2941, %v2884
    %v3142 = vadd.s32 %v2941, %v2885
    %v3143 = vadd.s32 %v2941, %v2886
    %v3144 = vadd.s32 %v2941, %v2887
    %v3145 = vadd.s32 %v2941, %v2888
    %v3146 = vadd.s32 %v2941, %v2889
    %v3147 = vadd.s32 %v2941, %v2890
    %v3148 = vadd.s32 %v2941, %v2891
    %v3149 = vadd.s32 %v2941, %v2892
    %v3150 = vadd.s32 %v2941, %v2893
    %v3151 = vadd.s32 %v2941, %v2894
    %v3152 = vadd.s32 %v2941, %v2895
    %v3153 = vadd.s32 %v2941, %v2896
    %v3154 = vadd.s32 %v2941, %v2897
    %v3155 = vadd.s32 %v2941, %v2898
    %v3156 = vadd.s32 %v2941, %v2899
    %v3157 = vadd.s32 %v2941, %v2900
    %v3158 = vadd.s32 %v2941, %v2901
    %v3159 = vadd.s32 %v2941, %v2902
    %v3160 = vadd.s32 %v2941, %v2903
    %v3161 = vadd.s32 %v2941, %v2904
    %v3162 = vadd.s32 %v2941, %v2905
    %v3163 = vadd.s32 %v2941, %v2906
    %v3164 = vadd.s32 %v2941, %v2907
    %v3165 = vadd.s32 %v2941, %v2908
    %v3166 = vadd.s32 %v2941, %v2909
    %v3167 = vadd.s32 %v2941, %v2910
    %v3168 = vadd.s32 %v2941, %v2911
    %v3169 = vadd.s32 %v2941, %v2912
    %v3170 = vadd.s32 %v2941, %v2913
    %v3171 = vadd.s32 %v2941, %v2914
    %v3172 = vadd.s32 %v2941, %v2915
    %v3173 = vadd.s32 %v2941, %v2916
    %v3174 = vadd.s32 %v2941, %v2917
    %v3175 = vadd.s32 %v2941, %v2918
    %v3176 = vadd.s32 %v2941, %v2919
    %v3177 = vadd.s32 %v2941, %v2920
    %v3178 = vadd.s32 %v2941, %v2921
    %v3179 = vadd.s32 %v2941, %v2922
    %v3180 = vadd.s32 %v2941, %v2923
    %v3181 = vadd.s32 %v2941, %v2924
    %v3182 = vadd.s32 %v2941, %v2925
    %v3183 = vadd.s32 %v2941, %v2926
    %v3184 = vadd.s32 %v2941, %v2927
    %v3185 = vadd.s32 %v2941, %v2928
    %v3186 = vadd.s32 %v2941, %v2929
    %v3187 = vadd.s32 %v2941, %v2930
    %v3188 = vadd.s32 %v2941, %v2931
    %v3189 = vadd.s32 %v2941, %v2932
    %v3190 = vadd.s32 %v2941, %v2933
    %v3191 = vadd.s32 %v2941, %v2934
    %v3192 = vadd.s32 %v2941, %v2935
    %v3193 = vadd.s32 %v2941, %v2936
    %v3194 = vadd.s32 %v2941, %v2937
    %v3195 = vadd.s32 %v2941, %v2938
    %v3196 = vadd.s32 %v2941, %v2939
    %v3197 = vadd.s32 %v2941, %v2940
    %vm3198 = vcmp.lt.s32.totalorder %v2942, 512
    %vm3199 = vcmp.lt.s32.totalorder %v2943, 512
    %vm3200 = vcmp.lt.s32.totalorder %v2944, 512
    %vm3201 = vcmp.lt.s32.totalorder %v2945, 512
    %vm3202 = vcmp.lt.s32.totalorder %v2946, 512
    %vm3203 = vcmp.lt.s32.totalorder %v2947, 512
    %vm3204 = vcmp.lt.s32.totalorder %v2948, 512
    %vm3205 = vcmp.lt.s32.totalorder %v2949, 512
    %vm3206 = vcmp.lt.s32.totalorder %v2950, 512
    %vm3207 = vcmp.lt.s32.totalorder %v2951, 512
    %vm3208 = vcmp.lt.s32.totalorder %v2952, 512
    %vm3209 = vcmp.lt.s32.totalorder %v2953, 512
    %vm3210 = vcmp.lt.s32.totalorder %v2954, 512
    %vm3211 = vcmp.lt.s32.totalorder %v2955, 512
    %vm3212 = vcmp.lt.s32.totalorder %v2956, 512
    %vm3213 = vcmp.lt.s32.totalorder %v2957, 512
    %vm3214 = vcmp.lt.s32.totalorder %v2958, 512
    %vm3215 = vcmp.lt.s32.totalorder %v2959, 512
    %vm3216 = vcmp.lt.s32.totalorder %v2960, 512
    %vm3217 = vcmp.lt.s32.totalorder %v2961, 512
    %vm3218 = vcmp.lt.s32.totalorder %v2962, 512
    %vm3219 = vcmp.lt.s32.totalorder %v2963, 512
    %vm3220 = vcmp.lt.s32.totalorder %v2964, 512
    %vm3221 = vcmp.lt.s32.totalorder %v2965, 512
    %vm3222 = vcmp.lt.s32.totalorder %v2966, 512
    %vm3223 = vcmp.lt.s32.totalorder %v2967, 512
    %vm3224 = vcmp.lt.s32.totalorder %v2968, 512
    %vm3225 = vcmp.lt.s32.totalorder %v2969, 512
    %vm3226 = vcmp.lt.s32.totalorder %v2970, 512
    %vm3227 = vcmp.lt.s32.totalorder %v2971, 512
    %vm3228 = vcmp.lt.s32.totalorder %v2972, 512
    %vm3229 = vcmp.lt.s32.totalorder %v2973, 512
    %vm3230 = vcmp.lt.s32.totalorder %v2974, 512
    %vm3231 = vcmp.lt.s32.totalorder %v2975, 512
    %vm3232 = vcmp.lt.s32.totalorder %v2976, 512
    %vm3233 = vcmp.lt.s32.totalorder %v2977, 512
    %vm3234 = vcmp.lt.s32.totalorder %v2978, 512
    %vm3235 = vcmp.lt.s32.totalorder %v2979, 512
    %vm3236 = vcmp.lt.s32.totalorder %v2980, 512
    %vm3237 = vcmp.lt.s32.totalorder %v2981, 512
    %vm3238 = vcmp.lt.s32.totalorder %v2982, 512
    %vm3239 = vcmp.lt.s32.totalorder %v2983, 512
    %vm3240 = vcmp.lt.s32.totalorder %v2984, 512
    %vm3241 = vcmp.lt.s32.totalorder %v2985, 512
    %vm3242 = vcmp.lt.s32.totalorder %v2986, 512
    %vm3243 = vcmp.lt.s32.totalorder %v2987, 512
    %vm3244 = vcmp.lt.s32.totalorder %v2988, 512
    %vm3245 = vcmp.lt.s32.totalorder %v2989, 512
    %vm3246 = vcmp.lt.s32.totalorder %v2990, 512
    %vm3247 = vcmp.lt.s32.totalorder %v2991, 512
    %vm3248 = vcmp.lt.s32.totalorder %v2992, 512
    %vm3249 = vcmp.lt.s32.totalorder %v2993, 512
    %vm3250 = vcmp.lt.s32.totalorder %v2994, 512
    %vm3251 = vcmp.lt.s32.totalorder %v2995, 512
    %vm3252 = vcmp.lt.s32.totalorder %v2996, 512
    %vm3253 = vcmp.lt.s32.totalorder %v2997, 512
    %vm3254 = vcmp.lt.s32.totalorder %v2998, 512
    %vm3255 = vcmp.lt.s32.totalorder %v2999, 512
    %vm3256 = vcmp.lt.s32.totalorder %v3000, 512
    %vm3257 = vcmp.lt.s32.totalorder %v3001, 512
    %vm3258 = vcmp.lt.s32.totalorder %v3002, 512
    %vm3259 = vcmp.lt.s32.totalorder %v3003, 512
    %vm3260 = vcmp.lt.s32.totalorder %v3004, 512
    %vm3261 = vcmp.lt.s32.totalorder %v3005, 512
    %vm3262 = vcmp.lt.s32.totalorder %v3006, 512
    %vm3263 = vcmp.lt.s32.totalorder %v3007, 512
    %vm3264 = vcmp.lt.s32.totalorder %v3008, 512
    %vm3265 = vcmp.lt.s32.totalorder %v3009, 512
    %vm3266 = vcmp.lt.s32.totalorder %v3010, 512
    %vm3267 = vcmp.lt.s32.totalorder %v3011, 512
    %vm3268 = vcmp.lt.s32.totalorder %v3012, 512
    %vm3269 = vcmp.lt.s32.totalorder %v3013, 512
    %vm3270 = vcmp.lt.s32.totalorder %v3014, 512
    %vm3271 = vcmp.lt.s32.totalorder %v3015, 512
    %vm3272 = vcmp.lt.s32.totalorder %v3016, 512
    %vm3273 = vcmp.lt.s32.totalorder %v3017, 512
    %vm3274 = vcmp.lt.s32.totalorder %v3018, 512
    %vm3275 = vcmp.lt.s32.totalorder %v3019, 512
    %vm3276 = vcmp.lt.s32.totalorder %v3020, 512
    %vm3277 = vcmp.lt.s32.totalorder %v3021, 512
    %vm3278 = vcmp.lt.s32.totalorder %v3022, 512
    %vm3279 = vcmp.lt.s32.totalorder %v3023, 512
    %vm3280 = vcmp.lt.s32.totalorder %v3024, 512
    %vm3281 = vcmp.lt.s32.totalorder %v3025, 512
    %vm3282 = vcmp.lt.s32.totalorder %v3026, 512
    %vm3283 = vcmp.lt.s32.totalorder %v3027, 512
    %vm3284 = vcmp.lt.s32.totalorder %v3028, 512
    %vm3285 = vcmp.lt.s32.totalorder %v3029, 512
    %vm3286 = vcmp.lt.s32.totalorder %v3030, 512
    %vm3287 = vcmp.lt.s32.totalorder %v3031, 512
    %vm3288 = vcmp.lt.s32.totalorder %v3032, 512
    %vm3289 = vcmp.lt.s32.totalorder %v3033, 512
    %vm3290 = vcmp.lt.s32.totalorder %v3034, 512
    %vm3291 = vcmp.lt.s32.totalorder %v3035, 512
    %vm3292 = vcmp.lt.s32.totalorder %v3036, 512
    %vm3293 = vcmp.lt.s32.totalorder %v3037, 512
    %vm3294 = vcmp.lt.s32.totalorder %v3038, 512
    %vm3295 = vcmp.lt.s32.totalorder %v3039, 512
    %vm3296 = vcmp.lt.s32.totalorder %v3040, 512
    %vm3297 = vcmp.lt.s32.totalorder %v3041, 512
    %vm3298 = vcmp.lt.s32.totalorder %v3042, 512
    %vm3299 = vcmp.lt.s32.totalorder %v3043, 512
    %vm3300 = vcmp.lt.s32.totalorder %v3044, 512
    %vm3301 = vcmp.lt.s32.totalorder %v3045, 512
    %vm3302 = vcmp.lt.s32.totalorder %v3046, 512
    %vm3303 = vcmp.lt.s32.totalorder %v3047, 512
    %vm3304 = vcmp.lt.s32.totalorder %v3048, 512
    %vm3305 = vcmp.lt.s32.totalorder %v3049, 512
    %vm3306 = vcmp.lt.s32.totalorder %v3050, 512
    %vm3307 = vcmp.lt.s32.totalorder %v3051, 512
    %vm3308 = vcmp.lt.s32.totalorder %v3052, 512
    %vm3309 = vcmp.lt.s32.totalorder %v3053, 512
    %vm3310 = vcmp.lt.s32.totalorder %v3054, 512
    %vm3311 = vcmp.lt.s32.totalorder %v3055, 512
    %vm3312 = vcmp.lt.s32.totalorder %v3056, 512
    %vm3313 = vcmp.lt.s32.totalorder %v3057, 512
    %vm3314 = vcmp.lt.s32.totalorder %v3058, 512
    %vm3315 = vcmp.lt.s32.totalorder %v3059, 512
    %vm3316 = vcmp.lt.s32.totalorder %v3060, 512
    %vm3317 = vcmp.lt.s32.totalorder %v3061, 512
    %vm3318 = vcmp.lt.s32.totalorder %v3062, 512
    %vm3319 = vcmp.lt.s32.totalorder %v3063, 512
    %vm3320 = vcmp.lt.s32.totalorder %v3064, 512
    %vm3321 = vcmp.lt.s32.totalorder %v3065, 512
    %vm3322 = vcmp.lt.s32.totalorder %v3066, 512
    %vm3323 = vcmp.lt.s32.totalorder %v3067, 512
    %vm3324 = vcmp.lt.s32.totalorder %v3068, 512
    %vm3325 = vcmp.lt.s32.totalorder %v3069, 512
    %vm3326 = vcmp.lt.s32.totalorder %v3070, 512
    %vm3327 = vcmp.lt.s32.totalorder %v3071, 512
    %vm3328 = vcmp.lt.s32.totalorder %v3072, 512
    %vm3329 = vcmp.lt.s32.totalorder %v3073, 512
    %vm3330 = vcmp.lt.s32.totalorder %v3074, 512
    %vm3331 = vcmp.lt.s32.totalorder %v3075, 512
    %vm3332 = vcmp.lt.s32.totalorder %v3076, 512
    %vm3333 = vcmp.lt.s32.totalorder %v3077, 512
    %vm3334 = vcmp.lt.s32.totalorder %v3078, 512
    %vm3335 = vcmp.lt.s32.totalorder %v3079, 512
    %vm3336 = vcmp.lt.s32.totalorder %v3080, 512
    %vm3337 = vcmp.lt.s32.totalorder %v3081, 512
    %vm3338 = vcmp.lt.s32.totalorder %v3082, 512
    %vm3339 = vcmp.lt.s32.totalorder %v3083, 512
    %vm3340 = vcmp.lt.s32.totalorder %v3084, 512
    %vm3341 = vcmp.lt.s32.totalorder %v3085, 512
    %vm3342 = vcmp.lt.s32.totalorder %v3086, 512
    %vm3343 = vcmp.lt.s32.totalorder %v3087, 512
    %vm3344 = vcmp.lt.s32.totalorder %v3088, 512
    %vm3345 = vcmp.lt.s32.totalorder %v3089, 512
    %vm3346 = vcmp.lt.s32.totalorder %v3090, 512
    %vm3347 = vcmp.lt.s32.totalorder %v3091, 512
    %vm3348 = vcmp.lt.s32.totalorder %v3092, 512
    %vm3349 = vcmp.lt.s32.totalorder %v3093, 512
    %vm3350 = vcmp.lt.s32.totalorder %v3094, 512
    %vm3351 = vcmp.lt.s32.totalorder %v3095, 512
    %vm3352 = vcmp.lt.s32.totalorder %v3096, 512
    %vm3353 = vcmp.lt.s32.totalorder %v3097, 512
    %vm3354 = vcmp.lt.s32.totalorder %v3098, 512
    %vm3355 = vcmp.lt.s32.totalorder %v3099, 512
    %vm3356 = vcmp.lt.s32.totalorder %v3100, 512
    %vm3357 = vcmp.lt.s32.totalorder %v3101, 512
    %vm3358 = vcmp.lt.s32.totalorder %v3102, 512
    %vm3359 = vcmp.lt.s32.totalorder %v3103, 512
    %vm3360 = vcmp.lt.s32.totalorder %v3104, 512
    %vm3361 = vcmp.lt.s32.totalorder %v3105, 512
    %vm3362 = vcmp.lt.s32.totalorder %v3106, 512
    %vm3363 = vcmp.lt.s32.totalorder %v3107, 512
    %vm3364 = vcmp.lt.s32.totalorder %v3108, 512
    %vm3365 = vcmp.lt.s32.totalorder %v3109, 512
    %vm3366 = vcmp.lt.s32.totalorder %v3110, 512
    %vm3367 = vcmp.lt.s32.totalorder %v3111, 512
    %vm3368 = vcmp.lt.s32.totalorder %v3112, 512
    %vm3369 = vcmp.lt.s32.totalorder %v3113, 512
    %vm3370 = vcmp.lt.s32.totalorder %v3114, 512
    %vm3371 = vcmp.lt.s32.totalorder %v3115, 512
    %vm3372 = vcmp.lt.s32.totalorder %v3116, 512
    %vm3373 = vcmp.lt.s32.totalorder %v3117, 512
    %vm3374 = vcmp.lt.s32.totalorder %v3118, 512
    %vm3375 = vcmp.lt.s32.totalorder %v3119, 512
    %vm3376 = vcmp.lt.s32.totalorder %v3120, 512
    %vm3377 = vcmp.lt.s32.totalorder %v3121, 512
    %vm3378 = vcmp.lt.s32.totalorder %v3122, 512
    %vm3379 = vcmp.lt.s32.totalorder %v3123, 512
    %vm3380 = vcmp.lt.s32.totalorder %v3124, 512
    %vm3381 = vcmp.lt.s32.totalorder %v3125, 512
    %vm3382 = vcmp.lt.s32.totalorder %v3126, 512
    %vm3383 = vcmp.lt.s32.totalorder %v3127, 512
    %vm3384 = vcmp.lt.s32.totalorder %v3128, 512
    %vm3385 = vcmp.lt.s32.totalorder %v3129, 512
    %vm3386 = vcmp.lt.s32.totalorder %v3130, 512
    %vm3387 = vcmp.lt.s32.totalorder %v3131, 512
    %vm3388 = vcmp.lt.s32.totalorder %v3132, 512
    %vm3389 = vcmp.lt.s32.totalorder %v3133, 512
    %vm3390 = vcmp.lt.s32.totalorder %v3134, 512
    %vm3391 = vcmp.lt.s32.totalorder %v3135, 512
    %vm3392 = vcmp.lt.s32.totalorder %v3136, 512
    %vm3393 = vcmp.lt.s32.totalorder %v3137, 512
    %vm3394 = vcmp.lt.s32.totalorder %v3138, 512
    %vm3395 = vcmp.lt.s32.totalorder %v3139, 512
    %vm3396 = vcmp.lt.s32.totalorder %v3140, 512
    %vm3397 = vcmp.lt.s32.totalorder %v3141, 512
    %vm3398 = vcmp.lt.s32.totalorder %v3142, 512
    %vm3399 = vcmp.lt.s32.totalorder %v3143, 512
    %vm3400 = vcmp.lt.s32.totalorder %v3144, 512
    %vm3401 = vcmp.lt.s32.totalorder %v3145, 512
    %vm3402 = vcmp.lt.s32.totalorder %v3146, 512
    %vm3403 = vcmp.lt.s32.totalorder %v3147, 512
    %vm3404 = vcmp.lt.s32.totalorder %v3148, 512
    %vm3405 = vcmp.lt.s32.totalorder %v3149, 512
    %vm3406 = vcmp.lt.s32.totalorder %v3150, 512
    %vm3407 = vcmp.lt.s32.totalorder %v3151, 512
    %vm3408 = vcmp.lt.s32.totalorder %v3152, 512
    %vm3409 = vcmp.lt.s32.totalorder %v3153, 512
    %vm3410 = vcmp.lt.s32.totalorder %v3154, 512
    %vm3411 = vcmp.lt.s32.totalorder %v3155, 512
    %vm3412 = vcmp.lt.s32.totalorder %v3156, 512
    %vm3413 = vcmp.lt.s32.totalorder %v3157, 512
    %vm3414 = vcmp.lt.s32.totalorder %v3158, 512
    %vm3415 = vcmp.lt.s32.totalorder %v3159, 512
    %vm3416 = vcmp.lt.s32.totalorder %v3160, 512
    %vm3417 = vcmp.lt.s32.totalorder %v3161, 512
    %vm3418 = vcmp.lt.s32.totalorder %v3162, 512
    %vm3419 = vcmp.lt.s32.totalorder %v3163, 512
    %vm3420 = vcmp.lt.s32.totalorder %v3164, 512
    %vm3421 = vcmp.lt.s32.totalorder %v3165, 512
    %vm3422 = vcmp.lt.s32.totalorder %v3166, 512
    %vm3423 = vcmp.lt.s32.totalorder %v3167, 512
    %vm3424 = vcmp.lt.s32.totalorder %v3168, 512
    %vm3425 = vcmp.lt.s32.totalorder %v3169, 512
    %vm3426 = vcmp.lt.s32.totalorder %v3170, 512
    %vm3427 = vcmp.lt.s32.totalorder %v3171, 512
    %vm3428 = vcmp.lt.s32.totalorder %v3172, 512
    %vm3429 = vcmp.lt.s32.totalorder %v3173, 512
    %vm3430 = vcmp.lt.s32.totalorder %v3174, 512
    %vm3431 = vcmp.lt.s32.totalorder %v3175, 512
    %vm3432 = vcmp.lt.s32.totalorder %v3176, 512
    %vm3433 = vcmp.lt.s32.totalorder %v3177, 512
    %vm3434 = vcmp.lt.s32.totalorder %v3178, 512
    %vm3435 = vcmp.lt.s32.totalorder %v3179, 512
    %vm3436 = vcmp.lt.s32.totalorder %v3180, 512
    %vm3437 = vcmp.lt.s32.totalorder %v3181, 512
    %vm3438 = vcmp.lt.s32.totalorder %v3182, 512
    %vm3439 = vcmp.lt.s32.totalorder %v3183, 512
    %vm3440 = vcmp.lt.s32.totalorder %v3184, 512
    %vm3441 = vcmp.lt.s32.totalorder %v3185, 512
    %vm3442 = vcmp.lt.s32.totalorder %v3186, 512
    %vm3443 = vcmp.lt.s32.totalorder %v3187, 512
    %vm3444 = vcmp.lt.s32.totalorder %v3188, 512
    %vm3445 = vcmp.lt.s32.totalorder %v3189, 512
    %vm3446 = vcmp.lt.s32.totalorder %v3190, 512
    %vm3447 = vcmp.lt.s32.totalorder %v3191, 512
    %vm3448 = vcmp.lt.s32.totalorder %v3192, 512
    %vm3449 = vcmp.lt.s32.totalorder %v3193, 512
    %vm3450 = vcmp.lt.s32.totalorder %v3194, 512
    %vm3451 = vcmp.lt.s32.totalorder %v3195, 512
    %vm3452 = vcmp.lt.s32.totalorder %v3196, 512
    %vm3453 = vcmp.lt.s32.totalorder %v3197, 512
    %3454 = vmax.xlane.f32.xlu0 %v1404
    %v3455 = vpop.xlane.xlu0 %3454
    %3456 = vmax.xlane.f32.xlu0 %v1409
    %v3457 = vpop.xlane.xlu0 %3456
    %3458 = vmax.xlane.f32.xlu0 %v1414
    %v3459 = vpop.xlane.xlu0 %3458
    %3460 = vmax.xlane.f32.xlu0 %v1419
    %v3461 = vpop.xlane.xlu0 %3460
    %3462 = vmax.xlane.f32.xlu0 %v1424
    %v3463 = vpop.xlane.xlu0 %3462
    %3464 = vmax.xlane.f32.xlu0 %v1429
    %v3465 = vpop.xlane.xlu0 %3464
    %3466 = vmax.xlane.f32.xlu0 %v1434
    %v3467 = vpop.xlane.xlu0 %3466
    %3468 = vmax.xlane.f32.xlu0 %v1439
    %v3469 = vpop.xlane.xlu0 %3468
    %3470 = vmax.xlane.f32.xlu0 %v1444
    %v3471 = vpop.xlane.xlu0 %3470
    %3472 = vmax.xlane.f32.xlu0 %v1449
    %v3473 = vpop.xlane.xlu0 %3472
    %3474 = vmax.xlane.f32.xlu0 %v1454
    %v3475 = vpop.xlane.xlu0 %3474
    %3476 = vmax.xlane.f32.xlu0 %v1459
    %v3477 = vpop.xlane.xlu0 %3476
    %3478 = vmax.xlane.f32.xlu0 %v1464
    %v3479 = vpop.xlane.xlu0 %3478
    %3480 = vmax.xlane.f32.xlu0 %v1469
    %v3481 = vpop.xlane.xlu0 %3480
    %3482 = vmax.xlane.f32.xlu0 %v1474
    %v3483 = vpop.xlane.xlu0 %3482
    %3484 = vmax.xlane.f32.xlu0 %v1479
    %v3485 = vpop.xlane.xlu0 %3484
    %3486 = vmax.xlane.f32.xlu0 %v1484
    %v3487 = vpop.xlane.xlu0 %3486
    %3488 = vmax.xlane.f32.xlu0 %v1489
    %v3489 = vpop.xlane.xlu0 %3488
    %3490 = vmax.xlane.f32.xlu0 %v1494
    %v3491 = vpop.xlane.xlu0 %3490
    %3492 = vmax.xlane.f32.xlu0 %v1499
    %v3493 = vpop.xlane.xlu0 %3492
    %3494 = vmax.xlane.f32.xlu0 %v1504
    %v3495 = vpop.xlane.xlu0 %3494
    %3496 = vmax.xlane.f32.xlu0 %v1509
    %v3497 = vpop.xlane.xlu0 %3496
    %3498 = vmax.xlane.f32.xlu0 %v1514
    %v3499 = vpop.xlane.xlu0 %3498
    %3500 = vmax.xlane.f32.xlu0 %v1519
    %v3501 = vpop.xlane.xlu0 %3500
    %3502 = vmax.xlane.f32.xlu0 %v1524
    %v3503 = vpop.xlane.xlu0 %3502
    %3504 = vmax.xlane.f32.xlu0 %v1529
    %v3505 = vpop.xlane.xlu0 %3504
    %3506 = vmax.xlane.f32.xlu0 %v1534
    %v3507 = vpop.xlane.xlu0 %3506
    %3508 = vmax.xlane.f32.xlu0 %v1539
    %v3509 = vpop.xlane.xlu0 %3508
    %3510 = vmax.xlane.f32.xlu0 %v1544
    %v3511 = vpop.xlane.xlu0 %3510
    %3512 = vmax.xlane.f32.xlu0 %v1549
    %v3513 = vpop.xlane.xlu0 %3512
    %3514 = vmax.xlane.f32.xlu0 %v1554
    %v3515 = vpop.xlane.xlu0 %3514
    %3516 = vmax.xlane.f32.xlu0 %v1559
    %v3517 = vpop.xlane.xlu0 %3516
    %3518 = vmax.xlane.f32.xlu0 %v1564
    %v3519 = vpop.xlane.xlu0 %3518
    %3520 = vmax.xlane.f32.xlu0 %v1569
    %v3521 = vpop.xlane.xlu0 %3520
    %3522 = vmax.xlane.f32.xlu0 %v1574
    %v3523 = vpop.xlane.xlu0 %3522
    %3524 = vmax.xlane.f32.xlu0 %v1579
    %v3525 = vpop.xlane.xlu0 %3524
    %3526 = vmax.xlane.f32.xlu0 %v1584
    %v3527 = vpop.xlane.xlu0 %3526
    %3528 = vmax.xlane.f32.xlu0 %v1589
    %v3529 = vpop.xlane.xlu0 %3528
    %3530 = vmax.xlane.f32.xlu0 %v1594
    %v3531 = vpop.xlane.xlu0 %3530
    %3532 = vmax.xlane.f32.xlu0 %v1599
    %v3533 = vpop.xlane.xlu0 %3532
    %3534 = vmax.xlane.f32.xlu0 %v1604
    %v3535 = vpop.xlane.xlu0 %3534
    %3536 = vmax.xlane.f32.xlu0 %v1609
    %v3537 = vpop.xlane.xlu0 %3536
    %3538 = vmax.xlane.f32.xlu0 %v1614
    %v3539 = vpop.xlane.xlu0 %3538
    %3540 = vmax.xlane.f32.xlu0 %v1619
    %v3541 = vpop.xlane.xlu0 %3540
    %3542 = vmax.xlane.f32.xlu0 %v1624
    %v3543 = vpop.xlane.xlu0 %3542
    %3544 = vmax.xlane.f32.xlu0 %v1629
    %v3545 = vpop.xlane.xlu0 %3544
    %3546 = vmax.xlane.f32.xlu0 %v1634
    %v3547 = vpop.xlane.xlu0 %3546
    %3548 = vmax.xlane.f32.xlu0 %v1639
    %v3549 = vpop.xlane.xlu0 %3548
    %3550 = vmax.xlane.f32.xlu0 %v1644
    %v3551 = vpop.xlane.xlu0 %3550
    %3552 = vmax.xlane.f32.xlu0 %v1649
    %v3553 = vpop.xlane.xlu0 %3552
    %3554 = vmax.xlane.f32.xlu0 %v1654
    %v3555 = vpop.xlane.xlu0 %3554
    %3556 = vmax.xlane.f32.xlu0 %v1659
    %v3557 = vpop.xlane.xlu0 %3556
    %3558 = vmax.xlane.f32.xlu0 %v1664
    %v3559 = vpop.xlane.xlu0 %3558
    %3560 = vmax.xlane.f32.xlu0 %v1669
    %v3561 = vpop.xlane.xlu0 %3560
    %3562 = vmax.xlane.f32.xlu0 %v1674
    %v3563 = vpop.xlane.xlu0 %3562
    %3564 = vmax.xlane.f32.xlu0 %v1679
    %v3565 = vpop.xlane.xlu0 %3564
    %3566 = vmax.xlane.f32.xlu0 %v1684
    %v3567 = vpop.xlane.xlu0 %3566
    %3568 = vmax.xlane.f32.xlu0 %v1689
    %v3569 = vpop.xlane.xlu0 %3568
    %3570 = vmax.xlane.f32.xlu0 %v1694
    %v3571 = vpop.xlane.xlu0 %3570
    %3572 = vmax.xlane.f32.xlu0 %v1699
    %v3573 = vpop.xlane.xlu0 %3572
    %3574 = vmax.xlane.f32.xlu0 %v1704
    %v3575 = vpop.xlane.xlu0 %3574
    %3576 = vmax.xlane.f32.xlu0 %v1709
    %v3577 = vpop.xlane.xlu0 %3576
    %3578 = vmax.xlane.f32.xlu0 %v1714
    %v3579 = vpop.xlane.xlu0 %3578
    %3580 = vmax.xlane.f32.xlu0 %v1719
    %v3581 = vpop.xlane.xlu0 %3580
    %3582 = vmax.xlane.f32.xlu0 %v1724
    %v3583 = vpop.xlane.xlu0 %3582
    %3584 = vmax.xlane.f32.xlu0 %v1729
    %v3585 = vpop.xlane.xlu0 %3584
    %3586 = vmax.xlane.f32.xlu0 %v1734
    %v3587 = vpop.xlane.xlu0 %3586
    %3588 = vmax.xlane.f32.xlu0 %v1739
    %v3589 = vpop.xlane.xlu0 %3588
    %3590 = vmax.xlane.f32.xlu0 %v1744
    %v3591 = vpop.xlane.xlu0 %3590
    %3592 = vmax.xlane.f32.xlu0 %v1749
    %v3593 = vpop.xlane.xlu0 %3592
    %3594 = vmax.xlane.f32.xlu0 %v1754
    %v3595 = vpop.xlane.xlu0 %3594
    %3596 = vmax.xlane.f32.xlu0 %v1759
    %v3597 = vpop.xlane.xlu0 %3596
    %3598 = vmax.xlane.f32.xlu0 %v1764
    %v3599 = vpop.xlane.xlu0 %3598
    %3600 = vmax.xlane.f32.xlu0 %v1769
    %v3601 = vpop.xlane.xlu0 %3600
    %3602 = vmax.xlane.f32.xlu0 %v1774
    %v3603 = vpop.xlane.xlu0 %3602
    %3604 = vmax.xlane.f32.xlu0 %v1779
    %v3605 = vpop.xlane.xlu0 %3604
    %3606 = vmax.xlane.f32.xlu0 %v1784
    %v3607 = vpop.xlane.xlu0 %3606
    %3608 = vmax.xlane.f32.xlu0 %v1789
    %v3609 = vpop.xlane.xlu0 %3608
    %3610 = vmax.xlane.f32.xlu0 %v1794
    %v3611 = vpop.xlane.xlu0 %3610
    %3612 = vmax.xlane.f32.xlu0 %v1799
    %v3613 = vpop.xlane.xlu0 %3612
    %3614 = vmax.xlane.f32.xlu0 %v1804
    %v3615 = vpop.xlane.xlu0 %3614
    %3616 = vmax.xlane.f32.xlu0 %v1809
    %v3617 = vpop.xlane.xlu0 %3616
    %3618 = vmax.xlane.f32.xlu0 %v1814
    %v3619 = vpop.xlane.xlu0 %3618
    %3620 = vmax.xlane.f32.xlu0 %v1819
    %v3621 = vpop.xlane.xlu0 %3620
    %3622 = vmax.xlane.f32.xlu0 %v1824
    %v3623 = vpop.xlane.xlu0 %3622
    %3624 = vmax.xlane.f32.xlu0 %v1829
    %v3625 = vpop.xlane.xlu0 %3624
    %3626 = vmax.xlane.f32.xlu0 %v1834
    %v3627 = vpop.xlane.xlu0 %3626
    %3628 = vmax.xlane.f32.xlu0 %v1839
    %v3629 = vpop.xlane.xlu0 %3628
    %3630 = vmax.xlane.f32.xlu0 %v1844
    %v3631 = vpop.xlane.xlu0 %3630
    %3632 = vmax.xlane.f32.xlu0 %v1849
    %v3633 = vpop.xlane.xlu0 %3632
    %3634 = vmax.xlane.f32.xlu0 %v1854
    %v3635 = vpop.xlane.xlu0 %3634
    %3636 = vmax.xlane.f32.xlu0 %v1859
    %v3637 = vpop.xlane.xlu0 %3636
    %3638 = vmax.xlane.f32.xlu0 %v1864
    %v3639 = vpop.xlane.xlu0 %3638
    %3640 = vmax.xlane.f32.xlu0 %v1869
    %v3641 = vpop.xlane.xlu0 %3640
    %3642 = vmax.xlane.f32.xlu0 %v1874
    %v3643 = vpop.xlane.xlu0 %3642
    %3644 = vmax.xlane.f32.xlu0 %v1879
    %v3645 = vpop.xlane.xlu0 %3644
    %3646 = vmax.xlane.f32.xlu0 %v1884
    %v3647 = vpop.xlane.xlu0 %3646
    %3648 = vmax.xlane.f32.xlu0 %v1889
    %v3649 = vpop.xlane.xlu0 %3648
    %3650 = vmax.xlane.f32.xlu0 %v1894
    %v3651 = vpop.xlane.xlu0 %3650
    %3652 = vmax.xlane.f32.xlu0 %v1899
    %v3653 = vpop.xlane.xlu0 %3652
    %3654 = vmax.xlane.f32.xlu0 %v1904
    %v3655 = vpop.xlane.xlu0 %3654
    %3656 = vmax.xlane.f32.xlu0 %v1909
    %v3657 = vpop.xlane.xlu0 %3656
    %3658 = vmax.xlane.f32.xlu0 %v1914
    %v3659 = vpop.xlane.xlu0 %3658
    %3660 = vmax.xlane.f32.xlu0 %v1919
    %v3661 = vpop.xlane.xlu0 %3660
    %3662 = vmax.xlane.f32.xlu0 %v1924
    %v3663 = vpop.xlane.xlu0 %3662
    %3664 = vmax.xlane.f32.xlu0 %v1929
    %v3665 = vpop.xlane.xlu0 %3664
    %3666 = vmax.xlane.f32.xlu0 %v1934
    %v3667 = vpop.xlane.xlu0 %3666
    %3668 = vmax.xlane.f32.xlu0 %v1939
    %v3669 = vpop.xlane.xlu0 %3668
    %3670 = vmax.xlane.f32.xlu0 %v1944
    %v3671 = vpop.xlane.xlu0 %3670
    %3672 = vmax.xlane.f32.xlu0 %v1949
    %v3673 = vpop.xlane.xlu0 %3672
    %3674 = vmax.xlane.f32.xlu0 %v1954
    %v3675 = vpop.xlane.xlu0 %3674
    %3676 = vmax.xlane.f32.xlu0 %v1959
    %v3677 = vpop.xlane.xlu0 %3676
    %3678 = vmax.xlane.f32.xlu0 %v1964
    %v3679 = vpop.xlane.xlu0 %3678
    %3680 = vmax.xlane.f32.xlu0 %v1969
    %v3681 = vpop.xlane.xlu0 %3680
    %3682 = vmax.xlane.f32.xlu0 %v1974
    %v3683 = vpop.xlane.xlu0 %3682
    %3684 = vmax.xlane.f32.xlu0 %v1979
    %v3685 = vpop.xlane.xlu0 %3684
    %3686 = vmax.xlane.f32.xlu0 %v1984
    %v3687 = vpop.xlane.xlu0 %3686
    %3688 = vmax.xlane.f32.xlu0 %v1989
    %v3689 = vpop.xlane.xlu0 %3688
    %3690 = vmax.xlane.f32.xlu0 %v1994
    %v3691 = vpop.xlane.xlu0 %3690
    %3692 = vmax.xlane.f32.xlu0 %v1999
    %v3693 = vpop.xlane.xlu0 %3692
    %3694 = vmax.xlane.f32.xlu0 %v2004
    %v3695 = vpop.xlane.xlu0 %3694
    %3696 = vmax.xlane.f32.xlu0 %v2009
    %v3697 = vpop.xlane.xlu0 %3696
    %3698 = vmax.xlane.f32.xlu0 %v2014
    %v3699 = vpop.xlane.xlu0 %3698
    %3700 = vmax.xlane.f32.xlu0 %v2019
    %v3701 = vpop.xlane.xlu0 %3700
    %3702 = vmax.xlane.f32.xlu0 %v2024
    %v3703 = vpop.xlane.xlu0 %3702
    %3704 = vmax.xlane.f32.xlu0 %v2029
    %v3705 = vpop.xlane.xlu0 %3704
    %3706 = vmax.xlane.f32.xlu0 %v2034
    %v3707 = vpop.xlane.xlu0 %3706
    %3708 = vmax.xlane.f32.xlu0 %v2039
    %v3709 = vpop.xlane.xlu0 %3708
    %3710 = vmax.xlane.f32.xlu0 %v2044
    %v3711 = vpop.xlane.xlu0 %3710
    %3712 = vmax.xlane.f32.xlu0 %v2049
    %v3713 = vpop.xlane.xlu0 %3712
    %3714 = vmax.xlane.f32.xlu0 %v2054
    %v3715 = vpop.xlane.xlu0 %3714
    %3716 = vmax.xlane.f32.xlu0 %v2059
    %v3717 = vpop.xlane.xlu0 %3716
    %3718 = vmax.xlane.f32.xlu0 %v2064
    %v3719 = vpop.xlane.xlu0 %3718
    %3720 = vmax.xlane.f32.xlu0 %v2069
    %v3721 = vpop.xlane.xlu0 %3720
    %3722 = vmax.xlane.f32.xlu0 %v2074
    %v3723 = vpop.xlane.xlu0 %3722
    %3724 = vmax.xlane.f32.xlu0 %v2079
    %v3725 = vpop.xlane.xlu0 %3724
    %3726 = vmax.xlane.f32.xlu0 %v2084
    %v3727 = vpop.xlane.xlu0 %3726
    %3728 = vmax.xlane.f32.xlu0 %v2089
    %v3729 = vpop.xlane.xlu0 %3728
    %3730 = vmax.xlane.f32.xlu0 %v2094
    %v3731 = vpop.xlane.xlu0 %3730
    %3732 = vmax.xlane.f32.xlu0 %v2099
    %v3733 = vpop.xlane.xlu0 %3732
    %3734 = vmax.xlane.f32.xlu0 %v2104
    %v3735 = vpop.xlane.xlu0 %3734
    %3736 = vmax.xlane.f32.xlu0 %v2109
    %v3737 = vpop.xlane.xlu0 %3736
    %3738 = vmax.xlane.f32.xlu0 %v2114
    %v3739 = vpop.xlane.xlu0 %3738
    %3740 = vmax.xlane.f32.xlu0 %v2119
    %v3741 = vpop.xlane.xlu0 %3740
    %3742 = vmax.xlane.f32.xlu0 %v2124
    %v3743 = vpop.xlane.xlu0 %3742
    %3744 = vmax.xlane.f32.xlu0 %v2129
    %v3745 = vpop.xlane.xlu0 %3744
    %3746 = vmax.xlane.f32.xlu0 %v2134
    %v3747 = vpop.xlane.xlu0 %3746
    %3748 = vmax.xlane.f32.xlu0 %v2139
    %v3749 = vpop.xlane.xlu0 %3748
    %3750 = vmax.xlane.f32.xlu0 %v2144
    %v3751 = vpop.xlane.xlu0 %3750
    %3752 = vmax.xlane.f32.xlu0 %v2149
    %v3753 = vpop.xlane.xlu0 %3752
    %3754 = vmax.xlane.f32.xlu0 %v2154
    %v3755 = vpop.xlane.xlu0 %3754
    %3756 = vmax.xlane.f32.xlu0 %v2159
    %v3757 = vpop.xlane.xlu0 %3756
    %3758 = vmax.xlane.f32.xlu0 %v2164
    %v3759 = vpop.xlane.xlu0 %3758
    %3760 = vmax.xlane.f32.xlu0 %v2169
    %v3761 = vpop.xlane.xlu0 %3760
    %3762 = vmax.xlane.f32.xlu0 %v2174
    %v3763 = vpop.xlane.xlu0 %3762
    %3764 = vmax.xlane.f32.xlu0 %v2179
    %v3765 = vpop.xlane.xlu0 %3764
    %3766 = vmax.xlane.f32.xlu0 %v2184
    %v3767 = vpop.xlane.xlu0 %3766
    %3768 = vmax.xlane.f32.xlu0 %v2189
    %v3769 = vpop.xlane.xlu0 %3768
    %3770 = vmax.xlane.f32.xlu0 %v2194
    %v3771 = vpop.xlane.xlu0 %3770
    %3772 = vmax.xlane.f32.xlu0 %v2199
    %v3773 = vpop.xlane.xlu0 %3772
    %3774 = vmax.xlane.f32.xlu0 %v2204
    %v3775 = vpop.xlane.xlu0 %3774
    %3776 = vmax.xlane.f32.xlu0 %v2209
    %v3777 = vpop.xlane.xlu0 %3776
    %3778 = vmax.xlane.f32.xlu0 %v2214
    %v3779 = vpop.xlane.xlu0 %3778
    %3780 = vmax.xlane.f32.xlu0 %v2219
    %v3781 = vpop.xlane.xlu0 %3780
    %3782 = vmax.xlane.f32.xlu0 %v2224
    %v3783 = vpop.xlane.xlu0 %3782
    %3784 = vmax.xlane.f32.xlu0 %v2229
    %v3785 = vpop.xlane.xlu0 %3784
    %3786 = vmax.xlane.f32.xlu0 %v2234
    %v3787 = vpop.xlane.xlu0 %3786
    %3788 = vmax.xlane.f32.xlu0 %v2239
    %v3789 = vpop.xlane.xlu0 %3788
    %3790 = vmax.xlane.f32.xlu0 %v2244
    %v3791 = vpop.xlane.xlu0 %3790
    %3792 = vmax.xlane.f32.xlu0 %v2249
    %v3793 = vpop.xlane.xlu0 %3792
    %3794 = vmax.xlane.f32.xlu0 %v2254
    %v3795 = vpop.xlane.xlu0 %3794
    %3796 = vmax.xlane.f32.xlu0 %v2259
    %v3797 = vpop.xlane.xlu0 %3796
    %3798 = vmax.xlane.f32.xlu0 %v2264
    %v3799 = vpop.xlane.xlu0 %3798
    %3800 = vmax.xlane.f32.xlu0 %v2269
    %v3801 = vpop.xlane.xlu0 %3800
    %3802 = vmax.xlane.f32.xlu0 %v2274
    %v3803 = vpop.xlane.xlu0 %3802
    %3804 = vmax.xlane.f32.xlu0 %v2279
    %v3805 = vpop.xlane.xlu0 %3804
    %3806 = vmax.xlane.f32.xlu0 %v2284
    %v3807 = vpop.xlane.xlu0 %3806
    %3808 = vmax.xlane.f32.xlu0 %v2289
    %v3809 = vpop.xlane.xlu0 %3808
    %3810 = vmax.xlane.f32.xlu0 %v2294
    %v3811 = vpop.xlane.xlu0 %3810
    %3812 = vmax.xlane.f32.xlu0 %v2299
    %v3813 = vpop.xlane.xlu0 %3812
    %3814 = vmax.xlane.f32.xlu0 %v2304
    %v3815 = vpop.xlane.xlu0 %3814
    %3816 = vmax.xlane.f32.xlu0 %v2309
    %v3817 = vpop.xlane.xlu0 %3816
    %3818 = vmax.xlane.f32.xlu0 %v2314
    %v3819 = vpop.xlane.xlu0 %3818
    %3820 = vmax.xlane.f32.xlu0 %v2319
    %v3821 = vpop.xlane.xlu0 %3820
    %3822 = vmax.xlane.f32.xlu0 %v2324
    %v3823 = vpop.xlane.xlu0 %3822
    %3824 = vmax.xlane.f32.xlu0 %v2329
    %v3825 = vpop.xlane.xlu0 %3824
    %3826 = vmax.xlane.f32.xlu0 %v2334
    %v3827 = vpop.xlane.xlu0 %3826
    %3828 = vmax.xlane.f32.xlu0 %v2339
    %v3829 = vpop.xlane.xlu0 %3828
    %3830 = vmax.xlane.f32.xlu0 %v2344
    %v3831 = vpop.xlane.xlu0 %3830
    %3832 = vmax.xlane.f32.xlu0 %v2349
    %v3833 = vpop.xlane.xlu0 %3832
    %3834 = vmax.xlane.f32.xlu0 %v2354
    %v3835 = vpop.xlane.xlu0 %3834
    %3836 = vmax.xlane.f32.xlu0 %v2359
    %v3837 = vpop.xlane.xlu0 %3836
    %3838 = vmax.xlane.f32.xlu0 %v2364
    %v3839 = vpop.xlane.xlu0 %3838
    %3840 = vmax.xlane.f32.xlu0 %v2369
    %v3841 = vpop.xlane.xlu0 %3840
    %3842 = vmax.xlane.f32.xlu0 %v2374
    %v3843 = vpop.xlane.xlu0 %3842
    %3844 = vmax.xlane.f32.xlu0 %v2379
    %v3845 = vpop.xlane.xlu0 %3844
    %3846 = vmax.xlane.f32.xlu0 %v2384
    %v3847 = vpop.xlane.xlu0 %3846
    %3848 = vmax.xlane.f32.xlu0 %v2389
    %v3849 = vpop.xlane.xlu0 %3848
    %3850 = vmax.xlane.f32.xlu0 %v2394
    %v3851 = vpop.xlane.xlu0 %3850
    %3852 = vmax.xlane.f32.xlu0 %v2399
    %v3853 = vpop.xlane.xlu0 %3852
    %3854 = vmax.xlane.f32.xlu0 %v2404
    %v3855 = vpop.xlane.xlu0 %3854
    %3856 = vmax.xlane.f32.xlu0 %v2409
    %v3857 = vpop.xlane.xlu0 %3856
    %3858 = vmax.xlane.f32.xlu0 %v2414
    %v3859 = vpop.xlane.xlu0 %3858
    %3860 = vmax.xlane.f32.xlu0 %v2419
    %v3861 = vpop.xlane.xlu0 %3860
    %3862 = vmax.xlane.f32.xlu0 %v2424
    %v3863 = vpop.xlane.xlu0 %3862
    %3864 = vmax.xlane.f32.xlu0 %v2429
    %v3865 = vpop.xlane.xlu0 %3864
    %3866 = vmax.xlane.f32.xlu0 %v2434
    %v3867 = vpop.xlane.xlu0 %3866
    %3868 = vmax.xlane.f32.xlu0 %v2439
    %v3869 = vpop.xlane.xlu0 %3868
    %3870 = vmax.xlane.f32.xlu0 %v2444
    %v3871 = vpop.xlane.xlu0 %3870
    %3872 = vmax.xlane.f32.xlu0 %v2449
    %v3873 = vpop.xlane.xlu0 %3872
    %3874 = vmax.xlane.f32.xlu0 %v2454
    %v3875 = vpop.xlane.xlu0 %3874
    %3876 = vmax.xlane.f32.xlu0 %v2459
    %v3877 = vpop.xlane.xlu0 %3876
    %3878 = vmax.xlane.f32.xlu0 %v2464
    %v3879 = vpop.xlane.xlu0 %3878
    %3880 = vmax.xlane.f32.xlu0 %v2469
    %v3881 = vpop.xlane.xlu0 %3880
    %3882 = vmax.xlane.f32.xlu0 %v2474
    %v3883 = vpop.xlane.xlu0 %3882
    %3884 = vmax.xlane.f32.xlu0 %v2479
    %v3885 = vpop.xlane.xlu0 %3884
    %3886 = vmax.xlane.f32.xlu0 %v2484
    %v3887 = vpop.xlane.xlu0 %3886
    %3888 = vmax.xlane.f32.xlu0 %v2489
    %v3889 = vpop.xlane.xlu0 %3888
    %3890 = vmax.xlane.f32.xlu0 %v2494
    %v3891 = vpop.xlane.xlu0 %3890
    %3892 = vmax.xlane.f32.xlu0 %v2499
    %v3893 = vpop.xlane.xlu0 %3892
    %3894 = vmax.xlane.f32.xlu0 %v2504
    %v3895 = vpop.xlane.xlu0 %3894
    %3896 = vmax.xlane.f32.xlu0 %v2509
    %v3897 = vpop.xlane.xlu0 %3896
    %3898 = vmax.xlane.f32.xlu0 %v2514
    %v3899 = vpop.xlane.xlu0 %3898
    %3900 = vmax.xlane.f32.xlu0 %v2519
    %v3901 = vpop.xlane.xlu0 %3900
    %3902 = vmax.xlane.f32.xlu0 %v2524
    %v3903 = vpop.xlane.xlu0 %3902
    %3904 = vmax.xlane.f32.xlu0 %v2529
    %v3905 = vpop.xlane.xlu0 %3904
    %3906 = vmax.xlane.f32.xlu0 %v2534
    %v3907 = vpop.xlane.xlu0 %3906
    %3908 = vmax.xlane.f32.xlu0 %v2539
    %v3909 = vpop.xlane.xlu0 %3908
    %3910 = vmax.xlane.f32.xlu0 %v2544
    %v3911 = vpop.xlane.xlu0 %3910
    %3912 = vmax.xlane.f32.xlu0 %v2549
    %v3913 = vpop.xlane.xlu0 %3912
    %3914 = vmax.xlane.f32.xlu0 %v2554
    %v3915 = vpop.xlane.xlu0 %3914
    %3916 = vmax.xlane.f32.xlu0 %v2559
    %v3917 = vpop.xlane.xlu0 %3916
    %3918 = vmax.xlane.f32.xlu0 %v2564
    %v3919 = vpop.xlane.xlu0 %3918
    %3920 = vmax.xlane.f32.xlu0 %v2569
    %v3921 = vpop.xlane.xlu0 %3920
    %3922 = vmax.xlane.f32.xlu0 %v2574
    %v3923 = vpop.xlane.xlu0 %3922
    %3924 = vmax.xlane.f32.xlu0 %v2579
    %v3925 = vpop.xlane.xlu0 %3924
    %3926 = vmax.xlane.f32.xlu0 %v2584
    %v3927 = vpop.xlane.xlu0 %3926
    %3928 = vmax.xlane.f32.xlu0 %v2589
    %v3929 = vpop.xlane.xlu0 %3928
    %3930 = vmax.xlane.f32.xlu0 %v2594
    %v3931 = vpop.xlane.xlu0 %3930
    %3932 = vmax.xlane.f32.xlu0 %v2599
    %v3933 = vpop.xlane.xlu0 %3932
    %3934 = vmax.xlane.f32.xlu0 %v2604
    %v3935 = vpop.xlane.xlu0 %3934
    %3936 = vmax.xlane.f32.xlu0 %v2609
    %v3937 = vpop.xlane.xlu0 %3936
    %3938 = vmax.xlane.f32.xlu0 %v2614
    %v3939 = vpop.xlane.xlu0 %3938
    %3940 = vmax.xlane.f32.xlu0 %v2619
    %v3941 = vpop.xlane.xlu0 %3940
    %3942 = vmax.xlane.f32.xlu0 %v2624
    %v3943 = vpop.xlane.xlu0 %3942
    %3944 = vmax.xlane.f32.xlu0 %v2629
    %v3945 = vpop.xlane.xlu0 %3944
    %3946 = vmax.xlane.f32.xlu0 %v2634
    %v3947 = vpop.xlane.xlu0 %3946
    %3948 = vmax.xlane.f32.xlu0 %v2639
    %v3949 = vpop.xlane.xlu0 %3948
    %3950 = vmax.xlane.f32.xlu0 %v2644
    %v3951 = vpop.xlane.xlu0 %3950
    %3952 = vmax.xlane.f32.xlu0 %v2649
    %v3953 = vpop.xlane.xlu0 %3952
    %3954 = vmax.xlane.f32.xlu0 %v2654
    %v3955 = vpop.xlane.xlu0 %3954
    %3956 = vmax.xlane.f32.xlu0 %v2659
    %v3957 = vpop.xlane.xlu0 %3956
    %3958 = vmax.xlane.f32.xlu0 %v2664
    %v3959 = vpop.xlane.xlu0 %3958
    %3960 = vmax.xlane.f32.xlu0 %v2669
    %v3961 = vpop.xlane.xlu0 %3960
    %3962 = vmax.xlane.f32.xlu0 %v2674
    %v3963 = vpop.xlane.xlu0 %3962
    %3964 = vmax.xlane.f32.xlu0 %v2679
    %v3965 = vpop.xlane.xlu0 %3964
    %vm3966 = vcmp.eq.f32.partialorder %v1404, %v3455
    %vm3967 = vcmp.eq.f32.partialorder %v1409, %v3457
    %vm3968 = vcmp.eq.f32.partialorder %v1414, %v3459
    %vm3969 = vcmp.eq.f32.partialorder %v1419, %v3461
    %vm3970 = vcmp.eq.f32.partialorder %v1424, %v3463
    %vm3971 = vcmp.eq.f32.partialorder %v1429, %v3465
    %vm3972 = vcmp.eq.f32.partialorder %v1434, %v3467
    %vm3973 = vcmp.eq.f32.partialorder %v1439, %v3469
    %vm3974 = vcmp.eq.f32.partialorder %v1444, %v3471
    %vm3975 = vcmp.eq.f32.partialorder %v1449, %v3473
    %vm3976 = vcmp.eq.f32.partialorder %v1454, %v3475
    %vm3977 = vcmp.eq.f32.partialorder %v1459, %v3477
    %vm3978 = vcmp.eq.f32.partialorder %v1464, %v3479
    %vm3979 = vcmp.eq.f32.partialorder %v1469, %v3481
    %vm3980 = vcmp.eq.f32.partialorder %v1474, %v3483
    %vm3981 = vcmp.eq.f32.partialorder %v1479, %v3485
    %vm3982 = vcmp.eq.f32.partialorder %v1484, %v3487
    %vm3983 = vcmp.eq.f32.partialorder %v1489, %v3489
    %vm3984 = vcmp.eq.f32.partialorder %v1494, %v3491
    %vm3985 = vcmp.eq.f32.partialorder %v1499, %v3493
    %vm3986 = vcmp.eq.f32.partialorder %v1504, %v3495
    %vm3987 = vcmp.eq.f32.partialorder %v1509, %v3497
    %vm3988 = vcmp.eq.f32.partialorder %v1514, %v3499
    %vm3989 = vcmp.eq.f32.partialorder %v1519, %v3501
    %vm3990 = vcmp.eq.f32.partialorder %v1524, %v3503
    %vm3991 = vcmp.eq.f32.partialorder %v1529, %v3505
    %vm3992 = vcmp.eq.f32.partialorder %v1534, %v3507
    %vm3993 = vcmp.eq.f32.partialorder %v1539, %v3509
    %vm3994 = vcmp.eq.f32.partialorder %v1544, %v3511
    %vm3995 = vcmp.eq.f32.partialorder %v1549, %v3513
    %vm3996 = vcmp.eq.f32.partialorder %v1554, %v3515
    %vm3997 = vcmp.eq.f32.partialorder %v1559, %v3517
    %vm3998 = vcmp.eq.f32.partialorder %v1564, %v3519
    %vm3999 = vcmp.eq.f32.partialorder %v1569, %v3521
    %vm4000 = vcmp.eq.f32.partialorder %v1574, %v3523
    %vm4001 = vcmp.eq.f32.partialorder %v1579, %v3525
    %vm4002 = vcmp.eq.f32.partialorder %v1584, %v3527
    %vm4003 = vcmp.eq.f32.partialorder %v1589, %v3529
    %vm4004 = vcmp.eq.f32.partialorder %v1594, %v3531
    %vm4005 = vcmp.eq.f32.partialorder %v1599, %v3533
    %vm4006 = vcmp.eq.f32.partialorder %v1604, %v3535
    %vm4007 = vcmp.eq.f32.partialorder %v1609, %v3537
    %vm4008 = vcmp.eq.f32.partialorder %v1614, %v3539
    %vm4009 = vcmp.eq.f32.partialorder %v1619, %v3541
    %vm4010 = vcmp.eq.f32.partialorder %v1624, %v3543
    %vm4011 = vcmp.eq.f32.partialorder %v1629, %v3545
    %vm4012 = vcmp.eq.f32.partialorder %v1634, %v3547
    %vm4013 = vcmp.eq.f32.partialorder %v1639, %v3549
    %vm4014 = vcmp.eq.f32.partialorder %v1644, %v3551
    %vm4015 = vcmp.eq.f32.partialorder %v1649, %v3553
    %vm4016 = vcmp.eq.f32.partialorder %v1654, %v3555
    %vm4017 = vcmp.eq.f32.partialorder %v1659, %v3557
    %vm4018 = vcmp.eq.f32.partialorder %v1664, %v3559
    %vm4019 = vcmp.eq.f32.partialorder %v1669, %v3561
    %vm4020 = vcmp.eq.f32.partialorder %v1674, %v3563
    %vm4021 = vcmp.eq.f32.partialorder %v1679, %v3565
    %vm4022 = vcmp.eq.f32.partialorder %v1684, %v3567
    %vm4023 = vcmp.eq.f32.partialorder %v1689, %v3569
    %vm4024 = vcmp.eq.f32.partialorder %v1694, %v3571
    %vm4025 = vcmp.eq.f32.partialorder %v1699, %v3573
    %vm4026 = vcmp.eq.f32.partialorder %v1704, %v3575
    %vm4027 = vcmp.eq.f32.partialorder %v1709, %v3577
    %vm4028 = vcmp.eq.f32.partialorder %v1714, %v3579
    %vm4029 = vcmp.eq.f32.partialorder %v1719, %v3581
    %vm4030 = vcmp.eq.f32.partialorder %v1724, %v3583
    %vm4031 = vcmp.eq.f32.partialorder %v1729, %v3585
    %vm4032 = vcmp.eq.f32.partialorder %v1734, %v3587
    %vm4033 = vcmp.eq.f32.partialorder %v1739, %v3589
    %vm4034 = vcmp.eq.f32.partialorder %v1744, %v3591
    %vm4035 = vcmp.eq.f32.partialorder %v1749, %v3593
    %vm4036 = vcmp.eq.f32.partialorder %v1754, %v3595
    %vm4037 = vcmp.eq.f32.partialorder %v1759, %v3597
    %vm4038 = vcmp.eq.f32.partialorder %v1764, %v3599
    %vm4039 = vcmp.eq.f32.partialorder %v1769, %v3601
    %vm4040 = vcmp.eq.f32.partialorder %v1774, %v3603
    %vm4041 = vcmp.eq.f32.partialorder %v1779, %v3605
    %vm4042 = vcmp.eq.f32.partialorder %v1784, %v3607
    %vm4043 = vcmp.eq.f32.partialorder %v1789, %v3609
    %vm4044 = vcmp.eq.f32.partialorder %v1794, %v3611
    %vm4045 = vcmp.eq.f32.partialorder %v1799, %v3613
    %vm4046 = vcmp.eq.f32.partialorder %v1804, %v3615
    %vm4047 = vcmp.eq.f32.partialorder %v1809, %v3617
    %vm4048 = vcmp.eq.f32.partialorder %v1814, %v3619
    %vm4049 = vcmp.eq.f32.partialorder %v1819, %v3621
    %vm4050 = vcmp.eq.f32.partialorder %v1824, %v3623
    %vm4051 = vcmp.eq.f32.partialorder %v1829, %v3625
    %vm4052 = vcmp.eq.f32.partialorder %v1834, %v3627
    %vm4053 = vcmp.eq.f32.partialorder %v1839, %v3629
    %vm4054 = vcmp.eq.f32.partialorder %v1844, %v3631
    %vm4055 = vcmp.eq.f32.partialorder %v1849, %v3633
    %vm4056 = vcmp.eq.f32.partialorder %v1854, %v3635
    %vm4057 = vcmp.eq.f32.partialorder %v1859, %v3637
    %vm4058 = vcmp.eq.f32.partialorder %v1864, %v3639
    %vm4059 = vcmp.eq.f32.partialorder %v1869, %v3641
    %vm4060 = vcmp.eq.f32.partialorder %v1874, %v3643
    %vm4061 = vcmp.eq.f32.partialorder %v1879, %v3645
    %vm4062 = vcmp.eq.f32.partialorder %v1884, %v3647
    %vm4063 = vcmp.eq.f32.partialorder %v1889, %v3649
    %vm4064 = vcmp.eq.f32.partialorder %v1894, %v3651
    %vm4065 = vcmp.eq.f32.partialorder %v1899, %v3653
    %vm4066 = vcmp.eq.f32.partialorder %v1904, %v3655
    %vm4067 = vcmp.eq.f32.partialorder %v1909, %v3657
    %vm4068 = vcmp.eq.f32.partialorder %v1914, %v3659
    %vm4069 = vcmp.eq.f32.partialorder %v1919, %v3661
    %vm4070 = vcmp.eq.f32.partialorder %v1924, %v3663
    %vm4071 = vcmp.eq.f32.partialorder %v1929, %v3665
    %vm4072 = vcmp.eq.f32.partialorder %v1934, %v3667
    %vm4073 = vcmp.eq.f32.partialorder %v1939, %v3669
    %vm4074 = vcmp.eq.f32.partialorder %v1944, %v3671
    %vm4075 = vcmp.eq.f32.partialorder %v1949, %v3673
    %vm4076 = vcmp.eq.f32.partialorder %v1954, %v3675
    %vm4077 = vcmp.eq.f32.partialorder %v1959, %v3677
    %vm4078 = vcmp.eq.f32.partialorder %v1964, %v3679
    %vm4079 = vcmp.eq.f32.partialorder %v1969, %v3681
    %vm4080 = vcmp.eq.f32.partialorder %v1974, %v3683
    %vm4081 = vcmp.eq.f32.partialorder %v1979, %v3685
    %vm4082 = vcmp.eq.f32.partialorder %v1984, %v3687
    %vm4083 = vcmp.eq.f32.partialorder %v1989, %v3689
    %vm4084 = vcmp.eq.f32.partialorder %v1994, %v3691
    %vm4085 = vcmp.eq.f32.partialorder %v1999, %v3693
    %vm4086 = vcmp.eq.f32.partialorder %v2004, %v3695
    %vm4087 = vcmp.eq.f32.partialorder %v2009, %v3697
    %vm4088 = vcmp.eq.f32.partialorder %v2014, %v3699
    %vm4089 = vcmp.eq.f32.partialorder %v2019, %v3701
    %vm4090 = vcmp.eq.f32.partialorder %v2024, %v3703
    %vm4091 = vcmp.eq.f32.partialorder %v2029, %v3705
    %vm4092 = vcmp.eq.f32.partialorder %v2034, %v3707
    %vm4093 = vcmp.eq.f32.partialorder %v2039, %v3709
    %vm4094 = vcmp.eq.f32.partialorder %v2044, %v3711
    %vm4095 = vcmp.eq.f32.partialorder %v2049, %v3713
    %vm4096 = vcmp.eq.f32.partialorder %v2054, %v3715
    %vm4097 = vcmp.eq.f32.partialorder %v2059, %v3717
    %vm4098 = vcmp.eq.f32.partialorder %v2064, %v3719
    %vm4099 = vcmp.eq.f32.partialorder %v2069, %v3721
    %vm4100 = vcmp.eq.f32.partialorder %v2074, %v3723
    %vm4101 = vcmp.eq.f32.partialorder %v2079, %v3725
    %vm4102 = vcmp.eq.f32.partialorder %v2084, %v3727
    %vm4103 = vcmp.eq.f32.partialorder %v2089, %v3729
    %vm4104 = vcmp.eq.f32.partialorder %v2094, %v3731
    %vm4105 = vcmp.eq.f32.partialorder %v2099, %v3733
    %vm4106 = vcmp.eq.f32.partialorder %v2104, %v3735
    %vm4107 = vcmp.eq.f32.partialorder %v2109, %v3737
    %vm4108 = vcmp.eq.f32.partialorder %v2114, %v3739
    %vm4109 = vcmp.eq.f32.partialorder %v2119, %v3741
    %vm4110 = vcmp.eq.f32.partialorder %v2124, %v3743
    %vm4111 = vcmp.eq.f32.partialorder %v2129, %v3745
    %vm4112 = vcmp.eq.f32.partialorder %v2134, %v3747
    %vm4113 = vcmp.eq.f32.partialorder %v2139, %v3749
    %vm4114 = vcmp.eq.f32.partialorder %v2144, %v3751
    %vm4115 = vcmp.eq.f32.partialorder %v2149, %v3753
    %vm4116 = vcmp.eq.f32.partialorder %v2154, %v3755
    %vm4117 = vcmp.eq.f32.partialorder %v2159, %v3757
    %vm4118 = vcmp.eq.f32.partialorder %v2164, %v3759
    %vm4119 = vcmp.eq.f32.partialorder %v2169, %v3761
    %vm4120 = vcmp.eq.f32.partialorder %v2174, %v3763
    %vm4121 = vcmp.eq.f32.partialorder %v2179, %v3765
    %vm4122 = vcmp.eq.f32.partialorder %v2184, %v3767
    %vm4123 = vcmp.eq.f32.partialorder %v2189, %v3769
    %vm4124 = vcmp.eq.f32.partialorder %v2194, %v3771
    %vm4125 = vcmp.eq.f32.partialorder %v2199, %v3773
    %vm4126 = vcmp.eq.f32.partialorder %v2204, %v3775
    %vm4127 = vcmp.eq.f32.partialorder %v2209, %v3777
    %vm4128 = vcmp.eq.f32.partialorder %v2214, %v3779
    %vm4129 = vcmp.eq.f32.partialorder %v2219, %v3781
    %vm4130 = vcmp.eq.f32.partialorder %v2224, %v3783
    %vm4131 = vcmp.eq.f32.partialorder %v2229, %v3785
    %vm4132 = vcmp.eq.f32.partialorder %v2234, %v3787
    %vm4133 = vcmp.eq.f32.partialorder %v2239, %v3789
    %vm4134 = vcmp.eq.f32.partialorder %v2244, %v3791
    %vm4135 = vcmp.eq.f32.partialorder %v2249, %v3793
    %vm4136 = vcmp.eq.f32.partialorder %v2254, %v3795
    %vm4137 = vcmp.eq.f32.partialorder %v2259, %v3797
    %vm4138 = vcmp.eq.f32.partialorder %v2264, %v3799
    %vm4139 = vcmp.eq.f32.partialorder %v2269, %v3801
    %vm4140 = vcmp.eq.f32.partialorder %v2274, %v3803
    %vm4141 = vcmp.eq.f32.partialorder %v2279, %v3805
    %vm4142 = vcmp.eq.f32.partialorder %v2284, %v3807
    %vm4143 = vcmp.eq.f32.partialorder %v2289, %v3809
    %vm4144 = vcmp.eq.f32.partialorder %v2294, %v3811
    %vm4145 = vcmp.eq.f32.partialorder %v2299, %v3813
    %vm4146 = vcmp.eq.f32.partialorder %v2304, %v3815
    %vm4147 = vcmp.eq.f32.partialorder %v2309, %v3817
    %vm4148 = vcmp.eq.f32.partialorder %v2314, %v3819
    %vm4149 = vcmp.eq.f32.partialorder %v2319, %v3821
    %vm4150 = vcmp.eq.f32.partialorder %v2324, %v3823
    %vm4151 = vcmp.eq.f32.partialorder %v2329, %v3825
    %vm4152 = vcmp.eq.f32.partialorder %v2334, %v3827
    %vm4153 = vcmp.eq.f32.partialorder %v2339, %v3829
    %vm4154 = vcmp.eq.f32.partialorder %v2344, %v3831
    %vm4155 = vcmp.eq.f32.partialorder %v2349, %v3833
    %vm4156 = vcmp.eq.f32.partialorder %v2354, %v3835
    %vm4157 = vcmp.eq.f32.partialorder %v2359, %v3837
    %vm4158 = vcmp.eq.f32.partialorder %v2364, %v3839
    %vm4159 = vcmp.eq.f32.partialorder %v2369, %v3841
    %vm4160 = vcmp.eq.f32.partialorder %v2374, %v3843
    %vm4161 = vcmp.eq.f32.partialorder %v2379, %v3845
    %vm4162 = vcmp.eq.f32.partialorder %v2384, %v3847
    %vm4163 = vcmp.eq.f32.partialorder %v2389, %v3849
    %vm4164 = vcmp.eq.f32.partialorder %v2394, %v3851
    %vm4165 = vcmp.eq.f32.partialorder %v2399, %v3853
    %vm4166 = vcmp.eq.f32.partialorder %v2404, %v3855
    %vm4167 = vcmp.eq.f32.partialorder %v2409, %v3857
    %vm4168 = vcmp.eq.f32.partialorder %v2414, %v3859
    %vm4169 = vcmp.eq.f32.partialorder %v2419, %v3861
    %vm4170 = vcmp.eq.f32.partialorder %v2424, %v3863
    %vm4171 = vcmp.eq.f32.partialorder %v2429, %v3865
    %vm4172 = vcmp.eq.f32.partialorder %v2434, %v3867
    %vm4173 = vcmp.eq.f32.partialorder %v2439, %v3869
    %vm4174 = vcmp.eq.f32.partialorder %v2444, %v3871
    %vm4175 = vcmp.eq.f32.partialorder %v2449, %v3873
    %vm4176 = vcmp.eq.f32.partialorder %v2454, %v3875
    %vm4177 = vcmp.eq.f32.partialorder %v2459, %v3877
    %vm4178 = vcmp.eq.f32.partialorder %v2464, %v3879
    %vm4179 = vcmp.eq.f32.partialorder %v2469, %v3881
    %vm4180 = vcmp.eq.f32.partialorder %v2474, %v3883
    %vm4181 = vcmp.eq.f32.partialorder %v2479, %v3885
    %vm4182 = vcmp.eq.f32.partialorder %v2484, %v3887
    %vm4183 = vcmp.eq.f32.partialorder %v2489, %v3889
    %vm4184 = vcmp.eq.f32.partialorder %v2494, %v3891
    %vm4185 = vcmp.eq.f32.partialorder %v2499, %v3893
    %vm4186 = vcmp.eq.f32.partialorder %v2504, %v3895
    %vm4187 = vcmp.eq.f32.partialorder %v2509, %v3897
    %vm4188 = vcmp.eq.f32.partialorder %v2514, %v3899
    %vm4189 = vcmp.eq.f32.partialorder %v2519, %v3901
    %vm4190 = vcmp.eq.f32.partialorder %v2524, %v3903
    %vm4191 = vcmp.eq.f32.partialorder %v2529, %v3905
    %vm4192 = vcmp.eq.f32.partialorder %v2534, %v3907
    %vm4193 = vcmp.eq.f32.partialorder %v2539, %v3909
    %vm4194 = vcmp.eq.f32.partialorder %v2544, %v3911
    %vm4195 = vcmp.eq.f32.partialorder %v2549, %v3913
    %vm4196 = vcmp.eq.f32.partialorder %v2554, %v3915
    %vm4197 = vcmp.eq.f32.partialorder %v2559, %v3917
    %vm4198 = vcmp.eq.f32.partialorder %v2564, %v3919
    %vm4199 = vcmp.eq.f32.partialorder %v2569, %v3921
    %vm4200 = vcmp.eq.f32.partialorder %v2574, %v3923
    %vm4201 = vcmp.eq.f32.partialorder %v2579, %v3925
    %vm4202 = vcmp.eq.f32.partialorder %v2584, %v3927
    %vm4203 = vcmp.eq.f32.partialorder %v2589, %v3929
    %vm4204 = vcmp.eq.f32.partialorder %v2594, %v3931
    %vm4205 = vcmp.eq.f32.partialorder %v2599, %v3933
    %vm4206 = vcmp.eq.f32.partialorder %v2604, %v3935
    %vm4207 = vcmp.eq.f32.partialorder %v2609, %v3937
    %vm4208 = vcmp.eq.f32.partialorder %v2614, %v3939
    %vm4209 = vcmp.eq.f32.partialorder %v2619, %v3941
    %vm4210 = vcmp.eq.f32.partialorder %v2624, %v3943
    %vm4211 = vcmp.eq.f32.partialorder %v2629, %v3945
    %vm4212 = vcmp.eq.f32.partialorder %v2634, %v3947
    %vm4213 = vcmp.eq.f32.partialorder %v2639, %v3949
    %vm4214 = vcmp.eq.f32.partialorder %v2644, %v3951
    %vm4215 = vcmp.eq.f32.partialorder %v2649, %v3953
    %vm4216 = vcmp.eq.f32.partialorder %v2654, %v3955
    %vm4217 = vcmp.eq.f32.partialorder %v2659, %v3957
    %vm4218 = vcmp.eq.f32.partialorder %v2664, %v3959
    %vm4219 = vcmp.eq.f32.partialorder %v2669, %v3961
    %vm4220 = vcmp.eq.f32.partialorder %v2674, %v3963
    %vm4221 = vcmp.eq.f32.partialorder %v2679, %v3965
    %v4222 = vsel %vm3966, 1, 0
    %v4223 = vsel %vm3967, 1, 0
    %v4224 = vsel %vm3968, 1, 0
    %v4225 = vsel %vm3969, 1, 0
    %v4226 = vsel %vm3970, 1, 0
    %v4227 = vsel %vm3971, 1, 0
    %v4228 = vsel %vm3972, 1, 0
    %v4229 = vsel %vm3973, 1, 0
    %v4230 = vsel %vm3974, 1, 0
    %v4231 = vsel %vm3975, 1, 0
    %v4232 = vsel %vm3976, 1, 0
    %v4233 = vsel %vm3977, 1, 0
    %v4234 = vsel %vm3978, 1, 0
    %v4235 = vsel %vm3979, 1, 0
    %v4236 = vsel %vm3980, 1, 0
    %v4237 = vsel %vm3981, 1, 0
    %v4238 = vsel %vm3982, 1, 0
    %v4239 = vsel %vm3983, 1, 0
    %v4240 = vsel %vm3984, 1, 0
    %v4241 = vsel %vm3985, 1, 0
    %v4242 = vsel %vm3986, 1, 0
    %v4243 = vsel %vm3987, 1, 0
    %v4244 = vsel %vm3988, 1, 0
    %v4245 = vsel %vm3989, 1, 0
    %v4246 = vsel %vm3990, 1, 0
    %v4247 = vsel %vm3991, 1, 0
    %v4248 = vsel %vm3992, 1, 0
    %v4249 = vsel %vm3993, 1, 0
    %v4250 = vsel %vm3994, 1, 0
    %v4251 = vsel %vm3995, 1, 0
    %v4252 = vsel %vm3996, 1, 0
    %v4253 = vsel %vm3997, 1, 0
    %v4254 = vsel %vm3998, 1, 0
    %v4255 = vsel %vm3999, 1, 0
    %v4256 = vsel %vm4000, 1, 0
    %v4257 = vsel %vm4001, 1, 0
    %v4258 = vsel %vm4002, 1, 0
    %v4259 = vsel %vm4003, 1, 0
    %v4260 = vsel %vm4004, 1, 0
    %v4261 = vsel %vm4005, 1, 0
    %v4262 = vsel %vm4006, 1, 0
    %v4263 = vsel %vm4007, 1, 0
    %v4264 = vsel %vm4008, 1, 0
    %v4265 = vsel %vm4009, 1, 0
    %v4266 = vsel %vm4010, 1, 0
    %v4267 = vsel %vm4011, 1, 0
    %v4268 = vsel %vm4012, 1, 0
    %v4269 = vsel %vm4013, 1, 0
    %v4270 = vsel %vm4014, 1, 0
    %v4271 = vsel %vm4015, 1, 0
    %v4272 = vsel %vm4016, 1, 0
    %v4273 = vsel %vm4017, 1, 0
    %v4274 = vsel %vm4018, 1, 0
    %v4275 = vsel %vm4019, 1, 0
    %v4276 = vsel %vm4020, 1, 0
    %v4277 = vsel %vm4021, 1, 0
    %v4278 = vsel %vm4022, 1, 0
    %v4279 = vsel %vm4023, 1, 0
    %v4280 = vsel %vm4024, 1, 0
    %v4281 = vsel %vm4025, 1, 0
    %v4282 = vsel %vm4026, 1, 0
    %v4283 = vsel %vm4027, 1, 0
    %v4284 = vsel %vm4028, 1, 0
    %v4285 = vsel %vm4029, 1, 0
    %v4286 = vsel %vm4030, 1, 0
    %v4287 = vsel %vm4031, 1, 0
    %v4288 = vsel %vm4032, 1, 0
    %v4289 = vsel %vm4033, 1, 0
    %v4290 = vsel %vm4034, 1, 0
    %v4291 = vsel %vm4035, 1, 0
    %v4292 = vsel %vm4036, 1, 0
    %v4293 = vsel %vm4037, 1, 0
    %v4294 = vsel %vm4038, 1, 0
    %v4295 = vsel %vm4039, 1, 0
    %v4296 = vsel %vm4040, 1, 0
    %v4297 = vsel %vm4041, 1, 0
    %v4298 = vsel %vm4042, 1, 0
    %v4299 = vsel %vm4043, 1, 0
    %v4300 = vsel %vm4044, 1, 0
    %v4301 = vsel %vm4045, 1, 0
    %v4302 = vsel %vm4046, 1, 0
    %v4303 = vsel %vm4047, 1, 0
    %v4304 = vsel %vm4048, 1, 0
    %v4305 = vsel %vm4049, 1, 0
    %v4306 = vsel %vm4050, 1, 0
    %v4307 = vsel %vm4051, 1, 0
    %v4308 = vsel %vm4052, 1, 0
    %v4309 = vsel %vm4053, 1, 0
    %v4310 = vsel %vm4054, 1, 0
    %v4311 = vsel %vm4055, 1, 0
    %v4312 = vsel %vm4056, 1, 0
    %v4313 = vsel %vm4057, 1, 0
    %v4314 = vsel %vm4058, 1, 0
    %v4315 = vsel %vm4059, 1, 0
    %v4316 = vsel %vm4060, 1, 0
    %v4317 = vsel %vm4061, 1, 0
    %v4318 = vsel %vm4062, 1, 0
    %v4319 = vsel %vm4063, 1, 0
    %v4320 = vsel %vm4064, 1, 0
    %v4321 = vsel %vm4065, 1, 0
    %v4322 = vsel %vm4066, 1, 0
    %v4323 = vsel %vm4067, 1, 0
    %v4324 = vsel %vm4068, 1, 0
    %v4325 = vsel %vm4069, 1, 0
    %v4326 = vsel %vm4070, 1, 0
    %v4327 = vsel %vm4071, 1, 0
    %v4328 = vsel %vm4072, 1, 0
    %v4329 = vsel %vm4073, 1, 0
    %v4330 = vsel %vm4074, 1, 0
    %v4331 = vsel %vm4075, 1, 0
    %v4332 = vsel %vm4076, 1, 0
    %v4333 = vsel %vm4077, 1, 0
    %v4334 = vsel %vm4078, 1, 0
    %v4335 = vsel %vm4079, 1, 0
    %v4336 = vsel %vm4080, 1, 0
    %v4337 = vsel %vm4081, 1, 0
    %v4338 = vsel %vm4082, 1, 0
    %v4339 = vsel %vm4083, 1, 0
    %v4340 = vsel %vm4084, 1, 0
    %v4341 = vsel %vm4085, 1, 0
    %v4342 = vsel %vm4086, 1, 0
    %v4343 = vsel %vm4087, 1, 0
    %v4344 = vsel %vm4088, 1, 0
    %v4345 = vsel %vm4089, 1, 0
    %v4346 = vsel %vm4090, 1, 0
    %v4347 = vsel %vm4091, 1, 0
    %v4348 = vsel %vm4092, 1, 0
    %v4349 = vsel %vm4093, 1, 0
    %v4350 = vsel %vm4094, 1, 0
    %v4351 = vsel %vm4095, 1, 0
    %v4352 = vsel %vm4096, 1, 0
    %v4353 = vsel %vm4097, 1, 0
    %v4354 = vsel %vm4098, 1, 0
    %v4355 = vsel %vm4099, 1, 0
    %v4356 = vsel %vm4100, 1, 0
    %v4357 = vsel %vm4101, 1, 0
    %v4358 = vsel %vm4102, 1, 0
    %v4359 = vsel %vm4103, 1, 0
    %v4360 = vsel %vm4104, 1, 0
    %v4361 = vsel %vm4105, 1, 0
    %v4362 = vsel %vm4106, 1, 0
    %v4363 = vsel %vm4107, 1, 0
    %v4364 = vsel %vm4108, 1, 0
    %v4365 = vsel %vm4109, 1, 0
    %v4366 = vsel %vm4110, 1, 0
    %v4367 = vsel %vm4111, 1, 0
    %v4368 = vsel %vm4112, 1, 0
    %v4369 = vsel %vm4113, 1, 0
    %v4370 = vsel %vm4114, 1, 0
    %v4371 = vsel %vm4115, 1, 0
    %v4372 = vsel %vm4116, 1, 0
    %v4373 = vsel %vm4117, 1, 0
    %v4374 = vsel %vm4118, 1, 0
    %v4375 = vsel %vm4119, 1, 0
    %v4376 = vsel %vm4120, 1, 0
    %v4377 = vsel %vm4121, 1, 0
    %v4378 = vsel %vm4122, 1, 0
    %v4379 = vsel %vm4123, 1, 0
    %v4380 = vsel %vm4124, 1, 0
    %v4381 = vsel %vm4125, 1, 0
    %v4382 = vsel %vm4126, 1, 0
    %v4383 = vsel %vm4127, 1, 0
    %v4384 = vsel %vm4128, 1, 0
    %v4385 = vsel %vm4129, 1, 0
    %v4386 = vsel %vm4130, 1, 0
    %v4387 = vsel %vm4131, 1, 0
    %v4388 = vsel %vm4132, 1, 0
    %v4389 = vsel %vm4133, 1, 0
    %v4390 = vsel %vm4134, 1, 0
    %v4391 = vsel %vm4135, 1, 0
    %v4392 = vsel %vm4136, 1, 0
    %v4393 = vsel %vm4137, 1, 0
    %v4394 = vsel %vm4138, 1, 0
    %v4395 = vsel %vm4139, 1, 0
    %v4396 = vsel %vm4140, 1, 0
    %v4397 = vsel %vm4141, 1, 0
    %v4398 = vsel %vm4142, 1, 0
    %v4399 = vsel %vm4143, 1, 0
    %v4400 = vsel %vm4144, 1, 0
    %v4401 = vsel %vm4145, 1, 0
    %v4402 = vsel %vm4146, 1, 0
    %v4403 = vsel %vm4147, 1, 0
    %v4404 = vsel %vm4148, 1, 0
    %v4405 = vsel %vm4149, 1, 0
    %v4406 = vsel %vm4150, 1, 0
    %v4407 = vsel %vm4151, 1, 0
    %v4408 = vsel %vm4152, 1, 0
    %v4409 = vsel %vm4153, 1, 0
    %v4410 = vsel %vm4154, 1, 0
    %v4411 = vsel %vm4155, 1, 0
    %v4412 = vsel %vm4156, 1, 0
    %v4413 = vsel %vm4157, 1, 0
    %v4414 = vsel %vm4158, 1, 0
    %v4415 = vsel %vm4159, 1, 0
    %v4416 = vsel %vm4160, 1, 0
    %v4417 = vsel %vm4161, 1, 0
    %v4418 = vsel %vm4162, 1, 0
    %v4419 = vsel %vm4163, 1, 0
    %v4420 = vsel %vm4164, 1, 0
    %v4421 = vsel %vm4165, 1, 0
    %v4422 = vsel %vm4166, 1, 0
    %v4423 = vsel %vm4167, 1, 0
    %v4424 = vsel %vm4168, 1, 0
    %v4425 = vsel %vm4169, 1, 0
    %v4426 = vsel %vm4170, 1, 0
    %v4427 = vsel %vm4171, 1, 0
    %v4428 = vsel %vm4172, 1, 0
    %v4429 = vsel %vm4173, 1, 0
    %v4430 = vsel %vm4174, 1, 0
    %v4431 = vsel %vm4175, 1, 0
    %v4432 = vsel %vm4176, 1, 0
    %v4433 = vsel %vm4177, 1, 0
    %v4434 = vsel %vm4178, 1, 0
    %v4435 = vsel %vm4179, 1, 0
    %v4436 = vsel %vm4180, 1, 0
    %v4437 = vsel %vm4181, 1, 0
    %v4438 = vsel %vm4182, 1, 0
    %v4439 = vsel %vm4183, 1, 0
    %v4440 = vsel %vm4184, 1, 0
    %v4441 = vsel %vm4185, 1, 0
    %v4442 = vsel %vm4186, 1, 0
    %v4443 = vsel %vm4187, 1, 0
    %v4444 = vsel %vm4188, 1, 0
    %v4445 = vsel %vm4189, 1, 0
    %v4446 = vsel %vm4190, 1, 0
    %v4447 = vsel %vm4191, 1, 0
    %v4448 = vsel %vm4192, 1, 0
    %v4449 = vsel %vm4193, 1, 0
    %v4450 = vsel %vm4194, 1, 0
    %v4451 = vsel %vm4195, 1, 0
    %v4452 = vsel %vm4196, 1, 0
    %v4453 = vsel %vm4197, 1, 0
    %v4454 = vsel %vm4198, 1, 0
    %v4455 = vsel %vm4199, 1, 0
    %v4456 = vsel %vm4200, 1, 0
    %v4457 = vsel %vm4201, 1, 0
    %v4458 = vsel %vm4202, 1, 0
    %v4459 = vsel %vm4203, 1, 0
    %v4460 = vsel %vm4204, 1, 0
    %v4461 = vsel %vm4205, 1, 0
    %v4462 = vsel %vm4206, 1, 0
    %v4463 = vsel %vm4207, 1, 0
    %v4464 = vsel %vm4208, 1, 0
    %v4465 = vsel %vm4209, 1, 0
    %v4466 = vsel %vm4210, 1, 0
    %v4467 = vsel %vm4211, 1, 0
    %v4468 = vsel %vm4212, 1, 0
    %v4469 = vsel %vm4213, 1, 0
    %v4470 = vsel %vm4214, 1, 0
    %v4471 = vsel %vm4215, 1, 0
    %v4472 = vsel %vm4216, 1, 0
    %v4473 = vsel %vm4217, 1, 0
    %v4474 = vsel %vm4218, 1, 0
    %v4475 = vsel %vm4219, 1, 0
    %v4476 = vsel %vm4220, 1, 0
    %v4477 = vsel %vm4221, 1, 0
    %v4478 = vcvt.s32.f32 %v4222
    %v4479 = vcvt.s32.f32 %v4223
    %v4480 = vcvt.s32.f32 %v4224
    %v4481 = vcvt.s32.f32 %v4225
    %v4482 = vcvt.s32.f32 %v4226
    %v4483 = vcvt.s32.f32 %v4227
    %v4484 = vcvt.s32.f32 %v4228
    %v4485 = vcvt.s32.f32 %v4229
    %v4486 = vcvt.s32.f32 %v4230
    %v4487 = vcvt.s32.f32 %v4231
    %v4488 = vcvt.s32.f32 %v4232
    %v4489 = vcvt.s32.f32 %v4233
    %v4490 = vcvt.s32.f32 %v4234
    %v4491 = vcvt.s32.f32 %v4235
    %v4492 = vcvt.s32.f32 %v4236
    %v4493 = vcvt.s32.f32 %v4237
    %v4494 = vcvt.s32.f32 %v4238
    %v4495 = vcvt.s32.f32 %v4239
    %v4496 = vcvt.s32.f32 %v4240
    %v4497 = vcvt.s32.f32 %v4241
    %v4498 = vcvt.s32.f32 %v4242
    %v4499 = vcvt.s32.f32 %v4243
    %v4500 = vcvt.s32.f32 %v4244
    %v4501 = vcvt.s32.f32 %v4245
    %v4502 = vcvt.s32.f32 %v4246
    %v4503 = vcvt.s32.f32 %v4247
    %v4504 = vcvt.s32.f32 %v4248
    %v4505 = vcvt.s32.f32 %v4249
    %v4506 = vcvt.s32.f32 %v4250
    %v4507 = vcvt.s32.f32 %v4251
    %v4508 = vcvt.s32.f32 %v4252
    %v4509 = vcvt.s32.f32 %v4253
    %v4510 = vcvt.s32.f32 %v4254
    %v4511 = vcvt.s32.f32 %v4255
    %v4512 = vcvt.s32.f32 %v4256
    %v4513 = vcvt.s32.f32 %v4257
    %v4514 = vcvt.s32.f32 %v4258
    %v4515 = vcvt.s32.f32 %v4259
    %v4516 = vcvt.s32.f32 %v4260
    %v4517 = vcvt.s32.f32 %v4261
    %v4518 = vcvt.s32.f32 %v4262
    %v4519 = vcvt.s32.f32 %v4263
    %v4520 = vcvt.s32.f32 %v4264
    %v4521 = vcvt.s32.f32 %v4265
    %v4522 = vcvt.s32.f32 %v4266
    %v4523 = vcvt.s32.f32 %v4267
    %v4524 = vcvt.s32.f32 %v4268
    %v4525 = vcvt.s32.f32 %v4269
    %v4526 = vcvt.s32.f32 %v4270
    %v4527 = vcvt.s32.f32 %v4271
    %v4528 = vcvt.s32.f32 %v4272
    %v4529 = vcvt.s32.f32 %v4273
    %v4530 = vcvt.s32.f32 %v4274
    %v4531 = vcvt.s32.f32 %v4275
    %v4532 = vcvt.s32.f32 %v4276
    %v4533 = vcvt.s32.f32 %v4277
    %v4534 = vcvt.s32.f32 %v4278
    %v4535 = vcvt.s32.f32 %v4279
    %v4536 = vcvt.s32.f32 %v4280
    %v4537 = vcvt.s32.f32 %v4281
    %v4538 = vcvt.s32.f32 %v4282
    %v4539 = vcvt.s32.f32 %v4283
    %v4540 = vcvt.s32.f32 %v4284
    %v4541 = vcvt.s32.f32 %v4285
    %v4542 = vcvt.s32.f32 %v4286
    %v4543 = vcvt.s32.f32 %v4287
    %v4544 = vcvt.s32.f32 %v4288
    %v4545 = vcvt.s32.f32 %v4289
    %v4546 = vcvt.s32.f32 %v4290
    %v4547 = vcvt.s32.f32 %v4291
    %v4548 = vcvt.s32.f32 %v4292
    %v4549 = vcvt.s32.f32 %v4293
    %v4550 = vcvt.s32.f32 %v4294
    %v4551 = vcvt.s32.f32 %v4295
    %v4552 = vcvt.s32.f32 %v4296
    %v4553 = vcvt.s32.f32 %v4297
    %v4554 = vcvt.s32.f32 %v4298
    %v4555 = vcvt.s32.f32 %v4299
    %v4556 = vcvt.s32.f32 %v4300
    %v4557 = vcvt.s32.f32 %v4301
    %v4558 = vcvt.s32.f32 %v4302
    %v4559 = vcvt.s32.f32 %v4303
    %v4560 = vcvt.s32.f32 %v4304
    %v4561 = vcvt.s32.f32 %v4305
    %v4562 = vcvt.s32.f32 %v4306
    %v4563 = vcvt.s32.f32 %v4307
    %v4564 = vcvt.s32.f32 %v4308
    %v4565 = vcvt.s32.f32 %v4309
    %v4566 = vcvt.s32.f32 %v4310
    %v4567 = vcvt.s32.f32 %v4311
    %v4568 = vcvt.s32.f32 %v4312
    %v4569 = vcvt.s32.f32 %v4313
    %v4570 = vcvt.s32.f32 %v4314
    %v4571 = vcvt.s32.f32 %v4315
    %v4572 = vcvt.s32.f32 %v4316
    %v4573 = vcvt.s32.f32 %v4317
    %v4574 = vcvt.s32.f32 %v4318
    %v4575 = vcvt.s32.f32 %v4319
    %v4576 = vcvt.s32.f32 %v4320
    %v4577 = vcvt.s32.f32 %v4321
    %v4578 = vcvt.s32.f32 %v4322
    %v4579 = vcvt.s32.f32 %v4323
    %v4580 = vcvt.s32.f32 %v4324
    %v4581 = vcvt.s32.f32 %v4325
    %v4582 = vcvt.s32.f32 %v4326
    %v4583 = vcvt.s32.f32 %v4327
    %v4584 = vcvt.s32.f32 %v4328
    %v4585 = vcvt.s32.f32 %v4329
    %v4586 = vcvt.s32.f32 %v4330
    %v4587 = vcvt.s32.f32 %v4331
    %v4588 = vcvt.s32.f32 %v4332
    %v4589 = vcvt.s32.f32 %v4333
    %v4590 = vcvt.s32.f32 %v4334
    %v4591 = vcvt.s32.f32 %v4335
    %v4592 = vcvt.s32.f32 %v4336
    %v4593 = vcvt.s32.f32 %v4337
    %v4594 = vcvt.s32.f32 %v4338
    %v4595 = vcvt.s32.f32 %v4339
    %v4596 = vcvt.s32.f32 %v4340
    %v4597 = vcvt.s32.f32 %v4341
    %v4598 = vcvt.s32.f32 %v4342
    %v4599 = vcvt.s32.f32 %v4343
    %v4600 = vcvt.s32.f32 %v4344
    %v4601 = vcvt.s32.f32 %v4345
    %v4602 = vcvt.s32.f32 %v4346
    %v4603 = vcvt.s32.f32 %v4347
    %v4604 = vcvt.s32.f32 %v4348
    %v4605 = vcvt.s32.f32 %v4349
    %v4606 = vcvt.s32.f32 %v4350
    %v4607 = vcvt.s32.f32 %v4351
    %v4608 = vcvt.s32.f32 %v4352
    %v4609 = vcvt.s32.f32 %v4353
    %v4610 = vcvt.s32.f32 %v4354
    %v4611 = vcvt.s32.f32 %v4355
    %v4612 = vcvt.s32.f32 %v4356
    %v4613 = vcvt.s32.f32 %v4357
    %v4614 = vcvt.s32.f32 %v4358
    %v4615 = vcvt.s32.f32 %v4359
    %v4616 = vcvt.s32.f32 %v4360
    %v4617 = vcvt.s32.f32 %v4361
    %v4618 = vcvt.s32.f32 %v4362
    %v4619 = vcvt.s32.f32 %v4363
    %v4620 = vcvt.s32.f32 %v4364
    %v4621 = vcvt.s32.f32 %v4365
    %v4622 = vcvt.s32.f32 %v4366
    %v4623 = vcvt.s32.f32 %v4367
    %v4624 = vcvt.s32.f32 %v4368
    %v4625 = vcvt.s32.f32 %v4369
    %v4626 = vcvt.s32.f32 %v4370
    %v4627 = vcvt.s32.f32 %v4371
    %v4628 = vcvt.s32.f32 %v4372
    %v4629 = vcvt.s32.f32 %v4373
    %v4630 = vcvt.s32.f32 %v4374
    %v4631 = vcvt.s32.f32 %v4375
    %v4632 = vcvt.s32.f32 %v4376
    %v4633 = vcvt.s32.f32 %v4377
    %v4634 = vcvt.s32.f32 %v4378
    %v4635 = vcvt.s32.f32 %v4379
    %v4636 = vcvt.s32.f32 %v4380
    %v4637 = vcvt.s32.f32 %v4381
    %v4638 = vcvt.s32.f32 %v4382
    %v4639 = vcvt.s32.f32 %v4383
    %v4640 = vcvt.s32.f32 %v4384
    %v4641 = vcvt.s32.f32 %v4385
    %v4642 = vcvt.s32.f32 %v4386
    %v4643 = vcvt.s32.f32 %v4387
    %v4644 = vcvt.s32.f32 %v4388
    %v4645 = vcvt.s32.f32 %v4389
    %v4646 = vcvt.s32.f32 %v4390
    %v4647 = vcvt.s32.f32 %v4391
    %v4648 = vcvt.s32.f32 %v4392
    %v4649 = vcvt.s32.f32 %v4393
    %v4650 = vcvt.s32.f32 %v4394
    %v4651 = vcvt.s32.f32 %v4395
    %v4652 = vcvt.s32.f32 %v4396
    %v4653 = vcvt.s32.f32 %v4397
    %v4654 = vcvt.s32.f32 %v4398
    %v4655 = vcvt.s32.f32 %v4399
    %v4656 = vcvt.s32.f32 %v4400
    %v4657 = vcvt.s32.f32 %v4401
    %v4658 = vcvt.s32.f32 %v4402
    %v4659 = vcvt.s32.f32 %v4403
    %v4660 = vcvt.s32.f32 %v4404
    %v4661 = vcvt.s32.f32 %v4405
    %v4662 = vcvt.s32.f32 %v4406
    %v4663 = vcvt.s32.f32 %v4407
    %v4664 = vcvt.s32.f32 %v4408
    %v4665 = vcvt.s32.f32 %v4409
    %v4666 = vcvt.s32.f32 %v4410
    %v4667 = vcvt.s32.f32 %v4411
    %v4668 = vcvt.s32.f32 %v4412
    %v4669 = vcvt.s32.f32 %v4413
    %v4670 = vcvt.s32.f32 %v4414
    %v4671 = vcvt.s32.f32 %v4415
    %v4672 = vcvt.s32.f32 %v4416
    %v4673 = vcvt.s32.f32 %v4417
    %v4674 = vcvt.s32.f32 %v4418
    %v4675 = vcvt.s32.f32 %v4419
    %v4676 = vcvt.s32.f32 %v4420
    %v4677 = vcvt.s32.f32 %v4421
    %v4678 = vcvt.s32.f32 %v4422
    %v4679 = vcvt.s32.f32 %v4423
    %v4680 = vcvt.s32.f32 %v4424
    %v4681 = vcvt.s32.f32 %v4425
    %v4682 = vcvt.s32.f32 %v4426
    %v4683 = vcvt.s32.f32 %v4427
    %v4684 = vcvt.s32.f32 %v4428
    %v4685 = vcvt.s32.f32 %v4429
    %v4686 = vcvt.s32.f32 %v4430
    %v4687 = vcvt.s32.f32 %v4431
    %v4688 = vcvt.s32.f32 %v4432
    %v4689 = vcvt.s32.f32 %v4433
    %v4690 = vcvt.s32.f32 %v4434
    %v4691 = vcvt.s32.f32 %v4435
    %v4692 = vcvt.s32.f32 %v4436
    %v4693 = vcvt.s32.f32 %v4437
    %v4694 = vcvt.s32.f32 %v4438
    %v4695 = vcvt.s32.f32 %v4439
    %v4696 = vcvt.s32.f32 %v4440
    %v4697 = vcvt.s32.f32 %v4441
    %v4698 = vcvt.s32.f32 %v4442
    %v4699 = vcvt.s32.f32 %v4443
    %v4700 = vcvt.s32.f32 %v4444
    %v4701 = vcvt.s32.f32 %v4445
    %v4702 = vcvt.s32.f32 %v4446
    %v4703 = vcvt.s32.f32 %v4447
    %v4704 = vcvt.s32.f32 %v4448
    %v4705 = vcvt.s32.f32 %v4449
    %v4706 = vcvt.s32.f32 %v4450
    %v4707 = vcvt.s32.f32 %v4451
    %v4708 = vcvt.s32.f32 %v4452
    %v4709 = vcvt.s32.f32 %v4453
    %v4710 = vcvt.s32.f32 %v4454
    %v4711 = vcvt.s32.f32 %v4455
    %v4712 = vcvt.s32.f32 %v4456
    %v4713 = vcvt.s32.f32 %v4457
    %v4714 = vcvt.s32.f32 %v4458
    %v4715 = vcvt.s32.f32 %v4459
    %v4716 = vcvt.s32.f32 %v4460
    %v4717 = vcvt.s32.f32 %v4461
    %v4718 = vcvt.s32.f32 %v4462
    %v4719 = vcvt.s32.f32 %v4463
    %v4720 = vcvt.s32.f32 %v4464
    %v4721 = vcvt.s32.f32 %v4465
    %v4722 = vcvt.s32.f32 %v4466
    %v4723 = vcvt.s32.f32 %v4467
    %v4724 = vcvt.s32.f32 %v4468
    %v4725 = vcvt.s32.f32 %v4469
    %v4726 = vcvt.s32.f32 %v4470
    %v4727 = vcvt.s32.f32 %v4471
    %v4728 = vcvt.s32.f32 %v4472
    %v4729 = vcvt.s32.f32 %v4473
    %v4730 = vcvt.s32.f32 %v4474
    %v4731 = vcvt.s32.f32 %v4475
    %v4732 = vcvt.s32.f32 %v4476
    %v4733 = vcvt.s32.f32 %v4477
    %v4734 = vsel %vm3198, 1, 0
    %v4735 = vsel %vm3199, 1, 0
    %v4736 = vsel %vm3200, 1, 0
    %v4737 = vsel %vm3201, 1, 0
    %v4738 = vsel %vm3202, 1, 0
    %v4739 = vsel %vm3203, 1, 0
    %v4740 = vsel %vm3204, 1, 0
    %v4741 = vsel %vm3205, 1, 0
    %v4742 = vsel %vm3206, 1, 0
    %v4743 = vsel %vm3207, 1, 0
    %v4744 = vsel %vm3208, 1, 0
    %v4745 = vsel %vm3209, 1, 0
    %v4746 = vsel %vm3210, 1, 0
    %v4747 = vsel %vm3211, 1, 0
    %v4748 = vsel %vm3212, 1, 0
    %v4749 = vsel %vm3213, 1, 0
    %v4750 = vsel %vm3214, 1, 0
    %v4751 = vsel %vm3215, 1, 0
    %v4752 = vsel %vm3216, 1, 0
    %v4753 = vsel %vm3217, 1, 0
    %v4754 = vsel %vm3218, 1, 0
    %v4755 = vsel %vm3219, 1, 0
    %v4756 = vsel %vm3220, 1, 0
    %v4757 = vsel %vm3221, 1, 0
    %v4758 = vsel %vm3222, 1, 0
    %v4759 = vsel %vm3223, 1, 0
    %v4760 = vsel %vm3224, 1, 0
    %v4761 = vsel %vm3225, 1, 0
    %v4762 = vsel %vm3226, 1, 0
    %v4763 = vsel %vm3227, 1, 0
    %v4764 = vsel %vm3228, 1, 0
    %v4765 = vsel %vm3229, 1, 0
    %v4766 = vsel %vm3230, 1, 0
    %v4767 = vsel %vm3231, 1, 0
    %v4768 = vsel %vm3232, 1, 0
    %v4769 = vsel %vm3233, 1, 0
    %v4770 = vsel %vm3234, 1, 0
    %v4771 = vsel %vm3235, 1, 0
    %v4772 = vsel %vm3236, 1, 0
    %v4773 = vsel %vm3237, 1, 0
    %v4774 = vsel %vm3238, 1, 0
    %v4775 = vsel %vm3239, 1, 0
    %v4776 = vsel %vm3240, 1, 0
    %v4777 = vsel %vm3241, 1, 0
    %v4778 = vsel %vm3242, 1, 0
    %v4779 = vsel %vm3243, 1, 0
    %v4780 = vsel %vm3244, 1, 0
    %v4781 = vsel %vm3245, 1, 0
    %v4782 = vsel %vm3246, 1, 0
    %v4783 = vsel %vm3247, 1, 0
    %v4784 = vsel %vm3248, 1, 0
    %v4785 = vsel %vm3249, 1, 0
    %v4786 = vsel %vm3250, 1, 0
    %v4787 = vsel %vm3251, 1, 0
    %v4788 = vsel %vm3252, 1, 0
    %v4789 = vsel %vm3253, 1, 0
    %v4790 = vsel %vm3254, 1, 0
    %v4791 = vsel %vm3255, 1, 0
    %v4792 = vsel %vm3256, 1, 0
    %v4793 = vsel %vm3257, 1, 0
    %v4794 = vsel %vm3258, 1, 0
    %v4795 = vsel %vm3259, 1, 0
    %v4796 = vsel %vm3260, 1, 0
    %v4797 = vsel %vm3261, 1, 0
    %v4798 = vsel %vm3262, 1, 0
    %v4799 = vsel %vm3263, 1, 0
    %v4800 = vsel %vm3264, 1, 0
    %v4801 = vsel %vm3265, 1, 0
    %v4802 = vsel %vm3266, 1, 0
    %v4803 = vsel %vm3267, 1, 0
    %v4804 = vsel %vm3268, 1, 0
    %v4805 = vsel %vm3269, 1, 0
    %v4806 = vsel %vm3270, 1, 0
    %v4807 = vsel %vm3271, 1, 0
    %v4808 = vsel %vm3272, 1, 0
    %v4809 = vsel %vm3273, 1, 0
    %v4810 = vsel %vm3274, 1, 0
    %v4811 = vsel %vm3275, 1, 0
    %v4812 = vsel %vm3276, 1, 0
    %v4813 = vsel %vm3277, 1, 0
    %v4814 = vsel %vm3278, 1, 0
    %v4815 = vsel %vm3279, 1, 0
    %v4816 = vsel %vm3280, 1, 0
    %v4817 = vsel %vm3281, 1, 0
    %v4818 = vsel %vm3282, 1, 0
    %v4819 = vsel %vm3283, 1, 0
    %v4820 = vsel %vm3284, 1, 0
    %v4821 = vsel %vm3285, 1, 0
    %v4822 = vsel %vm3286, 1, 0
    %v4823 = vsel %vm3287, 1, 0
    %v4824 = vsel %vm3288, 1, 0
    %v4825 = vsel %vm3289, 1, 0
    %v4826 = vsel %vm3290, 1, 0
    %v4827 = vsel %vm3291, 1, 0
    %v4828 = vsel %vm3292, 1, 0
    %v4829 = vsel %vm3293, 1, 0
    %v4830 = vsel %vm3294, 1, 0
    %v4831 = vsel %vm3295, 1, 0
    %v4832 = vsel %vm3296, 1, 0
    %v4833 = vsel %vm3297, 1, 0
    %v4834 = vsel %vm3298, 1, 0
    %v4835 = vsel %vm3299, 1, 0
    %v4836 = vsel %vm3300, 1, 0
    %v4837 = vsel %vm3301, 1, 0
    %v4838 = vsel %vm3302, 1, 0
    %v4839 = vsel %vm3303, 1, 0
    %v4840 = vsel %vm3304, 1, 0
    %v4841 = vsel %vm3305, 1, 0
    %v4842 = vsel %vm3306, 1, 0
    %v4843 = vsel %vm3307, 1, 0
    %v4844 = vsel %vm3308, 1, 0
    %v4845 = vsel %vm3309, 1, 0
    %v4846 = vsel %vm3310, 1, 0
    %v4847 = vsel %vm3311, 1, 0
    %v4848 = vsel %vm3312, 1, 0
    %v4849 = vsel %vm3313, 1, 0
    %v4850 = vsel %vm3314, 1, 0
    %v4851 = vsel %vm3315, 1, 0
    %v4852 = vsel %vm3316, 1, 0
    %v4853 = vsel %vm3317, 1, 0
    %v4854 = vsel %vm3318, 1, 0
    %v4855 = vsel %vm3319, 1, 0
    %v4856 = vsel %vm3320, 1, 0
    %v4857 = vsel %vm3321, 1, 0
    %v4858 = vsel %vm3322, 1, 0
    %v4859 = vsel %vm3323, 1, 0
    %v4860 = vsel %vm3324, 1, 0
    %v4861 = vsel %vm3325, 1, 0
    %v4862 = vsel %vm3326, 1, 0
    %v4863 = vsel %vm3327, 1, 0
    %v4864 = vsel %vm3328, 1, 0
    %v4865 = vsel %vm3329, 1, 0
    %v4866 = vsel %vm3330, 1, 0
    %v4867 = vsel %vm3331, 1, 0
    %v4868 = vsel %vm3332, 1, 0
    %v4869 = vsel %vm3333, 1, 0
    %v4870 = vsel %vm3334, 1, 0
    %v4871 = vsel %vm3335, 1, 0
    %v4872 = vsel %vm3336, 1, 0
    %v4873 = vsel %vm3337, 1, 0
    %v4874 = vsel %vm3338, 1, 0
    %v4875 = vsel %vm3339, 1, 0
    %v4876 = vsel %vm3340, 1, 0
    %v4877 = vsel %vm3341, 1, 0
    %v4878 = vsel %vm3342, 1, 0
    %v4879 = vsel %vm3343, 1, 0
    %v4880 = vsel %vm3344, 1, 0
    %v4881 = vsel %vm3345, 1, 0
    %v4882 = vsel %vm3346, 1, 0
    %v4883 = vsel %vm3347, 1, 0
    %v4884 = vsel %vm3348, 1, 0
    %v4885 = vsel %vm3349, 1, 0
    %v4886 = vsel %vm3350, 1, 0
    %v4887 = vsel %vm3351, 1, 0
    %v4888 = vsel %vm3352, 1, 0
    %v4889 = vsel %vm3353, 1, 0
    %v4890 = vsel %vm3354, 1, 0
    %v4891 = vsel %vm3355, 1, 0
    %v4892 = vsel %vm3356, 1, 0
    %v4893 = vsel %vm3357, 1, 0
    %v4894 = vsel %vm3358, 1, 0
    %v4895 = vsel %vm3359, 1, 0
    %v4896 = vsel %vm3360, 1, 0
    %v4897 = vsel %vm3361, 1, 0
    %v4898 = vsel %vm3362, 1, 0
    %v4899 = vsel %vm3363, 1, 0
    %v4900 = vsel %vm3364, 1, 0
    %v4901 = vsel %vm3365, 1, 0
    %v4902 = vsel %vm3366, 1, 0
    %v4903 = vsel %vm3367, 1, 0
    %v4904 = vsel %vm3368, 1, 0
    %v4905 = vsel %vm3369, 1, 0
    %v4906 = vsel %vm3370, 1, 0
    %v4907 = vsel %vm3371, 1, 0
    %v4908 = vsel %vm3372, 1, 0
    %v4909 = vsel %vm3373, 1, 0
    %v4910 = vsel %vm3374, 1, 0
    %v4911 = vsel %vm3375, 1, 0
    %v4912 = vsel %vm3376, 1, 0
    %v4913 = vsel %vm3377, 1, 0
    %v4914 = vsel %vm3378, 1, 0
    %v4915 = vsel %vm3379, 1, 0
    %v4916 = vsel %vm3380, 1, 0
    %v4917 = vsel %vm3381, 1, 0
    %v4918 = vsel %vm3382, 1, 0
    %v4919 = vsel %vm3383, 1, 0
    %v4920 = vsel %vm3384, 1, 0
    %v4921 = vsel %vm3385, 1, 0
    %v4922 = vsel %vm3386, 1, 0
    %v4923 = vsel %vm3387, 1, 0
    %v4924 = vsel %vm3388, 1, 0
    %v4925 = vsel %vm3389, 1, 0
    %v4926 = vsel %vm3390, 1, 0
    %v4927 = vsel %vm3391, 1, 0
    %v4928 = vsel %vm3392, 1, 0
    %v4929 = vsel %vm3393, 1, 0
    %v4930 = vsel %vm3394, 1, 0
    %v4931 = vsel %vm3395, 1, 0
    %v4932 = vsel %vm3396, 1, 0
    %v4933 = vsel %vm3397, 1, 0
    %v4934 = vsel %vm3398, 1, 0
    %v4935 = vsel %vm3399, 1, 0
    %v4936 = vsel %vm3400, 1, 0
    %v4937 = vsel %vm3401, 1, 0
    %v4938 = vsel %vm3402, 1, 0
    %v4939 = vsel %vm3403, 1, 0
    %v4940 = vsel %vm3404, 1, 0
    %v4941 = vsel %vm3405, 1, 0
    %v4942 = vsel %vm3406, 1, 0
    %v4943 = vsel %vm3407, 1, 0
    %v4944 = vsel %vm3408, 1, 0
    %v4945 = vsel %vm3409, 1, 0
    %v4946 = vsel %vm3410, 1, 0
    %v4947 = vsel %vm3411, 1, 0
    %v4948 = vsel %vm3412, 1, 0
    %v4949 = vsel %vm3413, 1, 0
    %v4950 = vsel %vm3414, 1, 0
    %v4951 = vsel %vm3415, 1, 0
    %v4952 = vsel %vm3416, 1, 0
    %v4953 = vsel %vm3417, 1, 0
    %v4954 = vsel %vm3418, 1, 0
    %v4955 = vsel %vm3419, 1, 0
    %v4956 = vsel %vm3420, 1, 0
    %v4957 = vsel %vm3421, 1, 0
    %v4958 = vsel %vm3422, 1, 0
    %v4959 = vsel %vm3423, 1, 0
    %v4960 = vsel %vm3424, 1, 0
    %v4961 = vsel %vm3425, 1, 0
    %v4962 = vsel %vm3426, 1, 0
    %v4963 = vsel %vm3427, 1, 0
    %v4964 = vsel %vm3428, 1, 0
    %v4965 = vsel %vm3429, 1, 0
    %v4966 = vsel %vm3430, 1, 0
    %v4967 = vsel %vm3431, 1, 0
    %v4968 = vsel %vm3432, 1, 0
    %v4969 = vsel %vm3433, 1, 0
    %v4970 = vsel %vm3434, 1, 0
    %v4971 = vsel %vm3435, 1, 0
    %v4972 = vsel %vm3436, 1, 0
    %v4973 = vsel %vm3437, 1, 0
    %v4974 = vsel %vm3438, 1, 0
    %v4975 = vsel %vm3439, 1, 0
    %v4976 = vsel %vm3440, 1, 0
    %v4977 = vsel %vm3441, 1, 0
    %v4978 = vsel %vm3442, 1, 0
    %v4979 = vsel %vm3443, 1, 0
    %v4980 = vsel %vm3444, 1, 0
    %v4981 = vsel %vm3445, 1, 0
    %v4982 = vsel %vm3446, 1, 0
    %v4983 = vsel %vm3447, 1, 0
    %v4984 = vsel %vm3448, 1, 0
    %v4985 = vsel %vm3449, 1, 0
    %v4986 = vsel %vm3450, 1, 0
    %v4987 = vsel %vm3451, 1, 0
    %v4988 = vsel %vm3452, 1, 0
    %v4989 = vsel %vm3453, 1, 0
    %vm4990 = vcmp.eq.s32.totalorder %v4734, 1
    %vm4991 = vcmp.eq.s32.totalorder %v4735, 1
    %vm4992 = vcmp.eq.s32.totalorder %v4736, 1
    %vm4993 = vcmp.eq.s32.totalorder %v4737, 1
    %vm4994 = vcmp.eq.s32.totalorder %v4738, 1
    %vm4995 = vcmp.eq.s32.totalorder %v4739, 1
    %vm4996 = vcmp.eq.s32.totalorder %v4740, 1
    %vm4997 = vcmp.eq.s32.totalorder %v4741, 1
    %vm4998 = vcmp.eq.s32.totalorder %v4742, 1
    %vm4999 = vcmp.eq.s32.totalorder %v4743, 1
    %vm5000 = vcmp.eq.s32.totalorder %v4744, 1
    %vm5001 = vcmp.eq.s32.totalorder %v4745, 1
    %vm5002 = vcmp.eq.s32.totalorder %v4746, 1
    %vm5003 = vcmp.eq.s32.totalorder %v4747, 1
    %vm5004 = vcmp.eq.s32.totalorder %v4748, 1
    %vm5005 = vcmp.eq.s32.totalorder %v4749, 1
    %vm5006 = vcmp.eq.s32.totalorder %v4750, 1
    %vm5007 = vcmp.eq.s32.totalorder %v4751, 1
    %vm5008 = vcmp.eq.s32.totalorder %v4752, 1
    %vm5009 = vcmp.eq.s32.totalorder %v4753, 1
    %vm5010 = vcmp.eq.s32.totalorder %v4754, 1
    %vm5011 = vcmp.eq.s32.totalorder %v4755, 1
    %vm5012 = vcmp.eq.s32.totalorder %v4756, 1
    %vm5013 = vcmp.eq.s32.totalorder %v4757, 1
    %vm5014 = vcmp.eq.s32.totalorder %v4758, 1
    %vm5015 = vcmp.eq.s32.totalorder %v4759, 1
    %vm5016 = vcmp.eq.s32.totalorder %v4760, 1
    %vm5017 = vcmp.eq.s32.totalorder %v4761, 1
    %vm5018 = vcmp.eq.s32.totalorder %v4762, 1
    %vm5019 = vcmp.eq.s32.totalorder %v4763, 1
    %vm5020 = vcmp.eq.s32.totalorder %v4764, 1
    %vm5021 = vcmp.eq.s32.totalorder %v4765, 1
    %vm5022 = vcmp.eq.s32.totalorder %v4766, 1
    %vm5023 = vcmp.eq.s32.totalorder %v4767, 1
    %vm5024 = vcmp.eq.s32.totalorder %v4768, 1
    %vm5025 = vcmp.eq.s32.totalorder %v4769, 1
    %vm5026 = vcmp.eq.s32.totalorder %v4770, 1
    %vm5027 = vcmp.eq.s32.totalorder %v4771, 1
    %vm5028 = vcmp.eq.s32.totalorder %v4772, 1
    %vm5029 = vcmp.eq.s32.totalorder %v4773, 1
    %vm5030 = vcmp.eq.s32.totalorder %v4774, 1
    %vm5031 = vcmp.eq.s32.totalorder %v4775, 1
    %vm5032 = vcmp.eq.s32.totalorder %v4776, 1
    %vm5033 = vcmp.eq.s32.totalorder %v4777, 1
    %vm5034 = vcmp.eq.s32.totalorder %v4778, 1
    %vm5035 = vcmp.eq.s32.totalorder %v4779, 1
    %vm5036 = vcmp.eq.s32.totalorder %v4780, 1
    %vm5037 = vcmp.eq.s32.totalorder %v4781, 1
    %vm5038 = vcmp.eq.s32.totalorder %v4782, 1
    %vm5039 = vcmp.eq.s32.totalorder %v4783, 1
    %vm5040 = vcmp.eq.s32.totalorder %v4784, 1
    %vm5041 = vcmp.eq.s32.totalorder %v4785, 1
    %vm5042 = vcmp.eq.s32.totalorder %v4786, 1
    %vm5043 = vcmp.eq.s32.totalorder %v4787, 1
    %vm5044 = vcmp.eq.s32.totalorder %v4788, 1
    %vm5045 = vcmp.eq.s32.totalorder %v4789, 1
    %vm5046 = vcmp.eq.s32.totalorder %v4790, 1
    %vm5047 = vcmp.eq.s32.totalorder %v4791, 1
    %vm5048 = vcmp.eq.s32.totalorder %v4792, 1
    %vm5049 = vcmp.eq.s32.totalorder %v4793, 1
    %vm5050 = vcmp.eq.s32.totalorder %v4794, 1
    %vm5051 = vcmp.eq.s32.totalorder %v4795, 1
    %vm5052 = vcmp.eq.s32.totalorder %v4796, 1
    %vm5053 = vcmp.eq.s32.totalorder %v4797, 1
    %vm5054 = vcmp.eq.s32.totalorder %v4798, 1
    %vm5055 = vcmp.eq.s32.totalorder %v4799, 1
    %vm5056 = vcmp.eq.s32.totalorder %v4800, 1
    %vm5057 = vcmp.eq.s32.totalorder %v4801, 1
    %vm5058 = vcmp.eq.s32.totalorder %v4802, 1
    %vm5059 = vcmp.eq.s32.totalorder %v4803, 1
    %vm5060 = vcmp.eq.s32.totalorder %v4804, 1
    %vm5061 = vcmp.eq.s32.totalorder %v4805, 1
    %vm5062 = vcmp.eq.s32.totalorder %v4806, 1
    %vm5063 = vcmp.eq.s32.totalorder %v4807, 1
    %vm5064 = vcmp.eq.s32.totalorder %v4808, 1
    %vm5065 = vcmp.eq.s32.totalorder %v4809, 1
    %vm5066 = vcmp.eq.s32.totalorder %v4810, 1
    %vm5067 = vcmp.eq.s32.totalorder %v4811, 1
    %vm5068 = vcmp.eq.s32.totalorder %v4812, 1
    %vm5069 = vcmp.eq.s32.totalorder %v4813, 1
    %vm5070 = vcmp.eq.s32.totalorder %v4814, 1
    %vm5071 = vcmp.eq.s32.totalorder %v4815, 1
    %vm5072 = vcmp.eq.s32.totalorder %v4816, 1
    %vm5073 = vcmp.eq.s32.totalorder %v4817, 1
    %vm5074 = vcmp.eq.s32.totalorder %v4818, 1
    %vm5075 = vcmp.eq.s32.totalorder %v4819, 1
    %vm5076 = vcmp.eq.s32.totalorder %v4820, 1
    %vm5077 = vcmp.eq.s32.totalorder %v4821, 1
    %vm5078 = vcmp.eq.s32.totalorder %v4822, 1
    %vm5079 = vcmp.eq.s32.totalorder %v4823, 1
    %vm5080 = vcmp.eq.s32.totalorder %v4824, 1
    %vm5081 = vcmp.eq.s32.totalorder %v4825, 1
    %vm5082 = vcmp.eq.s32.totalorder %v4826, 1
    %vm5083 = vcmp.eq.s32.totalorder %v4827, 1
    %vm5084 = vcmp.eq.s32.totalorder %v4828, 1
    %vm5085 = vcmp.eq.s32.totalorder %v4829, 1
    %vm5086 = vcmp.eq.s32.totalorder %v4830, 1
    %vm5087 = vcmp.eq.s32.totalorder %v4831, 1
    %vm5088 = vcmp.eq.s32.totalorder %v4832, 1
    %vm5089 = vcmp.eq.s32.totalorder %v4833, 1
    %vm5090 = vcmp.eq.s32.totalorder %v4834, 1
    %vm5091 = vcmp.eq.s32.totalorder %v4835, 1
    %vm5092 = vcmp.eq.s32.totalorder %v4836, 1
    %vm5093 = vcmp.eq.s32.totalorder %v4837, 1
    %vm5094 = vcmp.eq.s32.totalorder %v4838, 1
    %vm5095 = vcmp.eq.s32.totalorder %v4839, 1
    %vm5096 = vcmp.eq.s32.totalorder %v4840, 1
    %vm5097 = vcmp.eq.s32.totalorder %v4841, 1
    %vm5098 = vcmp.eq.s32.totalorder %v4842, 1
    %vm5099 = vcmp.eq.s32.totalorder %v4843, 1
    %vm5100 = vcmp.eq.s32.totalorder %v4844, 1
    %vm5101 = vcmp.eq.s32.totalorder %v4845, 1
    %vm5102 = vcmp.eq.s32.totalorder %v4846, 1
    %vm5103 = vcmp.eq.s32.totalorder %v4847, 1
    %vm5104 = vcmp.eq.s32.totalorder %v4848, 1
    %vm5105 = vcmp.eq.s32.totalorder %v4849, 1
    %vm5106 = vcmp.eq.s32.totalorder %v4850, 1
    %vm5107 = vcmp.eq.s32.totalorder %v4851, 1
    %vm5108 = vcmp.eq.s32.totalorder %v4852, 1
    %vm5109 = vcmp.eq.s32.totalorder %v4853, 1
    %vm5110 = vcmp.eq.s32.totalorder %v4854, 1
    %vm5111 = vcmp.eq.s32.totalorder %v4855, 1
    %vm5112 = vcmp.eq.s32.totalorder %v4856, 1
    %vm5113 = vcmp.eq.s32.totalorder %v4857, 1
    %vm5114 = vcmp.eq.s32.totalorder %v4858, 1
    %vm5115 = vcmp.eq.s32.totalorder %v4859, 1
    %vm5116 = vcmp.eq.s32.totalorder %v4860, 1
    %vm5117 = vcmp.eq.s32.totalorder %v4861, 1
    %vm5118 = vcmp.eq.s32.totalorder %v4862, 1
    %vm5119 = vcmp.eq.s32.totalorder %v4863, 1
    %vm5120 = vcmp.eq.s32.totalorder %v4864, 1
    %vm5121 = vcmp.eq.s32.totalorder %v4865, 1
    %vm5122 = vcmp.eq.s32.totalorder %v4866, 1
    %vm5123 = vcmp.eq.s32.totalorder %v4867, 1
    %vm5124 = vcmp.eq.s32.totalorder %v4868, 1
    %vm5125 = vcmp.eq.s32.totalorder %v4869, 1
    %vm5126 = vcmp.eq.s32.totalorder %v4870, 1
    %vm5127 = vcmp.eq.s32.totalorder %v4871, 1
    %vm5128 = vcmp.eq.s32.totalorder %v4872, 1
    %vm5129 = vcmp.eq.s32.totalorder %v4873, 1
    %vm5130 = vcmp.eq.s32.totalorder %v4874, 1
    %vm5131 = vcmp.eq.s32.totalorder %v4875, 1
    %vm5132 = vcmp.eq.s32.totalorder %v4876, 1
    %vm5133 = vcmp.eq.s32.totalorder %v4877, 1
    %vm5134 = vcmp.eq.s32.totalorder %v4878, 1
    %vm5135 = vcmp.eq.s32.totalorder %v4879, 1
    %vm5136 = vcmp.eq.s32.totalorder %v4880, 1
    %vm5137 = vcmp.eq.s32.totalorder %v4881, 1
    %vm5138 = vcmp.eq.s32.totalorder %v4882, 1
    %vm5139 = vcmp.eq.s32.totalorder %v4883, 1
    %vm5140 = vcmp.eq.s32.totalorder %v4884, 1
    %vm5141 = vcmp.eq.s32.totalorder %v4885, 1
    %vm5142 = vcmp.eq.s32.totalorder %v4886, 1
    %vm5143 = vcmp.eq.s32.totalorder %v4887, 1
    %vm5144 = vcmp.eq.s32.totalorder %v4888, 1
    %vm5145 = vcmp.eq.s32.totalorder %v4889, 1
    %vm5146 = vcmp.eq.s32.totalorder %v4890, 1
    %vm5147 = vcmp.eq.s32.totalorder %v4891, 1
    %vm5148 = vcmp.eq.s32.totalorder %v4892, 1
    %vm5149 = vcmp.eq.s32.totalorder %v4893, 1
    %vm5150 = vcmp.eq.s32.totalorder %v4894, 1
    %vm5151 = vcmp.eq.s32.totalorder %v4895, 1
    %vm5152 = vcmp.eq.s32.totalorder %v4896, 1
    %vm5153 = vcmp.eq.s32.totalorder %v4897, 1
    %vm5154 = vcmp.eq.s32.totalorder %v4898, 1
    %vm5155 = vcmp.eq.s32.totalorder %v4899, 1
    %vm5156 = vcmp.eq.s32.totalorder %v4900, 1
    %vm5157 = vcmp.eq.s32.totalorder %v4901, 1
    %vm5158 = vcmp.eq.s32.totalorder %v4902, 1
    %vm5159 = vcmp.eq.s32.totalorder %v4903, 1
    %vm5160 = vcmp.eq.s32.totalorder %v4904, 1
    %vm5161 = vcmp.eq.s32.totalorder %v4905, 1
    %vm5162 = vcmp.eq.s32.totalorder %v4906, 1
    %vm5163 = vcmp.eq.s32.totalorder %v4907, 1
    %vm5164 = vcmp.eq.s32.totalorder %v4908, 1
    %vm5165 = vcmp.eq.s32.totalorder %v4909, 1
    %vm5166 = vcmp.eq.s32.totalorder %v4910, 1
    %vm5167 = vcmp.eq.s32.totalorder %v4911, 1
    %vm5168 = vcmp.eq.s32.totalorder %v4912, 1
    %vm5169 = vcmp.eq.s32.totalorder %v4913, 1
    %vm5170 = vcmp.eq.s32.totalorder %v4914, 1
    %vm5171 = vcmp.eq.s32.totalorder %v4915, 1
    %vm5172 = vcmp.eq.s32.totalorder %v4916, 1
    %vm5173 = vcmp.eq.s32.totalorder %v4917, 1
    %vm5174 = vcmp.eq.s32.totalorder %v4918, 1
    %vm5175 = vcmp.eq.s32.totalorder %v4919, 1
    %vm5176 = vcmp.eq.s32.totalorder %v4920, 1
    %vm5177 = vcmp.eq.s32.totalorder %v4921, 1
    %vm5178 = vcmp.eq.s32.totalorder %v4922, 1
    %vm5179 = vcmp.eq.s32.totalorder %v4923, 1
    %vm5180 = vcmp.eq.s32.totalorder %v4924, 1
    %vm5181 = vcmp.eq.s32.totalorder %v4925, 1
    %vm5182 = vcmp.eq.s32.totalorder %v4926, 1
    %vm5183 = vcmp.eq.s32.totalorder %v4927, 1
    %vm5184 = vcmp.eq.s32.totalorder %v4928, 1
    %vm5185 = vcmp.eq.s32.totalorder %v4929, 1
    %vm5186 = vcmp.eq.s32.totalorder %v4930, 1
    %vm5187 = vcmp.eq.s32.totalorder %v4931, 1
    %vm5188 = vcmp.eq.s32.totalorder %v4932, 1
    %vm5189 = vcmp.eq.s32.totalorder %v4933, 1
    %vm5190 = vcmp.eq.s32.totalorder %v4934, 1
    %vm5191 = vcmp.eq.s32.totalorder %v4935, 1
    %vm5192 = vcmp.eq.s32.totalorder %v4936, 1
    %vm5193 = vcmp.eq.s32.totalorder %v4937, 1
    %vm5194 = vcmp.eq.s32.totalorder %v4938, 1
    %vm5195 = vcmp.eq.s32.totalorder %v4939, 1
    %vm5196 = vcmp.eq.s32.totalorder %v4940, 1
    %vm5197 = vcmp.eq.s32.totalorder %v4941, 1
    %vm5198 = vcmp.eq.s32.totalorder %v4942, 1
    %vm5199 = vcmp.eq.s32.totalorder %v4943, 1
    %vm5200 = vcmp.eq.s32.totalorder %v4944, 1
    %vm5201 = vcmp.eq.s32.totalorder %v4945, 1
    %vm5202 = vcmp.eq.s32.totalorder %v4946, 1
    %vm5203 = vcmp.eq.s32.totalorder %v4947, 1
    %vm5204 = vcmp.eq.s32.totalorder %v4948, 1
    %vm5205 = vcmp.eq.s32.totalorder %v4949, 1
    %vm5206 = vcmp.eq.s32.totalorder %v4950, 1
    %vm5207 = vcmp.eq.s32.totalorder %v4951, 1
    %vm5208 = vcmp.eq.s32.totalorder %v4952, 1
    %vm5209 = vcmp.eq.s32.totalorder %v4953, 1
    %vm5210 = vcmp.eq.s32.totalorder %v4954, 1
    %vm5211 = vcmp.eq.s32.totalorder %v4955, 1
    %vm5212 = vcmp.eq.s32.totalorder %v4956, 1
    %vm5213 = vcmp.eq.s32.totalorder %v4957, 1
    %vm5214 = vcmp.eq.s32.totalorder %v4958, 1
    %vm5215 = vcmp.eq.s32.totalorder %v4959, 1
    %vm5216 = vcmp.eq.s32.totalorder %v4960, 1
    %vm5217 = vcmp.eq.s32.totalorder %v4961, 1
    %vm5218 = vcmp.eq.s32.totalorder %v4962, 1
    %vm5219 = vcmp.eq.s32.totalorder %v4963, 1
    %vm5220 = vcmp.eq.s32.totalorder %v4964, 1
    %vm5221 = vcmp.eq.s32.totalorder %v4965, 1
    %vm5222 = vcmp.eq.s32.totalorder %v4966, 1
    %vm5223 = vcmp.eq.s32.totalorder %v4967, 1
    %vm5224 = vcmp.eq.s32.totalorder %v4968, 1
    %vm5225 = vcmp.eq.s32.totalorder %v4969, 1
    %vm5226 = vcmp.eq.s32.totalorder %v4970, 1
    %vm5227 = vcmp.eq.s32.totalorder %v4971, 1
    %vm5228 = vcmp.eq.s32.totalorder %v4972, 1
    %vm5229 = vcmp.eq.s32.totalorder %v4973, 1
    %vm5230 = vcmp.eq.s32.totalorder %v4974, 1
    %vm5231 = vcmp.eq.s32.totalorder %v4975, 1
    %vm5232 = vcmp.eq.s32.totalorder %v4976, 1
    %vm5233 = vcmp.eq.s32.totalorder %v4977, 1
    %vm5234 = vcmp.eq.s32.totalorder %v4978, 1
    %vm5235 = vcmp.eq.s32.totalorder %v4979, 1
    %vm5236 = vcmp.eq.s32.totalorder %v4980, 1
    %vm5237 = vcmp.eq.s32.totalorder %v4981, 1
    %vm5238 = vcmp.eq.s32.totalorder %v4982, 1
    %vm5239 = vcmp.eq.s32.totalorder %v4983, 1
    %vm5240 = vcmp.eq.s32.totalorder %v4984, 1
    %vm5241 = vcmp.eq.s32.totalorder %v4985, 1
    %vm5242 = vcmp.eq.s32.totalorder %v4986, 1
    %vm5243 = vcmp.eq.s32.totalorder %v4987, 1
    %vm5244 = vcmp.eq.s32.totalorder %v4988, 1
    %vm5245 = vcmp.eq.s32.totalorder %v4989, 1
    %v5246 = vsel %vm4990, %v4478, 0.0
    %v5247 = vsel %vm4991, %v4479, 0.0
    %v5248 = vsel %vm4992, %v4480, 0.0
    %v5249 = vsel %vm4993, %v4481, 0.0
    %v5250 = vsel %vm4994, %v4482, 0.0
    %v5251 = vsel %vm4995, %v4483, 0.0
    %v5252 = vsel %vm4996, %v4484, 0.0
    %v5253 = vsel %vm4997, %v4485, 0.0
    %v5254 = vsel %vm4998, %v4486, 0.0
    %v5255 = vsel %vm4999, %v4487, 0.0
    %v5256 = vsel %vm5000, %v4488, 0.0
    %v5257 = vsel %vm5001, %v4489, 0.0
    %v5258 = vsel %vm5002, %v4490, 0.0
    %v5259 = vsel %vm5003, %v4491, 0.0
    %v5260 = vsel %vm5004, %v4492, 0.0
    %v5261 = vsel %vm5005, %v4493, 0.0
    %v5262 = vsel %vm5006, %v4494, 0.0
    %v5263 = vsel %vm5007, %v4495, 0.0
    %v5264 = vsel %vm5008, %v4496, 0.0
    %v5265 = vsel %vm5009, %v4497, 0.0
    %v5266 = vsel %vm5010, %v4498, 0.0
    %v5267 = vsel %vm5011, %v4499, 0.0
    %v5268 = vsel %vm5012, %v4500, 0.0
    %v5269 = vsel %vm5013, %v4501, 0.0
    %v5270 = vsel %vm5014, %v4502, 0.0
    %v5271 = vsel %vm5015, %v4503, 0.0
    %v5272 = vsel %vm5016, %v4504, 0.0
    %v5273 = vsel %vm5017, %v4505, 0.0
    %v5274 = vsel %vm5018, %v4506, 0.0
    %v5275 = vsel %vm5019, %v4507, 0.0
    %v5276 = vsel %vm5020, %v4508, 0.0
    %v5277 = vsel %vm5021, %v4509, 0.0
    %v5278 = vsel %vm5022, %v4510, 0.0
    %v5279 = vsel %vm5023, %v4511, 0.0
    %v5280 = vsel %vm5024, %v4512, 0.0
    %v5281 = vsel %vm5025, %v4513, 0.0
    %v5282 = vsel %vm5026, %v4514, 0.0
    %v5283 = vsel %vm5027, %v4515, 0.0
    %v5284 = vsel %vm5028, %v4516, 0.0
    %v5285 = vsel %vm5029, %v4517, 0.0
    %v5286 = vsel %vm5030, %v4518, 0.0
    %v5287 = vsel %vm5031, %v4519, 0.0
    %v5288 = vsel %vm5032, %v4520, 0.0
    %v5289 = vsel %vm5033, %v4521, 0.0
    %v5290 = vsel %vm5034, %v4522, 0.0
    %v5291 = vsel %vm5035, %v4523, 0.0
    %v5292 = vsel %vm5036, %v4524, 0.0
    %v5293 = vsel %vm5037, %v4525, 0.0
    %v5294 = vsel %vm5038, %v4526, 0.0
    %v5295 = vsel %vm5039, %v4527, 0.0
    %v5296 = vsel %vm5040, %v4528, 0.0
    %v5297 = vsel %vm5041, %v4529, 0.0
    %v5298 = vsel %vm5042, %v4530, 0.0
    %v5299 = vsel %vm5043, %v4531, 0.0
    %v5300 = vsel %vm5044, %v4532, 0.0
    %v5301 = vsel %vm5045, %v4533, 0.0
    %v5302 = vsel %vm5046, %v4534, 0.0
    %v5303 = vsel %vm5047, %v4535, 0.0
    %v5304 = vsel %vm5048, %v4536, 0.0
    %v5305 = vsel %vm5049, %v4537, 0.0
    %v5306 = vsel %vm5050, %v4538, 0.0
    %v5307 = vsel %vm5051, %v4539, 0.0
    %v5308 = vsel %vm5052, %v4540, 0.0
    %v5309 = vsel %vm5053, %v4541, 0.0
    %v5310 = vsel %vm5054, %v4542, 0.0
    %v5311 = vsel %vm5055, %v4543, 0.0
    %v5312 = vsel %vm5056, %v4544, 0.0
    %v5313 = vsel %vm5057, %v4545, 0.0
    %v5314 = vsel %vm5058, %v4546, 0.0
    %v5315 = vsel %vm5059, %v4547, 0.0
    %v5316 = vsel %vm5060, %v4548, 0.0
    %v5317 = vsel %vm5061, %v4549, 0.0
    %v5318 = vsel %vm5062, %v4550, 0.0
    %v5319 = vsel %vm5063, %v4551, 0.0
    %v5320 = vsel %vm5064, %v4552, 0.0
    %v5321 = vsel %vm5065, %v4553, 0.0
    %v5322 = vsel %vm5066, %v4554, 0.0
    %v5323 = vsel %vm5067, %v4555, 0.0
    %v5324 = vsel %vm5068, %v4556, 0.0
    %v5325 = vsel %vm5069, %v4557, 0.0
    %v5326 = vsel %vm5070, %v4558, 0.0
    %v5327 = vsel %vm5071, %v4559, 0.0
    %v5328 = vsel %vm5072, %v4560, 0.0
    %v5329 = vsel %vm5073, %v4561, 0.0
    %v5330 = vsel %vm5074, %v4562, 0.0
    %v5331 = vsel %vm5075, %v4563, 0.0
    %v5332 = vsel %vm5076, %v4564, 0.0
    %v5333 = vsel %vm5077, %v4565, 0.0
    %v5334 = vsel %vm5078, %v4566, 0.0
    %v5335 = vsel %vm5079, %v4567, 0.0
    %v5336 = vsel %vm5080, %v4568, 0.0
    %v5337 = vsel %vm5081, %v4569, 0.0
    %v5338 = vsel %vm5082, %v4570, 0.0
    %v5339 = vsel %vm5083, %v4571, 0.0
    %v5340 = vsel %vm5084, %v4572, 0.0
    %v5341 = vsel %vm5085, %v4573, 0.0
    %v5342 = vsel %vm5086, %v4574, 0.0
    %v5343 = vsel %vm5087, %v4575, 0.0
    %v5344 = vsel %vm5088, %v4576, 0.0
    %v5345 = vsel %vm5089, %v4577, 0.0
    %v5346 = vsel %vm5090, %v4578, 0.0
    %v5347 = vsel %vm5091, %v4579, 0.0
    %v5348 = vsel %vm5092, %v4580, 0.0
    %v5349 = vsel %vm5093, %v4581, 0.0
    %v5350 = vsel %vm5094, %v4582, 0.0
    %v5351 = vsel %vm5095, %v4583, 0.0
    %v5352 = vsel %vm5096, %v4584, 0.0
    %v5353 = vsel %vm5097, %v4585, 0.0
    %v5354 = vsel %vm5098, %v4586, 0.0
    %v5355 = vsel %vm5099, %v4587, 0.0
    %v5356 = vsel %vm5100, %v4588, 0.0
    %v5357 = vsel %vm5101, %v4589, 0.0
    %v5358 = vsel %vm5102, %v4590, 0.0
    %v5359 = vsel %vm5103, %v4591, 0.0
    %v5360 = vsel %vm5104, %v4592, 0.0
    %v5361 = vsel %vm5105, %v4593, 0.0
    %v5362 = vsel %vm5106, %v4594, 0.0
    %v5363 = vsel %vm5107, %v4595, 0.0
    %v5364 = vsel %vm5108, %v4596, 0.0
    %v5365 = vsel %vm5109, %v4597, 0.0
    %v5366 = vsel %vm5110, %v4598, 0.0
    %v5367 = vsel %vm5111, %v4599, 0.0
    %v5368 = vsel %vm5112, %v4600, 0.0
    %v5369 = vsel %vm5113, %v4601, 0.0
    %v5370 = vsel %vm5114, %v4602, 0.0
    %v5371 = vsel %vm5115, %v4603, 0.0
    %v5372 = vsel %vm5116, %v4604, 0.0
    %v5373 = vsel %vm5117, %v4605, 0.0
    %v5374 = vsel %vm5118, %v4606, 0.0
    %v5375 = vsel %vm5119, %v4607, 0.0
    %v5376 = vsel %vm5120, %v4608, 0.0
    %v5377 = vsel %vm5121, %v4609, 0.0
    %v5378 = vsel %vm5122, %v4610, 0.0
    %v5379 = vsel %vm5123, %v4611, 0.0
    %v5380 = vsel %vm5124, %v4612, 0.0
    %v5381 = vsel %vm5125, %v4613, 0.0
    %v5382 = vsel %vm5126, %v4614, 0.0
    %v5383 = vsel %vm5127, %v4615, 0.0
    %v5384 = vsel %vm5128, %v4616, 0.0
    %v5385 = vsel %vm5129, %v4617, 0.0
    %v5386 = vsel %vm5130, %v4618, 0.0
    %v5387 = vsel %vm5131, %v4619, 0.0
    %v5388 = vsel %vm5132, %v4620, 0.0
    %v5389 = vsel %vm5133, %v4621, 0.0
    %v5390 = vsel %vm5134, %v4622, 0.0
    %v5391 = vsel %vm5135, %v4623, 0.0
    %v5392 = vsel %vm5136, %v4624, 0.0
    %v5393 = vsel %vm5137, %v4625, 0.0
    %v5394 = vsel %vm5138, %v4626, 0.0
    %v5395 = vsel %vm5139, %v4627, 0.0
    %v5396 = vsel %vm5140, %v4628, 0.0
    %v5397 = vsel %vm5141, %v4629, 0.0
    %v5398 = vsel %vm5142, %v4630, 0.0
    %v5399 = vsel %vm5143, %v4631, 0.0
    %v5400 = vsel %vm5144, %v4632, 0.0
    %v5401 = vsel %vm5145, %v4633, 0.0
    %v5402 = vsel %vm5146, %v4634, 0.0
    %v5403 = vsel %vm5147, %v4635, 0.0
    %v5404 = vsel %vm5148, %v4636, 0.0
    %v5405 = vsel %vm5149, %v4637, 0.0
    %v5406 = vsel %vm5150, %v4638, 0.0
    %v5407 = vsel %vm5151, %v4639, 0.0
    %v5408 = vsel %vm5152, %v4640, 0.0
    %v5409 = vsel %vm5153, %v4641, 0.0
    %v5410 = vsel %vm5154, %v4642, 0.0
    %v5411 = vsel %vm5155, %v4643, 0.0
    %v5412 = vsel %vm5156, %v4644, 0.0
    %v5413 = vsel %vm5157, %v4645, 0.0
    %v5414 = vsel %vm5158, %v4646, 0.0
    %v5415 = vsel %vm5159, %v4647, 0.0
    %v5416 = vsel %vm5160, %v4648, 0.0
    %v5417 = vsel %vm5161, %v4649, 0.0
    %v5418 = vsel %vm5162, %v4650, 0.0
    %v5419 = vsel %vm5163, %v4651, 0.0
    %v5420 = vsel %vm5164, %v4652, 0.0
    %v5421 = vsel %vm5165, %v4653, 0.0
    %v5422 = vsel %vm5166, %v4654, 0.0
    %v5423 = vsel %vm5167, %v4655, 0.0
    %v5424 = vsel %vm5168, %v4656, 0.0
    %v5425 = vsel %vm5169, %v4657, 0.0
    %v5426 = vsel %vm5170, %v4658, 0.0
    %v5427 = vsel %vm5171, %v4659, 0.0
    %v5428 = vsel %vm5172, %v4660, 0.0
    %v5429 = vsel %vm5173, %v4661, 0.0
    %v5430 = vsel %vm5174, %v4662, 0.0
    %v5431 = vsel %vm5175, %v4663, 0.0
    %v5432 = vsel %vm5176, %v4664, 0.0
    %v5433 = vsel %vm5177, %v4665, 0.0
    %v5434 = vsel %vm5178, %v4666, 0.0
    %v5435 = vsel %vm5179, %v4667, 0.0
    %v5436 = vsel %vm5180, %v4668, 0.0
    %v5437 = vsel %vm5181, %v4669, 0.0
    %v5438 = vsel %vm5182, %v4670, 0.0
    %v5439 = vsel %vm5183, %v4671, 0.0
    %v5440 = vsel %vm5184, %v4672, 0.0
    %v5441 = vsel %vm5185, %v4673, 0.0
    %v5442 = vsel %vm5186, %v4674, 0.0
    %v5443 = vsel %vm5187, %v4675, 0.0
    %v5444 = vsel %vm5188, %v4676, 0.0
    %v5445 = vsel %vm5189, %v4677, 0.0
    %v5446 = vsel %vm5190, %v4678, 0.0
    %v5447 = vsel %vm5191, %v4679, 0.0
    %v5448 = vsel %vm5192, %v4680, 0.0
    %v5449 = vsel %vm5193, %v4681, 0.0
    %v5450 = vsel %vm5194, %v4682, 0.0
    %v5451 = vsel %vm5195, %v4683, 0.0
    %v5452 = vsel %vm5196, %v4684, 0.0
    %v5453 = vsel %vm5197, %v4685, 0.0
    %v5454 = vsel %vm5198, %v4686, 0.0
    %v5455 = vsel %vm5199, %v4687, 0.0
    %v5456 = vsel %vm5200, %v4688, 0.0
    %v5457 = vsel %vm5201, %v4689, 0.0
    %v5458 = vsel %vm5202, %v4690, 0.0
    %v5459 = vsel %vm5203, %v4691, 0.0
    %v5460 = vsel %vm5204, %v4692, 0.0
    %v5461 = vsel %vm5205, %v4693, 0.0
    %v5462 = vsel %vm5206, %v4694, 0.0
    %v5463 = vsel %vm5207, %v4695, 0.0
    %v5464 = vsel %vm5208, %v4696, 0.0
    %v5465 = vsel %vm5209, %v4697, 0.0
    %v5466 = vsel %vm5210, %v4698, 0.0
    %v5467 = vsel %vm5211, %v4699, 0.0
    %v5468 = vsel %vm5212, %v4700, 0.0
    %v5469 = vsel %vm5213, %v4701, 0.0
    %v5470 = vsel %vm5214, %v4702, 0.0
    %v5471 = vsel %vm5215, %v4703, 0.0
    %v5472 = vsel %vm5216, %v4704, 0.0
    %v5473 = vsel %vm5217, %v4705, 0.0
    %v5474 = vsel %vm5218, %v4706, 0.0
    %v5475 = vsel %vm5219, %v4707, 0.0
    %v5476 = vsel %vm5220, %v4708, 0.0
    %v5477 = vsel %vm5221, %v4709, 0.0
    %v5478 = vsel %vm5222, %v4710, 0.0
    %v5479 = vsel %vm5223, %v4711, 0.0
    %v5480 = vsel %vm5224, %v4712, 0.0
    %v5481 = vsel %vm5225, %v4713, 0.0
    %v5482 = vsel %vm5226, %v4714, 0.0
    %v5483 = vsel %vm5227, %v4715, 0.0
    %v5484 = vsel %vm5228, %v4716, 0.0
    %v5485 = vsel %vm5229, %v4717, 0.0
    %v5486 = vsel %vm5230, %v4718, 0.0
    %v5487 = vsel %vm5231, %v4719, 0.0
    %v5488 = vsel %vm5232, %v4720, 0.0
    %v5489 = vsel %vm5233, %v4721, 0.0
    %v5490 = vsel %vm5234, %v4722, 0.0
    %v5491 = vsel %vm5235, %v4723, 0.0
    %v5492 = vsel %vm5236, %v4724, 0.0
    %v5493 = vsel %vm5237, %v4725, 0.0
    %v5494 = vsel %vm5238, %v4726, 0.0
    %v5495 = vsel %vm5239, %v4727, 0.0
    %v5496 = vsel %vm5240, %v4728, 0.0
    %v5497 = vsel %vm5241, %v4729, 0.0
    %v5498 = vsel %vm5242, %v4730, 0.0
    %v5499 = vsel %vm5243, %v4731, 0.0
    %v5500 = vsel %vm5244, %v4732, 0.0
    %v5501 = vsel %vm5245, %v4733, 0.0
    %v5502 = vld [vmem:[%s2] sm:$0xff]
    %v5503 = vld [vmem:[%s2 + $0x8] sm:$0xff]
    %5504 = vmatprep.subr.mxu0 0.0
    %5505 = vmatpush1.xpose.msra.mxu0 %v5502
    %5506 = vmatprep.subr.mxu0 0.0
    %5507 = vmatpush1.xpose.msra.mxu0 %v5503
    %5508 = vmatprep.subr.mxu0 0.0
    %5509 = vmatpush1.xpose.msra.mxu0 0.0
    %5510 = vmatprep.subr.mxu0 0.0
    %5511 = vmatpush1.xpose.msra.mxu0 0.0
    %5512 = vmatprep.subr.mxu0 0.0
    %5513 = vmatpush1.xpose.msra.mxu0 0.0
    %5514 = vmatprep.subr.mxu0 0.0
    %5515 = vmatpush1.xpose.msra.mxu0 0.0
    %5516 = vmatprep.subr.mxu0 0.0
    %5517 = vmatpush1.xpose.msra.mxu0 0.0
    %5518 = vmatprep.subr.mxu0 0.0
    %5519 = vmatpush1.xpose.msra.mxu0 0.0
    %5520 = vmatprep.subr.mxu0 0.0
    %5521 = vmatpush1.xpose.msra.mxu0 0.0
    %5522 = vmatprep.subr.mxu0 0.0
    %5523 = vmatpush1.xpose.msra.mxu0 0.0
    %5524 = vmatprep.subr.mxu0 0.0
    %5525 = vmatpush1.xpose.msra.mxu0 0.0
    %5526 = vmatprep.subr.mxu0 0.0
    %5527 = vmatpush1.xpose.msra.mxu0 0.0
    %5528 = vmatprep.subr.mxu0 0.0
    %5529 = vmatpush1.xpose.msra.mxu0 0.0
    %5530 = vmatprep.subr.mxu0 0.0
    %5531 = vmatpush1.xpose.msra.mxu0 0.0
    %5532 = vmatprep.subr.mxu0 0.0
    %5533 = vmatpush1.xpose.msra.mxu0 0.0
    %5534 = vmatprep.subr.mxu0 0.0
    %5535 = vmatpush1.xpose.msra.mxu0 0.0
    %5536 = vmatprep.subr.mxu0 0.0
    %5537 = vmatpush1.xpose.msra.mxu0 0.0
    %5538 = vmatprep.subr.mxu0 0.0
    %5539 = vmatpush1.xpose.msra.mxu0 0.0
    %5540 = vmatprep.subr.mxu0 0.0
    %5541 = vmatpush1.xpose.msra.mxu0 0.0
    %5542 = vmatprep.subr.mxu0 0.0
    %5543 = vmatpush1.xpose.msra.mxu0 0.0
    %5544 = vmatprep.subr.mxu0 0.0
    %5545 = vmatpush1.xpose.msra.mxu0 0.0
    %5546 = vmatprep.subr.mxu0 0.0
    %5547 = vmatpush1.xpose.msra.mxu0 0.0
    %5548 = vmatprep.subr.mxu0 0.0
    %5549 = vmatpush1.xpose.msra.mxu0 0.0
    %5550 = vmatprep.subr.mxu0 0.0
    %5551 = vmatpush1.xpose.msra.mxu0 0.0
    %5552 = vmatprep.subr.mxu0 0.0
    %5553 = vmatpush1.xpose.msra.mxu0 0.0
    %5554 = vmatprep.subr.mxu0 0.0
    %5555 = vmatpush1.xpose.msra.mxu0 0.0
    %5556 = vmatprep.subr.mxu0 0.0
    %5557 = vmatpush1.xpose.msra.mxu0 0.0
    %5558 = vmatprep.subr.mxu0 0.0
    %5559 = vmatpush1.xpose.msra.mxu0 0.0
    %5560 = vmatprep.subr.mxu0 0.0
    %5561 = vmatpush1.xpose.msra.mxu0 0.0
    %5562 = vmatprep.subr.mxu0 0.0
    %5563 = vmatpush1.xpose.msra.mxu0 0.0
    %5564 = vmatprep.subr.mxu0 0.0
    %5565 = vmatpush1.xpose.msra.mxu0 0.0
    %5566 = vmatprep.subr.mxu0 0.0
    %5567 = vmatpush1.xpose.msra.mxu0 0.0
    %5568 = vmatprep.mubr.f32.mxu0 0.0
    %5569 = vmatmul.mubr.f32.gmra.mrb[0].mxu0 %v5246
    %v5570 = vpop.f32.mrb[0].mxu0
    %v5571 = vadd.f32 0.0, %v5570
    %v5572 = vpop.f32.mrb[0].mxu0
    %5573 = vmatprep.mubr.f32.mxu0 0.0
    %5574 = vmatmul.mubr.f32.gmra.mrb[0].mxu0 %v5247
    %v5575 = vpop.f32.mrb[0].mxu0
    %v5576 = vadd.f32 0.0, %v5575
    %v5577 = vpop.f32.mrb[0].mxu0
    %5578 = vmatprep.mubr.f32.mxu0 0.0
    %5579 = vmatmul.mubr.f32.gmra.mrb[0].mxu0 %v5248
    %v5580 = vpop.f32.mrb[0].mxu0
    %v5581 = vadd.f32 0.0, %v5580
    %v5582 = vpop.f32.mrb[0].mxu0
    %5583 = vmatprep.mubr.f32.mxu0 0.0
    %5584 = vmatmul.mubr.f32.gmra.mrb[0].mxu0 %v5249
    %v5585 = vpop.f32.mrb[0].mxu0
    %v5586 = vadd.f32 0.0, %v5585
    %v5587 = vpop.f32.mrb[0].mxu0
    %5588 = vmatprep.mubr.f32.mxu0 0.0
    %5589 = vmatmul.mubr.f32.gmra.mrb[0].mxu0 %v5250
    %v5590 = vpop.f32.mrb[0].mxu0
    %v5591 = vadd.f32 0.0, %v5590
    %v5592 = vpop.f32.mrb[0].mxu0
    %5593 = vmatprep.mubr.f32.mxu0 0.0
    %5594 = vmatmul.mubr.f32.gmra.mrb[0].mxu0 %v5251
    %v5595 = vpop.f32.mrb[0].mxu0
    %v5596 = vadd.f32 0.0, %v5595
    %v5597 = vpop.f32.mrb[0].mxu0
    %5598 = vmatprep.mubr.f32.mxu0 0.0
    %5599 = vmatmul.mubr.f32.gmra.mrb[0].mxu0 %v5252
    %v5600 = vpop.f32.mrb[0].mxu0
    %v5601 = vadd.f32 0.0, %v5600
    %v5602 = vpop.f32.mrb[0].mxu0
    %5603 = vmatprep.mubr.f32.mxu0 0.0
    %5604 = vmatmul.mubr.f32.gmra.mrb[0].mxu0 %v5253
    %v5605 = vpop.f32.mrb[0].mxu0
    %v5606 = vadd.f32 0.0, %v5605
    %v5607 = vpop.f32.mrb[0].mxu0
    %5608 = vmatprep.mubr.f32.mxu0 0.0
    %5609 = vmatmul.mubr.f32.gmra.mrb[0].mxu0 %v5254
    %v5610 = vpop.f32.mrb[0].mxu0
    %v5611 = vadd.f32 0.0, %v5610
    %v5612 = vpop.f32.mrb[0].mxu0
    %5613 = vmatprep.mubr.f32.mxu0 0.0
    %5614 = vmatmul.mubr.f32.gmra.mrb[0].mxu0 %v5255
    %v5615 = vpop.f32.mrb[0].mxu0
    %v5616 = vadd.f32 0.0, %v5615
    %v5617 = vpop.f32.mrb[0].mxu0
    %5618 = vmatprep.mubr.f32.mxu0 0.0
    %5619 = vmatmul.mubr.f32.gmra.mrb[0].mxu0 %v5256
    %v5620 = vpop.f32.mrb[0].mxu0
    %v5621 = vadd.f32 0.0, %v5620
    %v5622 = vpop.f32.mrb[0].mxu0
    %5623 = vmatprep.mubr.f32.mxu0 0.0
    %5624 = vmatmul.mubr.f32.gmra.mrb[0].mxu0 %v5257
    %v5625 = vpop.f32.mrb[0].mxu0
    %v5626 = vadd.f32 0.0, %v5625
    %v5627 = vpop.f32.mrb[0].mxu0
    %5628 = vmatprep.mubr.f32.mxu0 0.0
    %5629 = vmatmul.mubr.f32.gmra.mrb[0].mxu0 %v5258
    %v5630 = vpop.f32.mrb[0].mxu0
    %v5631 = vadd.f32 0.0, %v5630
    %v5632 = vpop.f32.mrb[0].mxu0
    %5633 = vmatprep.mubr.f32.mxu0 0.0
    %5634 = vmatmul.mubr.f32.gmra.mrb[0].mxu0 %v5259
    %v5635 = vpop.f32.mrb[0].mxu0
    %v5636 = vadd.f32 0.0, %v5635
    %v5637 = vpop.f32.mrb[0].mxu0
    %5638 = vmatprep.mubr.f32.mxu0 0.0
    %5639 = vmatmul.mubr.f32.gmra.mrb[0].mxu0 %v5260
    %v5640 = vpop.f32.mrb[0].mxu0
    %v5641 = vadd.f32 0.0, %v5640
    %v5642 = vpop.f32.mrb[0].mxu0
    %5643 = vmatprep.mubr.f32.mxu0 0.0
    %5644 = vmatmul.mubr.f32.gmra.mrb[0].mxu0 %v5261
    %v5645 = vpop.f32.mrb[0].mxu0
    %v5646 = vadd.f32 0.0, %v5645
    %v5647 = vpop.f32.mrb[0].mxu0
    %5648 = vmatprep.mubr.f32.mxu0 0.0
    %5649 = vmatmul.mubr.f32.gmra.mrb[0].mxu0 %v5262
    %v5650 = vpop.f32.mrb[0].mxu0
    %v5651 = vadd.f32 0.0, %v5650
    %v5652 = vpop.f32.mrb[0].mxu0
    %5653 = vmatprep.mubr.f32.mxu0 0.0
    %5654 = vmatmul.mubr.f32.gmra.mrb[0].mxu0 %v5263
    %v5655 = vpop.f32.mrb[0].mxu0
    %v5656 = vadd.f32 0.0, %v5655
    %v5657 = vpop.f32.mrb[0].mxu0
    %5658 = vmatprep.mubr.f32.mxu0 0.0
    %5659 = vmatmul.mubr.f32.gmra.mrb[0].mxu0 %v5264
    %v5660 = vpop.f32.mrb[0].mxu0
    %v5661 = vadd.f32 0.0, %v5660
    %v5662 = vpop.f32.mrb[0].mxu0
    %5663 = vmatprep.mubr.f32.mxu0 0.0
    %5664 = vmatmul.mubr.f32.gmra.mrb[0].mxu0 %v5265
    %v5665 = vpop.f32.mrb[0].mxu0
    %v5666 = vadd.f32 0.0, %v5665
    %v5667 = vpop.f32.mrb[0].mxu0
    %5668 = vmatprep.mubr.f32.mxu0 0.0
    %5669 = vmatmul.mubr.f32.gmra.mrb[0].mxu0 %v5266
    %v5670 = vpop.f32.mrb[0].mxu0
    %v5671 = vadd.f32 0.0, %v5670
    %v5672 = vpop.f32.mrb[0].mxu0
    %5673 = vmatprep.mubr.f32.mxu0 0.0
    %5674 = vmatmul.mubr.f32.gmra.mrb[0].mxu0 %v5267
    %v5675 = vpop.f32.mrb[0].mxu0
    %v5676 = vadd.f32 0.0, %v5675
    %v5677 = vpop.f32.mrb[0].mxu0
    %5678 = vmatprep.mubr.f32.mxu0 0.0
    %5679 = vmatmul.mubr.f32.gmra.mrb[0].mxu0 %v5268
    %v5680 = vpop.f32.mrb[0].mxu0
    %v5681 = vadd.f32 0.0, %v5680
    %v5682 = vpop.f32.mrb[0].mxu0
    %5683 = vmatprep.mubr.f32.mxu0 0.0
    %5684 = vmatmul.mubr.f32.gmra.mrb[0].mxu0 %v5269
    %v5685 = vpop.f32.mrb[0].mxu0
    %v5686 = vadd.f32 0.0, %v5685
    %v5687 = vpop.f32.mrb[0].mxu0
    %5688 = vmatprep.mubr.f32.mxu0 0.0
    %5689 = vmatmul.mubr.f32.gmra.mrb[0].mxu0 %v5270
    %v5690 = vpop.f32.mrb[0].mxu0
    %v5691 = vadd.f32 0.0, %v5690
    %v5692 = vpop.f32.mrb[0].mxu0
    %5693 = vmatprep.mubr.f32.mxu0 0.0
    %5694 = vmatmul.mubr.f32.gmra.mrb[0].mxu0 %v5271
    %v5695 = vpop.f32.mrb[0].mxu0
    %v5696 = vadd.f32 0.0, %v5695
    %v5697 = vpop.f32.mrb[0].mxu0
    %5698 = vmatprep.mubr.f32.mxu0 0.0
    %5699 = vmatmul.mubr.f32.gmra.mrb[0].mxu0 %v5272
    %v5700 = vpop.f32.mrb[0].mxu0
    %v5701 = vadd.f32 0.0, %v5700
    %v5702 = vpop.f32.mrb[0].mxu0
    %5703 = vmatprep.mubr.f32.mxu0 0.0
    %5704 = vmatmul.mubr.f32.gmra.mrb[0].mxu0 %v5273
    %v5705 = vpop.f32.mrb[0].mxu0
    %v5706 = vadd.f32 0.0, %v5705
    %v5707 = vpop.f32.mrb[0].mxu0
    %5708 = vmatprep.mubr.f32.mxu0 0.0
    %5709 = vmatmul.mubr.f32.gmra.mrb[0].mxu0 %v5274
    %v5710 = vpop.f32.mrb[0].mxu0
    %v5711 = vadd.f32 0.0, %v5710
    %v5712 = vpop.f32.mrb[0].mxu0
    %5713 = vmatprep.mubr.f32.mxu0 0.0
    %5714 = vmatmul.mubr.f32.gmra.mrb[0].mxu0 %v5275
    %v5715 = vpop.f32.mrb[0].mxu0
    %v5716 = vadd.f32 0.0, %v5715
    %v5717 = vpop.f32.mrb[0].mxu0
    %5718 = vmatprep.mubr.f32.mxu0 0.0
    %5719 = vmatmul.mubr.f32.gmra.mrb[0].mxu0 %v5276
    %v5720 = vpop.f32.mrb[0].mxu0
    %v5721 = vadd.f32 0.0, %v5720
    %v5722 = vpop.f32.mrb[0].mxu0
    %5723 = vmatprep.mubr.f32.mxu0 0.0
    %5724 = vmatmul.mubr.f32.gmra.mrb[0].mxu0 %v5277
    %v5725 = vpop.f32.mrb[0].mxu0
    %v5726 = vadd.f32 0.0, %v5725
    %v5727 = vpop.f32.mrb[0].mxu0
    %5728 = vmatprep.mubr.f32.mxu0 0.0
    %5729 = vmatmul.mubr.f32.gmra.mrb[0].mxu0 %v5278
    %v5730 = vpop.f32.mrb[0].mxu0
    %v5731 = vadd.f32 0.0, %v5730
    %v5732 = vpop.f32.mrb[0].mxu0
    %5733 = vmatprep.mubr.f32.mxu0 0.0
    %5734 = vmatmul.mubr.f32.gmra.mrb[0].mxu0 %v5279
    %v5735 = vpop.f32.mrb[0].mxu0
    %v5736 = vadd.f32 0.0, %v5735
    %v5737 = vpop.f32.mrb[0].mxu0
    %5738 = vmatprep.mubr.f32.mxu0 0.0
    %5739 = vmatmul.mubr.f32.gmra.mrb[0].mxu0 %v5280
    %v5740 = vpop.f32.mrb[0].mxu0
    %v5741 = vadd.f32 0.0, %v5740
    %v5742 = vpop.f32.mrb[0].mxu0
    %5743 = vmatprep.mubr.f32.mxu0 0.0
    %5744 = vmatmul.mubr.f32.gmra.mrb[0].mxu0 %v5281
    %v5745 = vpop.f32.mrb[0].mxu0
    %v5746 = vadd.f32 0.0, %v5745
    %v5747 = vpop.f32.mrb[0].mxu0
    %5748 = vmatprep.mubr.f32.mxu0 0.0
    %5749 = vmatmul.mubr.f32.gmra.mrb[0].mxu0 %v5282
    %v5750 = vpop.f32.mrb[0].mxu0
    %v5751 = vadd.f32 0.0, %v5750
    %v5752 = vpop.f32.mrb[0].mxu0
    %5753 = vmatprep.mubr.f32.mxu0 0.0
    %5754 = vmatmul.mubr.f32.gmra.mrb[0].mxu0 %v5283
    %v5755 = vpop.f32.mrb[0].mxu0
    %v5756 = vadd.f32 0.0, %v5755
    %v5757 = vpop.f32.mrb[0].mxu0
    %5758 = vmatprep.mubr.f32.mxu0 0.0
    %5759 = vmatmul.mubr.f32.gmra.mrb[0].mxu0 %v5284
    %v5760 = vpop.f32.mrb[0].mxu0
    %v5761 = vadd.f32 0.0, %v5760
    %v5762 = vpop.f32.mrb[0].mxu0
    %5763 = vmatprep.mubr.f32.mxu0 0.0
    %5764 = vmatmul.mubr.f32.gmra.mrb[0].mxu0 %v5285
    %v5765 = vpop.f32.mrb[0].mxu0
    %v5766 = vadd.f32 0.0, %v5765
    %v5767 = vpop.f32.mrb[0].mxu0
    %5768 = vmatprep.mubr.f32.mxu0 0.0
    %5769 = vmatmul.mubr.f32.gmra.mrb[0].mxu0 %v5286
    %v5770 = vpop.f32.mrb[0].mxu0
    %v5771 = vadd.f32 0.0, %v5770
    %v5772 = vpop.f32.mrb[0].mxu0
    %5773 = vmatprep.mubr.f32.mxu0 0.0
    %5774 = vmatmul.mubr.f32.gmra.mrb[0].mxu0 %v5287
    %v5775 = vpop.f32.mrb[0].mxu0
    %v5776 = vadd.f32 0.0, %v5775
    %v5777 = vpop.f32.mrb[0].mxu0
    %5778 = vmatprep.mubr.f32.mxu0 0.0
    %5779 = vmatmul.mubr.f32.gmra.mrb[0].mxu0 %v5288
    %v5780 = vpop.f32.mrb[0].mxu0
    %v5781 = vadd.f32 0.0, %v5780
    %v5782 = vpop.f32.mrb[0].mxu0
    %5783 = vmatprep.mubr.f32.mxu0 0.0
    %5784 = vmatmul.mubr.f32.gmra.mrb[0].mxu0 %v5289
    %v5785 = vpop.f32.mrb[0].mxu0
    %v5786 = vadd.f32 0.0, %v5785
    %v5787 = vpop.f32.mrb[0].mxu0
    %5788 = vmatprep.mubr.f32.mxu0 0.0
    %5789 = vmatmul.mubr.f32.gmra.mrb[0].mxu0 %v5290
    %v5790 = vpop.f32.mrb[0].mxu0
    %v5791 = vadd.f32 0.0, %v5790
    %v5792 = vpop.f32.mrb[0].mxu0
    %5793 = vmatprep.mubr.f32.mxu0 0.0
    %5794 = vmatmul.mubr.f32.gmra.mrb[0].mxu0 %v5291
    %v5795 = vpop.f32.mrb[0].mxu0
    %v5796 = vadd.f32 0.0, %v5795
    %v5797 = vpop.f32.mrb[0].mxu0
    %5798 = vmatprep.mubr.f32.mxu0 0.0
    %5799 = vmatmul.mubr.f32.gmra.mrb[0].mxu0 %v5292
    %v5800 = vpop.f32.mrb[0].mxu0
    %v5801 = vadd.f32 0.0, %v5800
    %v5802 = vpop.f32.mrb[0].mxu0
    %5803 = vmatprep.mubr.f32.mxu0 0.0
    %5804 = vmatmul.mubr.f32.gmra.mrb[0].mxu0 %v5293
    %v5805 = vpop.f32.mrb[0].mxu0
    %v5806 = vadd.f32 0.0, %v5805
    %v5807 = vpop.f32.mrb[0].mxu0
    %5808 = vmatprep.mubr.f32.mxu0 0.0
    %5809 = vmatmul.mubr.f32.gmra.mrb[0].mxu0 %v5294
    %v5810 = vpop.f32.mrb[0].mxu0
    %v5811 = vadd.f32 0.0, %v5810
    %v5812 = vpop.f32.mrb[0].mxu0
    %5813 = vmatprep.mubr.f32.mxu0 0.0
    %5814 = vmatmul.mubr.f32.gmra.mrb[0].mxu0 %v5295
    %v5815 = vpop.f32.mrb[0].mxu0
    %v5816 = vadd.f32 0.0, %v5815
    %v5817 = vpop.f32.mrb[0].mxu0
    %5818 = vmatprep.mubr.f32.mxu0 0.0
    %5819 = vmatmul.mubr.f32.gmra.mrb[0].mxu0 %v5296
    %v5820 = vpop.f32.mrb[0].mxu0
    %v5821 = vadd.f32 0.0, %v5820
    %v5822 = vpop.f32.mrb[0].mxu0
    %5823 = vmatprep.mubr.f32.mxu0 0.0
    %5824 = vmatmul.mubr.f32.gmra.mrb[0].mxu0 %v5297
    %v5825 = vpop.f32.mrb[0].mxu0
    %v5826 = vadd.f32 0.0, %v5825
    %v5827 = vpop.f32.mrb[0].mxu0
    %5828 = vmatprep.mubr.f32.mxu0 0.0
    %5829 = vmatmul.mubr.f32.gmra.mrb[0].mxu0 %v5298
    %v5830 = vpop.f32.mrb[0].mxu0
    %v5831 = vadd.f32 0.0, %v5830
    %v5832 = vpop.f32.mrb[0].mxu0
    %5833 = vmatprep.mubr.f32.mxu0 0.0
    %5834 = vmatmul.mubr.f32.gmra.mrb[0].mxu0 %v5299
    %v5835 = vpop.f32.mrb[0].mxu0
    %v5836 = vadd.f32 0.0, %v5835
    %v5837 = vpop.f32.mrb[0].mxu0
    %5838 = vmatprep.mubr.f32.mxu0 0.0
    %5839 = vmatmul.mubr.f32.gmra.mrb[0].mxu0 %v5300
    %v5840 = vpop.f32.mrb[0].mxu0
    %v5841 = vadd.f32 0.0, %v5840
    %v5842 = vpop.f32.mrb[0].mxu0
    %5843 = vmatprep.mubr.f32.mxu0 0.0
    %5844 = vmatmul.mubr.f32.gmra.mrb[0].mxu0 %v5301
    %v5845 = vpop.f32.mrb[0].mxu0
    %v5846 = vadd.f32 0.0, %v5845
    %v5847 = vpop.f32.mrb[0].mxu0
    %5848 = vmatprep.mubr.f32.mxu0 0.0
    %5849 = vmatmul.mubr.f32.gmra.mrb[0].mxu0 %v5302
    %v5850 = vpop.f32.mrb[0].mxu0
    %v5851 = vadd.f32 0.0, %v5850
    %v5852 = vpop.f32.mrb[0].mxu0
    %5853 = vmatprep.mubr.f32.mxu0 0.0
    %5854 = vmatmul.mubr.f32.gmra.mrb[0].mxu0 %v5303
    %v5855 = vpop.f32.mrb[0].mxu0
    %v5856 = vadd.f32 0.0, %v5855
    %v5857 = vpop.f32.mrb[0].mxu0
    %5858 = vmatprep.mubr.f32.mxu0 0.0
    %5859 = vmatmul.mubr.f32.gmra.mrb[0].mxu0 %v5304
    %v5860 = vpop.f32.mrb[0].mxu0
    %v5861 = vadd.f32 0.0, %v5860
    %v5862 = vpop.f32.mrb[0].mxu0
    %5863 = vmatprep.mubr.f32.mxu0 0.0
    %5864 = vmatmul.mubr.f32.gmra.mrb[0].mxu0 %v5305
    %v5865 = vpop.f32.mrb[0].mxu0
    %v5866 = vadd.f32 0.0, %v5865
    %v5867 = vpop.f32.mrb[0].mxu0
    %5868 = vmatprep.mubr.f32.mxu0 0.0
    %5869 = vmatmul.mubr.f32.gmra.mrb[0].mxu0 %v5306
    %v5870 = vpop.f32.mrb[0].mxu0
    %v5871 = vadd.f32 0.0, %v5870
    %v5872 = vpop.f32.mrb[0].mxu0
    %5873 = vmatprep.mubr.f32.mxu0 0.0
    %5874 = vmatmul.mubr.f32.gmra.mrb[0].mxu0 %v5307
    %v5875 = vpop.f32.mrb[0].mxu0
    %v5876 = vadd.f32 0.0, %v5875
    %v5877 = vpop.f32.mrb[0].mxu0
    %5878 = vmatprep.mubr.f32.mxu0 0.0
    %5879 = vmatmul.mubr.f32.gmra.mrb[0].mxu0 %v5308
    %v5880 = vpop.f32.mrb[0].mxu0
    %v5881 = vadd.f32 0.0, %v5880
    %v5882 = vpop.f32.mrb[0].mxu0
    %5883 = vmatprep.mubr.f32.mxu0 0.0
    %5884 = vmatmul.mubr.f32.gmra.mrb[0].mxu0 %v5309
    %v5885 = vpop.f32.mrb[0].mxu0
    %v5886 = vadd.f32 0.0, %v5885
    %v5887 = vpop.f32.mrb[0].mxu0
    %5888 = vmatprep.mubr.f32.mxu0 0.0
    %5889 = vmatmul.mubr.f32.gmra.mrb[0].mxu0 %v5310
    %v5890 = vpop.f32.mrb[0].mxu0
    %v5891 = vadd.f32 0.0, %v5890
    %v5892 = vpop.f32.mrb[0].mxu0
    %5893 = vmatprep.mubr.f32.mxu0 0.0
    %5894 = vmatmul.mubr.f32.gmra.mrb[0].mxu0 %v5311
    %v5895 = vpop.f32.mrb[0].mxu0
    %v5896 = vadd.f32 0.0, %v5895
    %v5897 = vpop.f32.mrb[0].mxu0
    %5898 = vmatprep.mubr.f32.mxu0 0.0
    %5899 = vmatmul.mubr.f32.gmra.mrb[0].mxu0 %v5312
    %v5900 = vpop.f32.mrb[0].mxu0
    %v5901 = vadd.f32 0.0, %v5900
    %v5902 = vpop.f32.mrb[0].mxu0
    %5903 = vmatprep.mubr.f32.mxu0 0.0
    %5904 = vmatmul.mubr.f32.gmra.mrb[0].mxu0 %v5313
    %v5905 = vpop.f32.mrb[0].mxu0
    %v5906 = vadd.f32 0.0, %v5905
    %v5907 = vpop.f32.mrb[0].mxu0
    %5908 = vmatprep.mubr.f32.mxu0 0.0
    %5909 = vmatmul.mubr.f32.gmra.mrb[0].mxu0 %v5314
    %v5910 = vpop.f32.mrb[0].mxu0
    %v5911 = vadd.f32 0.0, %v5910
    %v5912 = vpop.f32.mrb[0].mxu0
    %5913 = vmatprep.mubr.f32.mxu0 0.0
    %5914 = vmatmul.mubr.f32.gmra.mrb[0].mxu0 %v5315
    %v5915 = vpop.f32.mrb[0].mxu0
    %v5916 = vadd.f32 0.0, %v5915
    %v5917 = vpop.f32.mrb[0].mxu0
    %5918 = vmatprep.mubr.f32.mxu0 0.0
    %5919 = vmatmul.mubr.f32.gmra.mrb[0].mxu0 %v5316
    %v5920 = vpop.f32.mrb[0].mxu0
    %v5921 = vadd.f32 0.0, %v5920
    %v5922 = vpop.f32.mrb[0].mxu0
    %5923 = vmatprep.mubr.f32.mxu0 0.0
    %5924 = vmatmul.mubr.f32.gmra.mrb[0].mxu0 %v5317
    %v5925 = vpop.f32.mrb[0].mxu0
    %v5926 = vadd.f32 0.0, %v5925
    %v5927 = vpop.f32.mrb[0].mxu0
    %5928 = vmatprep.mubr.f32.mxu0 0.0
    %5929 = vmatmul.mubr.f32.gmra.mrb[0].mxu0 %v5318
    %v5930 = vpop.f32.mrb[0].mxu0
    %v5931 = vadd.f32 0.0, %v5930
    %v5932 = vpop.f32.mrb[0].mxu0
    %5933 = vmatprep.mubr.f32.mxu0 0.0
    %5934 = vmatmul.mubr.f32.gmra.mrb[0].mxu0 %v5319
    %v5935 = vpop.f32.mrb[0].mxu0
    %v5936 = vadd.f32 0.0, %v5935
    %v5937 = vpop.f32.mrb[0].mxu0
    %5938 = vmatprep.mubr.f32.mxu0 0.0
    %5939 = vmatmul.mubr.f32.gmra.mrb[0].mxu0 %v5320
    %v5940 = vpop.f32.mrb[0].mxu0
    %v5941 = vadd.f32 0.0, %v5940
    %v5942 = vpop.f32.mrb[0].mxu0
    %5943 = vmatprep.mubr.f32.mxu0 0.0
    %5944 = vmatmul.mubr.f32.gmra.mrb[0].mxu0 %v5321
    %v5945 = vpop.f32.mrb[0].mxu0
    %v5946 = vadd.f32 0.0, %v5945
    %v5947 = vpop.f32.mrb[0].mxu0
    %5948 = vmatprep.mubr.f32.mxu0 0.0
    %5949 = vmatmul.mubr.f32.gmra.mrb[0].mxu0 %v5322
    %v5950 = vpop.f32.mrb[0].mxu0
    %v5951 = vadd.f32 0.0, %v5950
    %v5952 = vpop.f32.mrb[0].mxu0
    %5953 = vmatprep.mubr.f32.mxu0 0.0
    %5954 = vmatmul.mubr.f32.gmra.mrb[0].mxu0 %v5323
    %v5955 = vpop.f32.mrb[0].mxu0
    %v5956 = vadd.f32 0.0, %v5955
    %v5957 = vpop.f32.mrb[0].mxu0
    %5958 = vmatprep.mubr.f32.mxu0 0.0
    %5959 = vmatmul.mubr.f32.gmra.mrb[0].mxu0 %v5324
    %v5960 = vpop.f32.mrb[0].mxu0
    %v5961 = vadd.f32 0.0, %v5960
    %v5962 = vpop.f32.mrb[0].mxu0
    %5963 = vmatprep.mubr.f32.mxu0 0.0
    %5964 = vmatmul.mubr.f32.gmra.mrb[0].mxu0 %v5325
    %v5965 = vpop.f32.mrb[0].mxu0
    %v5966 = vadd.f32 0.0, %v5965
    %v5967 = vpop.f32.mrb[0].mxu0
    %5968 = vmatprep.mubr.f32.mxu0 0.0
    %5969 = vmatmul.mubr.f32.gmra.mrb[0].mxu0 %v5326
    %v5970 = vpop.f32.mrb[0].mxu0
    %v5971 = vadd.f32 0.0, %v5970
    %v5972 = vpop.f32.mrb[0].mxu0
    %5973 = vmatprep.mubr.f32.mxu0 0.0
    %5974 = vmatmul.mubr.f32.gmra.mrb[0].mxu0 %v5327
    %v5975 = vpop.f32.mrb[0].mxu0
    %v5976 = vadd.f32 0.0, %v5975
    %v5977 = vpop.f32.mrb[0].mxu0
    %5978 = vmatprep.mubr.f32.mxu0 0.0
    %5979 = vmatmul.mubr.f32.gmra.mrb[0].mxu0 %v5328
    %v5980 = vpop.f32.mrb[0].mxu0
    %v5981 = vadd.f32 0.0, %v5980
    %v5982 = vpop.f32.mrb[0].mxu0
    %5983 = vmatprep.mubr.f32.mxu0 0.0
    %5984 = vmatmul.mubr.f32.gmra.mrb[0].mxu0 %v5329
    %v5985 = vpop.f32.mrb[0].mxu0
    %v5986 = vadd.f32 0.0, %v5985
    %v5987 = vpop.f32.mrb[0].mxu0
    %5988 = vmatprep.mubr.f32.mxu0 0.0
    %5989 = vmatmul.mubr.f32.gmra.mrb[0].mxu0 %v5330
    %v5990 = vpop.f32.mrb[0].mxu0
    %v5991 = vadd.f32 0.0, %v5990
    %v5992 = vpop.f32.mrb[0].mxu0
    %5993 = vmatprep.mubr.f32.mxu0 0.0
    %5994 = vmatmul.mubr.f32.gmra.mrb[0].mxu0 %v5331
    %v5995 = vpop.f32.mrb[0].mxu0
    %v5996 = vadd.f32 0.0, %v5995
    %v5997 = vpop.f32.mrb[0].mxu0
    %5998 = vmatprep.mubr.f32.mxu0 0.0
    %5999 = vmatmul.mubr.f32.gmra.mrb[0].mxu0 %v5332
    %v6000 = vpop.f32.mrb[0].mxu0
    %v6001 = vadd.f32 0.0, %v6000
    %v6002 = vpop.f32.mrb[0].mxu0
    %6003 = vmatprep.mubr.f32.mxu0 0.0
    %6004 = vmatmul.mubr.f32.gmra.mrb[0].mxu0 %v5333
    %v6005 = vpop.f32.mrb[0].mxu0
    %v6006 = vadd.f32 0.0, %v6005
    %v6007 = vpop.f32.mrb[0].mxu0
    %6008 = vmatprep.mubr.f32.mxu0 0.0
    %6009 = vmatmul.mubr.f32.gmra.mrb[0].mxu0 %v5334
    %v6010 = vpop.f32.mrb[0].mxu0
    %v6011 = vadd.f32 0.0, %v6010
    %v6012 = vpop.f32.mrb[0].mxu0
    %6013 = vmatprep.mubr.f32.mxu0 0.0
    %6014 = vmatmul.mubr.f32.gmra.mrb[0].mxu0 %v5335
    %v6015 = vpop.f32.mrb[0].mxu0
    %v6016 = vadd.f32 0.0, %v6015
    %v6017 = vpop.f32.mrb[0].mxu0
    %6018 = vmatprep.mubr.f32.mxu0 0.0
    %6019 = vmatmul.mubr.f32.gmra.mrb[0].mxu0 %v5336
    %v6020 = vpop.f32.mrb[0].mxu0
    %v6021 = vadd.f32 0.0, %v6020
    %v6022 = vpop.f32.mrb[0].mxu0
    %6023 = vmatprep.mubr.f32.mxu0 0.0
    %6024 = vmatmul.mubr.f32.gmra.mrb[0].mxu0 %v5337
    %v6025 = vpop.f32.mrb[0].mxu0
    %v6026 = vadd.f32 0.0, %v6025
    %v6027 = vpop.f32.mrb[0].mxu0
    %6028 = vmatprep.mubr.f32.mxu0 0.0
    %6029 = vmatmul.mubr.f32.gmra.mrb[0].mxu0 %v5338
    %v6030 = vpop.f32.mrb[0].mxu0
    %v6031 = vadd.f32 0.0, %v6030
    %v6032 = vpop.f32.mrb[0].mxu0
    %6033 = vmatprep.mubr.f32.mxu0 0.0
    %6034 = vmatmul.mubr.f32.gmra.mrb[0].mxu0 %v5339
    %v6035 = vpop.f32.mrb[0].mxu0
    %v6036 = vadd.f32 0.0, %v6035
    %v6037 = vpop.f32.mrb[0].mxu0
    %6038 = vmatprep.mubr.f32.mxu0 0.0
    %6039 = vmatmul.mubr.f32.gmra.mrb[0].mxu0 %v5340
    %v6040 = vpop.f32.mrb[0].mxu0
    %v6041 = vadd.f32 0.0, %v6040
    %v6042 = vpop.f32.mrb[0].mxu0
    %6043 = vmatprep.mubr.f32.mxu0 0.0
    %6044 = vmatmul.mubr.f32.gmra.mrb[0].mxu0 %v5341
    %v6045 = vpop.f32.mrb[0].mxu0
    %v6046 = vadd.f32 0.0, %v6045
    %v6047 = vpop.f32.mrb[0].mxu0
    %6048 = vmatprep.mubr.f32.mxu0 0.0
    %6049 = vmatmul.mubr.f32.gmra.mrb[0].mxu0 %v5342
    %v6050 = vpop.f32.mrb[0].mxu0
    %v6051 = vadd.f32 0.0, %v6050
    %v6052 = vpop.f32.mrb[0].mxu0
    %6053 = vmatprep.mubr.f32.mxu0 0.0
    %6054 = vmatmul.mubr.f32.gmra.mrb[0].mxu0 %v5343
    %v6055 = vpop.f32.mrb[0].mxu0
    %v6056 = vadd.f32 0.0, %v6055
    %v6057 = vpop.f32.mrb[0].mxu0
    %6058 = vmatprep.mubr.f32.mxu0 0.0
    %6059 = vmatmul.mubr.f32.gmra.mrb[0].mxu0 %v5344
    %v6060 = vpop.f32.mrb[0].mxu0
    %v6061 = vadd.f32 0.0, %v6060
    %v6062 = vpop.f32.mrb[0].mxu0
    %6063 = vmatprep.mubr.f32.mxu0 0.0
    %6064 = vmatmul.mubr.f32.gmra.mrb[0].mxu0 %v5345
    %v6065 = vpop.f32.mrb[0].mxu0
    %v6066 = vadd.f32 0.0, %v6065
    %v6067 = vpop.f32.mrb[0].mxu0
    %6068 = vmatprep.mubr.f32.mxu0 0.0
    %6069 = vmatmul.mubr.f32.gmra.mrb[0].mxu0 %v5346
    %v6070 = vpop.f32.mrb[0].mxu0
    %v6071 = vadd.f32 0.0, %v6070
    %v6072 = vpop.f32.mrb[0].mxu0
    %6073 = vmatprep.mubr.f32.mxu0 0.0
    %6074 = vmatmul.mubr.f32.gmra.mrb[0].mxu0 %v5347
    %v6075 = vpop.f32.mrb[0].mxu0
    %v6076 = vadd.f32 0.0, %v6075
    %v6077 = vpop.f32.mrb[0].mxu0
    %6078 = vmatprep.mubr.f32.mxu0 0.0
    %6079 = vmatmul.mubr.f32.gmra.mrb[0].mxu0 %v5348
    %v6080 = vpop.f32.mrb[0].mxu0
    %v6081 = vadd.f32 0.0, %v6080
    %v6082 = vpop.f32.mrb[0].mxu0
    %6083 = vmatprep.mubr.f32.mxu0 0.0
    %6084 = vmatmul.mubr.f32.gmra.mrb[0].mxu0 %v5349
    %v6085 = vpop.f32.mrb[0].mxu0
    %v6086 = vadd.f32 0.0, %v6085
    %v6087 = vpop.f32.mrb[0].mxu0
    %6088 = vmatprep.mubr.f32.mxu0 0.0
    %6089 = vmatmul.mubr.f32.gmra.mrb[0].mxu0 %v5350
    %v6090 = vpop.f32.mrb[0].mxu0
    %v6091 = vadd.f32 0.0, %v6090
    %v6092 = vpop.f32.mrb[0].mxu0
    %6093 = vmatprep.mubr.f32.mxu0 0.0
    %6094 = vmatmul.mubr.f32.gmra.mrb[0].mxu0 %v5351
    %v6095 = vpop.f32.mrb[0].mxu0
    %v6096 = vadd.f32 0.0, %v6095
    %v6097 = vpop.f32.mrb[0].mxu0
    %6098 = vmatprep.mubr.f32.mxu0 0.0
    %6099 = vmatmul.mubr.f32.gmra.mrb[0].mxu0 %v5352
    %v6100 = vpop.f32.mrb[0].mxu0
    %v6101 = vadd.f32 0.0, %v6100
    %v6102 = vpop.f32.mrb[0].mxu0
    %6103 = vmatprep.mubr.f32.mxu0 0.0
    %6104 = vmatmul.mubr.f32.gmra.mrb[0].mxu0 %v5353
    %v6105 = vpop.f32.mrb[0].mxu0
    %v6106 = vadd.f32 0.0, %v6105
    %v6107 = vpop.f32.mrb[0].mxu0
    %6108 = vmatprep.mubr.f32.mxu0 0.0
    %6109 = vmatmul.mubr.f32.gmra.mrb[0].mxu0 %v5354
    %v6110 = vpop.f32.mrb[0].mxu0
    %v6111 = vadd.f32 0.0, %v6110
    %v6112 = vpop.f32.mrb[0].mxu0
    %6113 = vmatprep.mubr.f32.mxu0 0.0
    %6114 = vmatmul.mubr.f32.gmra.mrb[0].mxu0 %v5355
    %v6115 = vpop.f32.mrb[0].mxu0
    %v6116 = vadd.f32 0.0, %v6115
    %v6117 = vpop.f32.mrb[0].mxu0
    %6118 = vmatprep.mubr.f32.mxu0 0.0
    %6119 = vmatmul.mubr.f32.gmra.mrb[0].mxu0 %v5356
    %v6120 = vpop.f32.mrb[0].mxu0
    %v6121 = vadd.f32 0.0, %v6120
    %v6122 = vpop.f32.mrb[0].mxu0
    %6123 = vmatprep.mubr.f32.mxu0 0.0
    %6124 = vmatmul.mubr.f32.gmra.mrb[0].mxu0 %v5357
    %v6125 = vpop.f32.mrb[0].mxu0
    %v6126 = vadd.f32 0.0, %v6125
    %v6127 = vpop.f32.mrb[0].mxu0
    %6128 = vmatprep.mubr.f32.mxu0 0.0
    %6129 = vmatmul.mubr.f32.gmra.mrb[0].mxu0 %v5358
    %v6130 = vpop.f32.mrb[0].mxu0
    %v6131 = vadd.f32 0.0, %v6130
    %v6132 = vpop.f32.mrb[0].mxu0
    %6133 = vmatprep.mubr.f32.mxu0 0.0
    %6134 = vmatmul.mubr.f32.gmra.mrb[0].mxu0 %v5359
    %v6135 = vpop.f32.mrb[0].mxu0
    %v6136 = vadd.f32 0.0, %v6135
    %v6137 = vpop.f32.mrb[0].mxu0
    %6138 = vmatprep.mubr.f32.mxu0 0.0
    %6139 = vmatmul.mubr.f32.gmra.mrb[0].mxu0 %v5360
    %v6140 = vpop.f32.mrb[0].mxu0
    %v6141 = vadd.f32 0.0, %v6140
    %v6142 = vpop.f32.mrb[0].mxu0
    %6143 = vmatprep.mubr.f32.mxu0 0.0
    %6144 = vmatmul.mubr.f32.gmra.mrb[0].mxu0 %v5361
    %v6145 = vpop.f32.mrb[0].mxu0
    %v6146 = vadd.f32 0.0, %v6145
    %v6147 = vpop.f32.mrb[0].mxu0
    %6148 = vmatprep.mubr.f32.mxu0 0.0
    %6149 = vmatmul.mubr.f32.gmra.mrb[0].mxu0 %v5362
    %v6150 = vpop.f32.mrb[0].mxu0
    %v6151 = vadd.f32 0.0, %v6150
    %v6152 = vpop.f32.mrb[0].mxu0
    %6153 = vmatprep.mubr.f32.mxu0 0.0
    %6154 = vmatmul.mubr.f32.gmra.mrb[0].mxu0 %v5363
    %v6155 = vpop.f32.mrb[0].mxu0
    %v6156 = vadd.f32 0.0, %v6155
    %v6157 = vpop.f32.mrb[0].mxu0
    %6158 = vmatprep.mubr.f32.mxu0 0.0
    %6159 = vmatmul.mubr.f32.gmra.mrb[0].mxu0 %v5364
    %v6160 = vpop.f32.mrb[0].mxu0
    %v6161 = vadd.f32 0.0, %v6160
    %v6162 = vpop.f32.mrb[0].mxu0
    %6163 = vmatprep.mubr.f32.mxu0 0.0
    %6164 = vmatmul.mubr.f32.gmra.mrb[0].mxu0 %v5365
    %v6165 = vpop.f32.mrb[0].mxu0
    %v6166 = vadd.f32 0.0, %v6165
    %v6167 = vpop.f32.mrb[0].mxu0
    %6168 = vmatprep.mubr.f32.mxu0 0.0
    %6169 = vmatmul.mubr.f32.gmra.mrb[0].mxu0 %v5366
    %v6170 = vpop.f32.mrb[0].mxu0
    %v6171 = vadd.f32 0.0, %v6170
    %v6172 = vpop.f32.mrb[0].mxu0
    %6173 = vmatprep.mubr.f32.mxu0 0.0
    %6174 = vmatmul.mubr.f32.gmra.mrb[0].mxu0 %v5367
    %v6175 = vpop.f32.mrb[0].mxu0
    %v6176 = vadd.f32 0.0, %v6175
    %v6177 = vpop.f32.mrb[0].mxu0
    %6178 = vmatprep.mubr.f32.mxu0 0.0
    %6179 = vmatmul.mubr.f32.gmra.mrb[0].mxu0 %v5368
    %v6180 = vpop.f32.mrb[0].mxu0
    %v6181 = vadd.f32 0.0, %v6180
    %v6182 = vpop.f32.mrb[0].mxu0
    %6183 = vmatprep.mubr.f32.mxu0 0.0
    %6184 = vmatmul.mubr.f32.gmra.mrb[0].mxu0 %v5369
    %v6185 = vpop.f32.mrb[0].mxu0
    %v6186 = vadd.f32 0.0, %v6185
    %v6187 = vpop.f32.mrb[0].mxu0
    %6188 = vmatprep.mubr.f32.mxu0 0.0
    %6189 = vmatmul.mubr.f32.gmra.mrb[0].mxu0 %v5370
    %v6190 = vpop.f32.mrb[0].mxu0
    %v6191 = vadd.f32 0.0, %v6190
    %v6192 = vpop.f32.mrb[0].mxu0
    %6193 = vmatprep.mubr.f32.mxu0 0.0
    %6194 = vmatmul.mubr.f32.gmra.mrb[0].mxu0 %v5371
    %v6195 = vpop.f32.mrb[0].mxu0
    %v6196 = vadd.f32 0.0, %v6195
    %v6197 = vpop.f32.mrb[0].mxu0
    %6198 = vmatprep.mubr.f32.mxu0 0.0
    %6199 = vmatmul.mubr.f32.gmra.mrb[0].mxu0 %v5372
    %v6200 = vpop.f32.mrb[0].mxu0
    %v6201 = vadd.f32 0.0, %v6200
    %v6202 = vpop.f32.mrb[0].mxu0
    %6203 = vmatprep.mubr.f32.mxu0 0.0
    %6204 = vmatmul.mubr.f32.gmra.mrb[0].mxu0 %v5373
    %v6205 = vpop.f32.mrb[0].mxu0
    %v6206 = vadd.f32 0.0, %v6205
    %v6207 = vpop.f32.mrb[0].mxu0
    %6208 = vmatprep.mubr.f32.mxu0 0.0
    %6209 = vmatmul.mubr.f32.gmra.mrb[0].mxu0 %v5374
    %v6210 = vpop.f32.mrb[0].mxu0
    %v6211 = vadd.f32 0.0, %v6210
    %v6212 = vpop.f32.mrb[0].mxu0
    %6213 = vmatprep.mubr.f32.mxu0 0.0
    %6214 = vmatmul.mubr.f32.gmra.mrb[0].mxu0 %v5375
    %v6215 = vpop.f32.mrb[0].mxu0
    %v6216 = vadd.f32 0.0, %v6215
    %v6217 = vpop.f32.mrb[0].mxu0
    %6218 = vmatprep.mubr.f32.mxu0 0.0
    %6219 = vmatmul.mubr.f32.gmra.mrb[0].mxu0 %v5376
    %v6220 = vpop.f32.mrb[0].mxu0
    %v6221 = vadd.f32 0.0, %v6220
    %v6222 = vpop.f32.mrb[0].mxu0
    %6223 = vmatprep.mubr.f32.mxu0 0.0
    %6224 = vmatmul.mubr.f32.gmra.mrb[0].mxu0 %v5377
    %v6225 = vpop.f32.mrb[0].mxu0
    %v6226 = vadd.f32 0.0, %v6225
    %v6227 = vpop.f32.mrb[0].mxu0
    %6228 = vmatprep.mubr.f32.mxu0 0.0
    %6229 = vmatmul.mubr.f32.gmra.mrb[0].mxu0 %v5378
    %v6230 = vpop.f32.mrb[0].mxu0
    %v6231 = vadd.f32 0.0, %v6230
    %v6232 = vpop.f32.mrb[0].mxu0
    %6233 = vmatprep.mubr.f32.mxu0 0.0
    %6234 = vmatmul.mubr.f32.gmra.mrb[0].mxu0 %v5379
    %v6235 = vpop.f32.mrb[0].mxu0
    %v6236 = vadd.f32 0.0, %v6235
    %v6237 = vpop.f32.mrb[0].mxu0
    %6238 = vmatprep.mubr.f32.mxu0 0.0
    %6239 = vmatmul.mubr.f32.gmra.mrb[0].mxu0 %v5380
    %v6240 = vpop.f32.mrb[0].mxu0
    %v6241 = vadd.f32 0.0, %v6240
    %v6242 = vpop.f32.mrb[0].mxu0
    %6243 = vmatprep.mubr.f32.mxu0 0.0
    %6244 = vmatmul.mubr.f32.gmra.mrb[0].mxu0 %v5381
    %v6245 = vpop.f32.mrb[0].mxu0
    %v6246 = vadd.f32 0.0, %v6245
    %v6247 = vpop.f32.mrb[0].mxu0
    %6248 = vmatprep.mubr.f32.mxu0 0.0
    %6249 = vmatmul.mubr.f32.gmra.mrb[0].mxu0 %v5382
    %v6250 = vpop.f32.mrb[0].mxu0
    %v6251 = vadd.f32 0.0, %v6250
    %v6252 = vpop.f32.mrb[0].mxu0
    %6253 = vmatprep.mubr.f32.mxu0 0.0
    %6254 = vmatmul.mubr.f32.gmra.mrb[0].mxu0 %v5383
    %v6255 = vpop.f32.mrb[0].mxu0
    %v6256 = vadd.f32 0.0, %v6255
    %v6257 = vpop.f32.mrb[0].mxu0
    %6258 = vmatprep.mubr.f32.mxu0 0.0
    %6259 = vmatmul.mubr.f32.gmra.mrb[0].mxu0 %v5384
    %v6260 = vpop.f32.mrb[0].mxu0
    %v6261 = vadd.f32 0.0, %v6260
    %v6262 = vpop.f32.mrb[0].mxu0
    %6263 = vmatprep.mubr.f32.mxu0 0.0
    %6264 = vmatmul.mubr.f32.gmra.mrb[0].mxu0 %v5385
    %v6265 = vpop.f32.mrb[0].mxu0
    %v6266 = vadd.f32 0.0, %v6265
    %v6267 = vpop.f32.mrb[0].mxu0
    %6268 = vmatprep.mubr.f32.mxu0 0.0
    %6269 = vmatmul.mubr.f32.gmra.mrb[0].mxu0 %v5386
    %v6270 = vpop.f32.mrb[0].mxu0
    %v6271 = vadd.f32 0.0, %v6270
    %v6272 = vpop.f32.mrb[0].mxu0
    %6273 = vmatprep.mubr.f32.mxu0 0.0
    %6274 = vmatmul.mubr.f32.gmra.mrb[0].mxu0 %v5387
    %v6275 = vpop.f32.mrb[0].mxu0
    %v6276 = vadd.f32 0.0, %v6275
    %v6277 = vpop.f32.mrb[0].mxu0
    %6278 = vmatprep.mubr.f32.mxu0 0.0
    %6279 = vmatmul.mubr.f32.gmra.mrb[0].mxu0 %v5388
    %v6280 = vpop.f32.mrb[0].mxu0
    %v6281 = vadd.f32 0.0, %v6280
    %v6282 = vpop.f32.mrb[0].mxu0
    %6283 = vmatprep.mubr.f32.mxu0 0.0
    %6284 = vmatmul.mubr.f32.gmra.mrb[0].mxu0 %v5389
    %v6285 = vpop.f32.mrb[0].mxu0
    %v6286 = vadd.f32 0.0, %v6285
    %v6287 = vpop.f32.mrb[0].mxu0
    %6288 = vmatprep.mubr.f32.mxu0 0.0
    %6289 = vmatmul.mubr.f32.gmra.mrb[0].mxu0 %v5390
    %v6290 = vpop.f32.mrb[0].mxu0
    %v6291 = vadd.f32 0.0, %v6290
    %v6292 = vpop.f32.mrb[0].mxu0
    %6293 = vmatprep.mubr.f32.mxu0 0.0
    %6294 = vmatmul.mubr.f32.gmra.mrb[0].mxu0 %v5391
    %v6295 = vpop.f32.mrb[0].mxu0
    %v6296 = vadd.f32 0.0, %v6295
    %v6297 = vpop.f32.mrb[0].mxu0
    %6298 = vmatprep.mubr.f32.mxu0 0.0
    %6299 = vmatmul.mubr.f32.gmra.mrb[0].mxu0 %v5392
    %v6300 = vpop.f32.mrb[0].mxu0
    %v6301 = vadd.f32 0.0, %v6300
    %v6302 = vpop.f32.mrb[0].mxu0
    %6303 = vmatprep.mubr.f32.mxu0 0.0
    %6304 = vmatmul.mubr.f32.gmra.mrb[0].mxu0 %v5393
    %v6305 = vpop.f32.mrb[0].mxu0
    %v6306 = vadd.f32 0.0, %v6305
    %v6307 = vpop.f32.mrb[0].mxu0
    %6308 = vmatprep.mubr.f32.mxu0 0.0
    %6309 = vmatmul.mubr.f32.gmra.mrb[0].mxu0 %v5394
    %v6310 = vpop.f32.mrb[0].mxu0
    %v6311 = vadd.f32 0.0, %v6310
    %v6312 = vpop.f32.mrb[0].mxu0
    %6313 = vmatprep.mubr.f32.mxu0 0.0
    %6314 = vmatmul.mubr.f32.gmra.mrb[0].mxu0 %v5395
    %v6315 = vpop.f32.mrb[0].mxu0
    %v6316 = vadd.f32 0.0, %v6315
    %v6317 = vpop.f32.mrb[0].mxu0
    %6318 = vmatprep.mubr.f32.mxu0 0.0
    %6319 = vmatmul.mubr.f32.gmra.mrb[0].mxu0 %v5396
    %v6320 = vpop.f32.mrb[0].mxu0
    %v6321 = vadd.f32 0.0, %v6320
    %v6322 = vpop.f32.mrb[0].mxu0
    %6323 = vmatprep.mubr.f32.mxu0 0.0
    %6324 = vmatmul.mubr.f32.gmra.mrb[0].mxu0 %v5397
    %v6325 = vpop.f32.mrb[0].mxu0
    %v6326 = vadd.f32 0.0, %v6325
    %v6327 = vpop.f32.mrb[0].mxu0
    %6328 = vmatprep.mubr.f32.mxu0 0.0
    %6329 = vmatmul.mubr.f32.gmra.mrb[0].mxu0 %v5398
    %v6330 = vpop.f32.mrb[0].mxu0
    %v6331 = vadd.f32 0.0, %v6330
    %v6332 = vpop.f32.mrb[0].mxu0
    %6333 = vmatprep.mubr.f32.mxu0 0.0
    %6334 = vmatmul.mubr.f32.gmra.mrb[0].mxu0 %v5399
    %v6335 = vpop.f32.mrb[0].mxu0
    %v6336 = vadd.f32 0.0, %v6335
    %v6337 = vpop.f32.mrb[0].mxu0
    %6338 = vmatprep.mubr.f32.mxu0 0.0
    %6339 = vmatmul.mubr.f32.gmra.mrb[0].mxu0 %v5400
    %v6340 = vpop.f32.mrb[0].mxu0
    %v6341 = vadd.f32 0.0, %v6340
    %v6342 = vpop.f32.mrb[0].mxu0
    %6343 = vmatprep.mubr.f32.mxu0 0.0
    %6344 = vmatmul.mubr.f32.gmra.mrb[0].mxu0 %v5401
    %v6345 = vpop.f32.mrb[0].mxu0
    %v6346 = vadd.f32 0.0, %v6345
    %v6347 = vpop.f32.mrb[0].mxu0
    %6348 = vmatprep.mubr.f32.mxu0 0.0
    %6349 = vmatmul.mubr.f32.gmra.mrb[0].mxu0 %v5402
    %v6350 = vpop.f32.mrb[0].mxu0
    %v6351 = vadd.f32 0.0, %v6350
    %v6352 = vpop.f32.mrb[0].mxu0
    %6353 = vmatprep.mubr.f32.mxu0 0.0
    %6354 = vmatmul.mubr.f32.gmra.mrb[0].mxu0 %v5403
    %v6355 = vpop.f32.mrb[0].mxu0
    %v6356 = vadd.f32 0.0, %v6355
    %v6357 = vpop.f32.mrb[0].mxu0
    %6358 = vmatprep.mubr.f32.mxu0 0.0
    %6359 = vmatmul.mubr.f32.gmra.mrb[0].mxu0 %v5404
    %v6360 = vpop.f32.mrb[0].mxu0
    %v6361 = vadd.f32 0.0, %v6360
    %v6362 = vpop.f32.mrb[0].mxu0
    %6363 = vmatprep.mubr.f32.mxu0 0.0
    %6364 = vmatmul.mubr.f32.gmra.mrb[0].mxu0 %v5405
    %v6365 = vpop.f32.mrb[0].mxu0
    %v6366 = vadd.f32 0.0, %v6365
    %v6367 = vpop.f32.mrb[0].mxu0
    %6368 = vmatprep.mubr.f32.mxu0 0.0
    %6369 = vmatmul.mubr.f32.gmra.mrb[0].mxu0 %v5406
    %v6370 = vpop.f32.mrb[0].mxu0
    %v6371 = vadd.f32 0.0, %v6370
    %v6372 = vpop.f32.mrb[0].mxu0
    %6373 = vmatprep.mubr.f32.mxu0 0.0
    %6374 = vmatmul.mubr.f32.gmra.mrb[0].mxu0 %v5407
    %v6375 = vpop.f32.mrb[0].mxu0
    %v6376 = vadd.f32 0.0, %v6375
    %v6377 = vpop.f32.mrb[0].mxu0
    %6378 = vmatprep.mubr.f32.mxu0 0.0
    %6379 = vmatmul.mubr.f32.gmra.mrb[0].mxu0 %v5408
    %v6380 = vpop.f32.mrb[0].mxu0
    %v6381 = vadd.f32 0.0, %v6380
    %v6382 = vpop.f32.mrb[0].mxu0
    %6383 = vmatprep.mubr.f32.mxu0 0.0
    %6384 = vmatmul.mubr.f32.gmra.mrb[0].mxu0 %v5409
    %v6385 = vpop.f32.mrb[0].mxu0
    %v6386 = vadd.f32 0.0, %v6385
    %v6387 = vpop.f32.mrb[0].mxu0
    %6388 = vmatprep.mubr.f32.mxu0 0.0
    %6389 = vmatmul.mubr.f32.gmra.mrb[0].mxu0 %v5410
    %v6390 = vpop.f32.mrb[0].mxu0
    %v6391 = vadd.f32 0.0, %v6390
    %v6392 = vpop.f32.mrb[0].mxu0
    %6393 = vmatprep.mubr.f32.mxu0 0.0
    %6394 = vmatmul.mubr.f32.gmra.mrb[0].mxu0 %v5411
    %v6395 = vpop.f32.mrb[0].mxu0
    %v6396 = vadd.f32 0.0, %v6395
    %v6397 = vpop.f32.mrb[0].mxu0
    %6398 = vmatprep.mubr.f32.mxu0 0.0
    %6399 = vmatmul.mubr.f32.gmra.mrb[0].mxu0 %v5412
    %v6400 = vpop.f32.mrb[0].mxu0
    %v6401 = vadd.f32 0.0, %v6400
    %v6402 = vpop.f32.mrb[0].mxu0
    %6403 = vmatprep.mubr.f32.mxu0 0.0
    %6404 = vmatmul.mubr.f32.gmra.mrb[0].mxu0 %v5413
    %v6405 = vpop.f32.mrb[0].mxu0
    %v6406 = vadd.f32 0.0, %v6405
    %v6407 = vpop.f32.mrb[0].mxu0
    %6408 = vmatprep.mubr.f32.mxu0 0.0
    %6409 = vmatmul.mubr.f32.gmra.mrb[0].mxu0 %v5414
    %v6410 = vpop.f32.mrb[0].mxu0
    %v6411 = vadd.f32 0.0, %v6410
    %v6412 = vpop.f32.mrb[0].mxu0
    %6413 = vmatprep.mubr.f32.mxu0 0.0
    %6414 = vmatmul.mubr.f32.gmra.mrb[0].mxu0 %v5415
    %v6415 = vpop.f32.mrb[0].mxu0
    %v6416 = vadd.f32 0.0, %v6415
    %v6417 = vpop.f32.mrb[0].mxu0
    %6418 = vmatprep.mubr.f32.mxu0 0.0
    %6419 = vmatmul.mubr.f32.gmra.mrb[0].mxu0 %v5416
    %v6420 = vpop.f32.mrb[0].mxu0
    %v6421 = vadd.f32 0.0, %v6420
    %v6422 = vpop.f32.mrb[0].mxu0
    %6423 = vmatprep.mubr.f32.mxu0 0.0
    %6424 = vmatmul.mubr.f32.gmra.mrb[0].mxu0 %v5417
    %v6425 = vpop.f32.mrb[0].mxu0
    %v6426 = vadd.f32 0.0, %v6425
    %v6427 = vpop.f32.mrb[0].mxu0
    %6428 = vmatprep.mubr.f32.mxu0 0.0
    %6429 = vmatmul.mubr.f32.gmra.mrb[0].mxu0 %v5418
    %v6430 = vpop.f32.mrb[0].mxu0
    %v6431 = vadd.f32 0.0, %v6430
    %v6432 = vpop.f32.mrb[0].mxu0
    %6433 = vmatprep.mubr.f32.mxu0 0.0
    %6434 = vmatmul.mubr.f32.gmra.mrb[0].mxu0 %v5419
    %v6435 = vpop.f32.mrb[0].mxu0
    %v6436 = vadd.f32 0.0, %v6435
    %v6437 = vpop.f32.mrb[0].mxu0
    %6438 = vmatprep.mubr.f32.mxu0 0.0
    %6439 = vmatmul.mubr.f32.gmra.mrb[0].mxu0 %v5420
    %v6440 = vpop.f32.mrb[0].mxu0
    %v6441 = vadd.f32 0.0, %v6440
    %v6442 = vpop.f32.mrb[0].mxu0
    %6443 = vmatprep.mubr.f32.mxu0 0.0
    %6444 = vmatmul.mubr.f32.gmra.mrb[0].mxu0 %v5421
    %v6445 = vpop.f32.mrb[0].mxu0
    %v6446 = vadd.f32 0.0, %v6445
    %v6447 = vpop.f32.mrb[0].mxu0
    %6448 = vmatprep.mubr.f32.mxu0 0.0
    %6449 = vmatmul.mubr.f32.gmra.mrb[0].mxu0 %v5422
    %v6450 = vpop.f32.mrb[0].mxu0
    %v6451 = vadd.f32 0.0, %v6450
    %v6452 = vpop.f32.mrb[0].mxu0
    %6453 = vmatprep.mubr.f32.mxu0 0.0
    %6454 = vmatmul.mubr.f32.gmra.mrb[0].mxu0 %v5423
    %v6455 = vpop.f32.mrb[0].mxu0
    %v6456 = vadd.f32 0.0, %v6455
    %v6457 = vpop.f32.mrb[0].mxu0
    %6458 = vmatprep.mubr.f32.mxu0 0.0
    %6459 = vmatmul.mubr.f32.gmra.mrb[0].mxu0 %v5424
    %v6460 = vpop.f32.mrb[0].mxu0
    %v6461 = vadd.f32 0.0, %v6460
    %v6462 = vpop.f32.mrb[0].mxu0
    %6463 = vmatprep.mubr.f32.mxu0 0.0
    %6464 = vmatmul.mubr.f32.gmra.mrb[0].mxu0 %v5425
    %v6465 = vpop.f32.mrb[0].mxu0
    %v6466 = vadd.f32 0.0, %v6465
    %v6467 = vpop.f32.mrb[0].mxu0
    %6468 = vmatprep.mubr.f32.mxu0 0.0
    %6469 = vmatmul.mubr.f32.gmra.mrb[0].mxu0 %v5426
    %v6470 = vpop.f32.mrb[0].mxu0
    %v6471 = vadd.f32 0.0, %v6470
    %v6472 = vpop.f32.mrb[0].mxu0
    %6473 = vmatprep.mubr.f32.mxu0 0.0
    %6474 = vmatmul.mubr.f32.gmra.mrb[0].mxu0 %v5427
    %v6475 = vpop.f32.mrb[0].mxu0
    %v6476 = vadd.f32 0.0, %v6475
    %v6477 = vpop.f32.mrb[0].mxu0
    %6478 = vmatprep.mubr.f32.mxu0 0.0
    %6479 = vmatmul.mubr.f32.gmra.mrb[0].mxu0 %v5428
    %v6480 = vpop.f32.mrb[0].mxu0
    %v6481 = vadd.f32 0.0, %v6480
    %v6482 = vpop.f32.mrb[0].mxu0
    %6483 = vmatprep.mubr.f32.mxu0 0.0
    %6484 = vmatmul.mubr.f32.gmra.mrb[0].mxu0 %v5429
    %v6485 = vpop.f32.mrb[0].mxu0
    %v6486 = vadd.f32 0.0, %v6485
    %v6487 = vpop.f32.mrb[0].mxu0
    %6488 = vmatprep.mubr.f32.mxu0 0.0
    %6489 = vmatmul.mubr.f32.gmra.mrb[0].mxu0 %v5430
    %v6490 = vpop.f32.mrb[0].mxu0
    %v6491 = vadd.f32 0.0, %v6490
    %v6492 = vpop.f32.mrb[0].mxu0
    %6493 = vmatprep.mubr.f32.mxu0 0.0
    %6494 = vmatmul.mubr.f32.gmra.mrb[0].mxu0 %v5431
    %v6495 = vpop.f32.mrb[0].mxu0
    %v6496 = vadd.f32 0.0, %v6495
    %v6497 = vpop.f32.mrb[0].mxu0
    %6498 = vmatprep.mubr.f32.mxu0 0.0
    %6499 = vmatmul.mubr.f32.gmra.mrb[0].mxu0 %v5432
    %v6500 = vpop.f32.mrb[0].mxu0
    %v6501 = vadd.f32 0.0, %v6500
    %v6502 = vpop.f32.mrb[0].mxu0
    %6503 = vmatprep.mubr.f32.mxu0 0.0
    %6504 = vmatmul.mubr.f32.gmra.mrb[0].mxu0 %v5433
    %v6505 = vpop.f32.mrb[0].mxu0
    %v6506 = vadd.f32 0.0, %v6505
    %v6507 = vpop.f32.mrb[0].mxu0
    %6508 = vmatprep.mubr.f32.mxu0 0.0
    %6509 = vmatmul.mubr.f32.gmra.mrb[0].mxu0 %v5434
    %v6510 = vpop.f32.mrb[0].mxu0
    %v6511 = vadd.f32 0.0, %v6510
    %v6512 = vpop.f32.mrb[0].mxu0
    %6513 = vmatprep.mubr.f32.mxu0 0.0
    %6514 = vmatmul.mubr.f32.gmra.mrb[0].mxu0 %v5435
    %v6515 = vpop.f32.mrb[0].mxu0
    %v6516 = vadd.f32 0.0, %v6515
    %v6517 = vpop.f32.mrb[0].mxu0
    %6518 = vmatprep.mubr.f32.mxu0 0.0
    %6519 = vmatmul.mubr.f32.gmra.mrb[0].mxu0 %v5436
    %v6520 = vpop.f32.mrb[0].mxu0
    %v6521 = vadd.f32 0.0, %v6520
    %v6522 = vpop.f32.mrb[0].mxu0
    %6523 = vmatprep.mubr.f32.mxu0 0.0
    %6524 = vmatmul.mubr.f32.gmra.mrb[0].mxu0 %v5437
    %v6525 = vpop.f32.mrb[0].mxu0
    %v6526 = vadd.f32 0.0, %v6525
    %v6527 = vpop.f32.mrb[0].mxu0
    %6528 = vmatprep.mubr.f32.mxu0 0.0
    %6529 = vmatmul.mubr.f32.gmra.mrb[0].mxu0 %v5438
    %v6530 = vpop.f32.mrb[0].mxu0
    %v6531 = vadd.f32 0.0, %v6530
    %v6532 = vpop.f32.mrb[0].mxu0
    %6533 = vmatprep.mubr.f32.mxu0 0.0
    %6534 = vmatmul.mubr.f32.gmra.mrb[0].mxu0 %v5439
    %v6535 = vpop.f32.mrb[0].mxu0
    %v6536 = vadd.f32 0.0, %v6535
    %v6537 = vpop.f32.mrb[0].mxu0
    %6538 = vmatprep.mubr.f32.mxu0 0.0
    %6539 = vmatmul.mubr.f32.gmra.mrb[0].mxu0 %v5440
    %v6540 = vpop.f32.mrb[0].mxu0
    %v6541 = vadd.f32 0.0, %v6540
    %v6542 = vpop.f32.mrb[0].mxu0
    %6543 = vmatprep.mubr.f32.mxu0 0.0
    %6544 = vmatmul.mubr.f32.gmra.mrb[0].mxu0 %v5441
    %v6545 = vpop.f32.mrb[0].mxu0
    %v6546 = vadd.f32 0.0, %v6545
    %v6547 = vpop.f32.mrb[0].mxu0
    %6548 = vmatprep.mubr.f32.mxu0 0.0
    %6549 = vmatmul.mubr.f32.gmra.mrb[0].mxu0 %v5442
    %v6550 = vpop.f32.mrb[0].mxu0
    %v6551 = vadd.f32 0.0, %v6550
    %v6552 = vpop.f32.mrb[0].mxu0
    %6553 = vmatprep.mubr.f32.mxu0 0.0
    %6554 = vmatmul.mubr.f32.gmra.mrb[0].mxu0 %v5443
    %v6555 = vpop.f32.mrb[0].mxu0
    %v6556 = vadd.f32 0.0, %v6555
    %v6557 = vpop.f32.mrb[0].mxu0
    %6558 = vmatprep.mubr.f32.mxu0 0.0
    %6559 = vmatmul.mubr.f32.gmra.mrb[0].mxu0 %v5444
    %v6560 = vpop.f32.mrb[0].mxu0
    %v6561 = vadd.f32 0.0, %v6560
    %v6562 = vpop.f32.mrb[0].mxu0
    %6563 = vmatprep.mubr.f32.mxu0 0.0
    %6564 = vmatmul.mubr.f32.gmra.mrb[0].mxu0 %v5445
    %v6565 = vpop.f32.mrb[0].mxu0
    %v6566 = vadd.f32 0.0, %v6565
    %v6567 = vpop.f32.mrb[0].mxu0
    %6568 = vmatprep.mubr.f32.mxu0 0.0
    %6569 = vmatmul.mubr.f32.gmra.mrb[0].mxu0 %v5446
    %v6570 = vpop.f32.mrb[0].mxu0
    %v6571 = vadd.f32 0.0, %v6570
    %v6572 = vpop.f32.mrb[0].mxu0
    %6573 = vmatprep.mubr.f32.mxu0 0.0
    %6574 = vmatmul.mubr.f32.gmra.mrb[0].mxu0 %v5447
    %v6575 = vpop.f32.mrb[0].mxu0
    %v6576 = vadd.f32 0.0, %v6575
    %v6577 = vpop.f32.mrb[0].mxu0
    %6578 = vmatprep.mubr.f32.mxu0 0.0
    %6579 = vmatmul.mubr.f32.gmra.mrb[0].mxu0 %v5448
    %v6580 = vpop.f32.mrb[0].mxu0
    %v6581 = vadd.f32 0.0, %v6580
    %v6582 = vpop.f32.mrb[0].mxu0
    %6583 = vmatprep.mubr.f32.mxu0 0.0
    %6584 = vmatmul.mubr.f32.gmra.mrb[0].mxu0 %v5449
    %v6585 = vpop.f32.mrb[0].mxu0
    %v6586 = vadd.f32 0.0, %v6585
    %v6587 = vpop.f32.mrb[0].mxu0
    %6588 = vmatprep.mubr.f32.mxu0 0.0
    %6589 = vmatmul.mubr.f32.gmra.mrb[0].mxu0 %v5450
    %v6590 = vpop.f32.mrb[0].mxu0
    %v6591 = vadd.f32 0.0, %v6590
    %v6592 = vpop.f32.mrb[0].mxu0
    %6593 = vmatprep.mubr.f32.mxu0 0.0
    %6594 = vmatmul.mubr.f32.gmra.mrb[0].mxu0 %v5451
    %v6595 = vpop.f32.mrb[0].mxu0
    %v6596 = vadd.f32 0.0, %v6595
    %v6597 = vpop.f32.mrb[0].mxu0
    %6598 = vmatprep.mubr.f32.mxu0 0.0
    %6599 = vmatmul.mubr.f32.gmra.mrb[0].mxu0 %v5452
    %v6600 = vpop.f32.mrb[0].mxu0
    %v6601 = vadd.f32 0.0, %v6600
    %v6602 = vpop.f32.mrb[0].mxu0
    %6603 = vmatprep.mubr.f32.mxu0 0.0
    %6604 = vmatmul.mubr.f32.gmra.mrb[0].mxu0 %v5453
    %v6605 = vpop.f32.mrb[0].mxu0
    %v6606 = vadd.f32 0.0, %v6605
    %v6607 = vpop.f32.mrb[0].mxu0
    %6608 = vmatprep.mubr.f32.mxu0 0.0
    %6609 = vmatmul.mubr.f32.gmra.mrb[0].mxu0 %v5454
    %v6610 = vpop.f32.mrb[0].mxu0
    %v6611 = vadd.f32 0.0, %v6610
    %v6612 = vpop.f32.mrb[0].mxu0
    %6613 = vmatprep.mubr.f32.mxu0 0.0
    %6614 = vmatmul.mubr.f32.gmra.mrb[0].mxu0 %v5455
    %v6615 = vpop.f32.mrb[0].mxu0
    %v6616 = vadd.f32 0.0, %v6615
    %v6617 = vpop.f32.mrb[0].mxu0
    %6618 = vmatprep.mubr.f32.mxu0 0.0
    %6619 = vmatmul.mubr.f32.gmra.mrb[0].mxu0 %v5456
    %v6620 = vpop.f32.mrb[0].mxu0
    %v6621 = vadd.f32 0.0, %v6620
    %v6622 = vpop.f32.mrb[0].mxu0
    %6623 = vmatprep.mubr.f32.mxu0 0.0
    %6624 = vmatmul.mubr.f32.gmra.mrb[0].mxu0 %v5457
    %v6625 = vpop.f32.mrb[0].mxu0
    %v6626 = vadd.f32 0.0, %v6625
    %v6627 = vpop.f32.mrb[0].mxu0
    %6628 = vmatprep.mubr.f32.mxu0 0.0
    %6629 = vmatmul.mubr.f32.gmra.mrb[0].mxu0 %v5458
    %v6630 = vpop.f32.mrb[0].mxu0
    %v6631 = vadd.f32 0.0, %v6630
    %v6632 = vpop.f32.mrb[0].mxu0
    %6633 = vmatprep.mubr.f32.mxu0 0.0
    %6634 = vmatmul.mubr.f32.gmra.mrb[0].mxu0 %v5459
    %v6635 = vpop.f32.mrb[0].mxu0
    %v6636 = vadd.f32 0.0, %v6635
    %v6637 = vpop.f32.mrb[0].mxu0
    %6638 = vmatprep.mubr.f32.mxu0 0.0
    %6639 = vmatmul.mubr.f32.gmra.mrb[0].mxu0 %v5460
    %v6640 = vpop.f32.mrb[0].mxu0
    %v6641 = vadd.f32 0.0, %v6640
    %v6642 = vpop.f32.mrb[0].mxu0
    %6643 = vmatprep.mubr.f32.mxu0 0.0
    %6644 = vmatmul.mubr.f32.gmra.mrb[0].mxu0 %v5461
    %v6645 = vpop.f32.mrb[0].mxu0
    %v6646 = vadd.f32 0.0, %v6645
    %v6647 = vpop.f32.mrb[0].mxu0
    %6648 = vmatprep.mubr.f32.mxu0 0.0
    %6649 = vmatmul.mubr.f32.gmra.mrb[0].mxu0 %v5462
    %v6650 = vpop.f32.mrb[0].mxu0
    %v6651 = vadd.f32 0.0, %v6650
    %v6652 = vpop.f32.mrb[0].mxu0
    %6653 = vmatprep.mubr.f32.mxu0 0.0
    %6654 = vmatmul.mubr.f32.gmra.mrb[0].mxu0 %v5463
    %v6655 = vpop.f32.mrb[0].mxu0
    %v6656 = vadd.f32 0.0, %v6655
    %v6657 = vpop.f32.mrb[0].mxu0
    %6658 = vmatprep.mubr.f32.mxu0 0.0
    %6659 = vmatmul.mubr.f32.gmra.mrb[0].mxu0 %v5464
    %v6660 = vpop.f32.mrb[0].mxu0
    %v6661 = vadd.f32 0.0, %v6660
    %v6662 = vpop.f32.mrb[0].mxu0
    %6663 = vmatprep.mubr.f32.mxu0 0.0
    %6664 = vmatmul.mubr.f32.gmra.mrb[0].mxu0 %v5465
    %v6665 = vpop.f32.mrb[0].mxu0
    %v6666 = vadd.f32 0.0, %v6665
    %v6667 = vpop.f32.mrb[0].mxu0
    %6668 = vmatprep.mubr.f32.mxu0 0.0
    %6669 = vmatmul.mubr.f32.gmra.mrb[0].mxu0 %v5466
    %v6670 = vpop.f32.mrb[0].mxu0
    %v6671 = vadd.f32 0.0, %v6670
    %v6672 = vpop.f32.mrb[0].mxu0
    %6673 = vmatprep.mubr.f32.mxu0 0.0
    %6674 = vmatmul.mubr.f32.gmra.mrb[0].mxu0 %v5467
    %v6675 = vpop.f32.mrb[0].mxu0
    %v6676 = vadd.f32 0.0, %v6675
    %v6677 = vpop.f32.mrb[0].mxu0
    %6678 = vmatprep.mubr.f32.mxu0 0.0
    %6679 = vmatmul.mubr.f32.gmra.mrb[0].mxu0 %v5468
    %v6680 = vpop.f32.mrb[0].mxu0
    %v6681 = vadd.f32 0.0, %v6680
    %v6682 = vpop.f32.mrb[0].mxu0
    %6683 = vmatprep.mubr.f32.mxu0 0.0
    %6684 = vmatmul.mubr.f32.gmra.mrb[0].mxu0 %v5469
    %v6685 = vpop.f32.mrb[0].mxu0
    %v6686 = vadd.f32 0.0, %v6685
    %v6687 = vpop.f32.mrb[0].mxu0
    %6688 = vmatprep.mubr.f32.mxu0 0.0
    %6689 = vmatmul.mubr.f32.gmra.mrb[0].mxu0 %v5470
    %v6690 = vpop.f32.mrb[0].mxu0
    %v6691 = vadd.f32 0.0, %v6690
    %v6692 = vpop.f32.mrb[0].mxu0
    %6693 = vmatprep.mubr.f32.mxu0 0.0
    %6694 = vmatmul.mubr.f32.gmra.mrb[0].mxu0 %v5471
    %v6695 = vpop.f32.mrb[0].mxu0
    %v6696 = vadd.f32 0.0, %v6695
    %v6697 = vpop.f32.mrb[0].mxu0
    %6698 = vmatprep.mubr.f32.mxu0 0.0
    %6699 = vmatmul.mubr.f32.gmra.mrb[0].mxu0 %v5472
    %v6700 = vpop.f32.mrb[0].mxu0
    %v6701 = vadd.f32 0.0, %v6700
    %v6702 = vpop.f32.mrb[0].mxu0
    %6703 = vmatprep.mubr.f32.mxu0 0.0
    %6704 = vmatmul.mubr.f32.gmra.mrb[0].mxu0 %v5473
    %v6705 = vpop.f32.mrb[0].mxu0
    %v6706 = vadd.f32 0.0, %v6705
    %v6707 = vpop.f32.mrb[0].mxu0
    %6708 = vmatprep.mubr.f32.mxu0 0.0
    %6709 = vmatmul.mubr.f32.gmra.mrb[0].mxu0 %v5474
    %v6710 = vpop.f32.mrb[0].mxu0
    %v6711 = vadd.f32 0.0, %v6710
    %v6712 = vpop.f32.mrb[0].mxu0
    %6713 = vmatprep.mubr.f32.mxu0 0.0
    %6714 = vmatmul.mubr.f32.gmra.mrb[0].mxu0 %v5475
    %v6715 = vpop.f32.mrb[0].mxu0
    %v6716 = vadd.f32 0.0, %v6715
    %v6717 = vpop.f32.mrb[0].mxu0
    %6718 = vmatprep.mubr.f32.mxu0 0.0
    %6719 = vmatmul.mubr.f32.gmra.mrb[0].mxu0 %v5476
    %v6720 = vpop.f32.mrb[0].mxu0
    %v6721 = vadd.f32 0.0, %v6720
    %v6722 = vpop.f32.mrb[0].mxu0
    %6723 = vmatprep.mubr.f32.mxu0 0.0
    %6724 = vmatmul.mubr.f32.gmra.mrb[0].mxu0 %v5477
    %v6725 = vpop.f32.mrb[0].mxu0
    %v6726 = vadd.f32 0.0, %v6725
    %v6727 = vpop.f32.mrb[0].mxu0
    %6728 = vmatprep.mubr.f32.mxu0 0.0
    %6729 = vmatmul.mubr.f32.gmra.mrb[0].mxu0 %v5478
    %v6730 = vpop.f32.mrb[0].mxu0
    %v6731 = vadd.f32 0.0, %v6730
    %v6732 = vpop.f32.mrb[0].mxu0
    %6733 = vmatprep.mubr.f32.mxu0 0.0
    %6734 = vmatmul.mubr.f32.gmra.mrb[0].mxu0 %v5479
    %v6735 = vpop.f32.mrb[0].mxu0
    %v6736 = vadd.f32 0.0, %v6735
    %v6737 = vpop.f32.mrb[0].mxu0
    %6738 = vmatprep.mubr.f32.mxu0 0.0
    %6739 = vmatmul.mubr.f32.gmra.mrb[0].mxu0 %v5480
    %v6740 = vpop.f32.mrb[0].mxu0
    %v6741 = vadd.f32 0.0, %v6740
    %v6742 = vpop.f32.mrb[0].mxu0
    %6743 = vmatprep.mubr.f32.mxu0 0.0
    %6744 = vmatmul.mubr.f32.gmra.mrb[0].mxu0 %v5481
    %v6745 = vpop.f32.mrb[0].mxu0
    %v6746 = vadd.f32 0.0, %v6745
    %v6747 = vpop.f32.mrb[0].mxu0
    %6748 = vmatprep.mubr.f32.mxu0 0.0
    %6749 = vmatmul.mubr.f32.gmra.mrb[0].mxu0 %v5482
    %v6750 = vpop.f32.mrb[0].mxu0
    %v6751 = vadd.f32 0.0, %v6750
    %v6752 = vpop.f32.mrb[0].mxu0
    %6753 = vmatprep.mubr.f32.mxu0 0.0
    %6754 = vmatmul.mubr.f32.gmra.mrb[0].mxu0 %v5483
    %v6755 = vpop.f32.mrb[0].mxu0
    %v6756 = vadd.f32 0.0, %v6755
    %v6757 = vpop.f32.mrb[0].mxu0
    %6758 = vmatprep.mubr.f32.mxu0 0.0
    %6759 = vmatmul.mubr.f32.gmra.mrb[0].mxu0 %v5484
    %v6760 = vpop.f32.mrb[0].mxu0
    %v6761 = vadd.f32 0.0, %v6760
    %v6762 = vpop.f32.mrb[0].mxu0
    %6763 = vmatprep.mubr.f32.mxu0 0.0
    %6764 = vmatmul.mubr.f32.gmra.mrb[0].mxu0 %v5485
    %v6765 = vpop.f32.mrb[0].mxu0
    %v6766 = vadd.f32 0.0, %v6765
    %v6767 = vpop.f32.mrb[0].mxu0
    %6768 = vmatprep.mubr.f32.mxu0 0.0
    %6769 = vmatmul.mubr.f32.gmra.mrb[0].mxu0 %v5486
    %v6770 = vpop.f32.mrb[0].mxu0
    %v6771 = vadd.f32 0.0, %v6770
    %v6772 = vpop.f32.mrb[0].mxu0
    %6773 = vmatprep.mubr.f32.mxu0 0.0
    %6774 = vmatmul.mubr.f32.gmra.mrb[0].mxu0 %v5487
    %v6775 = vpop.f32.mrb[0].mxu0
    %v6776 = vadd.f32 0.0, %v6775
    %v6777 = vpop.f32.mrb[0].mxu0
    %6778 = vmatprep.mubr.f32.mxu0 0.0
    %6779 = vmatmul.mubr.f32.gmra.mrb[0].mxu0 %v5488
    %v6780 = vpop.f32.mrb[0].mxu0
    %v6781 = vadd.f32 0.0, %v6780
    %v6782 = vpop.f32.mrb[0].mxu0
    %6783 = vmatprep.mubr.f32.mxu0 0.0
    %6784 = vmatmul.mubr.f32.gmra.mrb[0].mxu0 %v5489
    %v6785 = vpop.f32.mrb[0].mxu0
    %v6786 = vadd.f32 0.0, %v6785
    %v6787 = vpop.f32.mrb[0].mxu0
    %6788 = vmatprep.mubr.f32.mxu0 0.0
    %6789 = vmatmul.mubr.f32.gmra.mrb[0].mxu0 %v5490
    %v6790 = vpop.f32.mrb[0].mxu0
    %v6791 = vadd.f32 0.0, %v6790
    %v6792 = vpop.f32.mrb[0].mxu0
    %6793 = vmatprep.mubr.f32.mxu0 0.0
    %6794 = vmatmul.mubr.f32.gmra.mrb[0].mxu0 %v5491
    %v6795 = vpop.f32.mrb[0].mxu0
    %v6796 = vadd.f32 0.0, %v6795
    %v6797 = vpop.f32.mrb[0].mxu0
    %6798 = vmatprep.mubr.f32.mxu0 0.0
    %6799 = vmatmul.mubr.f32.gmra.mrb[0].mxu0 %v5492
    %v6800 = vpop.f32.mrb[0].mxu0
    %v6801 = vadd.f32 0.0, %v6800
    %v6802 = vpop.f32.mrb[0].mxu0
    %6803 = vmatprep.mubr.f32.mxu0 0.0
    %6804 = vmatmul.mubr.f32.gmra.mrb[0].mxu0 %v5493
    %v6805 = vpop.f32.mrb[0].mxu0
    %v6806 = vadd.f32 0.0, %v6805
    %v6807 = vpop.f32.mrb[0].mxu0
    %6808 = vmatprep.mubr.f32.mxu0 0.0
    %6809 = vmatmul.mubr.f32.gmra.mrb[0].mxu0 %v5494
    %v6810 = vpop.f32.mrb[0].mxu0
    %v6811 = vadd.f32 0.0, %v6810
    %v6812 = vpop.f32.mrb[0].mxu0
    %6813 = vmatprep.mubr.f32.mxu0 0.0
    %6814 = vmatmul.mubr.f32.gmra.mrb[0].mxu0 %v5495
    %v6815 = vpop.f32.mrb[0].mxu0
    %v6816 = vadd.f32 0.0, %v6815
    %v6817 = vpop.f32.mrb[0].mxu0
    %6818 = vmatprep.mubr.f32.mxu0 0.0
    %6819 = vmatmul.mubr.f32.gmra.mrb[0].mxu0 %v5496
    %v6820 = vpop.f32.mrb[0].mxu0
    %v6821 = vadd.f32 0.0, %v6820
    %v6822 = vpop.f32.mrb[0].mxu0
    %6823 = vmatprep.mubr.f32.mxu0 0.0
    %6824 = vmatmul.mubr.f32.gmra.mrb[0].mxu0 %v5497
    %v6825 = vpop.f32.mrb[0].mxu0
    %v6826 = vadd.f32 0.0, %v6825
    %v6827 = vpop.f32.mrb[0].mxu0
    %6828 = vmatprep.mubr.f32.mxu0 0.0
    %6829 = vmatmul.mubr.f32.gmra.mrb[0].mxu0 %v5498
    %v6830 = vpop.f32.mrb[0].mxu0
    %v6831 = vadd.f32 0.0, %v6830
    %v6832 = vpop.f32.mrb[0].mxu0
    %6833 = vmatprep.mubr.f32.mxu0 0.0
    %6834 = vmatmul.mubr.f32.gmra.mrb[0].mxu0 %v5499
    %v6835 = vpop.f32.mrb[0].mxu0
    %v6836 = vadd.f32 0.0, %v6835
    %v6837 = vpop.f32.mrb[0].mxu0
    %6838 = vmatprep.mubr.f32.mxu0 0.0
    %6839 = vmatmul.mubr.f32.gmra.mrb[0].mxu0 %v5500
    %v6840 = vpop.f32.mrb[0].mxu0
    %v6841 = vadd.f32 0.0, %v6840
    %v6842 = vpop.f32.mrb[0].mxu0
    %6843 = vmatprep.mubr.f32.mxu0 0.0
    %6844 = vmatmul.mubr.f32.gmra.mrb[0].mxu0 %v5501
    %v6845 = vpop.f32.mrb[0].mxu0
    %v6846 = vadd.f32 0.0, %v6845
    %v6847 = vpop.f32.mrb[0].mxu0
    %6848 = vdwg.mxu0
    %v6849 = vsub.f32 %v5571, %v48
    %v6850 = vsub.f32 %v5576, %v49
    %v6851 = vsub.f32 %v5581, %v50
    %v6852 = vsub.f32 %v5586, %v51
    %v6853 = vsub.f32 %v5591, %v52
    %v6854 = vsub.f32 %v5596, %v53
    %v6855 = vsub.f32 %v5601, %v54
    %v6856 = vsub.f32 %v5606, %v55
    %v6857 = vsub.f32 %v5611, %v56
    %v6858 = vsub.f32 %v5616, %v57
    %v6859 = vsub.f32 %v5621, %v58
    %v6860 = vsub.f32 %v5626, %v59
    %v6861 = vsub.f32 %v5631, %v60
    %v6862 = vsub.f32 %v5636, %v61
    %v6863 = vsub.f32 %v5641, %v62
    %v6864 = vsub.f32 %v5646, %v63
    %v6865 = vsub.f32 %v5651, %v64
    %v6866 = vsub.f32 %v5656, %v65
    %v6867 = vsub.f32 %v5661, %v66
    %v6868 = vsub.f32 %v5666, %v67
    %v6869 = vsub.f32 %v5671, %v68
    %v6870 = vsub.f32 %v5676, %v69
    %v6871 = vsub.f32 %v5681, %v70
    %v6872 = vsub.f32 %v5686, %v71
    %v6873 = vsub.f32 %v5691, %v72
    %v6874 = vsub.f32 %v5696, %v73
    %v6875 = vsub.f32 %v5701, %v74
    %v6876 = vsub.f32 %v5706, %v75
    %v6877 = vsub.f32 %v5711, %v76
    %v6878 = vsub.f32 %v5716, %v77
    %v6879 = vsub.f32 %v5721, %v78
    %v6880 = vsub.f32 %v5726, %v79
    %v6881 = vsub.f32 %v5731, %v80
    %v6882 = vsub.f32 %v5736, %v81
    %v6883 = vsub.f32 %v5741, %v82
    %v6884 = vsub.f32 %v5746, %v83
    %v6885 = vsub.f32 %v5751, %v84
    %v6886 = vsub.f32 %v5756, %v85
    %v6887 = vsub.f32 %v5761, %v86
    %v6888 = vsub.f32 %v5766, %v87
    %v6889 = vsub.f32 %v5771, %v88
    %v6890 = vsub.f32 %v5776, %v89
    %v6891 = vsub.f32 %v5781, %v90
    %v6892 = vsub.f32 %v5786, %v91
    %v6893 = vsub.f32 %v5791, %v92
    %v6894 = vsub.f32 %v5796, %v93
    %v6895 = vsub.f32 %v5801, %v94
    %v6896 = vsub.f32 %v5806, %v95
    %v6897 = vsub.f32 %v5811, %v96
    %v6898 = vsub.f32 %v5816, %v97
    %v6899 = vsub.f32 %v5821, %v98
    %v6900 = vsub.f32 %v5826, %v99
    %v6901 = vsub.f32 %v5831, %v100
    %v6902 = vsub.f32 %v5836, %v101
    %v6903 = vsub.f32 %v5841, %v102
    %v6904 = vsub.f32 %v5846, %v103
    %v6905 = vsub.f32 %v5851, %v104
    %v6906 = vsub.f32 %v5856, %v105
    %v6907 = vsub.f32 %v5861, %v106
    %v6908 = vsub.f32 %v5866, %v107
    %v6909 = vsub.f32 %v5871, %v108
    %v6910 = vsub.f32 %v5876, %v109
    %v6911 = vsub.f32 %v5881, %v110
    %v6912 = vsub.f32 %v5886, %v111
    %v6913 = vsub.f32 %v5891, %v112
    %v6914 = vsub.f32 %v5896, %v113
    %v6915 = vsub.f32 %v5901, %v114
    %v6916 = vsub.f32 %v5906, %v115
    %v6917 = vsub.f32 %v5911, %v116
    %v6918 = vsub.f32 %v5916, %v117
    %v6919 = vsub.f32 %v5921, %v118
    %v6920 = vsub.f32 %v5926, %v119
    %v6921 = vsub.f32 %v5931, %v120
    %v6922 = vsub.f32 %v5936, %v121
    %v6923 = vsub.f32 %v5941, %v122
    %v6924 = vsub.f32 %v5946, %v123
    %v6925 = vsub.f32 %v5951, %v124
    %v6926 = vsub.f32 %v5956, %v125
    %v6927 = vsub.f32 %v5961, %v126
    %v6928 = vsub.f32 %v5966, %v127
    %v6929 = vsub.f32 %v5971, %v128
    %v6930 = vsub.f32 %v5976, %v129
    %v6931 = vsub.f32 %v5981, %v130
    %v6932 = vsub.f32 %v5986, %v131
    %v6933 = vsub.f32 %v5991, %v132
    %v6934 = vsub.f32 %v5996, %v133
    %v6935 = vsub.f32 %v6001, %v134
    %v6936 = vsub.f32 %v6006, %v135
    %v6937 = vsub.f32 %v6011, %v136
    %v6938 = vsub.f32 %v6016, %v137
    %v6939 = vsub.f32 %v6021, %v138
    %v6940 = vsub.f32 %v6026, %v139
    %v6941 = vsub.f32 %v6031, %v140
    %v6942 = vsub.f32 %v6036, %v141
    %v6943 = vsub.f32 %v6041, %v142
    %v6944 = vsub.f32 %v6046, %v143
    %v6945 = vsub.f32 %v6051, %v144
    %v6946 = vsub.f32 %v6056, %v145
    %v6947 = vsub.f32 %v6061, %v146
    %v6948 = vsub.f32 %v6066, %v147
    %v6949 = vsub.f32 %v6071, %v148
    %v6950 = vsub.f32 %v6076, %v149
    %v6951 = vsub.f32 %v6081, %v150
    %v6952 = vsub.f32 %v6086, %v151
    %v6953 = vsub.f32 %v6091, %v152
    %v6954 = vsub.f32 %v6096, %v153
    %v6955 = vsub.f32 %v6101, %v154
    %v6956 = vsub.f32 %v6106, %v155
    %v6957 = vsub.f32 %v6111, %v156
    %v6958 = vsub.f32 %v6116, %v157
    %v6959 = vsub.f32 %v6121, %v158
    %v6960 = vsub.f32 %v6126, %v159
    %v6961 = vsub.f32 %v6131, %v160
    %v6962 = vsub.f32 %v6136, %v161
    %v6963 = vsub.f32 %v6141, %v162
    %v6964 = vsub.f32 %v6146, %v163
    %v6965 = vsub.f32 %v6151, %v164
    %v6966 = vsub.f32 %v6156, %v165
    %v6967 = vsub.f32 %v6161, %v166
    %v6968 = vsub.f32 %v6166, %v167
    %v6969 = vsub.f32 %v6171, %v168
    %v6970 = vsub.f32 %v6176, %v169
    %v6971 = vsub.f32 %v6181, %v170
    %v6972 = vsub.f32 %v6186, %v171
    %v6973 = vsub.f32 %v6191, %v172
    %v6974 = vsub.f32 %v6196, %v173
    %v6975 = vsub.f32 %v6201, %v174
    %v6976 = vsub.f32 %v6206, %v175
    %v6977 = vsub.f32 %v6211, %v176
    %v6978 = vsub.f32 %v6216, %v177
    %v6979 = vsub.f32 %v6221, %v178
    %v6980 = vsub.f32 %v6226, %v179
    %v6981 = vsub.f32 %v6231, %v180
    %v6982 = vsub.f32 %v6236, %v181
    %v6983 = vsub.f32 %v6241, %v182
    %v6984 = vsub.f32 %v6246, %v183
    %v6985 = vsub.f32 %v6251, %v184
    %v6986 = vsub.f32 %v6256, %v185
    %v6987 = vsub.f32 %v6261, %v186
    %v6988 = vsub.f32 %v6266, %v187
    %v6989 = vsub.f32 %v6271, %v188
    %v6990 = vsub.f32 %v6276, %v189
    %v6991 = vsub.f32 %v6281, %v190
    %v6992 = vsub.f32 %v6286, %v191
    %v6993 = vsub.f32 %v6291, %v192
    %v6994 = vsub.f32 %v6296, %v193
    %v6995 = vsub.f32 %v6301, %v194
    %v6996 = vsub.f32 %v6306, %v195
    %v6997 = vsub.f32 %v6311, %v196
    %v6998 = vsub.f32 %v6316, %v197
    %v6999 = vsub.f32 %v6321, %v198
    %v7000 = vsub.f32 %v6326, %v199
    %v7001 = vsub.f32 %v6331, %v200
    %v7002 = vsub.f32 %v6336, %v201
    %v7003 = vsub.f32 %v6341, %v202
    %v7004 = vsub.f32 %v6346, %v203
    %v7005 = vsub.f32 %v6351, %v204
    %v7006 = vsub.f32 %v6356, %v205
    %v7007 = vsub.f32 %v6361, %v206
    %v7008 = vsub.f32 %v6366, %v207
    %v7009 = vsub.f32 %v6371, %v208
    %v7010 = vsub.f32 %v6376, %v209
    %v7011 = vsub.f32 %v6381, %v210
    %v7012 = vsub.f32 %v6386, %v211
    %v7013 = vsub.f32 %v6391, %v212
    %v7014 = vsub.f32 %v6396, %v213
    %v7015 = vsub.f32 %v6401, %v214
    %v7016 = vsub.f32 %v6406, %v215
    %v7017 = vsub.f32 %v6411, %v216
    %v7018 = vsub.f32 %v6416, %v217
    %v7019 = vsub.f32 %v6421, %v218
    %v7020 = vsub.f32 %v6426, %v219
    %v7021 = vsub.f32 %v6431, %v220
    %v7022 = vsub.f32 %v6436, %v221
    %v7023 = vsub.f32 %v6441, %v222
    %v7024 = vsub.f32 %v6446, %v223
    %v7025 = vsub.f32 %v6451, %v224
    %v7026 = vsub.f32 %v6456, %v225
    %v7027 = vsub.f32 %v6461, %v226
    %v7028 = vsub.f32 %v6466, %v227
    %v7029 = vsub.f32 %v6471, %v228
    %v7030 = vsub.f32 %v6476, %v229
    %v7031 = vsub.f32 %v6481, %v230
    %v7032 = vsub.f32 %v6486, %v231
    %v7033 = vsub.f32 %v6491, %v232
    %v7034 = vsub.f32 %v6496, %v233
    %v7035 = vsub.f32 %v6501, %v234
    %v7036 = vsub.f32 %v6506, %v235
    %v7037 = vsub.f32 %v6511, %v236
    %v7038 = vsub.f32 %v6516, %v237
    %v7039 = vsub.f32 %v6521, %v238
    %v7040 = vsub.f32 %v6526, %v239
    %v7041 = vsub.f32 %v6531, %v240
    %v7042 = vsub.f32 %v6536, %v241
    %v7043 = vsub.f32 %v6541, %v242
    %v7044 = vsub.f32 %v6546, %v243
    %v7045 = vsub.f32 %v6551, %v244
    %v7046 = vsub.f32 %v6556, %v245
    %v7047 = vsub.f32 %v6561, %v246
    %v7048 = vsub.f32 %v6566, %v247
    %v7049 = vsub.f32 %v6571, %v248
    %v7050 = vsub.f32 %v6576, %v249
    %v7051 = vsub.f32 %v6581, %v250
    %v7052 = vsub.f32 %v6586, %v251
    %v7053 = vsub.f32 %v6591, %v252
    %v7054 = vsub.f32 %v6596, %v253
    %v7055 = vsub.f32 %v6601, %v254
    %v7056 = vsub.f32 %v6606, %v255
    %v7057 = vsub.f32 %v6611, %v256
    %v7058 = vsub.f32 %v6616, %v257
    %v7059 = vsub.f32 %v6621, %v258
    %v7060 = vsub.f32 %v6626, %v259
    %v7061 = vsub.f32 %v6631, %v260
    %v7062 = vsub.f32 %v6636, %v261
    %v7063 = vsub.f32 %v6641, %v262
    %v7064 = vsub.f32 %v6646, %v263
    %v7065 = vsub.f32 %v6651, %v264
    %v7066 = vsub.f32 %v6656, %v265
    %v7067 = vsub.f32 %v6661, %v266
    %v7068 = vsub.f32 %v6666, %v267
    %v7069 = vsub.f32 %v6671, %v268
    %v7070 = vsub.f32 %v6676, %v269
    %v7071 = vsub.f32 %v6681, %v270
    %v7072 = vsub.f32 %v6686, %v271
    %v7073 = vsub.f32 %v6691, %v272
    %v7074 = vsub.f32 %v6696, %v273
    %v7075 = vsub.f32 %v6701, %v274
    %v7076 = vsub.f32 %v6706, %v275
    %v7077 = vsub.f32 %v6711, %v276
    %v7078 = vsub.f32 %v6716, %v277
    %v7079 = vsub.f32 %v6721, %v278
    %v7080 = vsub.f32 %v6726, %v279
    %v7081 = vsub.f32 %v6731, %v280
    %v7082 = vsub.f32 %v6736, %v281
    %v7083 = vsub.f32 %v6741, %v282
    %v7084 = vsub.f32 %v6746, %v283
    %v7085 = vsub.f32 %v6751, %v284
    %v7086 = vsub.f32 %v6756, %v285
    %v7087 = vsub.f32 %v6761, %v286
    %v7088 = vsub.f32 %v6766, %v287
    %v7089 = vsub.f32 %v6771, %v288
    %v7090 = vsub.f32 %v6776, %v289
    %v7091 = vsub.f32 %v6781, %v290
    %v7092 = vsub.f32 %v6786, %v291
    %v7093 = vsub.f32 %v6791, %v292
    %v7094 = vsub.f32 %v6796, %v293
    %v7095 = vsub.f32 %v6801, %v294
    %v7096 = vsub.f32 %v6806, %v295
    %v7097 = vsub.f32 %v6811, %v296
    %v7098 = vsub.f32 %v6816, %v297
    %v7099 = vsub.f32 %v6821, %v298
    %v7100 = vsub.f32 %v6826, %v299
    %v7101 = vsub.f32 %v6831, %v300
    %v7102 = vsub.f32 %v6836, %v301
    %v7103 = vsub.f32 %v6841, %v302
    %v7104 = vsub.f32 %v6846, %v303
    %v7105 = vld [vmem:[#allocation2] sm:$0x1]
    %v7106 = vmul.f32 %v6849, %v6849
    %v7107 = vmul.f32 %v6850, %v6850
    %v7108 = vmul.f32 %v6851, %v6851
    %v7109 = vmul.f32 %v6852, %v6852
    %v7110 = vmul.f32 %v6853, %v6853
    %v7111 = vmul.f32 %v6854, %v6854
    %v7112 = vmul.f32 %v6855, %v6855
    %v7113 = vmul.f32 %v6856, %v6856
    %v7114 = vmul.f32 %v6857, %v6857
    %v7115 = vmul.f32 %v6858, %v6858
    %v7116 = vmul.f32 %v6859, %v6859
    %v7117 = vmul.f32 %v6860, %v6860
    %v7118 = vmul.f32 %v6861, %v6861
    %v7119 = vmul.f32 %v6862, %v6862
    %v7120 = vmul.f32 %v6863, %v6863
    %v7121 = vmul.f32 %v6864, %v6864
    %v7122 = vmul.f32 %v6865, %v6865
    %v7123 = vmul.f32 %v6866, %v6866
    %v7124 = vmul.f32 %v6867, %v6867
    %v7125 = vmul.f32 %v6868, %v6868
    %v7126 = vmul.f32 %v6869, %v6869
    %v7127 = vmul.f32 %v6870, %v6870
    %v7128 = vmul.f32 %v6871, %v6871
    %v7129 = vmul.f32 %v6872, %v6872
    %v7130 = vmul.f32 %v6873, %v6873
    %v7131 = vmul.f32 %v6874, %v6874
    %v7132 = vmul.f32 %v6875, %v6875
    %v7133 = vmul.f32 %v6876, %v6876
    %v7134 = vmul.f32 %v6877, %v6877
    %v7135 = vmul.f32 %v6878, %v6878
    %v7136 = vmul.f32 %v6879, %v6879
    %v7137 = vmul.f32 %v6880, %v6880
    %v7138 = vmul.f32 %v6881, %v6881
    %v7139 = vmul.f32 %v6882, %v6882
    %v7140 = vmul.f32 %v6883, %v6883
    %v7141 = vmul.f32 %v6884, %v6884
    %v7142 = vmul.f32 %v6885, %v6885
    %v7143 = vmul.f32 %v6886, %v6886
    %v7144 = vmul.f32 %v6887, %v6887
    %v7145 = vmul.f32 %v6888, %v6888
    %v7146 = vmul.f32 %v6889, %v6889
    %v7147 = vmul.f32 %v6890, %v6890
    %v7148 = vmul.f32 %v6891, %v6891
    %v7149 = vmul.f32 %v6892, %v6892
    %v7150 = vmul.f32 %v6893, %v6893
    %v7151 = vmul.f32 %v6894, %v6894
    %v7152 = vmul.f32 %v6895, %v6895
    %v7153 = vmul.f32 %v6896, %v6896
    %v7154 = vmul.f32 %v6897, %v6897
    %v7155 = vmul.f32 %v6898, %v6898
    %v7156 = vmul.f32 %v6899, %v6899
    %v7157 = vmul.f32 %v6900, %v6900
    %v7158 = vmul.f32 %v6901, %v6901
    %v7159 = vmul.f32 %v6902, %v6902
    %v7160 = vmul.f32 %v6903, %v6903
    %v7161 = vmul.f32 %v6904, %v6904
    %v7162 = vmul.f32 %v6905, %v6905
    %v7163 = vmul.f32 %v6906, %v6906
    %v7164 = vmul.f32 %v6907, %v6907
    %v7165 = vmul.f32 %v6908, %v6908
    %v7166 = vmul.f32 %v6909, %v6909
    %v7167 = vmul.f32 %v6910, %v6910
    %v7168 = vmul.f32 %v6911, %v6911
    %v7169 = vmul.f32 %v6912, %v6912
    %v7170 = vmul.f32 %v6913, %v6913
    %v7171 = vmul.f32 %v6914, %v6914
    %v7172 = vmul.f32 %v6915, %v6915
    %v7173 = vmul.f32 %v6916, %v6916
    %v7174 = vmul.f32 %v6917, %v6917
    %v7175 = vmul.f32 %v6918, %v6918
    %v7176 = vmul.f32 %v6919, %v6919
    %v7177 = vmul.f32 %v6920, %v6920
    %v7178 = vmul.f32 %v6921, %v6921
    %v7179 = vmul.f32 %v6922, %v6922
    %v7180 = vmul.f32 %v6923, %v6923
    %v7181 = vmul.f32 %v6924, %v6924
    %v7182 = vmul.f32 %v6925, %v6925
    %v7183 = vmul.f32 %v6926, %v6926
    %v7184 = vmul.f32 %v6927, %v6927
    %v7185 = vmul.f32 %v6928, %v6928
    %v7186 = vmul.f32 %v6929, %v6929
    %v7187 = vmul.f32 %v6930, %v6930
    %v7188 = vmul.f32 %v6931, %v6931
    %v7189 = vmul.f32 %v6932, %v6932
    %v7190 = vmul.f32 %v6933, %v6933
    %v7191 = vmul.f32 %v6934, %v6934
    %v7192 = vmul.f32 %v6935, %v6935
    %v7193 = vmul.f32 %v6936, %v6936
    %v7194 = vmul.f32 %v6937, %v6937
    %v7195 = vmul.f32 %v6938, %v6938
    %v7196 = vmul.f32 %v6939, %v6939
    %v7197 = vmul.f32 %v6940, %v6940
    %v7198 = vmul.f32 %v6941, %v6941
    %v7199 = vmul.f32 %v6942, %v6942
    %v7200 = vmul.f32 %v6943, %v6943
    %v7201 = vmul.f32 %v6944, %v6944
    %v7202 = vmul.f32 %v6945, %v6945
    %v7203 = vmul.f32 %v6946, %v6946
    %v7204 = vmul.f32 %v6947, %v6947
    %v7205 = vmul.f32 %v6948, %v6948
    %v7206 = vmul.f32 %v6949, %v6949
    %v7207 = vmul.f32 %v6950, %v6950
    %v7208 = vmul.f32 %v6951, %v6951
    %v7209 = vmul.f32 %v6952, %v6952
    %v7210 = vmul.f32 %v6953, %v6953
    %v7211 = vmul.f32 %v6954, %v6954
    %v7212 = vmul.f32 %v6955, %v6955
    %v7213 = vmul.f32 %v6956, %v6956
    %v7214 = vmul.f32 %v6957, %v6957
    %v7215 = vmul.f32 %v6958, %v6958
    %v7216 = vmul.f32 %v6959, %v6959
    %v7217 = vmul.f32 %v6960, %v6960
    %v7218 = vmul.f32 %v6961, %v6961
    %v7219 = vmul.f32 %v6962, %v6962
    %v7220 = vmul.f32 %v6963, %v6963
    %v7221 = vmul.f32 %v6964, %v6964
    %v7222 = vmul.f32 %v6965, %v6965
    %v7223 = vmul.f32 %v6966, %v6966
    %v7224 = vmul.f32 %v6967, %v6967
    %v7225 = vmul.f32 %v6968, %v6968
    %v7226 = vmul.f32 %v6969, %v6969
    %v7227 = vmul.f32 %v6970, %v6970
    %v7228 = vmul.f32 %v6971, %v6971
    %v7229 = vmul.f32 %v6972, %v6972
    %v7230 = vmul.f32 %v6973, %v6973
    %v7231 = vmul.f32 %v6974, %v6974
    %v7232 = vmul.f32 %v6975, %v6975
    %v7233 = vmul.f32 %v6976, %v6976
    %v7234 = vmul.f32 %v6977, %v6977
    %v7235 = vmul.f32 %v6978, %v6978
    %v7236 = vmul.f32 %v6979, %v6979
    %v7237 = vmul.f32 %v6980, %v6980
    %v7238 = vmul.f32 %v6981, %v6981
    %v7239 = vmul.f32 %v6982, %v6982
    %v7240 = vmul.f32 %v6983, %v6983
    %v7241 = vmul.f32 %v6984, %v6984
    %v7242 = vmul.f32 %v6985, %v6985
    %v7243 = vmul.f32 %v6986, %v6986
    %v7244 = vmul.f32 %v6987, %v6987
    %v7245 = vmul.f32 %v6988, %v6988
    %v7246 = vmul.f32 %v6989, %v6989
    %v7247 = vmul.f32 %v6990, %v6990
    %v7248 = vmul.f32 %v6991, %v6991
    %v7249 = vmul.f32 %v6992, %v6992
    %v7250 = vmul.f32 %v6993, %v6993
    %v7251 = vmul.f32 %v6994, %v6994
    %v7252 = vmul.f32 %v6995, %v6995
    %v7253 = vmul.f32 %v6996, %v6996
    %v7254 = vmul.f32 %v6997, %v6997
    %v7255 = vmul.f32 %v6998, %v6998
    %v7256 = vmul.f32 %v6999, %v6999
    %v7257 = vmul.f32 %v7000, %v7000
    %v7258 = vmul.f32 %v7001, %v7001
    %v7259 = vmul.f32 %v7002, %v7002
    %v7260 = vmul.f32 %v7003, %v7003
    %v7261 = vmul.f32 %v7004, %v7004
    %v7262 = vmul.f32 %v7005, %v7005
    %v7263 = vmul.f32 %v7006, %v7006
    %v7264 = vmul.f32 %v7007, %v7007
    %v7265 = vmul.f32 %v7008, %v7008
    %v7266 = vmul.f32 %v7009, %v7009
    %v7267 = vmul.f32 %v7010, %v7010
    %v7268 = vmul.f32 %v7011, %v7011
    %v7269 = vmul.f32 %v7012, %v7012
    %v7270 = vmul.f32 %v7013, %v7013
    %v7271 = vmul.f32 %v7014, %v7014
    %v7272 = vmul.f32 %v7015, %v7015
    %v7273 = vmul.f32 %v7016, %v7016
    %v7274 = vmul.f32 %v7017, %v7017
    %v7275 = vmul.f32 %v7018, %v7018
    %v7276 = vmul.f32 %v7019, %v7019
    %v7277 = vmul.f32 %v7020, %v7020
    %v7278 = vmul.f32 %v7021, %v7021
    %v7279 = vmul.f32 %v7022, %v7022
    %v7280 = vmul.f32 %v7023, %v7023
    %v7281 = vmul.f32 %v7024, %v7024
    %v7282 = vmul.f32 %v7025, %v7025
    %v7283 = vmul.f32 %v7026, %v7026
    %v7284 = vmul.f32 %v7027, %v7027
    %v7285 = vmul.f32 %v7028, %v7028
    %v7286 = vmul.f32 %v7029, %v7029
    %v7287 = vmul.f32 %v7030, %v7030
    %v7288 = vmul.f32 %v7031, %v7031
    %v7289 = vmul.f32 %v7032, %v7032
    %v7290 = vmul.f32 %v7033, %v7033
    %v7291 = vmul.f32 %v7034, %v7034
    %v7292 = vmul.f32 %v7035, %v7035
    %v7293 = vmul.f32 %v7036, %v7036
    %v7294 = vmul.f32 %v7037, %v7037
    %v7295 = vmul.f32 %v7038, %v7038
    %v7296 = vmul.f32 %v7039, %v7039
    %v7297 = vmul.f32 %v7040, %v7040
    %v7298 = vmul.f32 %v7041, %v7041
    %v7299 = vmul.f32 %v7042, %v7042
    %v7300 = vmul.f32 %v7043, %v7043
    %v7301 = vmul.f32 %v7044, %v7044
    %v7302 = vmul.f32 %v7045, %v7045
    %v7303 = vmul.f32 %v7046, %v7046
    %v7304 = vmul.f32 %v7047, %v7047
    %v7305 = vmul.f32 %v7048, %v7048
    %v7306 = vmul.f32 %v7049, %v7049
    %v7307 = vmul.f32 %v7050, %v7050
    %v7308 = vmul.f32 %v7051, %v7051
    %v7309 = vmul.f32 %v7052, %v7052
    %v7310 = vmul.f32 %v7053, %v7053
    %v7311 = vmul.f32 %v7054, %v7054
    %v7312 = vmul.f32 %v7055, %v7055
    %v7313 = vmul.f32 %v7056, %v7056
    %v7314 = vmul.f32 %v7057, %v7057
    %v7315 = vmul.f32 %v7058, %v7058
    %v7316 = vmul.f32 %v7059, %v7059
    %v7317 = vmul.f32 %v7060, %v7060
    %v7318 = vmul.f32 %v7061, %v7061
    %v7319 = vmul.f32 %v7062, %v7062
    %v7320 = vmul.f32 %v7063, %v7063
    %v7321 = vmul.f32 %v7064, %v7064
    %v7322 = vmul.f32 %v7065, %v7065
    %v7323 = vmul.f32 %v7066, %v7066
    %v7324 = vmul.f32 %v7067, %v7067
    %v7325 = vmul.f32 %v7068, %v7068
    %v7326 = vmul.f32 %v7069, %v7069
    %v7327 = vmul.f32 %v7070, %v7070
    %v7328 = vmul.f32 %v7071, %v7071
    %v7329 = vmul.f32 %v7072, %v7072
    %v7330 = vmul.f32 %v7073, %v7073
    %v7331 = vmul.f32 %v7074, %v7074
    %v7332 = vmul.f32 %v7075, %v7075
    %v7333 = vmul.f32 %v7076, %v7076
    %v7334 = vmul.f32 %v7077, %v7077
    %v7335 = vmul.f32 %v7078, %v7078
    %v7336 = vmul.f32 %v7079, %v7079
    %v7337 = vmul.f32 %v7080, %v7080
    %v7338 = vmul.f32 %v7081, %v7081
    %v7339 = vmul.f32 %v7082, %v7082
    %v7340 = vmul.f32 %v7083, %v7083
    %v7341 = vmul.f32 %v7084, %v7084
    %v7342 = vmul.f32 %v7085, %v7085
    %v7343 = vmul.f32 %v7086, %v7086
    %v7344 = vmul.f32 %v7087, %v7087
    %v7345 = vmul.f32 %v7088, %v7088
    %v7346 = vmul.f32 %v7089, %v7089
    %v7347 = vmul.f32 %v7090, %v7090
    %v7348 = vmul.f32 %v7091, %v7091
    %v7349 = vmul.f32 %v7092, %v7092
    %v7350 = vmul.f32 %v7093, %v7093
    %v7351 = vmul.f32 %v7094, %v7094
    %v7352 = vmul.f32 %v7095, %v7095
    %v7353 = vmul.f32 %v7096, %v7096
    %v7354 = vmul.f32 %v7097, %v7097
    %v7355 = vmul.f32 %v7098, %v7098
    %v7356 = vmul.f32 %v7099, %v7099
    %v7357 = vmul.f32 %v7100, %v7100
    %v7358 = vmul.f32 %v7101, %v7101
    %v7359 = vmul.f32 %v7102, %v7102
    %v7360 = vmul.f32 %v7103, %v7103
    %v7361 = vmul.f32 %v7104, %v7104
    %v7362 = vsel %vm304, %v7106, 0.0
    %v7363 = vsel %vm304, %v7107, 0.0
    %v7364 = vadd.f32 %v7362, %v7363
    %v7365 = vsel %vm304, %v7108, 0.0
    %v7366 = vadd.f32 %v7364, %v7365
    %v7367 = vsel %vm304, %v7109, 0.0
    %v7368 = vadd.f32 %v7366, %v7367
    %v7369 = vsel %vm304, %v7110, 0.0
    %v7370 = vadd.f32 %v7368, %v7369
    %v7371 = vsel %vm304, %v7111, 0.0
    %v7372 = vadd.f32 %v7370, %v7371
    %v7373 = vsel %vm304, %v7112, 0.0
    %v7374 = vadd.f32 %v7372, %v7373
    %v7375 = vsel %vm304, %v7113, 0.0
    %v7376 = vadd.f32 %v7374, %v7375
    %v7377 = vsel %vm304, %v7114, 0.0
    %v7378 = vadd.f32 %v7376, %v7377
    %v7379 = vsel %vm304, %v7115, 0.0
    %v7380 = vadd.f32 %v7378, %v7379
    %v7381 = vsel %vm304, %v7116, 0.0
    %v7382 = vadd.f32 %v7380, %v7381
    %v7383 = vsel %vm304, %v7117, 0.0
    %v7384 = vadd.f32 %v7382, %v7383
    %v7385 = vsel %vm304, %v7118, 0.0
    %v7386 = vadd.f32 %v7384, %v7385
    %v7387 = vsel %vm304, %v7119, 0.0
    %v7388 = vadd.f32 %v7386, %v7387
    %v7389 = vsel %vm304, %v7120, 0.0
    %v7390 = vadd.f32 %v7388, %v7389
    %v7391 = vsel %vm304, %v7121, 0.0
    %v7392 = vadd.f32 %v7390, %v7391
    %v7393 = vsel %vm304, %v7122, 0.0
    %v7394 = vadd.f32 %v7392, %v7393
    %v7395 = vsel %vm304, %v7123, 0.0
    %v7396 = vadd.f32 %v7394, %v7395
    %v7397 = vsel %vm304, %v7124, 0.0
    %v7398 = vadd.f32 %v7396, %v7397
    %v7399 = vsel %vm304, %v7125, 0.0
    %v7400 = vadd.f32 %v7398, %v7399
    %v7401 = vsel %vm304, %v7126, 0.0
    %v7402 = vadd.f32 %v7400, %v7401
    %v7403 = vsel %vm304, %v7127, 0.0
    %v7404 = vadd.f32 %v7402, %v7403
    %v7405 = vsel %vm304, %v7128, 0.0
    %v7406 = vadd.f32 %v7404, %v7405
    %v7407 = vsel %vm304, %v7129, 0.0
    %v7408 = vadd.f32 %v7406, %v7407
    %v7409 = vsel %vm304, %v7130, 0.0
    %v7410 = vadd.f32 %v7408, %v7409
    %v7411 = vsel %vm304, %v7131, 0.0
    %v7412 = vadd.f32 %v7410, %v7411
    %v7413 = vsel %vm304, %v7132, 0.0
    %v7414 = vadd.f32 %v7412, %v7413
    %v7415 = vsel %vm304, %v7133, 0.0
    %v7416 = vadd.f32 %v7414, %v7415
    %v7417 = vsel %vm304, %v7134, 0.0
    %v7418 = vadd.f32 %v7416, %v7417
    %v7419 = vsel %vm304, %v7135, 0.0
    %v7420 = vadd.f32 %v7418, %v7419
    %v7421 = vsel %vm304, %v7136, 0.0
    %v7422 = vadd.f32 %v7420, %v7421
    %v7423 = vsel %vm304, %v7137, 0.0
    %v7424 = vadd.f32 %v7422, %v7423
    %v7425 = vsel %vm304, %v7138, 0.0
    %v7426 = vadd.f32 %v7424, %v7425
    %v7427 = vsel %vm304, %v7139, 0.0
    %v7428 = vadd.f32 %v7426, %v7427
    %v7429 = vsel %vm304, %v7140, 0.0
    %v7430 = vadd.f32 %v7428, %v7429
    %v7431 = vsel %vm304, %v7141, 0.0
    %v7432 = vadd.f32 %v7430, %v7431
    %v7433 = vsel %vm304, %v7142, 0.0
    %v7434 = vadd.f32 %v7432, %v7433
    %v7435 = vsel %vm304, %v7143, 0.0
    %v7436 = vadd.f32 %v7434, %v7435
    %v7437 = vsel %vm304, %v7144, 0.0
    %v7438 = vadd.f32 %v7436, %v7437
    %v7439 = vsel %vm304, %v7145, 0.0
    %v7440 = vadd.f32 %v7438, %v7439
    %v7441 = vsel %vm304, %v7146, 0.0
    %v7442 = vadd.f32 %v7440, %v7441
    %v7443 = vsel %vm304, %v7147, 0.0
    %v7444 = vadd.f32 %v7442, %v7443
    %v7445 = vsel %vm304, %v7148, 0.0
    %v7446 = vadd.f32 %v7444, %v7445
    %v7447 = vsel %vm304, %v7149, 0.0
    %v7448 = vadd.f32 %v7446, %v7447
    %v7449 = vsel %vm304, %v7150, 0.0
    %v7450 = vadd.f32 %v7448, %v7449
    %v7451 = vsel %vm304, %v7151, 0.0
    %v7452 = vadd.f32 %v7450, %v7451
    %v7453 = vsel %vm304, %v7152, 0.0
    %v7454 = vadd.f32 %v7452, %v7453
    %v7455 = vsel %vm304, %v7153, 0.0
    %v7456 = vadd.f32 %v7454, %v7455
    %v7457 = vsel %vm304, %v7154, 0.0
    %v7458 = vadd.f32 %v7456, %v7457
    %v7459 = vsel %vm304, %v7155, 0.0
    %v7460 = vadd.f32 %v7458, %v7459
    %v7461 = vsel %vm304, %v7156, 0.0
    %v7462 = vadd.f32 %v7460, %v7461
    %v7463 = vsel %vm304, %v7157, 0.0
    %v7464 = vadd.f32 %v7462, %v7463
    %v7465 = vsel %vm304, %v7158, 0.0
    %v7466 = vadd.f32 %v7464, %v7465
    %v7467 = vsel %vm304, %v7159, 0.0
    %v7468 = vadd.f32 %v7466, %v7467
    %v7469 = vsel %vm304, %v7160, 0.0
    %v7470 = vadd.f32 %v7468, %v7469
    %v7471 = vsel %vm304, %v7161, 0.0
    %v7472 = vadd.f32 %v7470, %v7471
    %v7473 = vsel %vm304, %v7162, 0.0
    %v7474 = vadd.f32 %v7472, %v7473
    %v7475 = vsel %vm304, %v7163, 0.0
    %v7476 = vadd.f32 %v7474, %v7475
    %v7477 = vsel %vm304, %v7164, 0.0
    %v7478 = vadd.f32 %v7476, %v7477
    %v7479 = vsel %vm304, %v7165, 0.0
    %v7480 = vadd.f32 %v7478, %v7479
    %v7481 = vsel %vm304, %v7166, 0.0
    %v7482 = vadd.f32 %v7480, %v7481
    %v7483 = vsel %vm304, %v7167, 0.0
    %v7484 = vadd.f32 %v7482, %v7483
    %v7485 = vsel %vm304, %v7168, 0.0
    %v7486 = vadd.f32 %v7484, %v7485
    %v7487 = vsel %vm304, %v7169, 0.0
    %v7488 = vadd.f32 %v7486, %v7487
    %v7489 = vsel %vm304, %v7170, 0.0
    %v7490 = vadd.f32 %v7488, %v7489
    %v7491 = vsel %vm304, %v7171, 0.0
    %v7492 = vadd.f32 %v7490, %v7491
    %v7493 = vsel %vm304, %v7172, 0.0
    %v7494 = vadd.f32 %v7492, %v7493
    %v7495 = vsel %vm304, %v7173, 0.0
    %v7496 = vadd.f32 %v7494, %v7495
    %v7497 = vsel %vm304, %v7174, 0.0
    %v7498 = vadd.f32 %v7496, %v7497
    %v7499 = vsel %vm304, %v7175, 0.0
    %v7500 = vadd.f32 %v7498, %v7499
    %v7501 = vsel %vm304, %v7176, 0.0
    %v7502 = vadd.f32 %v7500, %v7501
    %v7503 = vsel %vm304, %v7177, 0.0
    %v7504 = vadd.f32 %v7502, %v7503
    %v7505 = vsel %vm304, %v7178, 0.0
    %v7506 = vadd.f32 %v7504, %v7505
    %v7507 = vsel %vm304, %v7179, 0.0
    %v7508 = vadd.f32 %v7506, %v7507
    %v7509 = vsel %vm304, %v7180, 0.0
    %v7510 = vadd.f32 %v7508, %v7509
    %v7511 = vsel %vm304, %v7181, 0.0
    %v7512 = vadd.f32 %v7510, %v7511
    %v7513 = vsel %vm304, %v7182, 0.0
    %v7514 = vadd.f32 %v7512, %v7513
    %v7515 = vsel %vm304, %v7183, 0.0
    %v7516 = vadd.f32 %v7514, %v7515
    %v7517 = vsel %vm304, %v7184, 0.0
    %v7518 = vadd.f32 %v7516, %v7517
    %v7519 = vsel %vm304, %v7185, 0.0
    %v7520 = vadd.f32 %v7518, %v7519
    %v7521 = vsel %vm304, %v7186, 0.0
    %v7522 = vadd.f32 %v7520, %v7521
    %v7523 = vsel %vm304, %v7187, 0.0
    %v7524 = vadd.f32 %v7522, %v7523
    %v7525 = vsel %vm304, %v7188, 0.0
    %v7526 = vadd.f32 %v7524, %v7525
    %v7527 = vsel %vm304, %v7189, 0.0
    %v7528 = vadd.f32 %v7526, %v7527
    %v7529 = vsel %vm304, %v7190, 0.0
    %v7530 = vadd.f32 %v7528, %v7529
    %v7531 = vsel %vm304, %v7191, 0.0
    %v7532 = vadd.f32 %v7530, %v7531
    %v7533 = vsel %vm304, %v7192, 0.0
    %v7534 = vadd.f32 %v7532, %v7533
    %v7535 = vsel %vm304, %v7193, 0.0
    %v7536 = vadd.f32 %v7534, %v7535
    %v7537 = vsel %vm304, %v7194, 0.0
    %v7538 = vadd.f32 %v7536, %v7537
    %v7539 = vsel %vm304, %v7195, 0.0
    %v7540 = vadd.f32 %v7538, %v7539
    %v7541 = vsel %vm304, %v7196, 0.0
    %v7542 = vadd.f32 %v7540, %v7541
    %v7543 = vsel %vm304, %v7197, 0.0
    %v7544 = vadd.f32 %v7542, %v7543
    %v7545 = vsel %vm304, %v7198, 0.0
    %v7546 = vadd.f32 %v7544, %v7545
    %v7547 = vsel %vm304, %v7199, 0.0
    %v7548 = vadd.f32 %v7546, %v7547
    %v7549 = vsel %vm304, %v7200, 0.0
    %v7550 = vadd.f32 %v7548, %v7549
    %v7551 = vsel %vm304, %v7201, 0.0
    %v7552 = vadd.f32 %v7550, %v7551
    %v7553 = vsel %vm304, %v7202, 0.0
    %v7554 = vadd.f32 %v7552, %v7553
    %v7555 = vsel %vm304, %v7203, 0.0
    %v7556 = vadd.f32 %v7554, %v7555
    %v7557 = vsel %vm304, %v7204, 0.0
    %v7558 = vadd.f32 %v7556, %v7557
    %v7559 = vsel %vm304, %v7205, 0.0
    %v7560 = vadd.f32 %v7558, %v7559
    %v7561 = vsel %vm304, %v7206, 0.0
    %v7562 = vadd.f32 %v7560, %v7561
    %v7563 = vsel %vm304, %v7207, 0.0
    %v7564 = vadd.f32 %v7562, %v7563
    %v7565 = vsel %vm304, %v7208, 0.0
    %v7566 = vadd.f32 %v7564, %v7565
    %v7567 = vsel %vm304, %v7209, 0.0
    %v7568 = vadd.f32 %v7566, %v7567
    %v7569 = vsel %vm304, %v7210, 0.0
    %v7570 = vadd.f32 %v7568, %v7569
    %v7571 = vsel %vm304, %v7211, 0.0
    %v7572 = vadd.f32 %v7570, %v7571
    %v7573 = vsel %vm304, %v7212, 0.0
    %v7574 = vadd.f32 %v7572, %v7573
    %v7575 = vsel %vm304, %v7213, 0.0
    %v7576 = vadd.f32 %v7574, %v7575
    %v7577 = vsel %vm304, %v7214, 0.0
    %v7578 = vadd.f32 %v7576, %v7577
    %v7579 = vsel %vm304, %v7215, 0.0
    %v7580 = vadd.f32 %v7578, %v7579
    %v7581 = vsel %vm304, %v7216, 0.0
    %v7582 = vadd.f32 %v7580, %v7581
    %v7583 = vsel %vm304, %v7217, 0.0
    %v7584 = vadd.f32 %v7582, %v7583
    %v7585 = vsel %vm304, %v7218, 0.0
    %v7586 = vadd.f32 %v7584, %v7585
    %v7587 = vsel %vm304, %v7219, 0.0
    %v7588 = vadd.f32 %v7586, %v7587
    %v7589 = vsel %vm304, %v7220, 0.0
    %v7590 = vadd.f32 %v7588, %v7589
    %v7591 = vsel %vm304, %v7221, 0.0
    %v7592 = vadd.f32 %v7590, %v7591
    %v7593 = vsel %vm304, %v7222, 0.0
    %v7594 = vadd.f32 %v7592, %v7593
    %v7595 = vsel %vm304, %v7223, 0.0
    %v7596 = vadd.f32 %v7594, %v7595
    %v7597 = vsel %vm304, %v7224, 0.0
    %v7598 = vadd.f32 %v7596, %v7597
    %v7599 = vsel %vm304, %v7225, 0.0
    %v7600 = vadd.f32 %v7598, %v7599
    %v7601 = vsel %vm304, %v7226, 0.0
    %v7602 = vadd.f32 %v7600, %v7601
    %v7603 = vsel %vm304, %v7227, 0.0
    %v7604 = vadd.f32 %v7602, %v7603
    %v7605 = vsel %vm304, %v7228, 0.0
    %v7606 = vadd.f32 %v7604, %v7605
    %v7607 = vsel %vm304, %v7229, 0.0
    %v7608 = vadd.f32 %v7606, %v7607
    %v7609 = vsel %vm304, %v7230, 0.0
    %v7610 = vadd.f32 %v7608, %v7609
    %v7611 = vsel %vm304, %v7231, 0.0
    %v7612 = vadd.f32 %v7610, %v7611
    %v7613 = vsel %vm304, %v7232, 0.0
    %v7614 = vadd.f32 %v7612, %v7613
    %v7615 = vsel %vm304, %v7233, 0.0
    %v7616 = vadd.f32 %v7614, %v7615
    %v7617 = vsel %vm304, %v7234, 0.0
    %v7618 = vadd.f32 %v7616, %v7617
    %v7619 = vsel %vm304, %v7235, 0.0
    %v7620 = vadd.f32 %v7618, %v7619
    %v7621 = vsel %vm304, %v7236, 0.0
    %v7622 = vadd.f32 %v7620, %v7621
    %v7623 = vsel %vm304, %v7237, 0.0
    %v7624 = vadd.f32 %v7622, %v7623
    %v7625 = vsel %vm304, %v7238, 0.0
    %v7626 = vadd.f32 %v7624, %v7625
    %v7627 = vsel %vm304, %v7239, 0.0
    %v7628 = vadd.f32 %v7626, %v7627
    %v7629 = vsel %vm304, %v7240, 0.0
    %v7630 = vadd.f32 %v7628, %v7629
    %v7631 = vsel %vm304, %v7241, 0.0
    %v7632 = vadd.f32 %v7630, %v7631
    %v7633 = vsel %vm304, %v7242, 0.0
    %v7634 = vadd.f32 %v7632, %v7633
    %v7635 = vsel %vm304, %v7243, 0.0
    %v7636 = vadd.f32 %v7634, %v7635
    %v7637 = vsel %vm304, %v7244, 0.0
    %v7638 = vadd.f32 %v7636, %v7637
    %v7639 = vsel %vm304, %v7245, 0.0
    %v7640 = vadd.f32 %v7638, %v7639
    %v7641 = vsel %vm304, %v7246, 0.0
    %v7642 = vadd.f32 %v7640, %v7641
    %v7643 = vsel %vm304, %v7247, 0.0
    %v7644 = vadd.f32 %v7642, %v7643
    %v7645 = vsel %vm304, %v7248, 0.0
    %v7646 = vadd.f32 %v7644, %v7645
    %v7647 = vsel %vm304, %v7249, 0.0
    %v7648 = vadd.f32 %v7646, %v7647
    %v7649 = vsel %vm304, %v7250, 0.0
    %v7650 = vadd.f32 %v7648, %v7649
    %v7651 = vsel %vm304, %v7251, 0.0
    %v7652 = vadd.f32 %v7650, %v7651
    %v7653 = vsel %vm304, %v7252, 0.0
    %v7654 = vadd.f32 %v7652, %v7653
    %v7655 = vsel %vm304, %v7253, 0.0
    %v7656 = vadd.f32 %v7654, %v7655
    %v7657 = vsel %vm304, %v7254, 0.0
    %v7658 = vadd.f32 %v7656, %v7657
    %v7659 = vsel %vm304, %v7255, 0.0
    %v7660 = vadd.f32 %v7658, %v7659
    %v7661 = vsel %vm304, %v7256, 0.0
    %v7662 = vadd.f32 %v7660, %v7661
    %v7663 = vsel %vm304, %v7257, 0.0
    %v7664 = vadd.f32 %v7662, %v7663
    %v7665 = vsel %vm304, %v7258, 0.0
    %v7666 = vadd.f32 %v7664, %v7665
    %v7667 = vsel %vm304, %v7259, 0.0
    %v7668 = vadd.f32 %v7666, %v7667
    %v7669 = vsel %vm304, %v7260, 0.0
    %v7670 = vadd.f32 %v7668, %v7669
    %v7671 = vsel %vm304, %v7261, 0.0
    %v7672 = vadd.f32 %v7670, %v7671
    %v7673 = vsel %vm304, %v7262, 0.0
    %v7674 = vadd.f32 %v7672, %v7673
    %v7675 = vsel %vm304, %v7263, 0.0
    %v7676 = vadd.f32 %v7674, %v7675
    %v7677 = vsel %vm304, %v7264, 0.0
    %v7678 = vadd.f32 %v7676, %v7677
    %v7679 = vsel %vm304, %v7265, 0.0
    %v7680 = vadd.f32 %v7678, %v7679
    %v7681 = vsel %vm304, %v7266, 0.0
    %v7682 = vadd.f32 %v7680, %v7681
    %v7683 = vsel %vm304, %v7267, 0.0
    %v7684 = vadd.f32 %v7682, %v7683
    %v7685 = vsel %vm304, %v7268, 0.0
    %v7686 = vadd.f32 %v7684, %v7685
    %v7687 = vsel %vm304, %v7269, 0.0
    %v7688 = vadd.f32 %v7686, %v7687
    %v7689 = vsel %vm304, %v7270, 0.0
    %v7690 = vadd.f32 %v7688, %v7689
    %v7691 = vsel %vm304, %v7271, 0.0
    %v7692 = vadd.f32 %v7690, %v7691
    %v7693 = vsel %vm304, %v7272, 0.0
    %v7694 = vadd.f32 %v7692, %v7693
    %v7695 = vsel %vm304, %v7273, 0.0
    %v7696 = vadd.f32 %v7694, %v7695
    %v7697 = vsel %vm304, %v7274, 0.0
    %v7698 = vadd.f32 %v7696, %v7697
    %v7699 = vsel %vm304, %v7275, 0.0
    %v7700 = vadd.f32 %v7698, %v7699
    %v7701 = vsel %vm304, %v7276, 0.0
    %v7702 = vadd.f32 %v7700, %v7701
    %v7703 = vsel %vm304, %v7277, 0.0
    %v7704 = vadd.f32 %v7702, %v7703
    %v7705 = vsel %vm304, %v7278, 0.0
    %v7706 = vadd.f32 %v7704, %v7705
    %v7707 = vsel %vm304, %v7279, 0.0
    %v7708 = vadd.f32 %v7706, %v7707
    %v7709 = vsel %vm304, %v7280, 0.0
    %v7710 = vadd.f32 %v7708, %v7709
    %v7711 = vsel %vm304, %v7281, 0.0
    %v7712 = vadd.f32 %v7710, %v7711
    %v7713 = vsel %vm304, %v7282, 0.0
    %v7714 = vadd.f32 %v7712, %v7713
    %v7715 = vsel %vm304, %v7283, 0.0
    %v7716 = vadd.f32 %v7714, %v7715
    %v7717 = vsel %vm304, %v7284, 0.0
    %v7718 = vadd.f32 %v7716, %v7717
    %v7719 = vsel %vm304, %v7285, 0.0
    %v7720 = vadd.f32 %v7718, %v7719
    %v7721 = vsel %vm304, %v7286, 0.0
    %v7722 = vadd.f32 %v7720, %v7721
    %v7723 = vsel %vm304, %v7287, 0.0
    %v7724 = vadd.f32 %v7722, %v7723
    %v7725 = vsel %vm304, %v7288, 0.0
    %v7726 = vadd.f32 %v7724, %v7725
    %v7727 = vsel %vm304, %v7289, 0.0
    %v7728 = vadd.f32 %v7726, %v7727
    %v7729 = vsel %vm304, %v7290, 0.0
    %v7730 = vadd.f32 %v7728, %v7729
    %v7731 = vsel %vm304, %v7291, 0.0
    %v7732 = vadd.f32 %v7730, %v7731
    %v7733 = vsel %vm304, %v7292, 0.0
    %v7734 = vadd.f32 %v7732, %v7733
    %v7735 = vsel %vm304, %v7293, 0.0
    %v7736 = vadd.f32 %v7734, %v7735
    %v7737 = vsel %vm304, %v7294, 0.0
    %v7738 = vadd.f32 %v7736, %v7737
    %v7739 = vsel %vm304, %v7295, 0.0
    %v7740 = vadd.f32 %v7738, %v7739
    %v7741 = vsel %vm304, %v7296, 0.0
    %v7742 = vadd.f32 %v7740, %v7741
    %v7743 = vsel %vm304, %v7297, 0.0
    %v7744 = vadd.f32 %v7742, %v7743
    %v7745 = vsel %vm304, %v7298, 0.0
    %v7746 = vadd.f32 %v7744, %v7745
    %v7747 = vsel %vm304, %v7299, 0.0
    %v7748 = vadd.f32 %v7746, %v7747
    %v7749 = vsel %vm304, %v7300, 0.0
    %v7750 = vadd.f32 %v7748, %v7749
    %v7751 = vsel %vm304, %v7301, 0.0
    %v7752 = vadd.f32 %v7750, %v7751
    %v7753 = vsel %vm304, %v7302, 0.0
    %v7754 = vadd.f32 %v7752, %v7753
    %v7755 = vsel %vm304, %v7303, 0.0
    %v7756 = vadd.f32 %v7754, %v7755
    %v7757 = vsel %vm304, %v7304, 0.0
    %v7758 = vadd.f32 %v7756, %v7757
    %v7759 = vsel %vm304, %v7305, 0.0
    %v7760 = vadd.f32 %v7758, %v7759
    %v7761 = vsel %vm304, %v7306, 0.0
    %v7762 = vadd.f32 %v7760, %v7761
    %v7763 = vsel %vm304, %v7307, 0.0
    %v7764 = vadd.f32 %v7762, %v7763
    %v7765 = vsel %vm304, %v7308, 0.0
    %v7766 = vadd.f32 %v7764, %v7765
    %v7767 = vsel %vm304, %v7309, 0.0
    %v7768 = vadd.f32 %v7766, %v7767
    %v7769 = vsel %vm304, %v7310, 0.0
    %v7770 = vadd.f32 %v7768, %v7769
    %v7771 = vsel %vm304, %v7311, 0.0
    %v7772 = vadd.f32 %v7770, %v7771
    %v7773 = vsel %vm304, %v7312, 0.0
    %v7774 = vadd.f32 %v7772, %v7773
    %v7775 = vsel %vm304, %v7313, 0.0
    %v7776 = vadd.f32 %v7774, %v7775
    %v7777 = vsel %vm304, %v7314, 0.0
    %v7778 = vadd.f32 %v7776, %v7777
    %v7779 = vsel %vm304, %v7315, 0.0
    %v7780 = vadd.f32 %v7778, %v7779
    %v7781 = vsel %vm304, %v7316, 0.0
    %v7782 = vadd.f32 %v7780, %v7781
    %v7783 = vsel %vm304, %v7317, 0.0
    %v7784 = vadd.f32 %v7782, %v7783
    %v7785 = vsel %vm304, %v7318, 0.0
    %v7786 = vadd.f32 %v7784, %v7785
    %v7787 = vsel %vm304, %v7319, 0.0
    %v7788 = vadd.f32 %v7786, %v7787
    %v7789 = vsel %vm304, %v7320, 0.0
    %v7790 = vadd.f32 %v7788, %v7789
    %v7791 = vsel %vm304, %v7321, 0.0
    %v7792 = vadd.f32 %v7790, %v7791
    %v7793 = vsel %vm304, %v7322, 0.0
    %v7794 = vadd.f32 %v7792, %v7793
    %v7795 = vsel %vm304, %v7323, 0.0
    %v7796 = vadd.f32 %v7794, %v7795
    %v7797 = vsel %vm304, %v7324, 0.0
    %v7798 = vadd.f32 %v7796, %v7797
    %v7799 = vsel %vm304, %v7325, 0.0
    %v7800 = vadd.f32 %v7798, %v7799
    %v7801 = vsel %vm304, %v7326, 0.0
    %v7802 = vadd.f32 %v7800, %v7801
    %v7803 = vsel %vm304, %v7327, 0.0
    %v7804 = vadd.f32 %v7802, %v7803
    %v7805 = vsel %vm304, %v7328, 0.0
    %v7806 = vadd.f32 %v7804, %v7805
    %v7807 = vsel %vm304, %v7329, 0.0
    %v7808 = vadd.f32 %v7806, %v7807
    %v7809 = vsel %vm304, %v7330, 0.0
    %v7810 = vadd.f32 %v7808, %v7809
    %v7811 = vsel %vm304, %v7331, 0.0
    %v7812 = vadd.f32 %v7810, %v7811
    %v7813 = vsel %vm304, %v7332, 0.0
    %v7814 = vadd.f32 %v7812, %v7813
    %v7815 = vsel %vm304, %v7333, 0.0
    %v7816 = vadd.f32 %v7814, %v7815
    %v7817 = vsel %vm304, %v7334, 0.0
    %v7818 = vadd.f32 %v7816, %v7817
    %v7819 = vsel %vm304, %v7335, 0.0
    %v7820 = vadd.f32 %v7818, %v7819
    %v7821 = vsel %vm304, %v7336, 0.0
    %v7822 = vadd.f32 %v7820, %v7821
    %v7823 = vsel %vm304, %v7337, 0.0
    %v7824 = vadd.f32 %v7822, %v7823
    %v7825 = vsel %vm304, %v7338, 0.0
    %v7826 = vadd.f32 %v7824, %v7825
    %v7827 = vsel %vm304, %v7339, 0.0
    %v7828 = vadd.f32 %v7826, %v7827
    %v7829 = vsel %vm304, %v7340, 0.0
    %v7830 = vadd.f32 %v7828, %v7829
    %v7831 = vsel %vm304, %v7341, 0.0
    %v7832 = vadd.f32 %v7830, %v7831
    %v7833 = vsel %vm304, %v7342, 0.0
    %v7834 = vadd.f32 %v7832, %v7833
    %v7835 = vsel %vm304, %v7343, 0.0
    %v7836 = vadd.f32 %v7834, %v7835
    %v7837 = vsel %vm304, %v7344, 0.0
    %v7838 = vadd.f32 %v7836, %v7837
    %v7839 = vsel %vm304, %v7345, 0.0
    %v7840 = vadd.f32 %v7838, %v7839
    %v7841 = vsel %vm304, %v7346, 0.0
    %v7842 = vadd.f32 %v7840, %v7841
    %v7843 = vsel %vm304, %v7347, 0.0
    %v7844 = vadd.f32 %v7842, %v7843
    %v7845 = vsel %vm304, %v7348, 0.0
    %v7846 = vadd.f32 %v7844, %v7845
    %v7847 = vsel %vm304, %v7349, 0.0
    %v7848 = vadd.f32 %v7846, %v7847
    %v7849 = vsel %vm304, %v7350, 0.0
    %v7850 = vadd.f32 %v7848, %v7849
    %v7851 = vsel %vm304, %v7351, 0.0
    %v7852 = vadd.f32 %v7850, %v7851
    %v7853 = vsel %vm304, %v7352, 0.0
    %v7854 = vadd.f32 %v7852, %v7853
    %v7855 = vsel %vm304, %v7353, 0.0
    %v7856 = vadd.f32 %v7854, %v7855
    %v7857 = vsel %vm304, %v7354, 0.0
    %v7858 = vadd.f32 %v7856, %v7857
    %v7859 = vsel %vm304, %v7355, 0.0
    %v7860 = vadd.f32 %v7858, %v7859
    %v7861 = vsel %vm304, %v7356, 0.0
    %v7862 = vadd.f32 %v7860, %v7861
    %v7863 = vsel %vm304, %v7357, 0.0
    %v7864 = vadd.f32 %v7862, %v7863
    %v7865 = vsel %vm304, %v7358, 0.0
    %v7866 = vadd.f32 %v7864, %v7865
    %v7867 = vsel %vm304, %v7359, 0.0
    %v7868 = vadd.f32 %v7866, %v7867
    %v7869 = vsel %vm304, %v7360, 0.0
    %v7870 = vadd.f32 %v7868, %v7869
    %v7871 = vsel %vm304, %v7361, 0.0
    %v7872 = vadd.f32 %v7870, %v7871
    %7873 = vadd.xlane.f32.xlu0 %v7872
    %v7874 = vpop.xlane.xlu0 %7873
    %v7875 = vrot.slane %v7874, 4
    %v7876 = vadd.f32 %v7874, %v7875
    %v7877 = vrot.slane %v7876, 2
    %v7878 = vadd.f32 %v7876, %v7877
    %v7879 = vrot.slane %v7878, 1
    %v7880 = vadd.f32 %v7878, %v7879
    %s7881 = vtos %v7880
    %v7882 = vstv %s7881
    %v7883 = vadd.f32 %v7105, %v7882
    %vm7884 = vcmask 0
    %7885 = vst.msk [vmem:[#allocation2] sm:$0x1] %vm7884, %v7883
    %7886 = vxpose.xlu0.b32.start [1/16] %v305, 128
    %7887 = vxpose.xlu0.b32.cont [2/16] %v306, 128
    %7888 = vxpose.xlu0.b32.cont [3/16] %v307, 128
    %7889 = vxpose.xlu0.b32.cont [4/16] %v308, 128
    %7890 = vxpose.xlu0.b32.cont [5/16] %v309, 128
    %7891 = vxpose.xlu0.b32.cont [6/16] %v310, 128
    %7892 = vxpose.xlu0.b32.cont [7/16] %v311, 128
    %7893 = vxpose.xlu0.b32.cont [8/16] %v312, 128
    %7894 = vxpose.xlu0.b32.cont [9/16] %v313, 128
    %7895 = vxpose.xlu0.b32.cont [10/16] %v314, 128
    %7896 = vxpose.xlu0.b32.cont [11/16] %v315, 128
    %7897 = vxpose.xlu0.b32.cont [12/16] %v316, 128
    %7898 = vxpose.xlu0.b32.cont [13/16] %v317, 128
    %7899 = vxpose.xlu0.b32.cont [14/16] %v318, 128
    %7900 = vxpose.xlu0.b32.cont [15/16] %v319, 128
    %7901 = vxpose.xlu0.b32.end [16/16] %v320, 128
    %v7902 = vpop.trf.xlu0
    %v7903 = vpop.trf.xlu0
    %v7904 = vpop.trf.xlu0
    %v7905 = vpop.trf.xlu0
    %v7906 = vpop.trf.xlu0
    %v7907 = vpop.trf.xlu0
    %v7908 = vpop.trf.xlu0
    %v7909 = vpop.trf.xlu0
    %v7910 = vpop.trf.xlu0
    %v7911 = vpop.trf.xlu0
    %v7912 = vpop.trf.xlu0
    %v7913 = vpop.trf.xlu0
    %v7914 = vpop.trf.xlu0
    %v7915 = vpop.trf.xlu0
    %v7916 = vpop.trf.xlu0
    %v7917 = vpop.trf.xlu0
    %7918 = vxpose.xlu0.b32.start [1/16] %v321, 128
    %7919 = vxpose.xlu0.b32.cont [2/16] %v322, 128
    %7920 = vxpose.xlu0.b32.cont [3/16] %v323, 128
    %7921 = vxpose.xlu0.b32.cont [4/16] %v324, 128
    %7922 = vxpose.xlu0.b32.cont [5/16] %v325, 128
    %7923 = vxpose.xlu0.b32.cont [6/16] %v326, 128
    %7924 = vxpose.xlu0.b32.cont [7/16] %v327, 128
    %7925 = vxpose.xlu0.b32.cont [8/16] %v328, 128
    %7926 = vxpose.xlu0.b32.cont [9/16] %v329, 128
    %7927 = vxpose.xlu0.b32.cont [10/16] %v330, 128
    %7928 = vxpose.xlu0.b32.cont [11/16] %v331, 128
    %7929 = vxpose.xlu0.b32.cont [12/16] %v332, 128
    %7930 = vxpose.xlu0.b32.cont [13/16] %v333, 128
    %7931 = vxpose.xlu0.b32.cont [14/16] %v334, 128
    %7932 = vxpose.xlu0.b32.cont [15/16] %v335, 128
    %7933 = vxpose.xlu0.b32.end [16/16] %v336, 128
    %v7934 = vpop.trf.xlu0
    %v7935 = vpop.trf.xlu0
    %v7936 = vpop.trf.xlu0
    %v7937 = vpop.trf.xlu0
    %v7938 = vpop.trf.xlu0
    %v7939 = vpop.trf.xlu0
    %v7940 = vpop.trf.xlu0
    %v7941 = vpop.trf.xlu0
    %v7942 = vpop.trf.xlu0
    %v7943 = vpop.trf.xlu0
    %v7944 = vpop.trf.xlu0
    %v7945 = vpop.trf.xlu0
    %v7946 = vpop.trf.xlu0
    %v7947 = vpop.trf.xlu0
    %v7948 = vpop.trf.xlu0
    %v7949 = vpop.trf.xlu0
    %7950 = vxpose.xlu0.b32.start [1/16] %v337, 128
    %7951 = vxpose.xlu0.b32.cont [2/16] %v338, 128
    %7952 = vxpose.xlu0.b32.cont [3/16] %v339, 128
    %7953 = vxpose.xlu0.b32.cont [4/16] %v340, 128
    %7954 = vxpose.xlu0.b32.cont [5/16] %v341, 128
    %7955 = vxpose.xlu0.b32.cont [6/16] %v342, 128
    %7956 = vxpose.xlu0.b32.cont [7/16] %v343, 128
    %7957 = vxpose.xlu0.b32.cont [8/16] %v344, 128
    %7958 = vxpose.xlu0.b32.cont [9/16] %v345, 128
    %7959 = vxpose.xlu0.b32.cont [10/16] %v346, 128
    %7960 = vxpose.xlu0.b32.cont [11/16] %v347, 128
    %7961 = vxpose.xlu0.b32.cont [12/16] %v348, 128
    %7962 = vxpose.xlu0.b32.cont [13/16] %v349, 128
    %7963 = vxpose.xlu0.b32.cont [14/16] %v350, 128
    %7964 = vxpose.xlu0.b32.cont [15/16] %v351, 128
    %7965 = vxpose.xlu0.b32.end [16/16] %v352, 128
    %v7966 = vpop.trf.xlu0
    %v7967 = vpop.trf.xlu0
    %v7968 = vpop.trf.xlu0
    %v7969 = vpop.trf.xlu0
    %v7970 = vpop.trf.xlu0
    %v7971 = vpop.trf.xlu0
    %v7972 = vpop.trf.xlu0
    %v7973 = vpop.trf.xlu0
    %v7974 = vpop.trf.xlu0
    %v7975 = vpop.trf.xlu0
    %v7976 = vpop.trf.xlu0
    %v7977 = vpop.trf.xlu0
    %v7978 = vpop.trf.xlu0
    %v7979 = vpop.trf.xlu0
    %v7980 = vpop.trf.xlu0
    %v7981 = vpop.trf.xlu0
    %7982 = vxpose.xlu0.b32.start [1/16] %v353, 128
    %7983 = vxpose.xlu0.b32.cont [2/16] %v354, 128
    %7984 = vxpose.xlu0.b32.cont [3/16] %v355, 128
    %7985 = vxpose.xlu0.b32.cont [4/16] %v356, 128
    %7986 = vxpose.xlu0.b32.cont [5/16] %v357, 128
    %7987 = vxpose.xlu0.b32.cont [6/16] %v358, 128
    %7988 = vxpose.xlu0.b32.cont [7/16] %v359, 128
    %7989 = vxpose.xlu0.b32.cont [8/16] %v360, 128
    %7990 = vxpose.xlu0.b32.cont [9/16] %v361, 128
    %7991 = vxpose.xlu0.b32.cont [10/16] %v362, 128
    %7992 = vxpose.xlu0.b32.cont [11/16] %v363, 128
    %7993 = vxpose.xlu0.b32.cont [12/16] %v364, 128
    %7994 = vxpose.xlu0.b32.cont [13/16] %v365, 128
    %7995 = vxpose.xlu0.b32.cont [14/16] %v366, 128
    %7996 = vxpose.xlu0.b32.cont [15/16] %v367, 128
    %7997 = vxpose.xlu0.b32.end [16/16] %v368, 128
    %v7998 = vpop.trf.xlu0
    %v7999 = vpop.trf.xlu0
    %v8000 = vpop.trf.xlu0
    %v8001 = vpop.trf.xlu0
    %v8002 = vpop.trf.xlu0
    %v8003 = vpop.trf.xlu0
    %v8004 = vpop.trf.xlu0
    %v8005 = vpop.trf.xlu0
    %v8006 = vpop.trf.xlu0
    %v8007 = vpop.trf.xlu0
    %v8008 = vpop.trf.xlu0
    %v8009 = vpop.trf.xlu0
    %v8010 = vpop.trf.xlu0
    %v8011 = vpop.trf.xlu0
    %v8012 = vpop.trf.xlu0
    %v8013 = vpop.trf.xlu0
    %8014 = vxpose.xlu0.b32.start [1/16] %v369, 128
    %8015 = vxpose.xlu0.b32.cont [2/16] %v370, 128
    %8016 = vxpose.xlu0.b32.cont [3/16] %v371, 128
    %8017 = vxpose.xlu0.b32.cont [4/16] %v372, 128
    %8018 = vxpose.xlu0.b32.cont [5/16] %v373, 128
    %8019 = vxpose.xlu0.b32.cont [6/16] %v374, 128
    %8020 = vxpose.xlu0.b32.cont [7/16] %v375, 128
    %8021 = vxpose.xlu0.b32.cont [8/16] %v376, 128
    %8022 = vxpose.xlu0.b32.cont [9/16] %v377, 128
    %8023 = vxpose.xlu0.b32.cont [10/16] %v378, 128
    %8024 = vxpose.xlu0.b32.cont [11/16] %v379, 128
    %8025 = vxpose.xlu0.b32.cont [12/16] %v380, 128
    %8026 = vxpose.xlu0.b32.cont [13/16] %v381, 128
    %8027 = vxpose.xlu0.b32.cont [14/16] %v382, 128
    %8028 = vxpose.xlu0.b32.cont [15/16] %v383, 128
    %8029 = vxpose.xlu0.b32.end [16/16] %v384, 128
    %v8030 = vpop.trf.xlu0
    %v8031 = vpop.trf.xlu0
    %v8032 = vpop.trf.xlu0
    %v8033 = vpop.trf.xlu0
    %v8034 = vpop.trf.xlu0
    %v8035 = vpop.trf.xlu0
    %v8036 = vpop.trf.xlu0
    %v8037 = vpop.trf.xlu0
    %v8038 = vpop.trf.xlu0
    %v8039 = vpop.trf.xlu0
    %v8040 = vpop.trf.xlu0
    %v8041 = vpop.trf.xlu0
    %v8042 = vpop.trf.xlu0
    %v8043 = vpop.trf.xlu0
    %v8044 = vpop.trf.xlu0
    %v8045 = vpop.trf.xlu0
    %8046 = vxpose.xlu0.b32.start [1/16] %v385, 128
    %8047 = vxpose.xlu0.b32.cont [2/16] %v386, 128
    %8048 = vxpose.xlu0.b32.cont [3/16] %v387, 128
    %8049 = vxpose.xlu0.b32.cont [4/16] %v388, 128
    %8050 = vxpose.xlu0.b32.cont [5/16] %v389, 128
    %8051 = vxpose.xlu0.b32.cont [6/16] %v390, 128
    %8052 = vxpose.xlu0.b32.cont [7/16] %v391, 128
    %8053 = vxpose.xlu0.b32.cont [8/16] %v392, 128
    %8054 = vxpose.xlu0.b32.cont [9/16] %v393, 128
    %8055 = vxpose.xlu0.b32.cont [10/16] %v394, 128
    %8056 = vxpose.xlu0.b32.cont [11/16] %v395, 128
    %8057 = vxpose.xlu0.b32.cont [12/16] %v396, 128
    %8058 = vxpose.xlu0.b32.cont [13/16] %v397, 128
    %8059 = vxpose.xlu0.b32.cont [14/16] %v398, 128
    %8060 = vxpose.xlu0.b32.cont [15/16] %v399, 128
    %8061 = vxpose.xlu0.b32.end [16/16] %v400, 128
    %v8062 = vpop.trf.xlu0
    %v8063 = vpop.trf.xlu0
    %v8064 = vpop.trf.xlu0
    %v8065 = vpop.trf.xlu0
    %v8066 = vpop.trf.xlu0
    %v8067 = vpop.trf.xlu0
    %v8068 = vpop.trf.xlu0
    %v8069 = vpop.trf.xlu0
    %v8070 = vpop.trf.xlu0
    %v8071 = vpop.trf.xlu0
    %v8072 = vpop.trf.xlu0
    %v8073 = vpop.trf.xlu0
    %v8074 = vpop.trf.xlu0
    %v8075 = vpop.trf.xlu0
    %v8076 = vpop.trf.xlu0
    %v8077 = vpop.trf.xlu0
    %8078 = vxpose.xlu0.b32.start [1/16] %v401, 128
    %8079 = vxpose.xlu0.b32.cont [2/16] %v402, 128
    %8080 = vxpose.xlu0.b32.cont [3/16] %v403, 128
    %8081 = vxpose.xlu0.b32.cont [4/16] %v404, 128
    %8082 = vxpose.xlu0.b32.cont [5/16] %v405, 128
    %8083 = vxpose.xlu0.b32.cont [6/16] %v406, 128
    %8084 = vxpose.xlu0.b32.cont [7/16] %v407, 128
    %8085 = vxpose.xlu0.b32.cont [8/16] %v408, 128
    %8086 = vxpose.xlu0.b32.cont [9/16] %v409, 128
    %8087 = vxpose.xlu0.b32.cont [10/16] %v410, 128
    %8088 = vxpose.xlu0.b32.cont [11/16] %v411, 128
    %8089 = vxpose.xlu0.b32.cont [12/16] %v412, 128
    %8090 = vxpose.xlu0.b32.cont [13/16] %v413, 128
    %8091 = vxpose.xlu0.b32.cont [14/16] %v414, 128
    %8092 = vxpose.xlu0.b32.cont [15/16] %v415, 128
    %8093 = vxpose.xlu0.b32.end [16/16] %v416, 128
    %v8094 = vpop.trf.xlu0
    %v8095 = vpop.trf.xlu0
    %v8096 = vpop.trf.xlu0
    %v8097 = vpop.trf.xlu0
    %v8098 = vpop.trf.xlu0
    %v8099 = vpop.trf.xlu0
    %v8100 = vpop.trf.xlu0
    %v8101 = vpop.trf.xlu0
    %v8102 = vpop.trf.xlu0
    %v8103 = vpop.trf.xlu0
    %v8104 = vpop.trf.xlu0
    %v8105 = vpop.trf.xlu0
    %v8106 = vpop.trf.xlu0
    %v8107 = vpop.trf.xlu0
    %v8108 = vpop.trf.xlu0
    %v8109 = vpop.trf.xlu0
    %8110 = vxpose.xlu0.b32.start [1/16] %v417, 128
    %8111 = vxpose.xlu0.b32.cont [2/16] %v418, 128
    %8112 = vxpose.xlu0.b32.cont [3/16] %v419, 128
    %8113 = vxpose.xlu0.b32.cont [4/16] %v420, 128
    %8114 = vxpose.xlu0.b32.cont [5/16] %v421, 128
    %8115 = vxpose.xlu0.b32.cont [6/16] %v422, 128
    %8116 = vxpose.xlu0.b32.cont [7/16] %v423, 128
    %8117 = vxpose.xlu0.b32.cont [8/16] %v424, 128
    %8118 = vxpose.xlu0.b32.cont [9/16] %v425, 128
    %8119 = vxpose.xlu0.b32.cont [10/16] %v426, 128
    %8120 = vxpose.xlu0.b32.cont [11/16] %v427, 128
    %8121 = vxpose.xlu0.b32.cont [12/16] %v428, 128
    %8122 = vxpose.xlu0.b32.cont [13/16] %v429, 128
    %8123 = vxpose.xlu0.b32.cont [14/16] %v430, 128
    %8124 = vxpose.xlu0.b32.cont [15/16] %v431, 128
    %8125 = vxpose.xlu0.b32.end [16/16] %v432, 128
    %v8126 = vpop.trf.xlu0
    %v8127 = vpop.trf.xlu0
    %v8128 = vpop.trf.xlu0
    %v8129 = vpop.trf.xlu0
    %v8130 = vpop.trf.xlu0
    %v8131 = vpop.trf.xlu0
    %v8132 = vpop.trf.xlu0
    %v8133 = vpop.trf.xlu0
    %v8134 = vpop.trf.xlu0
    %v8135 = vpop.trf.xlu0
    %v8136 = vpop.trf.xlu0
    %v8137 = vpop.trf.xlu0
    %v8138 = vpop.trf.xlu0
    %v8139 = vpop.trf.xlu0
    %v8140 = vpop.trf.xlu0
    %v8141 = vpop.trf.xlu0
    %8142 = vxpose.xlu0.b32.start [1/16] %v433, 128
    %8143 = vxpose.xlu0.b32.cont [2/16] %v434, 128
    %8144 = vxpose.xlu0.b32.cont [3/16] %v435, 128
    %8145 = vxpose.xlu0.b32.cont [4/16] %v436, 128
    %8146 = vxpose.xlu0.b32.cont [5/16] %v437, 128
    %8147 = vxpose.xlu0.b32.cont [6/16] %v438, 128
    %8148 = vxpose.xlu0.b32.cont [7/16] %v439, 128
    %8149 = vxpose.xlu0.b32.cont [8/16] %v440, 128
    %8150 = vxpose.xlu0.b32.cont [9/16] %v441, 128
    %8151 = vxpose.xlu0.b32.cont [10/16] %v442, 128
    %8152 = vxpose.xlu0.b32.cont [11/16] %v443, 128
    %8153 = vxpose.xlu0.b32.cont [12/16] %v444, 128
    %8154 = vxpose.xlu0.b32.cont [13/16] %v445, 128
    %8155 = vxpose.xlu0.b32.cont [14/16] %v446, 128
    %8156 = vxpose.xlu0.b32.cont [15/16] %v447, 128
    %8157 = vxpose.xlu0.b32.end [16/16] %v448, 128
    %v8158 = vpop.trf.xlu0
    %v8159 = vpop.trf.xlu0
    %v8160 = vpop.trf.xlu0
    %v8161 = vpop.trf.xlu0
    %v8162 = vpop.trf.xlu0
    %v8163 = vpop.trf.xlu0
    %v8164 = vpop.trf.xlu0
    %v8165 = vpop.trf.xlu0
    %v8166 = vpop.trf.xlu0
    %v8167 = vpop.trf.xlu0
    %v8168 = vpop.trf.xlu0
    %v8169 = vpop.trf.xlu0
    %v8170 = vpop.trf.xlu0
    %v8171 = vpop.trf.xlu0
    %v8172 = vpop.trf.xlu0
    %v8173 = vpop.trf.xlu0
    %8174 = vxpose.xlu0.b32.start [1/16] %v449, 128
    %8175 = vxpose.xlu0.b32.cont [2/16] %v450, 128
    %8176 = vxpose.xlu0.b32.cont [3/16] %v451, 128
    %8177 = vxpose.xlu0.b32.cont [4/16] %v452, 128
    %8178 = vxpose.xlu0.b32.cont [5/16] %v453, 128
    %8179 = vxpose.xlu0.b32.cont [6/16] %v454, 128
    %8180 = vxpose.xlu0.b32.cont [7/16] %v455, 128
    %8181 = vxpose.xlu0.b32.cont [8/16] %v456, 128
    %8182 = vxpose.xlu0.b32.cont [9/16] %v457, 128
    %8183 = vxpose.xlu0.b32.cont [10/16] %v458, 128
    %8184 = vxpose.xlu0.b32.cont [11/16] %v459, 128
    %8185 = vxpose.xlu0.b32.cont [12/16] %v460, 128
    %8186 = vxpose.xlu0.b32.cont [13/16] %v461, 128
    %8187 = vxpose.xlu0.b32.cont [14/16] %v462, 128
    %8188 = vxpose.xlu0.b32.cont [15/16] %v463, 128
    %8189 = vxpose.xlu0.b32.end [16/16] %v464, 128
    %v8190 = vpop.trf.xlu0
    %v8191 = vpop.trf.xlu0
    %v8192 = vpop.trf.xlu0
    %v8193 = vpop.trf.xlu0
    %v8194 = vpop.trf.xlu0
    %v8195 = vpop.trf.xlu0
    %v8196 = vpop.trf.xlu0
    %v8197 = vpop.trf.xlu0
    %v8198 = vpop.trf.xlu0
    %v8199 = vpop.trf.xlu0
    %v8200 = vpop.trf.xlu0
    %v8201 = vpop.trf.xlu0
    %v8202 = vpop.trf.xlu0
    %v8203 = vpop.trf.xlu0
    %v8204 = vpop.trf.xlu0
    %v8205 = vpop.trf.xlu0
    %8206 = vxpose.xlu0.b32.start [1/16] %v465, 128
    %8207 = vxpose.xlu0.b32.cont [2/16] %v466, 128
    %8208 = vxpose.xlu0.b32.cont [3/16] %v467, 128
    %8209 = vxpose.xlu0.b32.cont [4/16] %v468, 128
    %8210 = vxpose.xlu0.b32.cont [5/16] %v469, 128
    %8211 = vxpose.xlu0.b32.cont [6/16] %v470, 128
    %8212 = vxpose.xlu0.b32.cont [7/16] %v471, 128
    %8213 = vxpose.xlu0.b32.cont [8/16] %v472, 128
    %8214 = vxpose.xlu0.b32.cont [9/16] %v473, 128
    %8215 = vxpose.xlu0.b32.cont [10/16] %v474, 128
    %8216 = vxpose.xlu0.b32.cont [11/16] %v475, 128
    %8217 = vxpose.xlu0.b32.cont [12/16] %v476, 128
    %8218 = vxpose.xlu0.b32.cont [13/16] %v477, 128
    %8219 = vxpose.xlu0.b32.cont [14/16] %v478, 128
    %8220 = vxpose.xlu0.b32.cont [15/16] %v479, 128
    %8221 = vxpose.xlu0.b32.end [16/16] %v480, 128
    %v8222 = vpop.trf.xlu0
    %v8223 = vpop.trf.xlu0
    %v8224 = vpop.trf.xlu0
    %v8225 = vpop.trf.xlu0
    %v8226 = vpop.trf.xlu0
    %v8227 = vpop.trf.xlu0
    %v8228 = vpop.trf.xlu0
    %v8229 = vpop.trf.xlu0
    %v8230 = vpop.trf.xlu0
    %v8231 = vpop.trf.xlu0
    %v8232 = vpop.trf.xlu0
    %v8233 = vpop.trf.xlu0
    %v8234 = vpop.trf.xlu0
    %v8235 = vpop.trf.xlu0
    %v8236 = vpop.trf.xlu0
    %v8237 = vpop.trf.xlu0
    %8238 = vxpose.xlu0.b32.start [1/16] %v481, 128
    %8239 = vxpose.xlu0.b32.cont [2/16] %v482, 128
    %8240 = vxpose.xlu0.b32.cont [3/16] %v483, 128
    %8241 = vxpose.xlu0.b32.cont [4/16] %v484, 128
    %8242 = vxpose.xlu0.b32.cont [5/16] %v485, 128
    %8243 = vxpose.xlu0.b32.cont [6/16] %v486, 128
    %8244 = vxpose.xlu0.b32.cont [7/16] %v487, 128
    %8245 = vxpose.xlu0.b32.cont [8/16] %v488, 128
    %8246 = vxpose.xlu0.b32.cont [9/16] %v489, 128
    %8247 = vxpose.xlu0.b32.cont [10/16] %v490, 128
    %8248 = vxpose.xlu0.b32.cont [11/16] %v491, 128
    %8249 = vxpose.xlu0.b32.cont [12/16] %v492, 128
    %8250 = vxpose.xlu0.b32.cont [13/16] %v493, 128
    %8251 = vxpose.xlu0.b32.cont [14/16] %v494, 128
    %8252 = vxpose.xlu0.b32.cont [15/16] %v495, 128
    %8253 = vxpose.xlu0.b32.end [16/16] %v496, 128
    %v8254 = vpop.trf.xlu0
    %v8255 = vpop.trf.xlu0
    %v8256 = vpop.trf.xlu0
    %v8257 = vpop.trf.xlu0
    %v8258 = vpop.trf.xlu0
    %v8259 = vpop.trf.xlu0
    %v8260 = vpop.trf.xlu0
    %v8261 = vpop.trf.xlu0
    %v8262 = vpop.trf.xlu0
    %v8263 = vpop.trf.xlu0
    %v8264 = vpop.trf.xlu0
    %v8265 = vpop.trf.xlu0
    %v8266 = vpop.trf.xlu0
    %v8267 = vpop.trf.xlu0
    %v8268 = vpop.trf.xlu0
    %v8269 = vpop.trf.xlu0
    %8270 = vxpose.xlu0.b32.start [1/16] %v497, 128
    %8271 = vxpose.xlu0.b32.cont [2/16] %v498, 128
    %8272 = vxpose.xlu0.b32.cont [3/16] %v499, 128
    %8273 = vxpose.xlu0.b32.cont [4/16] %v500, 128
    %8274 = vxpose.xlu0.b32.cont [5/16] %v501, 128
    %8275 = vxpose.xlu0.b32.cont [6/16] %v502, 128
    %8276 = vxpose.xlu0.b32.cont [7/16] %v503, 128
    %8277 = vxpose.xlu0.b32.cont [8/16] %v504, 128
    %8278 = vxpose.xlu0.b32.cont [9/16] %v505, 128
    %8279 = vxpose.xlu0.b32.cont [10/16] %v506, 128
    %8280 = vxpose.xlu0.b32.cont [11/16] %v507, 128
    %8281 = vxpose.xlu0.b32.cont [12/16] %v508, 128
    %8282 = vxpose.xlu0.b32.cont [13/16] %v509, 128
    %8283 = vxpose.xlu0.b32.cont [14/16] %v510, 128
    %8284 = vxpose.xlu0.b32.cont [15/16] %v511, 128
    %8285 = vxpose.xlu0.b32.end [16/16] %v512, 128
    %v8286 = vpop.trf.xlu0
    %v8287 = vpop.trf.xlu0
    %v8288 = vpop.trf.xlu0
    %v8289 = vpop.trf.xlu0
    %v8290 = vpop.trf.xlu0
    %v8291 = vpop.trf.xlu0
    %v8292 = vpop.trf.xlu0
    %v8293 = vpop.trf.xlu0
    %v8294 = vpop.trf.xlu0
    %v8295 = vpop.trf.xlu0
    %v8296 = vpop.trf.xlu0
    %v8297 = vpop.trf.xlu0
    %v8298 = vpop.trf.xlu0
    %v8299 = vpop.trf.xlu0
    %v8300 = vpop.trf.xlu0
    %v8301 = vpop.trf.xlu0
    %8302 = vxpose.xlu0.b32.start [1/16] %v513, 128
    %8303 = vxpose.xlu0.b32.cont [2/16] %v514, 128
    %8304 = vxpose.xlu0.b32.cont [3/16] %v515, 128
    %8305 = vxpose.xlu0.b32.cont [4/16] %v516, 128
    %8306 = vxpose.xlu0.b32.cont [5/16] %v517, 128
    %8307 = vxpose.xlu0.b32.cont [6/16] %v518, 128
    %8308 = vxpose.xlu0.b32.cont [7/16] %v519, 128
    %8309 = vxpose.xlu0.b32.cont [8/16] %v520, 128
    %8310 = vxpose.xlu0.b32.cont [9/16] %v521, 128
    %8311 = vxpose.xlu0.b32.cont [10/16] %v522, 128
    %8312 = vxpose.xlu0.b32.cont [11/16] %v523, 128
    %8313 = vxpose.xlu0.b32.cont [12/16] %v524, 128
    %8314 = vxpose.xlu0.b32.cont [13/16] %v525, 128
    %8315 = vxpose.xlu0.b32.cont [14/16] %v526, 128
    %8316 = vxpose.xlu0.b32.cont [15/16] %v527, 128
    %8317 = vxpose.xlu0.b32.end [16/16] %v528, 128
    %v8318 = vpop.trf.xlu0
    %v8319 = vpop.trf.xlu0
    %v8320 = vpop.trf.xlu0
    %v8321 = vpop.trf.xlu0
    %v8322 = vpop.trf.xlu0
    %v8323 = vpop.trf.xlu0
    %v8324 = vpop.trf.xlu0
    %v8325 = vpop.trf.xlu0
    %v8326 = vpop.trf.xlu0
    %v8327 = vpop.trf.xlu0
    %v8328 = vpop.trf.xlu0
    %v8329 = vpop.trf.xlu0
    %v8330 = vpop.trf.xlu0
    %v8331 = vpop.trf.xlu0
    %v8332 = vpop.trf.xlu0
    %v8333 = vpop.trf.xlu0
    %8334 = vxpose.xlu0.b32.start [1/16] %v529, 128
    %8335 = vxpose.xlu0.b32.cont [2/16] %v530, 128
    %8336 = vxpose.xlu0.b32.cont [3/16] %v531, 128
    %8337 = vxpose.xlu0.b32.cont [4/16] %v532, 128
    %8338 = vxpose.xlu0.b32.cont [5/16] %v533, 128
    %8339 = vxpose.xlu0.b32.cont [6/16] %v534, 128
    %8340 = vxpose.xlu0.b32.cont [7/16] %v535, 128
    %8341 = vxpose.xlu0.b32.cont [8/16] %v536, 128
    %8342 = vxpose.xlu0.b32.cont [9/16] %v537, 128
    %8343 = vxpose.xlu0.b32.cont [10/16] %v538, 128
    %8344 = vxpose.xlu0.b32.cont [11/16] %v539, 128
    %8345 = vxpose.xlu0.b32.cont [12/16] %v540, 128
    %8346 = vxpose.xlu0.b32.cont [13/16] %v541, 128
    %8347 = vxpose.xlu0.b32.cont [14/16] %v542, 128
    %8348 = vxpose.xlu0.b32.cont [15/16] %v543, 128
    %8349 = vxpose.xlu0.b32.end [16/16] %v544, 128
    %v8350 = vpop.trf.xlu0
    %v8351 = vpop.trf.xlu0
    %v8352 = vpop.trf.xlu0
    %v8353 = vpop.trf.xlu0
    %v8354 = vpop.trf.xlu0
    %v8355 = vpop.trf.xlu0
    %v8356 = vpop.trf.xlu0
    %v8357 = vpop.trf.xlu0
    %v8358 = vpop.trf.xlu0
    %v8359 = vpop.trf.xlu0
    %v8360 = vpop.trf.xlu0
    %v8361 = vpop.trf.xlu0
    %v8362 = vpop.trf.xlu0
    %v8363 = vpop.trf.xlu0
    %v8364 = vpop.trf.xlu0
    %v8365 = vpop.trf.xlu0
    %8366 = vxpose.xlu0.b32.start [1/16] %v545, 128
    %8367 = vxpose.xlu0.b32.cont [2/16] %v546, 128
    %8368 = vxpose.xlu0.b32.cont [3/16] %v547, 128
    %8369 = vxpose.xlu0.b32.cont [4/16] %v548, 128
    %8370 = vxpose.xlu0.b32.cont [5/16] %v549, 128
    %8371 = vxpose.xlu0.b32.cont [6/16] %v550, 128
    %8372 = vxpose.xlu0.b32.cont [7/16] %v551, 128
    %8373 = vxpose.xlu0.b32.cont [8/16] %v552, 128
    %8374 = vxpose.xlu0.b32.cont [9/16] %v553, 128
    %8375 = vxpose.xlu0.b32.cont [10/16] %v554, 128
    %8376 = vxpose.xlu0.b32.cont [11/16] %v555, 128
    %8377 = vxpose.xlu0.b32.cont [12/16] %v556, 128
    %8378 = vxpose.xlu0.b32.cont [13/16] %v557, 128
    %8379 = vxpose.xlu0.b32.cont [14/16] %v558, 128
    %8380 = vxpose.xlu0.b32.cont [15/16] %v559, 128
    %8381 = vxpose.xlu0.b32.end [16/16] %v560, 128
    %v8382 = vpop.trf.xlu0
    %v8383 = vpop.trf.xlu0
    %v8384 = vpop.trf.xlu0
    %v8385 = vpop.trf.xlu0
    %v8386 = vpop.trf.xlu0
    %v8387 = vpop.trf.xlu0
    %v8388 = vpop.trf.xlu0
    %v8389 = vpop.trf.xlu0
    %v8390 = vpop.trf.xlu0
    %v8391 = vpop.trf.xlu0
    %v8392 = vpop.trf.xlu0
    %v8393 = vpop.trf.xlu0
    %v8394 = vpop.trf.xlu0
    %v8395 = vpop.trf.xlu0
    %v8396 = vpop.trf.xlu0
    %v8397 = vpop.trf.xlu0
    %8398 = vmatprep.subr.mxu0 0.0
    %8399 = vmatpush1.msra.mxu0 %v5246
    %8400 = vmatprep.subr.mxu0 0.0
    %8401 = vmatpush1.msra.mxu0 %v5247
    %8402 = vmatprep.subr.mxu0 0.0
    %8403 = vmatpush1.msra.mxu0 %v5248
    %8404 = vmatprep.subr.mxu0 0.0
    %8405 = vmatpush1.msra.mxu0 %v5249
    %8406 = vmatprep.subr.mxu0 0.0
    %8407 = vmatpush1.msra.mxu0 %v5250
    %8408 = vmatprep.subr.mxu0 0.0
    %8409 = vmatpush1.msra.mxu0 %v5251
    %8410 = vmatprep.subr.mxu0 0.0
    %8411 = vmatpush1.msra.mxu0 %v5252
    %8412 = vmatprep.subr.mxu0 0.0
    %8413 = vmatpush1.msra.mxu0 %v5253
    %8414 = vmatprep.subr.mxu0 0.0
    %8415 = vmatpush1.msra.mxu0 %v5254
    %8416 = vmatprep.subr.mxu0 0.0
    %8417 = vmatpush1.msra.mxu0 %v5255
    %8418 = vmatprep.subr.mxu0 0.0
    %8419 = vmatpush1.msra.mxu0 %v5256
    %8420 = vmatprep.subr.mxu0 0.0
    %8421 = vmatpush1.msra.mxu0 %v5257
    %8422 = vmatprep.subr.mxu0 0.0
    %8423 = vmatpush1.msra.mxu0 %v5258
    %8424 = vmatprep.subr.mxu0 0.0
    %8425 = vmatpush1.msra.mxu0 %v5259
    %8426 = vmatprep.subr.mxu0 0.0
    %8427 = vmatpush1.msra.mxu0 %v5260
    %8428 = vmatprep.subr.mxu0 0.0
    %8429 = vmatpush1.msra.mxu0 %v5261
    %8430 = vmatprep.subr.mxu0 0.0
    %8431 = vmatpush1.msra.mxu0 %v5262
    %8432 = vmatprep.subr.mxu0 0.0
    %8433 = vmatpush1.msra.mxu0 %v5263
    %8434 = vmatprep.subr.mxu0 0.0
    %8435 = vmatpush1.msra.mxu0 %v5264
    %8436 = vmatprep.subr.mxu0 0.0
    %8437 = vmatpush1.msra.mxu0 %v5265
    %8438 = vmatprep.subr.mxu0 0.0
    %8439 = vmatpush1.msra.mxu0 %v5266
    %8440 = vmatprep.subr.mxu0 0.0
    %8441 = vmatpush1.msra.mxu0 %v5267
    %8442 = vmatprep.subr.mxu0 0.0
    %8443 = vmatpush1.msra.mxu0 %v5268
    %8444 = vmatprep.subr.mxu0 0.0
    %8445 = vmatpush1.msra.mxu0 %v5269
    %8446 = vmatprep.subr.mxu0 0.0
    %8447 = vmatpush1.msra.mxu0 %v5270
    %8448 = vmatprep.subr.mxu0 0.0
    %8449 = vmatpush1.msra.mxu0 %v5271
    %8450 = vmatprep.subr.mxu0 0.0
    %8451 = vmatpush1.msra.mxu0 %v5272
    %8452 = vmatprep.subr.mxu0 0.0
    %8453 = vmatpush1.msra.mxu0 %v5273
    %8454 = vmatprep.subr.mxu0 0.0
    %8455 = vmatpush1.msra.mxu0 %v5274
    %8456 = vmatprep.subr.mxu0 0.0
    %8457 = vmatpush1.msra.mxu0 %v5275
    %8458 = vmatprep.subr.mxu0 0.0
    %8459 = vmatpush1.msra.mxu0 %v5276
    %8460 = vmatprep.subr.mxu0 0.0
    %8461 = vmatpush1.msra.mxu0 %v5277
    %8462 = vmatprep.mubr.f32.mxu0 %v7934
    %8463 = vmatmul.mubr.f32.gmra.mrb[0].mxu0 %v7902
    %v8464 = vpop.f32.mrb[0].mxu0
    %v8465 = vadd.f32 0.0, %v8464
    %v8466 = vpop.f32.mrb[0].mxu0
    %8467 = vmatprep.mubr.f32.mxu0 %v7935
    %8468 = vmatmul.mubr.f32.gmra.mrb[0].mxu0 %v7903
    %v8469 = vpop.f32.mrb[0].mxu0
    %v8470 = vadd.f32 0.0, %v8469
    %v8471 = vpop.f32.mrb[0].mxu0
    %8472 = vmatprep.mubr.f32.mxu0 %v7936
    %8473 = vmatmul.mubr.f32.gmra.mrb[0].mxu0 %v7904
    %v8474 = vpop.f32.mrb[0].mxu0
    %v8475 = vadd.f32 0.0, %v8474
    %v8476 = vpop.f32.mrb[0].mxu0
    %8477 = vdwg.mxu0
    %8478 = vmatprep.subr.mxu0 0.0
    %8479 = vmatpush1.msra.mxu0 %v5278
    %8480 = vmatprep.subr.mxu0 0.0
    %8481 = vmatpush1.msra.mxu0 %v5279
    %8482 = vmatprep.subr.mxu0 0.0
    %8483 = vmatpush1.msra.mxu0 %v5280
    %8484 = vmatprep.subr.mxu0 0.0
    %8485 = vmatpush1.msra.mxu0 %v5281
    %8486 = vmatprep.subr.mxu0 0.0
    %8487 = vmatpush1.msra.mxu0 %v5282
    %8488 = vmatprep.subr.mxu0 0.0
    %8489 = vmatpush1.msra.mxu0 %v5283
    %8490 = vmatprep.subr.mxu0 0.0
    %8491 = vmatpush1.msra.mxu0 %v5284
    %8492 = vmatprep.subr.mxu0 0.0
    %8493 = vmatpush1.msra.mxu0 %v5285
    %8494 = vmatprep.subr.mxu0 0.0
    %8495 = vmatpush1.msra.mxu0 %v5286
    %8496 = vmatprep.subr.mxu0 0.0
    %8497 = vmatpush1.msra.mxu0 %v5287
    %8498 = vmatprep.subr.mxu0 0.0
    %8499 = vmatpush1.msra.mxu0 %v5288
    %8500 = vmatprep.subr.mxu0 0.0
    %8501 = vmatpush1.msra.mxu0 %v5289
    %8502 = vmatprep.subr.mxu0 0.0
    %8503 = vmatpush1.msra.mxu0 %v5290
    %8504 = vmatprep.subr.mxu0 0.0
    %8505 = vmatpush1.msra.mxu0 %v5291
    %8506 = vmatprep.subr.mxu0 0.0
    %8507 = vmatpush1.msra.mxu0 %v5292
    %8508 = vmatprep.subr.mxu0 0.0
    %8509 = vmatpush1.msra.mxu0 %v5293
    %8510 = vmatprep.subr.mxu0 0.0
    %8511 = vmatpush1.msra.mxu0 %v5294
    %8512 = vmatprep.subr.mxu0 0.0
    %8513 = vmatpush1.msra.mxu0 %v5295
    %8514 = vmatprep.subr.mxu0 0.0
    %8515 = vmatpush1.msra.mxu0 %v5296
    %8516 = vmatprep.subr.mxu0 0.0
    %8517 = vmatpush1.msra.mxu0 %v5297
    %8518 = vmatprep.subr.mxu0 0.0
    %8519 = vmatpush1.msra.mxu0 %v5298
    %8520 = vmatprep.subr.mxu0 0.0
    %8521 = vmatpush1.msra.mxu0 %v5299
    %8522 = vmatprep.subr.mxu0 0.0
    %8523 = vmatpush1.msra.mxu0 %v5300
    %8524 = vmatprep.subr.mxu0 0.0
    %8525 = vmatpush1.msra.mxu0 %v5301
    %8526 = vmatprep.subr.mxu0 0.0
    %8527 = vmatpush1.msra.mxu0 %v5302
    %8528 = vmatprep.subr.mxu0 0.0
    %8529 = vmatpush1.msra.mxu0 %v5303
    %8530 = vmatprep.subr.mxu0 0.0
    %8531 = vmatpush1.msra.mxu0 %v5304
    %8532 = vmatprep.subr.mxu0 0.0
    %8533 = vmatpush1.msra.mxu0 %v5305
    %8534 = vmatprep.subr.mxu0 0.0
    %8535 = vmatpush1.msra.mxu0 %v5306
    %8536 = vmatprep.subr.mxu0 0.0
    %8537 = vmatpush1.msra.mxu0 %v5307
    %8538 = vmatprep.subr.mxu0 0.0
    %8539 = vmatpush1.msra.mxu0 %v5308
    %8540 = vmatprep.subr.mxu0 0.0
    %8541 = vmatpush1.msra.mxu0 %v5309
    %8542 = vmatprep.mubr.f32.mxu0 %v7998
    %8543 = vmatmul.mubr.f32.gmra.mrb[0].mxu0 %v7966
    %v8544 = vpop.f32.mrb[0].mxu0
    %v8545 = vadd.f32 %v8465, %v8544
    %v8546 = vpop.f32.mrb[0].mxu0
    %8547 = vmatprep.mubr.f32.mxu0 %v7999
    %8548 = vmatmul.mubr.f32.gmra.mrb[0].mxu0 %v7967
    %v8549 = vpop.f32.mrb[0].mxu0
    %v8550 = vadd.f32 %v8470, %v8549
    %v8551 = vpop.f32.mrb[0].mxu0
    %8552 = vmatprep.mubr.f32.mxu0 %v8000
    %8553 = vmatmul.mubr.f32.gmra.mrb[0].mxu0 %v7968
    %v8554 = vpop.f32.mrb[0].mxu0
    %v8555 = vadd.f32 %v8475, %v8554
    %v8556 = vpop.f32.mrb[0].mxu0
    %8557 = vdwg.mxu0
    %8558 = vmatprep.subr.mxu0 0.0
    %8559 = vmatpush1.msra.mxu0 %v5310
    %8560 = vmatprep.subr.mxu0 0.0
    %8561 = vmatpush1.msra.mxu0 %v5311
    %8562 = vmatprep.subr.mxu0 0.0
    %8563 = vmatpush1.msra.mxu0 %v5312
    %8564 = vmatprep.subr.mxu0 0.0
    %8565 = vmatpush1.msra.mxu0 %v5313
    %8566 = vmatprep.subr.mxu0 0.0
    %8567 = vmatpush1.msra.mxu0 %v5314
    %8568 = vmatprep.subr.mxu0 0.0
    %8569 = vmatpush1.msra.mxu0 %v5315
    %8570 = vmatprep.subr.mxu0 0.0
    %8571 = vmatpush1.msra.mxu0 %v5316
    %8572 = vmatprep.subr.mxu0 0.0
    %8573 = vmatpush1.msra.mxu0 %v5317
    %8574 = vmatprep.subr.mxu0 0.0
    %8575 = vmatpush1.msra.mxu0 %v5318
    %8576 = vmatprep.subr.mxu0 0.0
    %8577 = vmatpush1.msra.mxu0 %v5319
    %8578 = vmatprep.subr.mxu0 0.0
    %8579 = vmatpush1.msra.mxu0 %v5320
    %8580 = vmatprep.subr.mxu0 0.0
    %8581 = vmatpush1.msra.mxu0 %v5321
    %8582 = vmatprep.subr.mxu0 0.0
    %8583 = vmatpush1.msra.mxu0 %v5322
    %8584 = vmatprep.subr.mxu0 0.0
    %8585 = vmatpush1.msra.mxu0 %v5323
    %8586 = vmatprep.subr.mxu0 0.0
    %8587 = vmatpush1.msra.mxu0 %v5324
    %8588 = vmatprep.subr.mxu0 0.0
    %8589 = vmatpush1.msra.mxu0 %v5325
    %8590 = vmatprep.subr.mxu0 0.0
    %8591 = vmatpush1.msra.mxu0 %v5326
    %8592 = vmatprep.subr.mxu0 0.0
    %8593 = vmatpush1.msra.mxu0 %v5327
    %8594 = vmatprep.subr.mxu0 0.0
    %8595 = vmatpush1.msra.mxu0 %v5328
    %8596 = vmatprep.subr.mxu0 0.0
    %8597 = vmatpush1.msra.mxu0 %v5329
    %8598 = vmatprep.subr.mxu0 0.0
    %8599 = vmatpush1.msra.mxu0 %v5330
    %8600 = vmatprep.subr.mxu0 0.0
    %8601 = vmatpush1.msra.mxu0 %v5331
    %8602 = vmatprep.subr.mxu0 0.0
    %8603 = vmatpush1.msra.mxu0 %v5332
    %8604 = vmatprep.subr.mxu0 0.0
    %8605 = vmatpush1.msra.mxu0 %v5333
    %8606 = vmatprep.subr.mxu0 0.0
    %8607 = vmatpush1.msra.mxu0 %v5334
    %8608 = vmatprep.subr.mxu0 0.0
    %8609 = vmatpush1.msra.mxu0 %v5335
    %8610 = vmatprep.subr.mxu0 0.0
    %8611 = vmatpush1.msra.mxu0 %v5336
    %8612 = vmatprep.subr.mxu0 0.0
    %8613 = vmatpush1.msra.mxu0 %v5337
    %8614 = vmatprep.subr.mxu0 0.0
    %8615 = vmatpush1.msra.mxu0 %v5338
    %8616 = vmatprep.subr.mxu0 0.0
    %8617 = vmatpush1.msra.mxu0 %v5339
    %8618 = vmatprep.subr.mxu0 0.0
    %8619 = vmatpush1.msra.mxu0 %v5340
    %8620 = vmatprep.subr.mxu0 0.0
    %8621 = vmatpush1.msra.mxu0 %v5341
    %8622 = vmatprep.mubr.f32.mxu0 %v8062
    %8623 = vmatmul.mubr.f32.gmra.mrb[0].mxu0 %v8030
    %v8624 = vpop.f32.mrb[0].mxu0
    %v8625 = vadd.f32 %v8545, %v8624
    %v8626 = vpop.f32.mrb[0].mxu0
    %8627 = vmatprep.mubr.f32.mxu0 %v8063
    %8628 = vmatmul.mubr.f32.gmra.mrb[0].mxu0 %v8031
    %v8629 = vpop.f32.mrb[0].mxu0
    %v8630 = vadd.f32 %v8550, %v8629
    %v8631 = vpop.f32.mrb[0].mxu0
    %8632 = vmatprep.mubr.f32.mxu0 %v8064
    %8633 = vmatmul.mubr.f32.gmra.mrb[0].mxu0 %v8032
    %v8634 = vpop.f32.mrb[0].mxu0
    %v8635 = vadd.f32 %v8555, %v8634
    %v8636 = vpop.f32.mrb[0].mxu0
    %8637 = vdwg.mxu0
    %8638 = vmatprep.subr.mxu0 0.0
    %8639 = vmatpush1.msra.mxu0 %v5342
    %8640 = vmatprep.subr.mxu0 0.0
    %8641 = vmatpush1.msra.mxu0 %v5343
    %8642 = vmatprep.subr.mxu0 0.0
    %8643 = vmatpush1.msra.mxu0 %v5344
    %8644 = vmatprep.subr.mxu0 0.0
    %8645 = vmatpush1.msra.mxu0 %v5345
    %8646 = vmatprep.subr.mxu0 0.0
    %8647 = vmatpush1.msra.mxu0 %v5346
    %8648 = vmatprep.subr.mxu0 0.0
    %8649 = vmatpush1.msra.mxu0 %v5347
    %8650 = vmatprep.subr.mxu0 0.0
    %8651 = vmatpush1.msra.mxu0 %v5348
    %8652 = vmatprep.subr.mxu0 0.0
    %8653 = vmatpush1.msra.mxu0 %v5349
    %8654 = vmatprep.subr.mxu0 0.0
    %8655 = vmatpush1.msra.mxu0 %v5350
    %8656 = vmatprep.subr.mxu0 0.0
    %8657 = vmatpush1.msra.mxu0 %v5351
    %8658 = vmatprep.subr.mxu0 0.0
    %8659 = vmatpush1.msra.mxu0 %v5352
    %8660 = vmatprep.subr.mxu0 0.0
    %8661 = vmatpush1.msra.mxu0 %v5353
    %8662 = vmatprep.subr.mxu0 0.0
    %8663 = vmatpush1.msra.mxu0 %v5354
    %8664 = vmatprep.subr.mxu0 0.0
    %8665 = vmatpush1.msra.mxu0 %v5355
    %8666 = vmatprep.subr.mxu0 0.0
    %8667 = vmatpush1.msra.mxu0 %v5356
    %8668 = vmatprep.subr.mxu0 0.0
    %8669 = vmatpush1.msra.mxu0 %v5357
    %8670 = vmatprep.subr.mxu0 0.0
    %8671 = vmatpush1.msra.mxu0 %v5358
    %8672 = vmatprep.subr.mxu0 0.0
    %8673 = vmatpush1.msra.mxu0 %v5359
    %8674 = vmatprep.subr.mxu0 0.0
    %8675 = vmatpush1.msra.mxu0 %v5360
    %8676 = vmatprep.subr.mxu0 0.0
    %8677 = vmatpush1.msra.mxu0 %v5361
    %8678 = vmatprep.subr.mxu0 0.0
    %8679 = vmatpush1.msra.mxu0 %v5362
    %8680 = vmatprep.subr.mxu0 0.0
    %8681 = vmatpush1.msra.mxu0 %v5363
    %8682 = vmatprep.subr.mxu0 0.0
    %8683 = vmatpush1.msra.mxu0 %v5364
    %8684 = vmatprep.subr.mxu0 0.0
    %8685 = vmatpush1.msra.mxu0 %v5365
    %8686 = vmatprep.subr.mxu0 0.0
    %8687 = vmatpush1.msra.mxu0 %v5366
    %8688 = vmatprep.subr.mxu0 0.0
    %8689 = vmatpush1.msra.mxu0 %v5367
    %8690 = vmatprep.subr.mxu0 0.0
    %8691 = vmatpush1.msra.mxu0 %v5368
    %8692 = vmatprep.subr.mxu0 0.0
    %8693 = vmatpush1.msra.mxu0 %v5369
    %8694 = vmatprep.subr.mxu0 0.0
    %8695 = vmatpush1.msra.mxu0 %v5370
    %8696 = vmatprep.subr.mxu0 0.0
    %8697 = vmatpush1.msra.mxu0 %v5371
    %8698 = vmatprep.subr.mxu0 0.0
    %8699 = vmatpush1.msra.mxu0 %v5372
    %8700 = vmatprep.subr.mxu0 0.0
    %8701 = vmatpush1.msra.mxu0 %v5373
    %8702 = vmatprep.mubr.f32.mxu0 %v8126
    %8703 = vmatmul.mubr.f32.gmra.mrb[0].mxu0 %v8094
    %v8704 = vpop.f32.mrb[0].mxu0
    %v8705 = vadd.f32 %v8625, %v8704
    %v8706 = vpop.f32.mrb[0].mxu0
    %8707 = vmatprep.mubr.f32.mxu0 %v8127
    %8708 = vmatmul.mubr.f32.gmra.mrb[0].mxu0 %v8095
    %v8709 = vpop.f32.mrb[0].mxu0
    %v8710 = vadd.f32 %v8630, %v8709
    %v8711 = vpop.f32.mrb[0].mxu0
    %8712 = vmatprep.mubr.f32.mxu0 %v8128
    %8713 = vmatmul.mubr.f32.gmra.mrb[0].mxu0 %v8096
    %v8714 = vpop.f32.mrb[0].mxu0
    %v8715 = vadd.f32 %v8635, %v8714
    %v8716 = vpop.f32.mrb[0].mxu0
    %8717 = vdwg.mxu0
    %8718 = vmatprep.subr.mxu0 0.0
    %8719 = vmatpush1.msra.mxu0 %v5374
    %8720 = vmatprep.subr.mxu0 0.0
    %8721 = vmatpush1.msra.mxu0 %v5375
    %8722 = vmatprep.subr.mxu0 0.0
    %8723 = vmatpush1.msra.mxu0 %v5376
    %8724 = vmatprep.subr.mxu0 0.0
    %8725 = vmatpush1.msra.mxu0 %v5377
    %8726 = vmatprep.subr.mxu0 0.0
    %8727 = vmatpush1.msra.mxu0 %v5378
    %8728 = vmatprep.subr.mxu0 0.0
    %8729 = vmatpush1.msra.mxu0 %v5379
    %8730 = vmatprep.subr.mxu0 0.0
    %8731 = vmatpush1.msra.mxu0 %v5380
    %8732 = vmatprep.subr.mxu0 0.0
    %8733 = vmatpush1.msra.mxu0 %v5381
    %8734 = vmatprep.subr.mxu0 0.0
    %8735 = vmatpush1.msra.mxu0 %v5382
    %8736 = vmatprep.subr.mxu0 0.0
    %8737 = vmatpush1.msra.mxu0 %v5383
    %8738 = vmatprep.subr.mxu0 0.0
    %8739 = vmatpush1.msra.mxu0 %v5384
    %8740 = vmatprep.subr.mxu0 0.0
    %8741 = vmatpush1.msra.mxu0 %v5385
    %8742 = vmatprep.subr.mxu0 0.0
    %8743 = vmatpush1.msra.mxu0 %v5386
    %8744 = vmatprep.subr.mxu0 0.0
    %8745 = vmatpush1.msra.mxu0 %v5387
    %8746 = vmatprep.subr.mxu0 0.0
    %8747 = vmatpush1.msra.mxu0 %v5388
    %8748 = vmatprep.subr.mxu0 0.0
    %8749 = vmatpush1.msra.mxu0 %v5389
    %8750 = vmatprep.subr.mxu0 0.0
    %8751 = vmatpush1.msra.mxu0 %v5390
    %8752 = vmatprep.subr.mxu0 0.0
    %8753 = vmatpush1.msra.mxu0 %v5391
    %8754 = vmatprep.subr.mxu0 0.0
    %8755 = vmatpush1.msra.mxu0 %v5392
    %8756 = vmatprep.subr.mxu0 0.0
    %8757 = vmatpush1.msra.mxu0 %v5393
    %8758 = vmatprep.subr.mxu0 0.0
    %8759 = vmatpush1.msra.mxu0 %v5394
    %8760 = vmatprep.subr.mxu0 0.0
    %8761 = vmatpush1.msra.mxu0 %v5395
    %8762 = vmatprep.subr.mxu0 0.0
    %8763 = vmatpush1.msra.mxu0 %v5396
    %8764 = vmatprep.subr.mxu0 0.0
    %8765 = vmatpush1.msra.mxu0 %v5397
    %8766 = vmatprep.subr.mxu0 0.0
    %8767 = vmatpush1.msra.mxu0 %v5398
    %8768 = vmatprep.subr.mxu0 0.0
    %8769 = vmatpush1.msra.mxu0 %v5399
    %8770 = vmatprep.subr.mxu0 0.0
    %8771 = vmatpush1.msra.mxu0 %v5400
    %8772 = vmatprep.subr.mxu0 0.0
    %8773 = vmatpush1.msra.mxu0 %v5401
    %8774 = vmatprep.subr.mxu0 0.0
    %8775 = vmatpush1.msra.mxu0 %v5402
    %8776 = vmatprep.subr.mxu0 0.0
    %8777 = vmatpush1.msra.mxu0 %v5403
    %8778 = vmatprep.subr.mxu0 0.0
    %8779 = vmatpush1.msra.mxu0 %v5404
    %8780 = vmatprep.subr.mxu0 0.0
    %8781 = vmatpush1.msra.mxu0 %v5405
    %8782 = vmatprep.mubr.f32.mxu0 %v8190
    %8783 = vmatmul.mubr.f32.gmra.mrb[0].mxu0 %v8158
    %v8784 = vpop.f32.mrb[0].mxu0
    %v8785 = vadd.f32 %v8705, %v8784
    %v8786 = vpop.f32.mrb[0].mxu0
    %8787 = vmatprep.mubr.f32.mxu0 %v8191
    %8788 = vmatmul.mubr.f32.gmra.mrb[0].mxu0 %v8159
    %v8789 = vpop.f32.mrb[0].mxu0
    %v8790 = vadd.f32 %v8710, %v8789
    %v8791 = vpop.f32.mrb[0].mxu0
    %8792 = vmatprep.mubr.f32.mxu0 %v8192
    %8793 = vmatmul.mubr.f32.gmra.mrb[0].mxu0 %v8160
    %v8794 = vpop.f32.mrb[0].mxu0
    %v8795 = vadd.f32 %v8715, %v8794
    %v8796 = vpop.f32.mrb[0].mxu0
    %8797 = vdwg.mxu0
    %8798 = vmatprep.subr.mxu0 0.0
    %8799 = vmatpush1.msra.mxu0 %v5406
    %8800 = vmatprep.subr.mxu0 0.0
    %8801 = vmatpush1.msra.mxu0 %v5407
    %8802 = vmatprep.subr.mxu0 0.0
    %8803 = vmatpush1.msra.mxu0 %v5408
    %8804 = vmatprep.subr.mxu0 0.0
    %8805 = vmatpush1.msra.mxu0 %v5409
    %8806 = vmatprep.subr.mxu0 0.0
    %8807 = vmatpush1.msra.mxu0 %v5410
    %8808 = vmatprep.subr.mxu0 0.0
    %8809 = vmatpush1.msra.mxu0 %v5411
    %8810 = vmatprep.subr.mxu0 0.0
    %8811 = vmatpush1.msra.mxu0 %v5412
    %8812 = vmatprep.subr.mxu0 0.0
    %8813 = vmatpush1.msra.mxu0 %v5413
    %8814 = vmatprep.subr.mxu0 0.0
    %8815 = vmatpush1.msra.mxu0 %v5414
    %8816 = vmatprep.subr.mxu0 0.0
    %8817 = vmatpush1.msra.mxu0 %v5415
    %8818 = vmatprep.subr.mxu0 0.0
    %8819 = vmatpush1.msra.mxu0 %v5416
    %8820 = vmatprep.subr.mxu0 0.0
    %8821 = vmatpush1.msra.mxu0 %v5417
    %8822 = vmatprep.subr.mxu0 0.0
    %8823 = vmatpush1.msra.mxu0 %v5418
    %8824 = vmatprep.subr.mxu0 0.0
    %8825 = vmatpush1.msra.mxu0 %v5419
    %8826 = vmatprep.subr.mxu0 0.0
    %8827 = vmatpush1.msra.mxu0 %v5420
    %8828 = vmatprep.subr.mxu0 0.0
    %8829 = vmatpush1.msra.mxu0 %v5421
    %8830 = vmatprep.subr.mxu0 0.0
    %8831 = vmatpush1.msra.mxu0 %v5422
    %8832 = vmatprep.subr.mxu0 0.0
    %8833 = vmatpush1.msra.mxu0 %v5423
    %8834 = vmatprep.subr.mxu0 0.0
    %8835 = vmatpush1.msra.mxu0 %v5424
    %8836 = vmatprep.subr.mxu0 0.0
    %8837 = vmatpush1.msra.mxu0 %v5425
    %8838 = vmatprep.subr.mxu0 0.0
    %8839 = vmatpush1.msra.mxu0 %v5426
    %8840 = vmatprep.subr.mxu0 0.0
    %8841 = vmatpush1.msra.mxu0 %v5427
    %8842 = vmatprep.subr.mxu0 0.0
    %8843 = vmatpush1.msra.mxu0 %v5428
    %8844 = vmatprep.subr.mxu0 0.0
    %8845 = vmatpush1.msra.mxu0 %v5429
    %8846 = vmatprep.subr.mxu0 0.0
    %8847 = vmatpush1.msra.mxu0 %v5430
    %8848 = vmatprep.subr.mxu0 0.0
    %8849 = vmatpush1.msra.mxu0 %v5431
    %8850 = vmatprep.subr.mxu0 0.0
    %8851 = vmatpush1.msra.mxu0 %v5432
    %8852 = vmatprep.subr.mxu0 0.0
    %8853 = vmatpush1.msra.mxu0 %v5433
    %8854 = vmatprep.subr.mxu0 0.0
    %8855 = vmatpush1.msra.mxu0 %v5434
    %8856 = vmatprep.subr.mxu0 0.0
    %8857 = vmatpush1.msra.mxu0 %v5435
    %8858 = vmatprep.subr.mxu0 0.0
    %8859 = vmatpush1.msra.mxu0 %v5436
    %8860 = vmatprep.subr.mxu0 0.0
    %8861 = vmatpush1.msra.mxu0 %v5437
    %8862 = vmatprep.mubr.f32.mxu0 %v8254
    %8863 = vmatmul.mubr.f32.gmra.mrb[0].mxu0 %v8222
    %v8864 = vpop.f32.mrb[0].mxu0
    %v8865 = vadd.f32 %v8785, %v8864
    %v8866 = vpop.f32.mrb[0].mxu0
    %8867 = vmatprep.mubr.f32.mxu0 %v8255
    %8868 = vmatmul.mubr.f32.gmra.mrb[0].mxu0 %v8223
    %v8869 = vpop.f32.mrb[0].mxu0
    %v8870 = vadd.f32 %v8790, %v8869
    %v8871 = vpop.f32.mrb[0].mxu0
    %8872 = vmatprep.mubr.f32.mxu0 %v8256
    %8873 = vmatmul.mubr.f32.gmra.mrb[0].mxu0 %v8224
    %v8874 = vpop.f32.mrb[0].mxu0
    %v8875 = vadd.f32 %v8795, %v8874
    %v8876 = vpop.f32.mrb[0].mxu0
    %8877 = vdwg.mxu0
    %8878 = vmatprep.subr.mxu0 0.0
    %8879 = vmatpush1.msra.mxu0 %v5438
    %8880 = vmatprep.subr.mxu0 0.0
    %8881 = vmatpush1.msra.mxu0 %v5439
    %8882 = vmatprep.subr.mxu0 0.0
    %8883 = vmatpush1.msra.mxu0 %v5440
    %8884 = vmatprep.subr.mxu0 0.0
    %8885 = vmatpush1.msra.mxu0 %v5441
    %8886 = vmatprep.subr.mxu0 0.0
    %8887 = vmatpush1.msra.mxu0 %v5442
    %8888 = vmatprep.subr.mxu0 0.0
    %8889 = vmatpush1.msra.mxu0 %v5443
    %8890 = vmatprep.subr.mxu0 0.0
    %8891 = vmatpush1.msra.mxu0 %v5444
    %8892 = vmatprep.subr.mxu0 0.0
    %8893 = vmatpush1.msra.mxu0 %v5445
    %8894 = vmatprep.subr.mxu0 0.0
    %8895 = vmatpush1.msra.mxu0 %v5446
    %8896 = vmatprep.subr.mxu0 0.0
    %8897 = vmatpush1.msra.mxu0 %v5447
    %8898 = vmatprep.subr.mxu0 0.0
    %8899 = vmatpush1.msra.mxu0 %v5448
    %8900 = vmatprep.subr.mxu0 0.0
    %8901 = vmatpush1.msra.mxu0 %v5449
    %8902 = vmatprep.subr.mxu0 0.0
    %8903 = vmatpush1.msra.mxu0 %v5450
    %8904 = vmatprep.subr.mxu0 0.0
    %8905 = vmatpush1.msra.mxu0 %v5451
    %8906 = vmatprep.subr.mxu0 0.0
    %8907 = vmatpush1.msra.mxu0 %v5452
    %8908 = vmatprep.subr.mxu0 0.0
    %8909 = vmatpush1.msra.mxu0 %v5453
    %8910 = vmatprep.subr.mxu0 0.0
    %8911 = vmatpush1.msra.mxu0 %v5454
    %8912 = vmatprep.subr.mxu0 0.0
    %8913 = vmatpush1.msra.mxu0 %v5455
    %8914 = vmatprep.subr.mxu0 0.0
    %8915 = vmatpush1.msra.mxu0 %v5456
    %8916 = vmatprep.subr.mxu0 0.0
    %8917 = vmatpush1.msra.mxu0 %v5457
    %8918 = vmatprep.subr.mxu0 0.0
    %8919 = vmatpush1.msra.mxu0 %v5458
    %8920 = vmatprep.subr.mxu0 0.0
    %8921 = vmatpush1.msra.mxu0 %v5459
    %8922 = vmatprep.subr.mxu0 0.0
    %8923 = vmatpush1.msra.mxu0 %v5460
    %8924 = vmatprep.subr.mxu0 0.0
    %8925 = vmatpush1.msra.mxu0 %v5461
    %8926 = vmatprep.subr.mxu0 0.0
    %8927 = vmatpush1.msra.mxu0 %v5462
    %8928 = vmatprep.subr.mxu0 0.0
    %8929 = vmatpush1.msra.mxu0 %v5463
    %8930 = vmatprep.subr.mxu0 0.0
    %8931 = vmatpush1.msra.mxu0 %v5464
    %8932 = vmatprep.subr.mxu0 0.0
    %8933 = vmatpush1.msra.mxu0 %v5465
    %8934 = vmatprep.subr.mxu0 0.0
    %8935 = vmatpush1.msra.mxu0 %v5466
    %8936 = vmatprep.subr.mxu0 0.0
    %8937 = vmatpush1.msra.mxu0 %v5467
    %8938 = vmatprep.subr.mxu0 0.0
    %8939 = vmatpush1.msra.mxu0 %v5468
    %8940 = vmatprep.subr.mxu0 0.0
    %8941 = vmatpush1.msra.mxu0 %v5469
    %8942 = vmatprep.mubr.f32.mxu0 %v8318
    %8943 = vmatmul.mubr.f32.gmra.mrb[0].mxu0 %v8286
    %v8944 = vpop.f32.mrb[0].mxu0
    %v8945 = vadd.f32 %v8865, %v8944
    %v8946 = vpop.f32.mrb[0].mxu0
    %8947 = vmatprep.mubr.f32.mxu0 %v8319
    %8948 = vmatmul.mubr.f32.gmra.mrb[0].mxu0 %v8287
    %v8949 = vpop.f32.mrb[0].mxu0
    %v8950 = vadd.f32 %v8870, %v8949
    %v8951 = vpop.f32.mrb[0].mxu0
    %8952 = vmatprep.mubr.f32.mxu0 %v8320
    %8953 = vmatmul.mubr.f32.gmra.mrb[0].mxu0 %v8288
    %v8954 = vpop.f32.mrb[0].mxu0
    %v8955 = vadd.f32 %v8875, %v8954
    %v8956 = vpop.f32.mrb[0].mxu0
    %8957 = vdwg.mxu0
    %8958 = vmatprep.subr.mxu0 0.0
    %8959 = vmatpush1.msra.mxu0 %v5470
    %8960 = vmatprep.subr.mxu0 0.0
    %8961 = vmatpush1.msra.mxu0 %v5471
    %8962 = vmatprep.subr.mxu0 0.0
    %8963 = vmatpush1.msra.mxu0 %v5472
    %8964 = vmatprep.subr.mxu0 0.0
    %8965 = vmatpush1.msra.mxu0 %v5473
    %8966 = vmatprep.subr.mxu0 0.0
    %8967 = vmatpush1.msra.mxu0 %v5474
    %8968 = vmatprep.subr.mxu0 0.0
    %8969 = vmatpush1.msra.mxu0 %v5475
    %8970 = vmatprep.subr.mxu0 0.0
    %8971 = vmatpush1.msra.mxu0 %v5476
    %8972 = vmatprep.subr.mxu0 0.0
    %8973 = vmatpush1.msra.mxu0 %v5477
    %8974 = vmatprep.subr.mxu0 0.0
    %8975 = vmatpush1.msra.mxu0 %v5478
    %8976 = vmatprep.subr.mxu0 0.0
    %8977 = vmatpush1.msra.mxu0 %v5479
    %8978 = vmatprep.subr.mxu0 0.0
    %8979 = vmatpush1.msra.mxu0 %v5480
    %8980 = vmatprep.subr.mxu0 0.0
    %8981 = vmatpush1.msra.mxu0 %v5481
    %8982 = vmatprep.subr.mxu0 0.0
    %8983 = vmatpush1.msra.mxu0 %v5482
    %8984 = vmatprep.subr.mxu0 0.0
    %8985 = vmatpush1.msra.mxu0 %v5483
    %8986 = vmatprep.subr.mxu0 0.0
    %8987 = vmatpush1.msra.mxu0 %v5484
    %8988 = vmatprep.subr.mxu0 0.0
    %8989 = vmatpush1.msra.mxu0 %v5485
    %8990 = vmatprep.subr.mxu0 0.0
    %8991 = vmatpush1.msra.mxu0 %v5486
    %8992 = vmatprep.subr.mxu0 0.0
    %8993 = vmatpush1.msra.mxu0 %v5487
    %8994 = vmatprep.subr.mxu0 0.0
    %8995 = vmatpush1.msra.mxu0 %v5488
    %8996 = vmatprep.subr.mxu0 0.0
    %8997 = vmatpush1.msra.mxu0 %v5489
    %8998 = vmatprep.subr.mxu0 0.0
    %8999 = vmatpush1.msra.mxu0 %v5490
    %9000 = vmatprep.subr.mxu0 0.0
    %9001 = vmatpush1.msra.mxu0 %v5491
    %9002 = vmatprep.subr.mxu0 0.0
    %9003 = vmatpush1.msra.mxu0 %v5492
    %9004 = vmatprep.subr.mxu0 0.0
    %9005 = vmatpush1.msra.mxu0 %v5493
    %9006 = vmatprep.subr.mxu0 0.0
    %9007 = vmatpush1.msra.mxu0 %v5494
    %9008 = vmatprep.subr.mxu0 0.0
    %9009 = vmatpush1.msra.mxu0 %v5495
    %9010 = vmatprep.subr.mxu0 0.0
    %9011 = vmatpush1.msra.mxu0 %v5496
    %9012 = vmatprep.subr.mxu0 0.0
    %9013 = vmatpush1.msra.mxu0 %v5497
    %9014 = vmatprep.subr.mxu0 0.0
    %9015 = vmatpush1.msra.mxu0 %v5498
    %9016 = vmatprep.subr.mxu0 0.0
    %9017 = vmatpush1.msra.mxu0 %v5499
    %9018 = vmatprep.subr.mxu0 0.0
    %9019 = vmatpush1.msra.mxu0 %v5500
    %9020 = vmatprep.subr.mxu0 0.0
    %9021 = vmatpush1.msra.mxu0 %v5501
    %9022 = vmatprep.mubr.f32.mxu0 %v8382
    %9023 = vmatmul.mubr.f32.gmra.mrb[0].mxu0 %v8350
    %v9024 = vpop.f32.mrb[0].mxu0
    %v9025 = vadd.f32 %v8945, %v9024
    %v9026 = vpop.f32.mrb[0].mxu0
    %9027 = vmatprep.mubr.f32.mxu0 %v8383
    %9028 = vmatmul.mubr.f32.gmra.mrb[0].mxu0 %v8351
    %v9029 = vpop.f32.mrb[0].mxu0
    %v9030 = vadd.f32 %v8950, %v9029
    %v9031 = vpop.f32.mrb[0].mxu0
    %9032 = vmatprep.mubr.f32.mxu0 %v8384
    %9033 = vmatmul.mubr.f32.gmra.mrb[0].mxu0 %v8352
    %v9034 = vpop.f32.mrb[0].mxu0
    %v9035 = vadd.f32 %v8955, %v9034
    %v9036 = vpop.f32.mrb[0].mxu0
    %9037 = vdwg.mxu0
    %v9038 = vld [vmem:[%s4] sm:$0xff]
    %v9039 = vld [vmem:[%s4 + $0x8] sm:$0xff]
    %v9040 = vld [vmem:[%s4 + $0x10] sm:$0x1]
    %v9041 = vadd.f32 %v9038, %v9025
    %v9042 = vadd.f32 %v9039, %v9030
    %v9043 = vadd.f32 %v9040, %v9035
    %9044 = vst [vmem:[%s4] sm:$0xff] %v9041
    %9045 = vst [vmem:[%s4 + $0x8] sm:$0xff] %v9042
    %9046 = vst [vmem:[%s4 + $0x10] sm:$0x1] %v9043
    // Predicated region
    $region18: #{vq_reductions.1} parent=1 // pred_check
      _
    $region19: #{vq_reductions.1} parent=1 // pred_check_branch
      %9048 = sbr.rel (0) target = $region21
    $region20: #{vq_reductions.1} parent=1 // pred_region
      %s9050 = ssub.s32 16, 16
      %9051 = vsyncadd [#allocation3], %s9050
      %s9053 = sshll.u32 [#allocation2], 4
      %s9054 = int_to_ptr.vmem [resolvable:$true] %s9053
      %9056 = dma.vmem_to_hbm [thread:$0]  %s9054, 16, %s3, [#allocation3]
    $region21: #{vq_reductions.1} parent=1 // pred_fallthru
      _
    // Predicated region
    $region22: #{vq_reductions.1} parent=1 // pred_check
      _
    $region23: #{vq_reductions.1} parent=1 // pred_check_branch
      %9058 = sbr.rel (0) target = $region25
    $region24: #{vq_reductions.1} parent=1 // pred_region
      _
    $region25: #{vq_reductions.1} parent=1 // pred_fallthru
      _
    // Predicated region
    $region26: #{vq_reductions.1} parent=1 // pred_check
      _
    $region27: #{vq_reductions.1} parent=1 // pred_check_branch
      %9060 = sbr.rel (0) target = $region29
    $region28: #{vq_reductions.1} parent=1 // pred_region
      %9061 = dma.done [#allocation3], 16
    $region29: #{vq_reductions.1} parent=1 // pred_fallthru
      _
    // Predicated region
    $region30: #{vq_reductions.1} parent=1 // pred_check
      _
    $region31: #{vq_reductions.1} parent=1 // pred_check_branch
      %9063 = sbr.rel (0) target = $region33
    $region32: #{vq_reductions.1} parent=1 // pred_region
      _
    $region33: #{vq_reductions.1} parent=1 // pred_fallthru
      _
    %9064 = vsyncpa [#allocation3], 1

</llo_original>
